<compile_context>
chip_gen: v5e
topology: v5e:2x2
jax: 0.10.0
libtpu: 0.0.40
codegen_flags: <defaults>
</compile_context>

<pallas_src>
import math
import functools

import numpy as np
import jax
import jax.numpy as jnp
from jax.experimental import pallas as pl
from jax.experimental.pallas import tpu as pltpu

LANES = 128
_BN_EPS = 1e-5
COMPUTE_DTYPE = jnp.bfloat16        # MXU operand dtype; accumulation stays f32
_VMEM_LIMIT = 32 * 1024 * 1024      # explicit scoped-VMEM budget (fits all chip generations)


def _rup(x, m):
    return ((x + m - 1) // m) * m


def _pad2d(a, rows, cols):
    r, c = a.shape
    return jnp.pad(a, ((0, rows - r), (0, cols - c)))


# ----------------------------------------------------------------------------
# Kernel 1: pose backbone + head, BF frames per grid step
#   conv3x3-as-matmul -> bias -> ReLU -> GAP (MXU ones matmul) -> FC
#   (root-centering and the 1/HW GAP scale are folded into the FC weights)
# ----------------------------------------------------------------------------
def _pose_head_kernel(p_ref, cw_ref, cb_ref, ones_ref, fw_ref, fb_ref, o_ref, *, bf):
    cw = cw_ref[...]                       # (Kp, Fp) bf16, resident across frames
    cb = cb_ref[...]                       # (1, Fp)  f32
    ones = ones_ref[...]                   # (1, HW)  bf16 (pure ones; 1/HW folded into fcw)
    pooled_rows = []
    # Per-frame inner loop keeps the conv activation at (HW, Fp) so it stays in vregs
    # (no giant spilled intermediate) while the grid only has G steps.
    for f in range(bf):
        feat = jnp.dot(p_ref[f], cw, preferred_element_type=jnp.float32)       # (HW, Fp)
        feat = jnp.maximum(feat + cb, 0.0)
        pooled_rows.append(
            jnp.dot(ones, feat.astype(COMPUTE_DTYPE),
                    preferred_element_type=jnp.float32))                       # (1, Fp)
    pooled = jnp.concatenate(pooled_rows, axis=0)                              # (BF, Fp) f32
    # FC head; root-centering + 1/HW already folded into fw/fb at prepare time
    o_ref[...] = (jnp.dot(pooled.astype(COMPUTE_DTYPE), fw_ref[...],
                          preferred_element_type=jnp.float32) + fb_ref[...])   # (BF, Op)


def pose_backbone_head(patches, pp):
    """patches: (G, BF, HW, Kp) bf16.  Returns (G, BF, Cp) f32 (root-centered, zero-padded)."""
    G, BF, HW, Kp = patches.shape
    Fp = pp["cw"].shape[1]
    Op = pp["fcw"].shape[1]
    kern = functools.partial(_pose_head_kernel, bf=BF)
    return pl.pallas_call(
        kern,
        out_shape=jax.ShapeDtypeStruct((G, BF, Op), jnp.float32),
        grid=(G,),
        in_specs=[
            pl.BlockSpec((None, BF, HW, Kp), lambda g: (g, 0, 0, 0)),   # BF frames / step
            pl.BlockSpec((Kp, Fp), lambda g: (0, 0)),                   # conv weight (resident)
            pl.BlockSpec((1, Fp), lambda g: (0, 0)),                    # conv bias
            pl.BlockSpec((1, HW), lambda g: (0, 0)),                    # GAP ones row (precomputed)
            pl.BlockSpec((Fp, Op), lambda g: (0, 0)),                   # fc weight (folds applied)
            pl.BlockSpec((1, Op), lambda g: (0, 0)),                    # fc bias
        ],
        out_specs=pl.BlockSpec((None, BF, Op), lambda g: (g, 0, 0)),
        compiler_params=pltpu.CompilerParams(
            dimension_semantics=("parallel",),      # G == 2 -> one block per TensorCore on v7x
            vmem_limit_bytes=_VMEM_LIMIT),
    )(patches, pp["cw"], pp["cb"], pp["ones"], pp["fcw"], pp["fcb"])


def _im2col(x):
    # x: (N, C, H, W) -> (N, H*W, C*9); column index = c*9 + ky*3 + kx
    # TODO(synk): at realistic backbone resolutions do the im2col in-kernel (9 shifted-slice
    # matmuls on a pre-padded NHWC block) to avoid this 9x HBM expansion of the input.
    N, C, H, W = x.shape
    xp = jnp.pad(x, ((0, 0), (0, 0), (1, 1), (1, 1)))
    cols = [xp[:, :, dy:dy + H, dx:dx + W] for dy in range(3) for dx in range(3)]
    pat = jnp.stack(cols, axis=2)                                  # (N, C, 9, H, W)
    return pat.transpose(0, 3, 4, 1, 2).reshape(N, H * W, C * 9)


def _prep_pose_params(p, num_joints, Cp, hw):
    F, C = p["conv_w"].shape[0], p["conv_w"].shape[1]
    K = C * 9
    Kp = _rup(K, 8)                   # sublane-friendly contraction dim (27 -> 32)
    Fp = _rup(F, LANES)               # lane-dense feature width
    D = num_joints * 3

    cw = _pad2d(p["conv_w"].reshape(F, K).T, Kp, Fp).astype(COMPUTE_DTYPE)
    cb = _pad2d(p["conv_b"].reshape(1, F), 1, Fp)

    # fold root-centering (x - x[:, :, :1, :]) into the FC head (it is linear)
    cmat = np.eye(D, dtype=np.float32)
    for j in range(num_joints):
        for c in range(3):
            cmat[c, j * 3 + c] -= 1.0
    cmat = jnp.asarray(cmat)
    # fold the 1/HW GAP scale into the FC weight so the in-kernel GAP row is pure ones (bf16-exact)
    fcw = _pad2d((p["fc_w"].T @ cmat) * (1.0 / hw), Fp, Cp).astype(COMPUTE_DTYPE)
    fcb = _pad2d((p["fc_b"] @ cmat).reshape(1, D), 1, Cp)
    ones = jnp.ones((1, hw), COMPUTE_DTYPE)
    return dict(cw=cw, cb=cb, fcw=fcw, fcb=fcb, ones=ones)


# ----------------------------------------------------------------------------
# Kernel 2: fully-fused TemporalModelOptimized1f (expand + blocks + shrink),
#           one grid step per sequence, strided-slice tap reads from VMEM scratch
# ----------------------------------------------------------------------------
def _make_tcn_kernel(T1, Cp, filter_widths):
    fw0 = filter_widths[0]
    n_blocks = len(filter_widths) - 1

    def taps(h_ref, fw, T_next):
        # x[:, :, k::fw] of the current (single-sequence) activation: one strided sublane
        # read per tap instead of O(T) single-row slices + concat.
        out = []
        for k in range(fw):
            if T_next == 1:
                out.append(h_ref[pl.ds(k, 1), :])
            else:
                out.append(h_ref[pl.ds(k, T_next, stride=fw), :])
        return out

    def kernel(*refs):
        it = iter(refs)
        x_ref, we_ref, be_ref = next(it), next(it), next(it)
        blk = [(next(it), next(it), next(it), next(it)) for _ in range(n_blocks)]
        ws_ref, bs_ref, o_ref, h_ref = next(it), next(it), next(it), next(it)

        # expand_conv (stride fw0) as fw0 accumulated matmuls; eval BN folded into weights
        acc = jnp.dot(x_ref[0], we_ref[0], preferred_element_type=jnp.float32)
        for k in range(1, fw0):
            acc = acc + jnp.dot(x_ref[k], we_ref[k], preferred_element_type=jnp.float32)
        h = jnp.maximum(acc + be_ref[...], 0.0)                     # (T1, Cp) f32

        T_cur = T1
        for i in range(n_blocks):
            fw = filter_widths[i + 1]
            T_next = T_cur // fw
            wc_ref, bc_ref, w1_ref, b1_ref = blk[i]
            h_ref[pl.ds(0, T_cur), :] = h                           # stage for strided tap reads
            tap = taps(h_ref, fw, T_next)                           # fw x (T_next, Cp) f32
            res = tap[fw // 2]                                      # residual: x[:, :, fw//2::fw]
            acc = jnp.dot(tap[0].astype(COMPUTE_DTYPE), wc_ref[0],
                          preferred_element_type=jnp.float32)
            for k in range(1, fw):
                acc = acc + jnp.dot(tap[k].astype(COMPUTE_DTYPE), wc_ref[k],
                                    preferred_element_type=jnp.float32)
            ha = jnp.maximum(acc + bc_ref[...], 0.0)
            hb = jnp.maximum(
                jnp.dot(ha.astype(COMPUTE_DTYPE), w1_ref[...],
                        preferred_element_type=jnp.float32) + b1_ref[...], 0.0)
            h = res + hb
            T_cur = T_next

        # shrink (1x1 conv with bias, no BN / ReLU)
        o_ref[...] = (jnp.dot(h.astype(COMPUTE_DTYPE), ws_ref[...],
                              preferred_element_type=jnp.float32) + bs_ref[...])

    return kernel


def tcn_fused(x_taps, tp, *, T1, T_out, Cp, filter_widths):
    S = x_taps.shape[0]
    args = [x_taps, tp["we"], tp["be"]]
    for (wc, bc, w1, b1) in tp["blocks"]:
        args += [wc, bc, w1, b1]
    args += [tp["ws"], tp["bs"]]

    # TODO(synk): at real channel counts (e.g. 1024) add pipeline_mode=pl.Buffered(1) on these
    # constant-index weight specs or split per residual block so the fused TCN fits v7x's 64 MiB VMEM.
    in_specs = [pl.BlockSpec((None,) + x_taps.shape[1:], lambda s: (s, 0, 0, 0))]
    for a in args[1:]:
        in_specs.append(pl.BlockSpec(a.shape, lambda s, nd=a.ndim: (0,) * nd))

    return pl.pallas_call(
        _make_tcn_kernel(T1, Cp, filter_widths),
        out_shape=jax.ShapeDtypeStruct((S, T_out, Cp), jnp.float32),
        grid=(S,),
        in_specs=in_specs,
        out_specs=pl.BlockSpec((None, T_out, Cp), lambda s: (s, 0, 0)),
        scratch_shapes=[pltpu.VMEM((T1, Cp), jnp.float32)],
        compiler_params=pltpu.CompilerParams(
            dimension_semantics=("parallel",),      # sequences independent -> 2 TCs on v7x
            vmem_limit_bytes=_VMEM_LIMIT),
    )(*args)


def _prep_tcn_params(p, filter_widths, channels, D, Cp):
    def fold(w_conv, bn):
        # Conv1d weight (C_out, C_in, k) + eval-mode BatchNorm1d -> per-tap (Cp, Cp) matrices with
        # gamma/sqrt(var+eps) folded into output channels, plus bias = beta - mean*scale.
        gamma, beta, mean, var = bn
        scale = gamma / jnp.sqrt(var + _BN_EPS)
        shift = beta - mean * scale
        k = w_conv.shape[2]
        taps = jnp.stack(
            [_pad2d(w_conv[:, :, i].T * scale[None, :], Cp, Cp) for i in range(k)], axis=0)
        return taps.astype(COMPUTE_DTYPE), _pad2d(shift.reshape(1, channels), 1, Cp)

    we, be = fold(p["expand_w"], p["expand_bn"])
    blocks = []
    for i in range(1, len(filter_widths)):
        wc, bc = fold(p[f"conv{i}_w"], p[f"bn{i}a"])
        w1_taps, b1 = fold(p[f"conv1x1_{i}_w"], p[f"bn{i}b"])
        blocks.append((wc, bc, w1_taps[0], b1))
    ws = _pad2d(p["shrink_w"][:, :, 0].T, Cp, Cp).astype(COMPUTE_DTYPE)
    bs = _pad2d(p["shrink_b"].reshape(1, D), 1, Cp)
    return dict(we=we, be=be, blocks=blocks, ws=ws, bs=bs)


def prepare_params(params, cfg, image_hw):
    """One-time weight preparation (padding, BN / centering / GAP folds, dtype casts).
    Hoisted out of the per-step forward so nothing is re-padded/transposed per call."""
    J = cfg["NUMPRED"]
    D = J * 3
    channels = cfg["CHANNELS"]
    filter_widths = cfg["filter_widths"]
    Cp = _rup(max(D, channels), LANES)    # lane-dense channel width shared by both kernels
    pose = _prep_pose_params(params["pose"], J, Cp, image_hw)
    tcn = _prep_tcn_params(params["tcn"], filter_widths, channels, D, Cp)
    return dict(pose=pose, tcn=tcn)


# ----------------------------------------------------------------------------
# TemporalPoseEstimationModel.forward
# ----------------------------------------------------------------------------
def temporal_pose_forward(prepped, cfg, x):
    assert x.ndim == 5
    S, T, C, H, W = x.shape
    J = cfg["NUMPRED"]
    D = J * 3
    filter_widths = cfg["filter_widths"]
    assert T % int(np.prod(filter_widths)) == 0

    pose_p, tcn_p = prepped["pose"], prepped["tcn"]
    Kp = pose_p["cw"].shape[0]
    Cp = pose_p["fcw"].shape[1]
    HW = H * W
    N = S * T

    # ---------------- pose backbone + head (fused Pallas kernel 1) ----------------
    # TODO(synk): the real PoseEstimationModel (ResNet-style backbone) is not defined in the
    # provided snippet; a conv3x3 -> ReLU -> GAP -> FC stand-in with the same interface is used.
    frames = x.reshape(N, C, H, W)
    patches = _im2col(frames)                                           # (N, HW, C*9)
    patches = jnp.pad(patches, ((0, 0), (0, 0), (0, Kp - C * 9))).astype(COMPUTE_DTYPE)
    BF = N // 2 if N % 2 == 0 else N          # 2 grid steps -> one block per TensorCore on v7x
    G = N // BF
    patches = patches.reshape(G, BF, HW, Kp)
    pose_flat = pose_backbone_head(patches, pose_p).reshape(N, Cp)      # f32, centered, zero-padded
    y = {"intermediatePredPos": pose_flat[:, :D].reshape(S, T, J, 3)}

    # ---------------------- fully fused TCN (Pallas kernel 2) ----------------------
    # TODO(synk): dropout (p=0.25) omitted (eval-mode identity); BN uses eval running statistics.
    fw0 = filter_widths[0]
    T1 = T // fw0
    T_out = T
    for fw in filter_widths:
        T_out //= fw
    # Columns D..Cp of pose_flat are exact zeros (zero-padded fcw/fcb), so the padded pose feeds
    # the TCN directly -- no slice/pad HBM round trip between the two Pallas kernels.
    x_taps = pose_flat.reshape(S, T1, fw0, Cp).transpose(0, 2, 1, 3).astype(COMPUTE_DTYPE)
    out_pad = tcn_fused(x_taps, tcn_p, T1=T1, T_out=T_out, Cp=Cp, filter_widths=filter_widths)
    pred = out_pad[:, :, :D].reshape(S, T_out, J, 3)
    if cfg["REFINE"]:
        pred = pred + y["intermediatePredPos"][:, -T_out:, :, :]
    y["predPos"] = pred
    return y


# ----------------------------------------------------------------------------
# Deterministic parameter init (synthetic)
# ----------------------------------------------------------------------------
def init_params(key, c_img, feat, num_joints, channels, filter_widths):
    D = num_joints * 3
    ks = jax.random.split(key, 8 + 2 * len(filter_widths))

    def bn_default():
        return (jnp.ones((channels,), jnp.float32), jnp.zeros((channels,), jnp.float32),
                jnp.zeros((channels,), jnp.float32), jnp.ones((channels,), jnp.float32))

    pose = {
        "conv_w": 0.1 * jax.random.normal(ks[0], (feat, c_img, 3, 3), jnp.float32),
        "conv_b": 0.01 * jax.random.normal(ks[1], (feat,), jnp.float32),
        "fc_w": 0.1 * jax.random.normal(ks[2], (D, feat), jnp.float32),
        "fc_b": 0.01 * jax.random.normal(ks[3], (D,), jnp.float32),
    }
    tcn = {
        "expand_w": 0.1 * jax.random.normal(ks[4], (channels, D, filter_widths[0]), jnp.float32),
        "expand_bn": bn_default(),
        "shrink_w": 0.1 * jax.random.normal(ks[5], (D, channels, 1), jnp.float32),
        "shrink_b": 0.01 * jax.random.normal(ks[6], (D,), jnp.float32),
    }
    for i in range(1, len(filter_widths)):
        tcn[f"conv{i}_w"] = 0.1 * jax.random.normal(
            ks[6 + 2 * i], (channels, channels, filter_widths[i]), jnp.float32)
        tcn[f"conv1x1_{i}_w"] = 0.1 * jax.random.normal(
            ks[7 + 2 * i], (channels, channels, 1), jnp.float32)
        tcn[f"bn{i}a"] = bn_default()
        tcn[f"bn{i}b"] = bn_default()
    return {"pose": pose, "tcn": tcn}


# ----------------------------------------------------------------------------
if __name__ == "__main__":
    # cfg.TRAINING.*
    RECEPTIVE_FIELD = 27
    NUMPRED = 4          # numJointIn
    REFINE = True
    CHANNELS = 32        # TCN hidden channels
    FEAT = 16            # stand-in backbone feature width

    filter_widths = [3] * int(round(math.log(RECEPTIVE_FIELD, 3)))   # [3, 3, 3]
    cfg = dict(NUMPRED=NUMPRED, REFINE=REFINE, CHANNELS=CHANNELS,
               filter_widths=filter_widths)

    key = jax.random.PRNGKey(0)
    kx, kp = jax.random.split(key)

    S, T, C, H, W = 2, RECEPTIVE_FIELD, 3, 16, 16
    x = jax.random.normal(kx, (S, T, C, H, W), jnp.float32)
    params = init_params(kp, C, FEAT, NUMPRED, CHANNELS, filter_widths)

    prepped = prepare_params(params, cfg, H * W)   # one-time weight prep (not per forward call)
    fwd = jax.jit(lambda pp, xx: temporal_pose_forward(pp, cfg, xx))
    out = fwd(prepped, x)
    jax.block_until_ready(out)

    T_out = T // int(np.prod(filter_widths))
    assert out["intermediatePredPos"].shape == (S, T, NUMPRED, 3)
    assert out["predPos"].shape == (S, T_out, NUMPRED, 3)
    assert out["predPos"].dtype == jnp.float32
    assert bool(jnp.all(jnp.isfinite(out["intermediatePredPos"])))
    assert bool(jnp.all(jnp.isfinite(out["predPos"])))

    print("KERNEL_OK")
</pallas_src>

<mosaic_0001>
module attributes {stable_mosaic.version = 11 : i64} {
  func.func @_pose_head_kernel(%arg0: i32, %arg1: memref<1x27x256x32xbf16, #tpu.memory_space<vmem>>, %arg2: memref<32x128xbf16, #tpu.memory_space<vmem>>, %arg3: memref<1x128xf32, #tpu.memory_space<vmem>>, %arg4: memref<1x256xbf16, #tpu.memory_space<vmem>>, %arg5: memref<128x128xbf16, #tpu.memory_space<vmem>>, %arg6: memref<1x128xf32, #tpu.memory_space<vmem>>, %arg7: memref<1x27x128xf32, #tpu.memory_space<vmem>>) attributes {dimension_semantics = [#tpu.dimension_semantics<parallel>], iteration_bounds = array<i64: 2>, scalar_prefetch = 0 : i64, scratch_operands = 0 : i64, tpu.core_type = #tpu.core_type<tc>, window_params = [{transform_indices = @transform_0, window_bounds = array<i64: 1, 27, 256, 32>}, {pipeline_mode = #tpu.pipeline_mode<synchronous>, transform_indices = @transform_1, window_bounds = array<i64: 32, 128>}, {pipeline_mode = #tpu.pipeline_mode<synchronous>, transform_indices = @transform_2, window_bounds = array<i64: 1, 128>}, {pipeline_mode = #tpu.pipeline_mode<synchronous>, transform_indices = @transform_3, window_bounds = array<i64: 1, 256>}, {pipeline_mode = #tpu.pipeline_mode<synchronous>, transform_indices = @transform_4, window_bounds = array<i64: 128, 128>}, {pipeline_mode = #tpu.pipeline_mode<synchronous>, transform_indices = @transform_5, window_bounds = array<i64: 1, 128>}, {transform_indices = @transform_6, window_bounds = array<i64: 1, 27, 128>}]} {
    %c0 = arith.constant 0 : index
    %c0_0 = arith.constant 0 : index
    %0 = vector.load %arg2[%c0, %c0_0] : memref<32x128xbf16, #tpu.memory_space<vmem>>, vector<32x128xbf16>
    %c0_1 = arith.constant 0 : index
    %c0_2 = arith.constant 0 : index
    %1 = vector.load %arg3[%c0_1, %c0_2] : memref<1x128xf32, #tpu.memory_space<vmem>>, vector<1x128xf32>
    %c0_3 = arith.constant 0 : index
    %c0_4 = arith.constant 0 : index
    %2 = vector.load %arg4[%c0_3, %c0_4] : memref<1x256xbf16, #tpu.memory_space<vmem>>, vector<1x256xbf16>
    %c0_5 = arith.constant 0 : index
    %c0_6 = arith.constant 0 : index
    %c0_7 = arith.constant 0 : index
    %c0_8 = arith.constant 0 : index
    %3 = vector.load %arg1[%c0_5, %c0_6, %c0_7, %c0_8] : memref<1x27x256x32xbf16, #tpu.memory_space<vmem>>, vector<1x1x256x32xbf16>
    %4 = vector.shape_cast %3 : vector<1x1x256x32xbf16> to vector<256x32xbf16>
    %cst = arith.constant dense<0.000000e+00> : vector<256x128xf32>
    %5 = tpu.matmul %4, %0, %cst {dimension_numbers = #tpu.dot_dimension_numbers<[1], [0], [0], [1], [0, 0, 1, 1], [], []>} : vector<256x32xbf16>, vector<32x128xbf16>, vector<256x128xf32> -> vector<256x128xf32>
    %6 = vector.broadcast %1 : vector<1x128xf32> to vector<256x128xf32>
    %7 = arith.addf %5, %6 : vector<256x128xf32>
    %cst_9 = arith.constant 0.000000e+00 : f32
    %8 = vector.broadcast %cst_9 : f32 to vector<256x128xf32>
    %9 = arith.maximumf %7, %8 : vector<256x128xf32>
    %10 = arith.truncf %9 : vector<256x128xf32> to vector<256x128xbf16>
    %cst_10 = arith.constant dense<0.000000e+00> : vector<1x128xf32>
    %11 = tpu.matmul %2, %10, %cst_10 {dimension_numbers = #tpu.dot_dimension_numbers<[1], [0], [0], [1], [0, 0, 1, 1], [], []>} : vector<1x256xbf16>, vector<256x128xbf16>, vector<1x128xf32> -> vector<1x128xf32>
    %c0_11 = arith.constant 0 : index
    %c1 = arith.constant 1 : index
    %c0_12 = arith.constant 0 : index
    %c0_13 = arith.constant 0 : index
    %12 = vector.load %arg1[%c0_11, %c1, %c0_12, %c0_13] : memref<1x27x256x32xbf16, #tpu.memory_space<vmem>>, vector<1x1x256x32xbf16>
    %13 = vector.shape_cast %12 : vector<1x1x256x32xbf16> to vector<256x32xbf16>
    %cst_14 = arith.constant dense<0.000000e+00> : vector<256x128xf32>
    %14 = tpu.matmul %13, %0, %cst_14 {dimension_numbers = #tpu.dot_dimension_numbers<[1], [0], [0], [1], [0, 0, 1, 1], [], []>} : vector<256x32xbf16>, vector<32x128xbf16>, vector<256x128xf32> -> vector<256x128xf32>
    %15 = vector.broadcast %1 : vector<1x128xf32> to vector<256x128xf32>
    %16 = arith.addf %14, %15 : vector<256x128xf32>
    %cst_15 = arith.constant 0.000000e+00 : f32
    %17 = vector.broadcast %cst_15 : f32 to vector<256x128xf32>
    %18 = arith.maximumf %16, %17 : vector<256x128xf32>
    %19 = arith.truncf %18 : vector<256x128xf32> to vector<256x128xbf16>
    %cst_16 = arith.constant dense<0.000000e+00> : vector<1x128xf32>
    %20 = tpu.matmul %2, %19, %cst_16 {dimension_numbers = #tpu.dot_dimension_numbers<[1], [0], [0], [1], [0, 0, 1, 1], [], []>} : vector<1x256xbf16>, vector<256x128xbf16>, vector<1x128xf32> -> vector<1x128xf32>
    %c0_17 = arith.constant 0 : index
    %c2 = arith.constant 2 : index
    %c0_18 = arith.constant 0 : index
    %c0_19 = arith.constant 0 : index
    %21 = vector.load %arg1[%c0_17, %c2, %c0_18, %c0_19] : memref<1x27x256x32xbf16, #tpu.memory_space<vmem>>, vector<1x1x256x32xbf16>
    %22 = vector.shape_cast %21 : vector<1x1x256x32xbf16> to vector<256x32xbf16>
    %cst_20 = arith.constant dense<0.000000e+00> : vector<256x128xf32>
    %23 = tpu.matmul %22, %0, %cst_20 {dimension_numbers = #tpu.dot_dimension_numbers<[1], [0], [0], [1], [0, 0, 1, 1], [], []>} : vector<256x32xbf16>, vector<32x128xbf16>, vector<256x128xf32> -> vector<256x128xf32>
    %24 = vector.broadcast %1 : vector<1x128xf32> to vector<256x128xf32>
    %25 = arith.addf %23, %24 : vector<256x128xf32>
    %cst_21 = arith.constant 0.000000e+00 : f32
    %26 = vector.broadcast %cst_21 : f32 to vector<256x128xf32>
    %27 = arith.maximumf %25, %26 : vector<256x128xf32>
    %28 = arith.truncf %27 : vector<256x128xf32> to vector<256x128xbf16>
    %cst_22 = arith.constant dense<0.000000e+00> : vector<1x128xf32>
    %29 = tpu.matmul %2, %28, %cst_22 {dimension_numbers = #tpu.dot_dimension_numbers<[1], [0], [0], [1], [0, 0, 1, 1], [], []>} : vector<1x256xbf16>, vector<256x128xbf16>, vector<1x128xf32> -> vector<1x128xf32>
    %c0_23 = arith.constant 0 : index
    %c3 = arith.constant 3 : index
    %c0_24 = arith.constant 0 : index
    %c0_25 = arith.constant 0 : index
    %30 = vector.load %arg1[%c0_23, %c3, %c0_24, %c0_25] : memref<1x27x256x32xbf16, #tpu.memory_space<vmem>>, vector<1x1x256x32xbf16>
    %31 = vector.shape_cast %30 : vector<1x1x256x32xbf16> to vector<256x32xbf16>
    %cst_26 = arith.constant dense<0.000000e+00> : vector<256x128xf32>
    %32 = tpu.matmul %31, %0, %cst_26 {dimension_numbers = #tpu.dot_dimension_numbers<[1], [0], [0], [1], [0, 0, 1, 1], [], []>} : vector<256x32xbf16>, vector<32x128xbf16>, vector<256x128xf32> -> vector<256x128xf32>
    %33 = vector.broadcast %1 : vector<1x128xf32> to vector<256x128xf32>
    %34 = arith.addf %32, %33 : vector<256x128xf32>
    %cst_27 = arith.constant 0.000000e+00 : f32
    %35 = vector.broadcast %cst_27 : f32 to vector<256x128xf32>
    %36 = arith.maximumf %34, %35 : vector<256x128xf32>
    %37 = arith.truncf %36 : vector<256x128xf32> to vector<256x128xbf16>
    %cst_28 = arith.constant dense<0.000000e+00> : vector<1x128xf32>
    %38 = tpu.matmul %2, %37, %cst_28 {dimension_numbers = #tpu.dot_dimension_numbers<[1], [0], [0], [1], [0, 0, 1, 1], [], []>} : vector<1x256xbf16>, vector<256x128xbf16>, vector<1x128xf32> -> vector<1x128xf32>
    %c0_29 = arith.constant 0 : index
    %c4 = arith.constant 4 : index
    %c0_30 = arith.constant 0 : index
    %c0_31 = arith.constant 0 : index
    %39 = vector.load %arg1[%c0_29, %c4, %c0_30, %c0_31] : memref<1x27x256x32xbf16, #tpu.memory_space<vmem>>, vector<1x1x256x32xbf16>
    %40 = vector.shape_cast %39 : vector<1x1x256x32xbf16> to vector<256x32xbf16>
    %cst_32 = arith.constant dense<0.000000e+00> : vector<256x128xf32>
    %41 = tpu.matmul %40, %0, %cst_32 {dimension_numbers = #tpu.dot_dimension_numbers<[1], [0], [0], [1], [0, 0, 1, 1], [], []>} : vector<256x32xbf16>, vector<32x128xbf16>, vector<256x128xf32> -> vector<256x128xf32>
    %42 = vector.broadcast %1 : vector<1x128xf32> to vector<256x128xf32>
    %43 = arith.addf %41, %42 : vector<256x128xf32>
    %cst_33 = arith.constant 0.000000e+00 : f32
    %44 = vector.broadcast %cst_33 : f32 to vector<256x128xf32>
    %45 = arith.maximumf %43, %44 : vector<256x128xf32>
    %46 = arith.truncf %45 : vector<256x128xf32> to vector<256x128xbf16>
    %cst_34 = arith.constant dense<0.000000e+00> : vector<1x128xf32>
    %47 = tpu.matmul %2, %46, %cst_34 {dimension_numbers = #tpu.dot_dimension_numbers<[1], [0], [0], [1], [0, 0, 1, 1], [], []>} : vector<1x256xbf16>, vector<256x128xbf16>, vector<1x128xf32> -> vector<1x128xf32>
    %c0_35 = arith.constant 0 : index
    %c5 = arith.constant 5 : index
    %c0_36 = arith.constant 0 : index
    %c0_37 = arith.constant 0 : index
    %48 = vector.load %arg1[%c0_35, %c5, %c0_36, %c0_37] : memref<1x27x256x32xbf16, #tpu.memory_space<vmem>>, vector<1x1x256x32xbf16>
    %49 = vector.shape_cast %48 : vector<1x1x256x32xbf16> to vector<256x32xbf16>
    %cst_38 = arith.constant dense<0.000000e+00> : vector<256x128xf32>
    %50 = tpu.matmul %49, %0, %cst_38 {dimension_numbers = #tpu.dot_dimension_numbers<[1], [0], [0], [1], [0, 0, 1, 1], [], []>} : vector<256x32xbf16>, vector<32x128xbf16>, vector<256x128xf32> -> vector<256x128xf32>
    %51 = vector.broadcast %1 : vector<1x128xf32> to vector<256x128xf32>
    %52 = arith.addf %50, %51 : vector<256x128xf32>
    %cst_39 = arith.constant 0.000000e+00 : f32
    %53 = vector.broadcast %cst_39 : f32 to vector<256x128xf32>
    %54 = arith.maximumf %52, %53 : vector<256x128xf32>
    %55 = arith.truncf %54 : vector<256x128xf32> to vector<256x128xbf16>
    %cst_40 = arith.constant dense<0.000000e+00> : vector<1x128xf32>
    %56 = tpu.matmul %2, %55, %cst_40 {dimension_numbers = #tpu.dot_dimension_numbers<[1], [0], [0], [1], [0, 0, 1, 1], [], []>} : vector<1x256xbf16>, vector<256x128xbf16>, vector<1x128xf32> -> vector<1x128xf32>
    %c0_41 = arith.constant 0 : index
    %c6 = arith.constant 6 : index
    %c0_42 = arith.constant 0 : index
    %c0_43 = arith.constant 0 : index
    %57 = vector.load %arg1[%c0_41, %c6, %c0_42, %c0_43] : memref<1x27x256x32xbf16, #tpu.memory_space<vmem>>, vector<1x1x256x32xbf16>
    %58 = vector.shape_cast %57 : vector<1x1x256x32xbf16> to vector<256x32xbf16>
    %cst_44 = arith.constant dense<0.000000e+00> : vector<256x128xf32>
    %59 = tpu.matmul %58, %0, %cst_44 {dimension_numbers = #tpu.dot_dimension_numbers<[1], [0], [0], [1], [0, 0, 1, 1], [], []>} : vector<256x32xbf16>, vector<32x128xbf16>, vector<256x128xf32> -> vector<256x128xf32>
    %60 = vector.broadcast %1 : vector<1x128xf32> to vector<256x128xf32>
    %61 = arith.addf %59, %60 : vector<256x128xf32>
    %cst_45 = arith.constant 0.000000e+00 : f32
    %62 = vector.broadcast %cst_45 : f32 to vector<256x128xf32>
    %63 = arith.maximumf %61, %62 : vector<256x128xf32>
    %64 = arith.truncf %63 : vector<256x128xf32> to vector<256x128xbf16>
    %cst_46 = arith.constant dense<0.000000e+00> : vector<1x128xf32>
    %65 = tpu.matmul %2, %64, %cst_46 {dimension_numbers = #tpu.dot_dimension_numbers<[1], [0], [0], [1], [0, 0, 1, 1], [], []>} : vector<1x256xbf16>, vector<256x128xbf16>, vector<1x128xf32> -> vector<1x128xf32>
    %c0_47 = arith.constant 0 : index
    %c7 = arith.constant 7 : index
    %c0_48 = arith.constant 0 : index
    %c0_49 = arith.constant 0 : index
    %66 = vector.load %arg1[%c0_47, %c7, %c0_48, %c0_49] : memref<1x27x256x32xbf16, #tpu.memory_space<vmem>>, vector<1x1x256x32xbf16>
    %67 = vector.shape_cast %66 : vector<1x1x256x32xbf16> to vector<256x32xbf16>
    %cst_50 = arith.constant dense<0.000000e+00> : vector<256x128xf32>
    %68 = tpu.matmul %67, %0, %cst_50 {dimension_numbers = #tpu.dot_dimension_numbers<[1], [0], [0], [1], [0, 0, 1, 1], [], []>} : vector<256x32xbf16>, vector<32x128xbf16>, vector<256x128xf32> -> vector<256x128xf32>
    %69 = vector.broadcast %1 : vector<1x128xf32> to vector<256x128xf32>
    %70 = arith.addf %68, %69 : vector<256x128xf32>
    %cst_51 = arith.constant 0.000000e+00 : f32
    %71 = vector.broadcast %cst_51 : f32 to vector<256x128xf32>
    %72 = arith.maximumf %70, %71 : vector<256x128xf32>
    %73 = arith.truncf %72 : vector<256x128xf32> to vector<256x128xbf16>
    %cst_52 = arith.constant dense<0.000000e+00> : vector<1x128xf32>
    %74 = tpu.matmul %2, %73, %cst_52 {dimension_numbers = #tpu.dot_dimension_numbers<[1], [0], [0], [1], [0, 0, 1, 1], [], []>} : vector<1x256xbf16>, vector<256x128xbf16>, vector<1x128xf32> -> vector<1x128xf32>
    %c0_53 = arith.constant 0 : index
    %c8 = arith.constant 8 : index
    %c0_54 = arith.constant 0 : index
    %c0_55 = arith.constant 0 : index
    %75 = vector.load %arg1[%c0_53, %c8, %c0_54, %c0_55] : memref<1x27x256x32xbf16, #tpu.memory_space<vmem>>, vector<1x1x256x32xbf16>
    %76 = vector.shape_cast %75 : vector<1x1x256x32xbf16> to vector<256x32xbf16>
    %cst_56 = arith.constant dense<0.000000e+00> : vector<256x128xf32>
    %77 = tpu.matmul %76, %0, %cst_56 {dimension_numbers = #tpu.dot_dimension_numbers<[1], [0], [0], [1], [0, 0, 1, 1], [], []>} : vector<256x32xbf16>, vector<32x128xbf16>, vector<256x128xf32> -> vector<256x128xf32>
    %78 = vector.broadcast %1 : vector<1x128xf32> to vector<256x128xf32>
    %79 = arith.addf %77, %78 : vector<256x128xf32>
    %cst_57 = arith.constant 0.000000e+00 : f32
    %80 = vector.broadcast %cst_57 : f32 to vector<256x128xf32>
    %81 = arith.maximumf %79, %80 : vector<256x128xf32>
    %82 = arith.truncf %81 : vector<256x128xf32> to vector<256x128xbf16>
    %cst_58 = arith.constant dense<0.000000e+00> : vector<1x128xf32>
    %83 = tpu.matmul %2, %82, %cst_58 {dimension_numbers = #tpu.dot_dimension_numbers<[1], [0], [0], [1], [0, 0, 1, 1], [], []>} : vector<1x256xbf16>, vector<256x128xbf16>, vector<1x128xf32> -> vector<1x128xf32>
    %c0_59 = arith.constant 0 : index
    %c9 = arith.constant 9 : index
    %c0_60 = arith.constant 0 : index
    %c0_61 = arith.constant 0 : index
    %84 = vector.load %arg1[%c0_59, %c9, %c0_60, %c0_61] : memref<1x27x256x32xbf16, #tpu.memory_space<vmem>>, vector<1x1x256x32xbf16>
    %85 = vector.shape_cast %84 : vector<1x1x256x32xbf16> to vector<256x32xbf16>
    %cst_62 = arith.constant dense<0.000000e+00> : vector<256x128xf32>
    %86 = tpu.matmul %85, %0, %cst_62 {dimension_numbers = #tpu.dot_dimension_numbers<[1], [0], [0], [1], [0, 0, 1, 1], [], []>} : vector<256x32xbf16>, vector<32x128xbf16>, vector<256x128xf32> -> vector<256x128xf32>
    %87 = vector.broadcast %1 : vector<1x128xf32> to vector<256x128xf32>
    %88 = arith.addf %86, %87 : vector<256x128xf32>
    %cst_63 = arith.constant 0.000000e+00 : f32
    %89 = vector.broadcast %cst_63 : f32 to vector<256x128xf32>
    %90 = arith.maximumf %88, %89 : vector<256x128xf32>
    %91 = arith.truncf %90 : vector<256x128xf32> to vector<256x128xbf16>
    %cst_64 = arith.constant dense<0.000000e+00> : vector<1x128xf32>
    %92 = tpu.matmul %2, %91, %cst_64 {dimension_numbers = #tpu.dot_dimension_numbers<[1], [0], [0], [1], [0, 0, 1, 1], [], []>} : vector<1x256xbf16>, vector<256x128xbf16>, vector<1x128xf32> -> vector<1x128xf32>
    %c0_65 = arith.constant 0 : index
    %c10 = arith.constant 10 : index
    %c0_66 = arith.constant 0 : index
    %c0_67 = arith.constant 0 : index
    %93 = vector.load %arg1[%c0_65, %c10, %c0_66, %c0_67] : memref<1x27x256x32xbf16, #tpu.memory_space<vmem>>, vector<1x1x256x32xbf16>
    %94 = vector.shape_cast %93 : vector<1x1x256x32xbf16> to vector<256x32xbf16>
    %cst_68 = arith.constant dense<0.000000e+00> : vector<256x128xf32>
    %95 = tpu.matmul %94, %0, %cst_68 {dimension_numbers = #tpu.dot_dimension_numbers<[1], [0], [0], [1], [0, 0, 1, 1], [], []>} : vector<256x32xbf16>, vector<32x128xbf16>, vector<256x128xf32> -> vector<256x128xf32>
    %96 = vector.broadcast %1 : vector<1x128xf32> to vector<256x128xf32>
    %97 = arith.addf %95, %96 : vector<256x128xf32>
    %cst_69 = arith.constant 0.000000e+00 : f32
    %98 = vector.broadcast %cst_69 : f32 to vector<256x128xf32>
    %99 = arith.maximumf %97, %98 : vector<256x128xf32>
    %100 = arith.truncf %99 : vector<256x128xf32> to vector<256x128xbf16>
    %cst_70 = arith.constant dense<0.000000e+00> : vector<1x128xf32>
    %101 = tpu.matmul %2, %100, %cst_70 {dimension_numbers = #tpu.dot_dimension_numbers<[1], [0], [0], [1], [0, 0, 1, 1], [], []>} : vector<1x256xbf16>, vector<256x128xbf16>, vector<1x128xf32> -> vector<1x128xf32>
    %c0_71 = arith.constant 0 : index
    %c11 = arith.constant 11 : index
    %c0_72 = arith.constant 0 : index
    %c0_73 = arith.constant 0 : index
    %102 = vector.load %arg1[%c0_71, %c11, %c0_72, %c0_73] : memref<1x27x256x32xbf16, #tpu.memory_space<vmem>>, vector<1x1x256x32xbf16>
    %103 = vector.shape_cast %102 : vector<1x1x256x32xbf16> to vector<256x32xbf16>
    %cst_74 = arith.constant dense<0.000000e+00> : vector<256x128xf32>
    %104 = tpu.matmul %103, %0, %cst_74 {dimension_numbers = #tpu.dot_dimension_numbers<[1], [0], [0], [1], [0, 0, 1, 1], [], []>} : vector<256x32xbf16>, vector<32x128xbf16>, vector<256x128xf32> -> vector<256x128xf32>
    %105 = vector.broadcast %1 : vector<1x128xf32> to vector<256x128xf32>
    %106 = arith.addf %104, %105 : vector<256x128xf32>
    %cst_75 = arith.constant 0.000000e+00 : f32
    %107 = vector.broadcast %cst_75 : f32 to vector<256x128xf32>
    %108 = arith.maximumf %106, %107 : vector<256x128xf32>
    %109 = arith.truncf %108 : vector<256x128xf32> to vector<256x128xbf16>
    %cst_76 = arith.constant dense<0.000000e+00> : vector<1x128xf32>
    %110 = tpu.matmul %2, %109, %cst_76 {dimension_numbers = #tpu.dot_dimension_numbers<[1], [0], [0], [1], [0, 0, 1, 1], [], []>} : vector<1x256xbf16>, vector<256x128xbf16>, vector<1x128xf32> -> vector<1x128xf32>
    %c0_77 = arith.constant 0 : index
    %c12 = arith.constant 12 : index
    %c0_78 = arith.constant 0 : index
    %c0_79 = arith.constant 0 : index
    %111 = vector.load %arg1[%c0_77, %c12, %c0_78, %c0_79] : memref<1x27x256x32xbf16, #tpu.memory_space<vmem>>, vector<1x1x256x32xbf16>
    %112 = vector.shape_cast %111 : vector<1x1x256x32xbf16> to vector<256x32xbf16>
    %cst_80 = arith.constant dense<0.000000e+00> : vector<256x128xf32>
    %113 = tpu.matmul %112, %0, %cst_80 {dimension_numbers = #tpu.dot_dimension_numbers<[1], [0], [0], [1], [0, 0, 1, 1], [], []>} : vector<256x32xbf16>, vector<32x128xbf16>, vector<256x128xf32> -> vector<256x128xf32>
    %114 = vector.broadcast %1 : vector<1x128xf32> to vector<256x128xf32>
    %115 = arith.addf %113, %114 : vector<256x128xf32>
    %cst_81 = arith.constant 0.000000e+00 : f32
    %116 = vector.broadcast %cst_81 : f32 to vector<256x128xf32>
    %117 = arith.maximumf %115, %116 : vector<256x128xf32>
    %118 = arith.truncf %117 : vector<256x128xf32> to vector<256x128xbf16>
    %cst_82 = arith.constant dense<0.000000e+00> : vector<1x128xf32>
    %119 = tpu.matmul %2, %118, %cst_82 {dimension_numbers = #tpu.dot_dimension_numbers<[1], [0], [0], [1], [0, 0, 1, 1], [], []>} : vector<1x256xbf16>, vector<256x128xbf16>, vector<1x128xf32> -> vector<1x128xf32>
    %c0_83 = arith.constant 0 : index
    %c13 = arith.constant 13 : index
    %c0_84 = arith.constant 0 : index
    %c0_85 = arith.constant 0 : index
    %120 = vector.load %arg1[%c0_83, %c13, %c0_84, %c0_85] : memref<1x27x256x32xbf16, #tpu.memory_space<vmem>>, vector<1x1x256x32xbf16>
    %121 = vector.shape_cast %120 : vector<1x1x256x32xbf16> to vector<256x32xbf16>
    %cst_86 = arith.constant dense<0.000000e+00> : vector<256x128xf32>
    %122 = tpu.matmul %121, %0, %cst_86 {dimension_numbers = #tpu.dot_dimension_numbers<[1], [0], [0], [1], [0, 0, 1, 1], [], []>} : vector<256x32xbf16>, vector<32x128xbf16>, vector<256x128xf32> -> vector<256x128xf32>
    %123 = vector.broadcast %1 : vector<1x128xf32> to vector<256x128xf32>
    %124 = arith.addf %122, %123 : vector<256x128xf32>
    %cst_87 = arith.constant 0.000000e+00 : f32
    %125 = vector.broadcast %cst_87 : f32 to vector<256x128xf32>
    %126 = arith.maximumf %124, %125 : vector<256x128xf32>
    %127 = arith.truncf %126 : vector<256x128xf32> to vector<256x128xbf16>
    %cst_88 = arith.constant dense<0.000000e+00> : vector<1x128xf32>
    %128 = tpu.matmul %2, %127, %cst_88 {dimension_numbers = #tpu.dot_dimension_numbers<[1], [0], [0], [1], [0, 0, 1, 1], [], []>} : vector<1x256xbf16>, vector<256x128xbf16>, vector<1x128xf32> -> vector<1x128xf32>
    %c0_89 = arith.constant 0 : index
    %c14 = arith.constant 14 : index
    %c0_90 = arith.constant 0 : index
    %c0_91 = arith.constant 0 : index
    %129 = vector.load %arg1[%c0_89, %c14, %c0_90, %c0_91] : memref<1x27x256x32xbf16, #tpu.memory_space<vmem>>, vector<1x1x256x32xbf16>
    %130 = vector.shape_cast %129 : vector<1x1x256x32xbf16> to vector<256x32xbf16>
    %cst_92 = arith.constant dense<0.000000e+00> : vector<256x128xf32>
    %131 = tpu.matmul %130, %0, %cst_92 {dimension_numbers = #tpu.dot_dimension_numbers<[1], [0], [0], [1], [0, 0, 1, 1], [], []>} : vector<256x32xbf16>, vector<32x128xbf16>, vector<256x128xf32> -> vector<256x128xf32>
    %132 = vector.broadcast %1 : vector<1x128xf32> to vector<256x128xf32>
    %133 = arith.addf %131, %132 : vector<256x128xf32>
    %cst_93 = arith.constant 0.000000e+00 : f32
    %134 = vector.broadcast %cst_93 : f32 to vector<256x128xf32>
    %135 = arith.maximumf %133, %134 : vector<256x128xf32>
    %136 = arith.truncf %135 : vector<256x128xf32> to vector<256x128xbf16>
    %cst_94 = arith.constant dense<0.000000e+00> : vector<1x128xf32>
    %137 = tpu.matmul %2, %136, %cst_94 {dimension_numbers = #tpu.dot_dimension_numbers<[1], [0], [0], [1], [0, 0, 1, 1], [], []>} : vector<1x256xbf16>, vector<256x128xbf16>, vector<1x128xf32> -> vector<1x128xf32>
    %c0_95 = arith.constant 0 : index
    %c15 = arith.constant 15 : index
    %c0_96 = arith.constant 0 : index
    %c0_97 = arith.constant 0 : index
    %138 = vector.load %arg1[%c0_95, %c15, %c0_96, %c0_97] : memref<1x27x256x32xbf16, #tpu.memory_space<vmem>>, vector<1x1x256x32xbf16>
    %139 = vector.shape_cast %138 : vector<1x1x256x32xbf16> to vector<256x32xbf16>
    %cst_98 = arith.constant dense<0.000000e+00> : vector<256x128xf32>
    %140 = tpu.matmul %139, %0, %cst_98 {dimension_numbers = #tpu.dot_dimension_numbers<[1], [0], [0], [1], [0, 0, 1, 1], [], []>} : vector<256x32xbf16>, vector<32x128xbf16>, vector<256x128xf32> -> vector<256x128xf32>
    %141 = vector.broadcast %1 : vector<1x128xf32> to vector<256x128xf32>
    %142 = arith.addf %140, %141 : vector<256x128xf32>
    %cst_99 = arith.constant 0.000000e+00 : f32
    %143 = vector.broadcast %cst_99 : f32 to vector<256x128xf32>
    %144 = arith.maximumf %142, %143 : vector<256x128xf32>
    %145 = arith.truncf %144 : vector<256x128xf32> to vector<256x128xbf16>
    %cst_100 = arith.constant dense<0.000000e+00> : vector<1x128xf32>
    %146 = tpu.matmul %2, %145, %cst_100 {dimension_numbers = #tpu.dot_dimension_numbers<[1], [0], [0], [1], [0, 0, 1, 1], [], []>} : vector<1x256xbf16>, vector<256x128xbf16>, vector<1x128xf32> -> vector<1x128xf32>
    %c0_101 = arith.constant 0 : index
    %c16 = arith.constant 16 : index
    %c0_102 = arith.constant 0 : index
    %c0_103 = arith.constant 0 : index
    %147 = vector.load %arg1[%c0_101, %c16, %c0_102, %c0_103] : memref<1x27x256x32xbf16, #tpu.memory_space<vmem>>, vector<1x1x256x32xbf16>
    %148 = vector.shape_cast %147 : vector<1x1x256x32xbf16> to vector<256x32xbf16>
    %cst_104 = arith.constant dense<0.000000e+00> : vector<256x128xf32>
    %149 = tpu.matmul %148, %0, %cst_104 {dimension_numbers = #tpu.dot_dimension_numbers<[1], [0], [0], [1], [0, 0, 1, 1], [], []>} : vector<256x32xbf16>, vector<32x128xbf16>, vector<256x128xf32> -> vector<256x128xf32>
    %150 = vector.broadcast %1 : vector<1x128xf32> to vector<256x128xf32>
    %151 = arith.addf %149, %150 : vector<256x128xf32>
    %cst_105 = arith.constant 0.000000e+00 : f32
    %152 = vector.broadcast %cst_105 : f32 to vector<256x128xf32>
    %153 = arith.maximumf %151, %152 : vector<256x128xf32>
    %154 = arith.truncf %153 : vector<256x128xf32> to vector<256x128xbf16>
    %cst_106 = arith.constant dense<0.000000e+00> : vector<1x128xf32>
    %155 = tpu.matmul %2, %154, %cst_106 {dimension_numbers = #tpu.dot_dimension_numbers<[1], [0], [0], [1], [0, 0, 1, 1], [], []>} : vector<1x256xbf16>, vector<256x128xbf16>, vector<1x128xf32> -> vector<1x128xf32>
    %c0_107 = arith.constant 0 : index
    %c17 = arith.constant 17 : index
    %c0_108 = arith.constant 0 : index
    %c0_109 = arith.constant 0 : index
    %156 = vector.load %arg1[%c0_107, %c17, %c0_108, %c0_109] : memref<1x27x256x32xbf16, #tpu.memory_space<vmem>>, vector<1x1x256x32xbf16>
    %157 = vector.shape_cast %156 : vector<1x1x256x32xbf16> to vector<256x32xbf16>
    %cst_110 = arith.constant dense<0.000000e+00> : vector<256x128xf32>
    %158 = tpu.matmul %157, %0, %cst_110 {dimension_numbers = #tpu.dot_dimension_numbers<[1], [0], [0], [1], [0, 0, 1, 1], [], []>} : vector<256x32xbf16>, vector<32x128xbf16>, vector<256x128xf32> -> vector<256x128xf32>
    %159 = vector.broadcast %1 : vector<1x128xf32> to vector<256x128xf32>
    %160 = arith.addf %158, %159 : vector<256x128xf32>
    %cst_111 = arith.constant 0.000000e+00 : f32
    %161 = vector.broadcast %cst_111 : f32 to vector<256x128xf32>
    %162 = arith.maximumf %160, %161 : vector<256x128xf32>
    %163 = arith.truncf %162 : vector<256x128xf32> to vector<256x128xbf16>
    %cst_112 = arith.constant dense<0.000000e+00> : vector<1x128xf32>
    %164 = tpu.matmul %2, %163, %cst_112 {dimension_numbers = #tpu.dot_dimension_numbers<[1], [0], [0], [1], [0, 0, 1, 1], [], []>} : vector<1x256xbf16>, vector<256x128xbf16>, vector<1x128xf32> -> vector<1x128xf32>
    %c0_113 = arith.constant 0 : index
    %c18 = arith.constant 18 : index
    %c0_114 = arith.constant 0 : index
    %c0_115 = arith.constant 0 : index
    %165 = vector.load %arg1[%c0_113, %c18, %c0_114, %c0_115] : memref<1x27x256x32xbf16, #tpu.memory_space<vmem>>, vector<1x1x256x32xbf16>
    %166 = vector.shape_cast %165 : vector<1x1x256x32xbf16> to vector<256x32xbf16>
    %cst_116 = arith.constant dense<0.000000e+00> : vector<256x128xf32>
    %167 = tpu.matmul %166, %0, %cst_116 {dimension_numbers = #tpu.dot_dimension_numbers<[1], [0], [0], [1], [0, 0, 1, 1], [], []>} : vector<256x32xbf16>, vector<32x128xbf16>, vector<256x128xf32> -> vector<256x128xf32>
    %168 = vector.broadcast %1 : vector<1x128xf32> to vector<256x128xf32>
    %169 = arith.addf %167, %168 : vector<256x128xf32>
    %cst_117 = arith.constant 0.000000e+00 : f32
    %170 = vector.broadcast %cst_117 : f32 to vector<256x128xf32>
    %171 = arith.maximumf %169, %170 : vector<256x128xf32>
    %172 = arith.truncf %171 : vector<256x128xf32> to vector<256x128xbf16>
    %cst_118 = arith.constant dense<0.000000e+00> : vector<1x128xf32>
    %173 = tpu.matmul %2, %172, %cst_118 {dimension_numbers = #tpu.dot_dimension_numbers<[1], [0], [0], [1], [0, 0, 1, 1], [], []>} : vector<1x256xbf16>, vector<256x128xbf16>, vector<1x128xf32> -> vector<1x128xf32>
    %c0_119 = arith.constant 0 : index
    %c19 = arith.constant 19 : index
    %c0_120 = arith.constant 0 : index
    %c0_121 = arith.constant 0 : index
    %174 = vector.load %arg1[%c0_119, %c19, %c0_120, %c0_121] : memref<1x27x256x32xbf16, #tpu.memory_space<vmem>>, vector<1x1x256x32xbf16>
    %175 = vector.shape_cast %174 : vector<1x1x256x32xbf16> to vector<256x32xbf16>
    %cst_122 = arith.constant dense<0.000000e+00> : vector<256x128xf32>
    %176 = tpu.matmul %175, %0, %cst_122 {dimension_numbers = #tpu.dot_dimension_numbers<[1], [0], [0], [1], [0, 0, 1, 1], [], []>} : vector<256x32xbf16>, vector<32x128xbf16>, vector<256x128xf32> -> vector<256x128xf32>
    %177 = vector.broadcast %1 : vector<1x128xf32> to vector<256x128xf32>
    %178 = arith.addf %176, %177 : vector<256x128xf32>
    %cst_123 = arith.constant 0.000000e+00 : f32
    %179 = vector.broadcast %cst_123 : f32 to vector<256x128xf32>
    %180 = arith.maximumf %178, %179 : vector<256x128xf32>
    %181 = arith.truncf %180 : vector<256x128xf32> to vector<256x128xbf16>
    %cst_124 = arith.constant dense<0.000000e+00> : vector<1x128xf32>
    %182 = tpu.matmul %2, %181, %cst_124 {dimension_numbers = #tpu.dot_dimension_numbers<[1], [0], [0], [1], [0, 0, 1, 1], [], []>} : vector<1x256xbf16>, vector<256x128xbf16>, vector<1x128xf32> -> vector<1x128xf32>
    %c0_125 = arith.constant 0 : index
    %c20 = arith.constant 20 : index
    %c0_126 = arith.constant 0 : index
    %c0_127 = arith.constant 0 : index
    %183 = vector.load %arg1[%c0_125, %c20, %c0_126, %c0_127] : memref<1x27x256x32xbf16, #tpu.memory_space<vmem>>, vector<1x1x256x32xbf16>
    %184 = vector.shape_cast %183 : vector<1x1x256x32xbf16> to vector<256x32xbf16>
    %cst_128 = arith.constant dense<0.000000e+00> : vector<256x128xf32>
    %185 = tpu.matmul %184, %0, %cst_128 {dimension_numbers = #tpu.dot_dimension_numbers<[1], [0], [0], [1], [0, 0, 1, 1], [], []>} : vector<256x32xbf16>, vector<32x128xbf16>, vector<256x128xf32> -> vector<256x128xf32>
    %186 = vector.broadcast %1 : vector<1x128xf32> to vector<256x128xf32>
    %187 = arith.addf %185, %186 : vector<256x128xf32>
    %cst_129 = arith.constant 0.000000e+00 : f32
    %188 = vector.broadcast %cst_129 : f32 to vector<256x128xf32>
    %189 = arith.maximumf %187, %188 : vector<256x128xf32>
    %190 = arith.truncf %189 : vector<256x128xf32> to vector<256x128xbf16>
    %cst_130 = arith.constant dense<0.000000e+00> : vector<1x128xf32>
    %191 = tpu.matmul %2, %190, %cst_130 {dimension_numbers = #tpu.dot_dimension_numbers<[1], [0], [0], [1], [0, 0, 1, 1], [], []>} : vector<1x256xbf16>, vector<256x128xbf16>, vector<1x128xf32> -> vector<1x128xf32>
    %c0_131 = arith.constant 0 : index
    %c21 = arith.constant 21 : index
    %c0_132 = arith.constant 0 : index
    %c0_133 = arith.constant 0 : index
    %192 = vector.load %arg1[%c0_131, %c21, %c0_132, %c0_133] : memref<1x27x256x32xbf16, #tpu.memory_space<vmem>>, vector<1x1x256x32xbf16>
    %193 = vector.shape_cast %192 : vector<1x1x256x32xbf16> to vector<256x32xbf16>
    %cst_134 = arith.constant dense<0.000000e+00> : vector<256x128xf32>
    %194 = tpu.matmul %193, %0, %cst_134 {dimension_numbers = #tpu.dot_dimension_numbers<[1], [0], [0], [1], [0, 0, 1, 1], [], []>} : vector<256x32xbf16>, vector<32x128xbf16>, vector<256x128xf32> -> vector<256x128xf32>
    %195 = vector.broadcast %1 : vector<1x128xf32> to vector<256x128xf32>
    %196 = arith.addf %194, %195 : vector<256x128xf32>
    %cst_135 = arith.constant 0.000000e+00 : f32
    %197 = vector.broadcast %cst_135 : f32 to vector<256x128xf32>
    %198 = arith.maximumf %196, %197 : vector<256x128xf32>
    %199 = arith.truncf %198 : vector<256x128xf32> to vector<256x128xbf16>
    %cst_136 = arith.constant dense<0.000000e+00> : vector<1x128xf32>
    %200 = tpu.matmul %2, %199, %cst_136 {dimension_numbers = #tpu.dot_dimension_numbers<[1], [0], [0], [1], [0, 0, 1, 1], [], []>} : vector<1x256xbf16>, vector<256x128xbf16>, vector<1x128xf32> -> vector<1x128xf32>
    %c0_137 = arith.constant 0 : index
    %c22 = arith.constant 22 : index
    %c0_138 = arith.constant 0 : index
    %c0_139 = arith.constant 0 : index
    %201 = vector.load %arg1[%c0_137, %c22, %c0_138, %c0_139] : memref<1x27x256x32xbf16, #tpu.memory_space<vmem>>, vector<1x1x256x32xbf16>
    %202 = vector.shape_cast %201 : vector<1x1x256x32xbf16> to vector<256x32xbf16>
    %cst_140 = arith.constant dense<0.000000e+00> : vector<256x128xf32>
    %203 = tpu.matmul %202, %0, %cst_140 {dimension_numbers = #tpu.dot_dimension_numbers<[1], [0], [0], [1], [0, 0, 1, 1], [], []>} : vector<256x32xbf16>, vector<32x128xbf16>, vector<256x128xf32> -> vector<256x128xf32>
    %204 = vector.broadcast %1 : vector<1x128xf32> to vector<256x128xf32>
    %205 = arith.addf %203, %204 : vector<256x128xf32>
    %cst_141 = arith.constant 0.000000e+00 : f32
    %206 = vector.broadcast %cst_141 : f32 to vector<256x128xf32>
    %207 = arith.maximumf %205, %206 : vector<256x128xf32>
    %208 = arith.truncf %207 : vector<256x128xf32> to vector<256x128xbf16>
    %cst_142 = arith.constant dense<0.000000e+00> : vector<1x128xf32>
    %209 = tpu.matmul %2, %208, %cst_142 {dimension_numbers = #tpu.dot_dimension_numbers<[1], [0], [0], [1], [0, 0, 1, 1], [], []>} : vector<1x256xbf16>, vector<256x128xbf16>, vector<1x128xf32> -> vector<1x128xf32>
    %c0_143 = arith.constant 0 : index
    %c23 = arith.constant 23 : index
    %c0_144 = arith.constant 0 : index
    %c0_145 = arith.constant 0 : index
    %210 = vector.load %arg1[%c0_143, %c23, %c0_144, %c0_145] : memref<1x27x256x32xbf16, #tpu.memory_space<vmem>>, vector<1x1x256x32xbf16>
    %211 = vector.shape_cast %210 : vector<1x1x256x32xbf16> to vector<256x32xbf16>
    %cst_146 = arith.constant dense<0.000000e+00> : vector<256x128xf32>
    %212 = tpu.matmul %211, %0, %cst_146 {dimension_numbers = #tpu.dot_dimension_numbers<[1], [0], [0], [1], [0, 0, 1, 1], [], []>} : vector<256x32xbf16>, vector<32x128xbf16>, vector<256x128xf32> -> vector<256x128xf32>
    %213 = vector.broadcast %1 : vector<1x128xf32> to vector<256x128xf32>
    %214 = arith.addf %212, %213 : vector<256x128xf32>
    %cst_147 = arith.constant 0.000000e+00 : f32
    %215 = vector.broadcast %cst_147 : f32 to vector<256x128xf32>
    %216 = arith.maximumf %214, %215 : vector<256x128xf32>
    %217 = arith.truncf %216 : vector<256x128xf32> to vector<256x128xbf16>
    %cst_148 = arith.constant dense<0.000000e+00> : vector<1x128xf32>
    %218 = tpu.matmul %2, %217, %cst_148 {dimension_numbers = #tpu.dot_dimension_numbers<[1], [0], [0], [1], [0, 0, 1, 1], [], []>} : vector<1x256xbf16>, vector<256x128xbf16>, vector<1x128xf32> -> vector<1x128xf32>
    %c0_149 = arith.constant 0 : index
    %c24 = arith.constant 24 : index
    %c0_150 = arith.constant 0 : index
    %c0_151 = arith.constant 0 : index
    %219 = vector.load %arg1[%c0_149, %c24, %c0_150, %c0_151] : memref<1x27x256x32xbf16, #tpu.memory_space<vmem>>, vector<1x1x256x32xbf16>
    %220 = vector.shape_cast %219 : vector<1x1x256x32xbf16> to vector<256x32xbf16>
    %cst_152 = arith.constant dense<0.000000e+00> : vector<256x128xf32>
    %221 = tpu.matmul %220, %0, %cst_152 {dimension_numbers = #tpu.dot_dimension_numbers<[1], [0], [0], [1], [0, 0, 1, 1], [], []>} : vector<256x32xbf16>, vector<32x128xbf16>, vector<256x128xf32> -> vector<256x128xf32>
    %222 = vector.broadcast %1 : vector<1x128xf32> to vector<256x128xf32>
    %223 = arith.addf %221, %222 : vector<256x128xf32>
    %cst_153 = arith.constant 0.000000e+00 : f32
    %224 = vector.broadcast %cst_153 : f32 to vector<256x128xf32>
    %225 = arith.maximumf %223, %224 : vector<256x128xf32>
    %226 = arith.truncf %225 : vector<256x128xf32> to vector<256x128xbf16>
    %cst_154 = arith.constant dense<0.000000e+00> : vector<1x128xf32>
    %227 = tpu.matmul %2, %226, %cst_154 {dimension_numbers = #tpu.dot_dimension_numbers<[1], [0], [0], [1], [0, 0, 1, 1], [], []>} : vector<1x256xbf16>, vector<256x128xbf16>, vector<1x128xf32> -> vector<1x128xf32>
    %c0_155 = arith.constant 0 : index
    %c25 = arith.constant 25 : index
    %c0_156 = arith.constant 0 : index
    %c0_157 = arith.constant 0 : index
    %228 = vector.load %arg1[%c0_155, %c25, %c0_156, %c0_157] : memref<1x27x256x32xbf16, #tpu.memory_space<vmem>>, vector<1x1x256x32xbf16>
    %229 = vector.shape_cast %228 : vector<1x1x256x32xbf16> to vector<256x32xbf16>
    %cst_158 = arith.constant dense<0.000000e+00> : vector<256x128xf32>
    %230 = tpu.matmul %229, %0, %cst_158 {dimension_numbers = #tpu.dot_dimension_numbers<[1], [0], [0], [1], [0, 0, 1, 1], [], []>} : vector<256x32xbf16>, vector<32x128xbf16>, vector<256x128xf32> -> vector<256x128xf32>
    %231 = vector.broadcast %1 : vector<1x128xf32> to vector<256x128xf32>
    %232 = arith.addf %230, %231 : vector<256x128xf32>
    %cst_159 = arith.constant 0.000000e+00 : f32
    %233 = vector.broadcast %cst_159 : f32 to vector<256x128xf32>
    %234 = arith.maximumf %232, %233 : vector<256x128xf32>
    %235 = arith.truncf %234 : vector<256x128xf32> to vector<256x128xbf16>
    %cst_160 = arith.constant dense<0.000000e+00> : vector<1x128xf32>
    %236 = tpu.matmul %2, %235, %cst_160 {dimension_numbers = #tpu.dot_dimension_numbers<[1], [0], [0], [1], [0, 0, 1, 1], [], []>} : vector<1x256xbf16>, vector<256x128xbf16>, vector<1x128xf32> -> vector<1x128xf32>
    %c0_161 = arith.constant 0 : index
    %c26 = arith.constant 26 : index
    %c0_162 = arith.constant 0 : index
    %c0_163 = arith.constant 0 : index
    %237 = vector.load %arg1[%c0_161, %c26, %c0_162, %c0_163] : memref<1x27x256x32xbf16, #tpu.memory_space<vmem>>, vector<1x1x256x32xbf16>
    %238 = vector.shape_cast %237 : vector<1x1x256x32xbf16> to vector<256x32xbf16>
    %cst_164 = arith.constant dense<0.000000e+00> : vector<256x128xf32>
    %239 = tpu.matmul %238, %0, %cst_164 {dimension_numbers = #tpu.dot_dimension_numbers<[1], [0], [0], [1], [0, 0, 1, 1], [], []>} : vector<256x32xbf16>, vector<32x128xbf16>, vector<256x128xf32> -> vector<256x128xf32>
    %240 = vector.broadcast %1 : vector<1x128xf32> to vector<256x128xf32>
    %241 = arith.addf %239, %240 : vector<256x128xf32>
    %cst_165 = arith.constant 0.000000e+00 : f32
    %242 = vector.broadcast %cst_165 : f32 to vector<256x128xf32>
    %243 = arith.maximumf %241, %242 : vector<256x128xf32>
    %244 = arith.truncf %243 : vector<256x128xf32> to vector<256x128xbf16>
    %cst_166 = arith.constant dense<0.000000e+00> : vector<1x128xf32>
    %245 = tpu.matmul %2, %244, %cst_166 {dimension_numbers = #tpu.dot_dimension_numbers<[1], [0], [0], [1], [0, 0, 1, 1], [], []>} : vector<1x256xbf16>, vector<256x128xbf16>, vector<1x128xf32> -> vector<1x128xf32>
    %246 = tpu.concatenate %11, %20, %29, %38, %47, %56, %65, %74, %83, %92, %101, %110, %119, %128, %137, %146 in 0 : vector<1x128xf32>, vector<1x128xf32>, vector<1x128xf32>, vector<1x128xf32>, vector<1x128xf32>, vector<1x128xf32>, vector<1x128xf32>, vector<1x128xf32>, vector<1x128xf32>, vector<1x128xf32>, vector<1x128xf32>, vector<1x128xf32>, vector<1x128xf32>, vector<1x128xf32>, vector<1x128xf32>, vector<1x128xf32> -> vector<16x128xf32>
    %247 = tpu.concatenate %155, %164, %173, %182, %191, %200, %209, %218, %227, %236, %245 in 0 : vector<1x128xf32>, vector<1x128xf32>, vector<1x128xf32>, vector<1x128xf32>, vector<1x128xf32>, vector<1x128xf32>, vector<1x128xf32>, vector<1x128xf32>, vector<1x128xf32>, vector<1x128xf32>, vector<1x128xf32> -> vector<11x128xf32>
    %248 = tpu.concatenate %246, %247 in 0 : vector<16x128xf32>, vector<11x128xf32> -> vector<27x128xf32>
    %249 = arith.truncf %248 : vector<27x128xf32> to vector<27x128xbf16>
    %c0_167 = arith.constant 0 : index
    %c0_168 = arith.constant 0 : index
    %250 = vector.load %arg5[%c0_167, %c0_168] : memref<128x128xbf16, #tpu.memory_space<vmem>>, vector<128x128xbf16>
    %cst_169 = arith.constant dense<0.000000e+00> : vector<27x128xf32>
    %251 = tpu.matmul %249, %250, %cst_169 {dimension_numbers = #tpu.dot_dimension_numbers<[1], [0], [0], [1], [0, 0, 1, 1], [], []>} : vector<27x128xbf16>, vector<128x128xbf16>, vector<27x128xf32> -> vector<27x128xf32>
    %c0_170 = arith.constant 0 : index
    %c0_171 = arith.constant 0 : index
    %252 = vector.load %arg6[%c0_170, %c0_171] : memref<1x128xf32, #tpu.memory_space<vmem>>, vector<1x128xf32>
    %253 = vector.broadcast %252 : vector<1x128xf32> to vector<27x128xf32>
    %254 = arith.addf %251, %253 : vector<27x128xf32>
    %c0_172 = arith.constant 0 : index
    %c0_173 = arith.constant 0 : index
    %c0_174 = arith.constant 0 : index
    %255 = vector.load %arg7[%c0_172, %c0_173, %c0_174] : memref<1x27x128xf32, #tpu.memory_space<vmem>>, vector<1x27x128xf32>
    %256 = vector.shape_cast %255 : vector<1x27x128xf32> to vector<27x128xf32>
    %257 = vector.shape_cast %254 : vector<27x128xf32> to vector<1x27x128xf32>
    tpu.vector_store %arg7[%c0_172, %c0_173, %c0_174], %257 {strides = array<i32>} : memref<1x27x128xf32, #tpu.memory_space<vmem>>, vector<1x27x128xf32>,
    return
  }
  func.func @transform_0(%arg0: i32) -> (i32, i32, i32, i32) {
    %c0_i32 = arith.constant 0 : i32
    %c0_i32_0 = arith.constant 0 : i32
    %c0_i32_1 = arith.constant 0 : i32
    %c0_i32_2 = arith.constant 0 : i32
    return %arg0, %c0_i32, %c0_i32_0, %c0_i32_1 : i32, i32, i32, i32
  }
  func.func @transform_1(%arg0: i32) -> (i32, i32) {
    %c0_i32 = arith.constant 0 : i32
    %c0_i32_0 = arith.constant 0 : i32
    %c0_i32_1 = arith.constant 0 : i32
    return %c0_i32, %c0_i32_0 : i32, i32
  }
  func.func @transform_2(%arg0: i32) -> (i32, i32) {
    %c0_i32 = arith.constant 0 : i32
    %c0_i32_0 = arith.constant 0 : i32
    %c0_i32_1 = arith.constant 0 : i32
    return %c0_i32, %c0_i32_0 : i32, i32
  }
  func.func @transform_3(%arg0: i32) -> (i32, i32) {
    %c0_i32 = arith.constant 0 : i32
    %c0_i32_0 = arith.constant 0 : i32
    %c0_i32_1 = arith.constant 0 : i32
    return %c0_i32, %c0_i32_0 : i32, i32
  }
  func.func @transform_4(%arg0: i32) -> (i32, i32) {
    %c0_i32 = arith.constant 0 : i32
    %c0_i32_0 = arith.constant 0 : i32
    %c0_i32_1 = arith.constant 0 : i32
    return %c0_i32, %c0_i32_0 : i32, i32
  }
  func.func @transform_5(%arg0: i32) -> (i32, i32) {
    %c0_i32 = arith.constant 0 : i32
    %c0_i32_0 = arith.constant 0 : i32
    %c0_i32_1 = arith.constant 0 : i32
    return %c0_i32, %c0_i32_0 : i32, i32
  }
  func.func @transform_6(%arg0: i32) -> (i32, i32, i32) {
    %c0_i32 = arith.constant 0 : i32
    %c0_i32_0 = arith.constant 0 : i32
    %c0_i32_1 = arith.constant 0 : i32
    return %arg0, %c0_i32, %c0_i32_0 : i32, i32, i32
  }
}

module attributes {stable_mosaic.version = 11 : i64} {
  func.func @kernel(%arg0: i32, %arg1: memref<1x3x9x128xbf16, #tpu.memory_space<vmem>>, %arg2: memref<3x128x128xbf16, #tpu.memory_space<vmem>>, %arg3: memref<1x128xf32, #tpu.memory_space<vmem>>, %arg4: memref<3x128x128xbf16, #tpu.memory_space<vmem>>, %arg5: memref<1x128xf32, #tpu.memory_space<vmem>>, %arg6: memref<128x128xbf16, #tpu.memory_space<vmem>>, %arg7: memref<1x128xf32, #tpu.memory_space<vmem>>, %arg8: memref<3x128x128xbf16, #tpu.memory_space<vmem>>, %arg9: memref<1x128xf32, #tpu.memory_space<vmem>>, %arg10: memref<128x128xbf16, #tpu.memory_space<vmem>>, %arg11: memref<1x128xf32, #tpu.memory_space<vmem>>, %arg12: memref<128x128xbf16, #tpu.memory_space<vmem>>, %arg13: memref<1x128xf32, #tpu.memory_space<vmem>>, %arg14: memref<1x1x128xf32, #tpu.memory_space<vmem>>, %arg15: memref<9x128xf32, #tpu.memory_space<vmem>>) attributes {dimension_semantics = [#tpu.dimension_semantics<parallel>], iteration_bounds = array<i64: 2>, scalar_prefetch = 0 : i64, scratch_operands = 1 : i64, tpu.core_type = #tpu.core_type<tc>, window_params = [{transform_indices = @transform_0, window_bounds = array<i64: 1, 3, 9, 128>}, {pipeline_mode = #tpu.pipeline_mode<synchronous>, transform_indices = @transform_1, window_bounds = array<i64: 3, 128, 128>}, {pipeline_mode = #tpu.pipeline_mode<synchronous>, transform_indices = @transform_2, window_bounds = array<i64: 1, 128>}, {pipeline_mode = #tpu.pipeline_mode<synchronous>, transform_indices = @transform_3, window_bounds = array<i64: 3, 128, 128>}, {pipeline_mode = #tpu.pipeline_mode<synchronous>, transform_indices = @transform_4, window_bounds = array<i64: 1, 128>}, {pipeline_mode = #tpu.pipeline_mode<synchronous>, transform_indices = @transform_5, window_bounds = array<i64: 128, 128>}, {pipeline_mode = #tpu.pipeline_mode<synchronous>, transform_indices = @transform_6, window_bounds = array<i64: 1, 128>}, {pipeline_mode = #tpu.pipeline_mode<synchronous>, transform_indices = @transform_7, window_bounds = array<i64: 3, 128, 128>}, {pipeline_mode = #tpu.pipeline_mode<synchronous>, transform_indices = @transform_8, window_bounds = array<i64: 1, 128>}, {pipeline_mode = #tpu.pipeline_mode<synchronous>, transform_indices = @transform_9, window_bounds = array<i64: 128, 128>}, {pipeline_mode = #tpu.pipeline_mode<synchronous>, transform_indices = @transform_10, window_bounds = array<i64: 1, 128>}, {pipeline_mode = #tpu.pipeline_mode<synchronous>, transform_indices = @transform_11, window_bounds = array<i64: 128, 128>}, {pipeline_mode = #tpu.pipeline_mode<synchronous>, transform_indices = @transform_12, window_bounds = array<i64: 1, 128>}, {transform_indices = @transform_13, window_bounds = array<i64: 1, 1, 128>}]} {
    %c0 = arith.constant 0 : index
    %c0_0 = arith.constant 0 : index
    %c0_1 = arith.constant 0 : index
    %c0_2 = arith.constant 0 : index
    %0 = vector.load %arg1[%c0, %c0_0, %c0_1, %c0_2] : memref<1x3x9x128xbf16, #tpu.memory_space<vmem>>, vector<1x1x9x128xbf16>
    %1 = vector.shape_cast %0 : vector<1x1x9x128xbf16> to vector<9x128xbf16>
    %c0_3 = arith.constant 0 : index
    %c0_4 = arith.constant 0 : index
    %c0_5 = arith.constant 0 : index
    %2 = vector.load %arg2[%c0_3, %c0_4, %c0_5] : memref<3x128x128xbf16, #tpu.memory_space<vmem>>, vector<1x128x128xbf16>
    %3 = vector.shape_cast %2 : vector<1x128x128xbf16> to vector<128x128xbf16>
    %cst = arith.constant dense<0.000000e+00> : vector<9x128xf32>
    %4 = tpu.matmul %1, %3, %cst {dimension_numbers = #tpu.dot_dimension_numbers<[1], [0], [0], [1], [0, 0, 1, 1], [], []>} : vector<9x128xbf16>, vector<128x128xbf16>, vector<9x128xf32> -> vector<9x128xf32>
    %c0_6 = arith.constant 0 : index
    %c1 = arith.constant 1 : index
    %c0_7 = arith.constant 0 : index
    %c0_8 = arith.constant 0 : index
    %5 = vector.load %arg1[%c0_6, %c1, %c0_7, %c0_8] : memref<1x3x9x128xbf16, #tpu.memory_space<vmem>>, vector<1x1x9x128xbf16>
    %6 = vector.shape_cast %5 : vector<1x1x9x128xbf16> to vector<9x128xbf16>
    %c1_9 = arith.constant 1 : index
    %c0_10 = arith.constant 0 : index
    %c0_11 = arith.constant 0 : index
    %7 = vector.load %arg2[%c1_9, %c0_10, %c0_11] : memref<3x128x128xbf16, #tpu.memory_space<vmem>>, vector<1x128x128xbf16>
    %8 = vector.shape_cast %7 : vector<1x128x128xbf16> to vector<128x128xbf16>
    %cst_12 = arith.constant dense<0.000000e+00> : vector<9x128xf32>
    %9 = tpu.matmul %6, %8, %cst_12 {dimension_numbers = #tpu.dot_dimension_numbers<[1], [0], [0], [1], [0, 0, 1, 1], [], []>} : vector<9x128xbf16>, vector<128x128xbf16>, vector<9x128xf32> -> vector<9x128xf32>
    %10 = arith.addf %4, %9 : vector<9x128xf32>
    %c0_13 = arith.constant 0 : index
    %c2 = arith.constant 2 : index
    %c0_14 = arith.constant 0 : index
    %c0_15 = arith.constant 0 : index
    %11 = vector.load %arg1[%c0_13, %c2, %c0_14, %c0_15] : memref<1x3x9x128xbf16, #tpu.memory_space<vmem>>, vector<1x1x9x128xbf16>
    %12 = vector.shape_cast %11 : vector<1x1x9x128xbf16> to vector<9x128xbf16>
    %c2_16 = arith.constant 2 : index
    %c0_17 = arith.constant 0 : index
    %c0_18 = arith.constant 0 : index
    %13 = vector.load %arg2[%c2_16, %c0_17, %c0_18] : memref<3x128x128xbf16, #tpu.memory_space<vmem>>, vector<1x128x128xbf16>
    %14 = vector.shape_cast %13 : vector<1x128x128xbf16> to vector<128x128xbf16>
    %cst_19 = arith.constant dense<0.000000e+00> : vector<9x128xf32>
    %15 = tpu.matmul %12, %14, %cst_19 {dimension_numbers = #tpu.dot_dimension_numbers<[1], [0], [0], [1], [0, 0, 1, 1], [], []>} : vector<9x128xbf16>, vector<128x128xbf16>, vector<9x128xf32> -> vector<9x128xf32>
    %16 = arith.addf %10, %15 : vector<9x128xf32>
    %c0_20 = arith.constant 0 : index
    %c0_21 = arith.constant 0 : index
    %17 = vector.load %arg3[%c0_20, %c0_21] : memref<1x128xf32, #tpu.memory_space<vmem>>, vector<1x128xf32>
    %18 = vector.broadcast %17 : vector<1x128xf32> to vector<9x128xf32>
    %19 = arith.addf %16, %18 : vector<9x128xf32>
    %cst_22 = arith.constant 0.000000e+00 : f32
    %20 = vector.broadcast %cst_22 : f32 to vector<9x128xf32>
    %21 = arith.maximumf %19, %20 : vector<9x128xf32>
    %c0_23 = arith.constant 0 : index
    %c0_24 = arith.constant 0 : index
    %22 = vector.load %arg15[%c0_23, %c0_24] : memref<9x128xf32, #tpu.memory_space<vmem>>, vector<9x128xf32>
    tpu.vector_store %arg15[%c0_23, %c0_24], %21 {strides = array<i32>} : memref<9x128xf32, #tpu.memory_space<vmem>>, vector<9x128xf32>,
    %c0_25 = arith.constant 0 : index
    %c0_26 = arith.constant 0 : index
    %23 = tpu.strided_load %arg15[%c0_25, %c0_26] {strides = array<i32: 3, 1>} : memref<9x128xf32, #tpu.memory_space<vmem>>, vector<3x128xf32>
    %c1_27 = arith.constant 1 : index
    %c0_28 = arith.constant 0 : index
    %24 = tpu.strided_load %arg15[%c1_27, %c0_28] {strides = array<i32: 3, 1>} : memref<9x128xf32, #tpu.memory_space<vmem>>, vector<3x128xf32>
    %c2_29 = arith.constant 2 : index
    %c0_30 = arith.constant 0 : index
    %25 = tpu.strided_load %arg15[%c2_29, %c0_30] {strides = array<i32: 3, 1>} : memref<9x128xf32, #tpu.memory_space<vmem>>, vector<3x128xf32>
    %26 = arith.truncf %23 : vector<3x128xf32> to vector<3x128xbf16>
    %c0_31 = arith.constant 0 : index
    %c0_32 = arith.constant 0 : index
    %c0_33 = arith.constant 0 : index
    %27 = vector.load %arg4[%c0_31, %c0_32, %c0_33] : memref<3x128x128xbf16, #tpu.memory_space<vmem>>, vector<1x128x128xbf16>
    %28 = vector.shape_cast %27 : vector<1x128x128xbf16> to vector<128x128xbf16>
    %cst_34 = arith.constant dense<0.000000e+00> : vector<3x128xf32>
    %29 = tpu.matmul %26, %28, %cst_34 {dimension_numbers = #tpu.dot_dimension_numbers<[1], [0], [0], [1], [0, 0, 1, 1], [], []>} : vector<3x128xbf16>, vector<128x128xbf16>, vector<3x128xf32> -> vector<3x128xf32>
    %30 = arith.truncf %24 : vector<3x128xf32> to vector<3x128xbf16>
    %c1_35 = arith.constant 1 : index
    %c0_36 = arith.constant 0 : index
    %c0_37 = arith.constant 0 : index
    %31 = vector.load %arg4[%c1_35, %c0_36, %c0_37] : memref<3x128x128xbf16, #tpu.memory_space<vmem>>, vector<1x128x128xbf16>
    %32 = vector.shape_cast %31 : vector<1x128x128xbf16> to vector<128x128xbf16>
    %cst_38 = arith.constant dense<0.000000e+00> : vector<3x128xf32>
    %33 = tpu.matmul %30, %32, %cst_38 {dimension_numbers = #tpu.dot_dimension_numbers<[1], [0], [0], [1], [0, 0, 1, 1], [], []>} : vector<3x128xbf16>, vector<128x128xbf16>, vector<3x128xf32> -> vector<3x128xf32>
    %34 = arith.addf %29, %33 : vector<3x128xf32>
    %35 = arith.truncf %25 : vector<3x128xf32> to vector<3x128xbf16>
    %c2_39 = arith.constant 2 : index
    %c0_40 = arith.constant 0 : index
    %c0_41 = arith.constant 0 : index
    %36 = vector.load %arg4[%c2_39, %c0_40, %c0_41] : memref<3x128x128xbf16, #tpu.memory_space<vmem>>, vector<1x128x128xbf16>
    %37 = vector.shape_cast %36 : vector<1x128x128xbf16> to vector<128x128xbf16>
    %cst_42 = arith.constant dense<0.000000e+00> : vector<3x128xf32>
    %38 = tpu.matmul %35, %37, %cst_42 {dimension_numbers = #tpu.dot_dimension_numbers<[1], [0], [0], [1], [0, 0, 1, 1], [], []>} : vector<3x128xbf16>, vector<128x128xbf16>, vector<3x128xf32> -> vector<3x128xf32>
    %39 = arith.addf %34, %38 : vector<3x128xf32>
    %c0_43 = arith.constant 0 : index
    %c0_44 = arith.constant 0 : index
    %40 = vector.load %arg5[%c0_43, %c0_44] : memref<1x128xf32, #tpu.memory_space<vmem>>, vector<1x128xf32>
    %41 = vector.broadcast %40 : vector<1x128xf32> to vector<3x128xf32>
    %42 = arith.addf %39, %41 : vector<3x128xf32>
    %cst_45 = arith.constant 0.000000e+00 : f32
    %43 = vector.broadcast %cst_45 : f32 to vector<3x128xf32>
    %44 = arith.maximumf %42, %43 : vector<3x128xf32>
    %45 = arith.truncf %44 : vector<3x128xf32> to vector<3x128xbf16>
    %c0_46 = arith.constant 0 : index
    %c0_47 = arith.constant 0 : index
    %46 = vector.load %arg6[%c0_46, %c0_47] : memref<128x128xbf16, #tpu.memory_space<vmem>>, vector<128x128xbf16>
    %cst_48 = arith.constant dense<0.000000e+00> : vector<3x128xf32>
    %47 = tpu.matmul %45, %46, %cst_48 {dimension_numbers = #tpu.dot_dimension_numbers<[1], [0], [0], [1], [0, 0, 1, 1], [], []>} : vector<3x128xbf16>, vector<128x128xbf16>, vector<3x128xf32> -> vector<3x128xf32>
    %c0_49 = arith.constant 0 : index
    %c0_50 = arith.constant 0 : index
    %48 = vector.load %arg7[%c0_49, %c0_50] : memref<1x128xf32, #tpu.memory_space<vmem>>, vector<1x128xf32>
    %49 = vector.broadcast %48 : vector<1x128xf32> to vector<3x128xf32>
    %50 = arith.addf %47, %49 : vector<3x128xf32>
    %cst_51 = arith.constant 0.000000e+00 : f32
    %51 = vector.broadcast %cst_51 : f32 to vector<3x128xf32>
    %52 = arith.maximumf %50, %51 : vector<3x128xf32>
    %53 = arith.addf %24, %52 : vector<3x128xf32>
    %c0_52 = arith.constant 0 : index
    %c0_53 = arith.constant 0 : index
    %54 = vector.load %arg15[%c0_52, %c0_53] : memref<9x128xf32, #tpu.memory_space<vmem>>, vector<3x128xf32>
    tpu.vector_store %arg15[%c0_52, %c0_53], %53 {strides = array<i32>} : memref<9x128xf32, #tpu.memory_space<vmem>>, vector<3x128xf32>,
    %c0_54 = arith.constant 0 : index
    %c0_55 = arith.constant 0 : index
    %55 = vector.load %arg15[%c0_54, %c0_55] : memref<9x128xf32, #tpu.memory_space<vmem>>, vector<1x128xf32>
    %c1_56 = arith.constant 1 : index
    %c0_57 = arith.constant 0 : index
    %56 = vector.load %arg15[%c1_56, %c0_57] : memref<9x128xf32, #tpu.memory_space<vmem>>, vector<1x128xf32>
    %c2_58 = arith.constant 2 : index
    %c0_59 = arith.constant 0 : index
    %57 = vector.load %arg15[%c2_58, %c0_59] : memref<9x128xf32, #tpu.memory_space<vmem>>, vector<1x128xf32>
    %58 = arith.truncf %55 : vector<1x128xf32> to vector<1x128xbf16>
    %c0_60 = arith.constant 0 : index
    %c0_61 = arith.constant 0 : index
    %c0_62 = arith.constant 0 : index
    %59 = vector.load %arg8[%c0_60, %c0_61, %c0_62] : memref<3x128x128xbf16, #tpu.memory_space<vmem>>, vector<1x128x128xbf16>
    %60 = vector.shape_cast %59 : vector<1x128x128xbf16> to vector<128x128xbf16>
    %cst_63 = arith.constant dense<0.000000e+00> : vector<1x128xf32>
    %61 = tpu.matmul %58, %60, %cst_63 {dimension_numbers = #tpu.dot_dimension_numbers<[1], [0], [0], [1], [0, 0, 1, 1], [], []>} : vector<1x128xbf16>, vector<128x128xbf16>, vector<1x128xf32> -> vector<1x128xf32>
    %62 = arith.truncf %56 : vector<1x128xf32> to vector<1x128xbf16>
    %c1_64 = arith.constant 1 : index
    %c0_65 = arith.constant 0 : index
    %c0_66 = arith.constant 0 : index
    %63 = vector.load %arg8[%c1_64, %c0_65, %c0_66] : memref<3x128x128xbf16, #tpu.memory_space<vmem>>, vector<1x128x128xbf16>
    %64 = vector.shape_cast %63 : vector<1x128x128xbf16> to vector<128x128xbf16>
    %cst_67 = arith.constant dense<0.000000e+00> : vector<1x128xf32>
    %65 = tpu.matmul %62, %64, %cst_67 {dimension_numbers = #tpu.dot_dimension_numbers<[1], [0], [0], [1], [0, 0, 1, 1], [], []>} : vector<1x128xbf16>, vector<128x128xbf16>, vector<1x128xf32> -> vector<1x128xf32>
    %66 = arith.addf %61, %65 : vector<1x128xf32>
    %67 = arith.truncf %57 : vector<1x128xf32> to vector<1x128xbf16>
    %c2_68 = arith.constant 2 : index
    %c0_69 = arith.constant 0 : index
    %c0_70 = arith.constant 0 : index
    %68 = vector.load %arg8[%c2_68, %c0_69, %c0_70] : memref<3x128x128xbf16, #tpu.memory_space<vmem>>, vector<1x128x128xbf16>
    %69 = vector.shape_cast %68 : vector<1x128x128xbf16> to vector<128x128xbf16>
    %cst_71 = arith.constant dense<0.000000e+00> : vector<1x128xf32>
    %70 = tpu.matmul %67, %69, %cst_71 {dimension_numbers = #tpu.dot_dimension_numbers<[1], [0], [0], [1], [0, 0, 1, 1], [], []>} : vector<1x128xbf16>, vector<128x128xbf16>, vector<1x128xf32> -> vector<1x128xf32>
    %71 = arith.addf %66, %70 : vector<1x128xf32>
    %c0_72 = arith.constant 0 : index
    %c0_73 = arith.constant 0 : index
    %72 = vector.load %arg9[%c0_72, %c0_73] : memref<1x128xf32, #tpu.memory_space<vmem>>, vector<1x128xf32>
    %73 = arith.addf %71, %72 : vector<1x128xf32>
    %cst_74 = arith.constant 0.000000e+00 : f32
    %74 = vector.broadcast %cst_74 : f32 to vector<1x128xf32>
    %75 = arith.maximumf %73, %74 : vector<1x128xf32>
    %76 = arith.truncf %75 : vector<1x128xf32> to vector<1x128xbf16>
    %c0_75 = arith.constant 0 : index
    %c0_76 = arith.constant 0 : index
    %77 = vector.load %arg10[%c0_75, %c0_76] : memref<128x128xbf16, #tpu.memory_space<vmem>>, vector<128x128xbf16>
    %cst_77 = arith.constant dense<0.000000e+00> : vector<1x128xf32>
    %78 = tpu.matmul %76, %77, %cst_77 {dimension_numbers = #tpu.dot_dimension_numbers<[1], [0], [0], [1], [0, 0, 1, 1], [], []>} : vector<1x128xbf16>, vector<128x128xbf16>, vector<1x128xf32> -> vector<1x128xf32>
    %c0_78 = arith.constant 0 : index
    %c0_79 = arith.constant 0 : index
    %79 = vector.load %arg11[%c0_78, %c0_79] : memref<1x128xf32, #tpu.memory_space<vmem>>, vector<1x128xf32>
    %80 = arith.addf %78, %79 : vector<1x128xf32>
    %cst_80 = arith.constant 0.000000e+00 : f32
    %81 = vector.broadcast %cst_80 : f32 to vector<1x128xf32>
    %82 = arith.maximumf %80, %81 : vector<1x128xf32>
    %83 = arith.addf %56, %82 : vector<1x128xf32>
    %84 = arith.truncf %83 : vector<1x128xf32> to vector<1x128xbf16>
    %c0_81 = arith.constant 0 : index
    %c0_82 = arith.constant 0 : index
    %85 = vector.load %arg12[%c0_81, %c0_82] : memref<128x128xbf16, #tpu.memory_space<vmem>>, vector<128x128xbf16>
    %cst_83 = arith.constant dense<0.000000e+00> : vector<1x128xf32>
    %86 = tpu.matmul %84, %85, %cst_83 {dimension_numbers = #tpu.dot_dimension_numbers<[1], [0], [0], [1], [0, 0, 1, 1], [], []>} : vector<1x128xbf16>, vector<128x128xbf16>, vector<1x128xf32> -> vector<1x128xf32>
    %c0_84 = arith.constant 0 : index
    %c0_85 = arith.constant 0 : index
    %87 = vector.load %arg13[%c0_84, %c0_85] : memref<1x128xf32, #tpu.memory_space<vmem>>, vector<1x128xf32>
    %88 = arith.addf %86, %87 : vector<1x128xf32>
    %c0_86 = arith.constant 0 : index
    %c0_87 = arith.constant 0 : index
    %c0_88 = arith.constant 0 : index
    %89 = vector.load %arg14[%c0_86, %c0_87, %c0_88] : memref<1x1x128xf32, #tpu.memory_space<vmem>>, vector<1x1x128xf32>
    %90 = vector.shape_cast %89 : vector<1x1x128xf32> to vector<1x128xf32>
    %91 = vector.shape_cast %88 : vector<1x128xf32> to vector<1x1x128xf32>
    tpu.vector_store %arg14[%c0_86, %c0_87, %c0_88], %91 {strides = array<i32>} : memref<1x1x128xf32, #tpu.memory_space<vmem>>, vector<1x1x128xf32>,
    return
  }
  func.func @transform_0(%arg0: i32) -> (i32, i32, i32, i32) {
    %c0_i32 = arith.constant 0 : i32
    %c0_i32_0 = arith.constant 0 : i32
    %c0_i32_1 = arith.constant 0 : i32
    %c0_i32_2 = arith.constant 0 : i32
    return %arg0, %c0_i32, %c0_i32_0, %c0_i32_1 : i32, i32, i32, i32
  }
  func.func @transform_1(%arg0: i32) -> (i32, i32, i32) {
    %c0_i32 = arith.constant 0 : i32
    %c0_i32_0 = arith.constant 0 : i32
    %c0_i32_1 = arith.constant 0 : i32
    %c0_i32_2 = arith.constant 0 : i32
    return %c0_i32, %c0_i32_0, %c0_i32_1 : i32, i32, i32
  }
  func.func @transform_2(%arg0: i32) -> (i32, i32) {
    %c0_i32 = arith.constant 0 : i32
    %c0_i32_0 = arith.constant 0 : i32
    %c0_i32_1 = arith.constant 0 : i32
    return %c0_i32, %c0_i32_0 : i32, i32
  }
  func.func @transform_3(%arg0: i32) -> (i32, i32, i32) {
    %c0_i32 = arith.constant 0 : i32
    %c0_i32_0 = arith.constant 0 : i32
    %c0_i32_1 = arith.constant 0 : i32
    %c0_i32_2 = arith.constant 0 : i32
    return %c0_i32, %c0_i32_0, %c0_i32_1 : i32, i32, i32
  }
  func.func @transform_4(%arg0: i32) -> (i32, i32) {
    %c0_i32 = arith.constant 0 : i32
    %c0_i32_0 = arith.constant 0 : i32
    %c0_i32_1 = arith.constant 0 : i32
    return %c0_i32, %c0_i32_0 : i32, i32
  }
  func.func @transform_5(%arg0: i32) -> (i32, i32) {
    %c0_i32 = arith.constant 0 : i32
    %c0_i32_0 = arith.constant 0 : i32
    %c0_i32_1 = arith.constant 0 : i32
    return %c0_i32, %c0_i32_0 : i32, i32
  }
  func.func @transform_6(%arg0: i32) -> (i32, i32) {
    %c0_i32 = arith.constant 0 : i32
    %c0_i32_0 = arith.constant 0 : i32
    %c0_i32_1 = arith.constant 0 : i32
    return %c0_i32, %c0_i32_0 : i32, i32
  }
  func.func @transform_7(%arg0: i32) -> (i32, i32, i32) {
    %c0_i32 = arith.constant 0 : i32
    %c0_i32_0 = arith.constant 0 : i32
    %c0_i32_1 = arith.constant 0 : i32
    %c0_i32_2 = arith.constant 0 : i32
    return %c0_i32, %c0_i32_0, %c0_i32_1 : i32, i32, i32
  }
  func.func @transform_8(%arg0: i32) -> (i32, i32) {
    %c0_i32 = arith.constant 0 : i32
    %c0_i32_0 = arith.constant 0 : i32
    %c0_i32_1 = arith.constant 0 : i32
    return %c0_i32, %c0_i32_0 : i32, i32
  }
  func.func @transform_9(%arg0: i32) -> (i32, i32) {
    %c0_i32 = arith.constant 0 : i32
    %c0_i32_0 = arith.constant 0 : i32
    %c0_i32_1 = arith.constant 0 : i32
    return %c0_i32, %c0_i32_0 : i32, i32
  }
  func.func @transform_10(%arg0: i32) -> (i32, i32) {
    %c0_i32 = arith.constant 0 : i32
    %c0_i32_0 = arith.constant 0 : i32
    %c0_i32_1 = arith.constant 0 : i32
    return %c0_i32, %c0_i32_0 : i32, i32
  }
  func.func @transform_11(%arg0: i32) -> (i32, i32) {
    %c0_i32 = arith.constant 0 : i32
    %c0_i32_0 = arith.constant 0 : i32
    %c0_i32_1 = arith.constant 0 : i32
    return %c0_i32, %c0_i32_0 : i32, i32
  }
  func.func @transform_12(%arg0: i32) -> (i32, i32) {
    %c0_i32 = arith.constant 0 : i32
    %c0_i32_0 = arith.constant 0 : i32
    %c0_i32_1 = arith.constant 0 : i32
    return %c0_i32, %c0_i32_0 : i32, i32
  }
  func.func @transform_13(%arg0: i32) -> (i32, i32, i32) {
    %c0_i32 = arith.constant 0 : i32
    %c0_i32_0 = arith.constant 0 : i32
    %c0_i32_1 = arith.constant 0 : i32
    return %arg0, %c0_i32, %c0_i32_0 : i32, i32, i32
  }
}

</mosaic_0001>

<llo_original>
// kernel: _lambda_.3
$region0: #{_lambda_.3}
  #allocation0 [shape = 'u32[]', space=smem, size = 0x4, offset = 0x4, fixed_abs, tag = 'smem constant byte address 0x4 - core index']
  #allocation1 [shape = 'u32[72,128]{1,0:T(1,128)}', space=vmem, size = 0x9000, scoped, tag = 'internal scratch']
  #allocation2 [shape = 'f32[9,128]{1,0:T(8,128)}', space=vmem, size = 0x2000, scoped, tag = 'scratch operand']
  %s0 = inlined_call_operand.vmem [shape: bf16[2,3,9,128], index: 0, kind: input, shape index: {}]
  %s1 = inlined_call_operand.vmem [shape: bf16[3,128,128], index: 1, kind: input, shape index: {}]
  %s2 = inlined_call_operand.vmem [shape: f32[1,128], index: 2, kind: input, shape index: {}]
  %s3 = inlined_call_operand.vmem [shape: bf16[3,128,128], index: 3, kind: input, shape index: {}]
  %s4 = inlined_call_operand.vmem [shape: f32[1,128], index: 4, kind: input, shape index: {}]
  %s5 = inlined_call_operand.vmem [shape: bf16[128,128], index: 5, kind: input, shape index: {}]
  %s6 = inlined_call_operand.vmem [shape: f32[1,128], index: 6, kind: input, shape index: {}]
  %s7 = inlined_call_operand.vmem [shape: bf16[3,128,128], index: 7, kind: input, shape index: {}]
  %s8 = inlined_call_operand.vmem [shape: f32[1,128], index: 8, kind: input, shape index: {}]
  %s9 = inlined_call_operand.vmem [shape: bf16[128,128], index: 9, kind: input, shape index: {}]
  %s10 = inlined_call_operand.vmem [shape: f32[1,128], index: 10, kind: input, shape index: {}]
  %s11 = inlined_call_operand.vmem [shape: bf16[128,128], index: 11, kind: input, shape index: {}]
  %s12 = inlined_call_operand.vmem [shape: f32[1,128], index: 12, kind: input, shape index: {}]
  %s13 = inlined_call_operand.vmem [shape: f32[2,1,128], index: 13, kind: output, shape index: {}]
  %s14 = sld [smem:[#allocation0]]
  $region85: #{_lambda_.3} parent=0
    _
  %s16 = ssub.s32 1, %s14
  %s17 = scalar_select 0, %s16, %s14
  loop: start=0, step=1, limit=4
  $region2: #{_lambda_.3} parent=0 // loop_pre_header
    _
  $region3: #{_lambda_.3} parent=0 // loop_header
    %s19 = sphi 0, %s23
    %p20 = scmp.ge.s32.totalorder %s19, 4
    %s29 = sphi 0, %s31
    %s32 = sphi 0, %s29
    %s33 = sphi 0, %s32
    %s49 = sphi 0, %s33
    %s53 = sphi 0, %s53
    %s55 = sphi 0, %s53
    %s56 = sphi 0, %s55
    %s70 = sphi 0, %s56
    %s74 = sphi 0, %s74
    %s76 = sphi 0, %s74
    %s77 = sphi 0, %s76
    %s91 = sphi 0, %s77
    %s95 = sphi 0, %s95
    %s97 = sphi 0, %s95
    %s98 = sphi 0, %s97
    %s112 = sphi 0, %s98
    %s116 = sphi 0, %s116
    %s118 = sphi 0, %s116
    %s119 = sphi 0, %s118
    %s133 = sphi 0, %s119
    %s137 = sphi 0, %s137
    %s139 = sphi 0, %s137
    %s140 = sphi 0, %s139
    %s154 = sphi 0, %s140
    %s158 = sphi 0, %s158
    %s160 = sphi 0, %s158
    %s161 = sphi 0, %s160
    %s175 = sphi 0, %s161
    %s179 = sphi 0, %s179
    %s181 = sphi 0, %s179
    %s182 = sphi 0, %s181
    %s196 = sphi 0, %s182
    %s200 = sphi 0, %s200
    %s202 = sphi 0, %s200
    %s203 = sphi 0, %s202
    %s217 = sphi 0, %s203
    %s221 = sphi 0, %s221
    %s223 = sphi 0, %s221
    %s224 = sphi 0, %s223
    %s238 = sphi 0, %s224
    %s242 = sphi 0, %s242
    %s244 = sphi 0, %s242
    %s245 = sphi 0, %s244
    %s259 = sphi 0, %s245
    %s263 = sphi 0, %s263
    %s265 = sphi 0, %s263
    %s266 = sphi 0, %s265
    %s280 = sphi 0, %s266
    %s284 = sphi 0, %s284
    %s286 = sphi 0, %s284
    %s287 = sphi 0, %s286
    %s301 = sphi 0, %s287
    %s307 = sphi 0, %s309
    %s310 = sphi 0, %s307
    %s311 = sphi 0, %s310
    %s327 = sphi 0, %s311
  $region4: #{_lambda_.3} parent=0 // loop_header_branch
    %22 = sbr.rel (%p20) target = $region8
  $region5: #{_lambda_.3} parent=0 // loop_body
    %s24 = ssub.s32 %s19, 1
    %s25 = ssub.s32 %s19, 2
    %s26 = sadd.s32 %s19, 1
    %s27 = ssub.s32 %s19, %s26
    %p28 = scmp.eq.s32.totalorder %s27, 0
    %s30 = sadd.s32 %s29, 1
    %s31 = scalar_select %p28, %s29, %s30
    %p34 = pneg %p28
    %p35 = scmp.eq.s32.totalorder %s19, 1
    %p36 = por %p34, %p35
    %p37 = scmp.ne.s32.totalorder %s29, %s32
    %p38 = scmp.eq.s32.totalorder %s19, 0
    %p39 = por %p37, %p38
    %p40 = scmp.ne.s32.totalorder %s29, %s32
    %p41 = scmp.eq.s32.totalorder %s24, 1
    %p42 = por %p40, %p41
    %p43 = scmp.ne.s32.totalorder %s32, %s33
    %p44 = scmp.eq.s32.totalorder %s24, 0
    %p45 = por %p43, %p44
    %p46 = scmp.ne.s32.totalorder %s32, %s33
    %p47 = scmp.eq.s32.totalorder %s25, 1
    %p48 = por %p46, %p47
    %p50 = scmp.ne.s32.totalorder %s33, %s49
    %p51 = scmp.eq.s32.totalorder %s25, 0
    %p52 = por %p50, %p51
    %s54 = sadd.s32 %s53, 1
    %p57 = scmp.eq.s32.totalorder %s19, 1
    %p58 = scmp.ne.s32.totalorder %s53, %s55
    %p59 = scmp.eq.s32.totalorder %s19, 0
    %p60 = por %p58, %p59
    %p61 = scmp.ne.s32.totalorder %s53, %s55
    %p62 = scmp.eq.s32.totalorder %s24, 1
    %p63 = por %p61, %p62
    %p64 = scmp.ne.s32.totalorder %s55, %s56
    %p65 = scmp.eq.s32.totalorder %s24, 0
    %p66 = por %p64, %p65
    %p67 = scmp.ne.s32.totalorder %s55, %s56
    %p68 = scmp.eq.s32.totalorder %s25, 1
    %p69 = por %p67, %p68
    %p71 = scmp.ne.s32.totalorder %s56, %s70
    %p72 = scmp.eq.s32.totalorder %s25, 0
    %p73 = por %p71, %p72
    %s75 = sadd.s32 %s74, 1
    %p78 = scmp.eq.s32.totalorder %s19, 1
    %p79 = scmp.ne.s32.totalorder %s74, %s76
    %p80 = scmp.eq.s32.totalorder %s19, 0
    %p81 = por %p79, %p80
    %p82 = scmp.ne.s32.totalorder %s74, %s76
    %p83 = scmp.eq.s32.totalorder %s24, 1
    %p84 = por %p82, %p83
    %p85 = scmp.ne.s32.totalorder %s76, %s77
    %p86 = scmp.eq.s32.totalorder %s24, 0
    %p87 = por %p85, %p86
    %p88 = scmp.ne.s32.totalorder %s76, %s77
    %p89 = scmp.eq.s32.totalorder %s25, 1
    %p90 = por %p88, %p89
    %p92 = scmp.ne.s32.totalorder %s77, %s91
    %p93 = scmp.eq.s32.totalorder %s25, 0
    %p94 = por %p92, %p93
    %s96 = sadd.s32 %s95, 1
    %p99 = scmp.eq.s32.totalorder %s19, 1
    %p100 = scmp.ne.s32.totalorder %s95, %s97
    %p101 = scmp.eq.s32.totalorder %s19, 0
    %p102 = por %p100, %p101
    %p103 = scmp.ne.s32.totalorder %s95, %s97
    %p104 = scmp.eq.s32.totalorder %s24, 1
    %p105 = por %p103, %p104
    %p106 = scmp.ne.s32.totalorder %s97, %s98
    %p107 = scmp.eq.s32.totalorder %s24, 0
    %p108 = por %p106, %p107
    %p109 = scmp.ne.s32.totalorder %s97, %s98
    %p110 = scmp.eq.s32.totalorder %s25, 1
    %p111 = por %p109, %p110
    %p113 = scmp.ne.s32.totalorder %s98, %s112
    %p114 = scmp.eq.s32.totalorder %s25, 0
    %p115 = por %p113, %p114
    %s117 = sadd.s32 %s116, 1
    %p120 = scmp.eq.s32.totalorder %s19, 1
    %p121 = scmp.ne.s32.totalorder %s116, %s118
    %p122 = scmp.eq.s32.totalorder %s19, 0
    %p123 = por %p121, %p122
    %p124 = scmp.ne.s32.totalorder %s116, %s118
    %p125 = scmp.eq.s32.totalorder %s24, 1
    %p126 = por %p124, %p125
    %p127 = scmp.ne.s32.totalorder %s118, %s119
    %p128 = scmp.eq.s32.totalorder %s24, 0
    %p129 = por %p127, %p128
    %p130 = scmp.ne.s32.totalorder %s118, %s119
    %p131 = scmp.eq.s32.totalorder %s25, 1
    %p132 = por %p130, %p131
    %p134 = scmp.ne.s32.totalorder %s119, %s133
    %p135 = scmp.eq.s32.totalorder %s25, 0
    %p136 = por %p134, %p135
    %s138 = sadd.s32 %s137, 1
    %p141 = scmp.eq.s32.totalorder %s19, 1
    %p142 = scmp.ne.s32.totalorder %s137, %s139
    %p143 = scmp.eq.s32.totalorder %s19, 0
    %p144 = por %p142, %p143
    %p145 = scmp.ne.s32.totalorder %s137, %s139
    %p146 = scmp.eq.s32.totalorder %s24, 1
    %p147 = por %p145, %p146
    %p148 = scmp.ne.s32.totalorder %s139, %s140
    %p149 = scmp.eq.s32.totalorder %s24, 0
    %p150 = por %p148, %p149
    %p151 = scmp.ne.s32.totalorder %s139, %s140
    %p152 = scmp.eq.s32.totalorder %s25, 1
    %p153 = por %p151, %p152
    %p155 = scmp.ne.s32.totalorder %s140, %s154
    %p156 = scmp.eq.s32.totalorder %s25, 0
    %p157 = por %p155, %p156
    %s159 = sadd.s32 %s158, 1
    %p162 = scmp.eq.s32.totalorder %s19, 1
    %p163 = scmp.ne.s32.totalorder %s158, %s160
    %p164 = scmp.eq.s32.totalorder %s19, 0
    %p165 = por %p163, %p164
    %p166 = scmp.ne.s32.totalorder %s158, %s160
    %p167 = scmp.eq.s32.totalorder %s24, 1
    %p168 = por %p166, %p167
    %p169 = scmp.ne.s32.totalorder %s160, %s161
    %p170 = scmp.eq.s32.totalorder %s24, 0
    %p171 = por %p169, %p170
    %p172 = scmp.ne.s32.totalorder %s160, %s161
    %p173 = scmp.eq.s32.totalorder %s25, 1
    %p174 = por %p172, %p173
    %p176 = scmp.ne.s32.totalorder %s161, %s175
    %p177 = scmp.eq.s32.totalorder %s25, 0
    %p178 = por %p176, %p177
    %s180 = sadd.s32 %s179, 1
    %p183 = scmp.eq.s32.totalorder %s19, 1
    %p184 = scmp.ne.s32.totalorder %s179, %s181
    %p185 = scmp.eq.s32.totalorder %s19, 0
    %p186 = por %p184, %p185
    %p187 = scmp.ne.s32.totalorder %s179, %s181
    %p188 = scmp.eq.s32.totalorder %s24, 1
    %p189 = por %p187, %p188
    %p190 = scmp.ne.s32.totalorder %s181, %s182
    %p191 = scmp.eq.s32.totalorder %s24, 0
    %p192 = por %p190, %p191
    %p193 = scmp.ne.s32.totalorder %s181, %s182
    %p194 = scmp.eq.s32.totalorder %s25, 1
    %p195 = por %p193, %p194
    %p197 = scmp.ne.s32.totalorder %s182, %s196
    %p198 = scmp.eq.s32.totalorder %s25, 0
    %p199 = por %p197, %p198
    %s201 = sadd.s32 %s200, 1
    %p204 = scmp.eq.s32.totalorder %s19, 1
    %p205 = scmp.ne.s32.totalorder %s200, %s202
    %p206 = scmp.eq.s32.totalorder %s19, 0
    %p207 = por %p205, %p206
    %p208 = scmp.ne.s32.totalorder %s200, %s202
    %p209 = scmp.eq.s32.totalorder %s24, 1
    %p210 = por %p208, %p209
    %p211 = scmp.ne.s32.totalorder %s202, %s203
    %p212 = scmp.eq.s32.totalorder %s24, 0
    %p213 = por %p211, %p212
    %p214 = scmp.ne.s32.totalorder %s202, %s203
    %p215 = scmp.eq.s32.totalorder %s25, 1
    %p216 = por %p214, %p215
    %p218 = scmp.ne.s32.totalorder %s203, %s217
    %p219 = scmp.eq.s32.totalorder %s25, 0
    %p220 = por %p218, %p219
    %s222 = sadd.s32 %s221, 1
    %p225 = scmp.eq.s32.totalorder %s19, 1
    %p226 = scmp.ne.s32.totalorder %s221, %s223
    %p227 = scmp.eq.s32.totalorder %s19, 0
    %p228 = por %p226, %p227
    %p229 = scmp.ne.s32.totalorder %s221, %s223
    %p230 = scmp.eq.s32.totalorder %s24, 1
    %p231 = por %p229, %p230
    %p232 = scmp.ne.s32.totalorder %s223, %s224
    %p233 = scmp.eq.s32.totalorder %s24, 0
    %p234 = por %p232, %p233
    %p235 = scmp.ne.s32.totalorder %s223, %s224
    %p236 = scmp.eq.s32.totalorder %s25, 1
    %p237 = por %p235, %p236
    %p239 = scmp.ne.s32.totalorder %s224, %s238
    %p240 = scmp.eq.s32.totalorder %s25, 0
    %p241 = por %p239, %p240
    %s243 = sadd.s32 %s242, 1
    %p246 = scmp.eq.s32.totalorder %s19, 1
    %p247 = scmp.ne.s32.totalorder %s242, %s244
    %p248 = scmp.eq.s32.totalorder %s19, 0
    %p249 = por %p247, %p248
    %p250 = scmp.ne.s32.totalorder %s242, %s244
    %p251 = scmp.eq.s32.totalorder %s24, 1
    %p252 = por %p250, %p251
    %p253 = scmp.ne.s32.totalorder %s244, %s245
    %p254 = scmp.eq.s32.totalorder %s24, 0
    %p255 = por %p253, %p254
    %p256 = scmp.ne.s32.totalorder %s244, %s245
    %p257 = scmp.eq.s32.totalorder %s25, 1
    %p258 = por %p256, %p257
    %p260 = scmp.ne.s32.totalorder %s245, %s259
    %p261 = scmp.eq.s32.totalorder %s25, 0
    %p262 = por %p260, %p261
    %s264 = sadd.s32 %s263, 1
    %p267 = scmp.eq.s32.totalorder %s19, 1
    %p268 = scmp.ne.s32.totalorder %s263, %s265
    %p269 = scmp.eq.s32.totalorder %s19, 0
    %p270 = por %p268, %p269
    %p271 = scmp.ne.s32.totalorder %s263, %s265
    %p272 = scmp.eq.s32.totalorder %s24, 1
    %p273 = por %p271, %p272
    %p274 = scmp.ne.s32.totalorder %s265, %s266
    %p275 = scmp.eq.s32.totalorder %s24, 0
    %p276 = por %p274, %p275
    %p277 = scmp.ne.s32.totalorder %s265, %s266
    %p278 = scmp.eq.s32.totalorder %s25, 1
    %p279 = por %p277, %p278
    %p281 = scmp.ne.s32.totalorder %s266, %s280
    %p282 = scmp.eq.s32.totalorder %s25, 0
    %p283 = por %p281, %p282
    %s285 = sadd.s32 %s284, 1
    %p288 = scmp.eq.s32.totalorder %s19, 1
    %p289 = scmp.ne.s32.totalorder %s284, %s286
    %p290 = scmp.eq.s32.totalorder %s19, 0
    %p291 = por %p289, %p290
    %p292 = scmp.ne.s32.totalorder %s284, %s286
    %p293 = scmp.eq.s32.totalorder %s24, 1
    %p294 = por %p292, %p293
    %p295 = scmp.ne.s32.totalorder %s286, %s287
    %p296 = scmp.eq.s32.totalorder %s24, 0
    %p297 = por %p295, %p296
    %p298 = scmp.ne.s32.totalorder %s286, %s287
    %p299 = scmp.eq.s32.totalorder %s25, 1
    %p300 = por %p298, %p299
    %p302 = scmp.ne.s32.totalorder %s287, %s301
    %p303 = scmp.eq.s32.totalorder %s25, 0
    %p304 = por %p302, %p303
    %s305 = ssub.s32 %s19, %s26
    %p306 = scmp.eq.s32.totalorder %s305, 0
    %s308 = sadd.s32 %s307, 1
    %s309 = scalar_select %p306, %s307, %s308
    %p312 = pneg %p306
    %p313 = scmp.eq.s32.totalorder %s19, 1
    %p314 = por %p312, %p313
    %p315 = scmp.ne.s32.totalorder %s307, %s310
    %p316 = scmp.eq.s32.totalorder %s19, 0
    %p317 = por %p315, %p316
    %p318 = scmp.ne.s32.totalorder %s307, %s310
    %p319 = scmp.eq.s32.totalorder %s24, 1
    %p320 = por %p318, %p319
    %p321 = scmp.ne.s32.totalorder %s310, %s311
    %p322 = scmp.eq.s32.totalorder %s24, 0
    %p323 = por %p321, %p322
    %p324 = scmp.ne.s32.totalorder %s310, %s311
    %p325 = scmp.eq.s32.totalorder %s25, 1
    %p326 = por %p324, %p325
    %p328 = scmp.ne.s32.totalorder %s311, %s327
    %p329 = scmp.eq.s32.totalorder %s25, 0
    %p330 = por %p328, %p329
    %p331 = scmp.le.s32.totalorder 1, %s19
    %p332 = scmp.lt.s32.totalorder %s19, 3
    %p333 = pnand %p331, %p332
    %p334 = pneg %p333
    // Predicated region
    $region9: #{_lambda_.3} parent=5 // pred_check
      _
    $region10: #{_lambda_.3} parent=5 // pred_check_branch
      %336 = sbr.rel (%p333) target = $region12
    $region11: #{_lambda_.3} parent=5 // pred_region
      %s337 = ssub.s32 %s19, 1
      // Predicated region
      $region13: #{_lambda_.3} parent=11 // pred_check
        %p338 = pneg %p66
      $region14: #{_lambda_.3} parent=11 // pred_check_branch
        %340 = sbr.rel (%p338) target = $region16
      $region15: #{_lambda_.3} parent=11 // pred_region
        _
      $region16: #{_lambda_.3} parent=11 // pred_fallthru
        _
      // Predicated region
      $region17: #{_lambda_.3} parent=11 // pred_check
        %p341 = pneg %p87
      $region18: #{_lambda_.3} parent=11 // pred_check_branch
        %343 = sbr.rel (%p341) target = $region20
      $region19: #{_lambda_.3} parent=11 // pred_region
        _
      $region20: #{_lambda_.3} parent=11 // pred_fallthru
        _
      // Predicated region
      $region21: #{_lambda_.3} parent=11 // pred_check
        %p344 = pneg %p108
      $region22: #{_lambda_.3} parent=11 // pred_check_branch
        %346 = sbr.rel (%p344) target = $region24
      $region23: #{_lambda_.3} parent=11 // pred_region
        _
      $region24: #{_lambda_.3} parent=11 // pred_fallthru
        _
      // Predicated region
      $region25: #{_lambda_.3} parent=11 // pred_check
        %p347 = pneg %p129
      $region26: #{_lambda_.3} parent=11 // pred_check_branch
        %349 = sbr.rel (%p347) target = $region28
      $region27: #{_lambda_.3} parent=11 // pred_region
        _
      $region28: #{_lambda_.3} parent=11 // pred_fallthru
        _
      // Predicated region
      $region29: #{_lambda_.3} parent=11 // pred_check
        %p350 = pneg %p150
      $region30: #{_lambda_.3} parent=11 // pred_check_branch
        %352 = sbr.rel (%p350) target = $region32
      $region31: #{_lambda_.3} parent=11 // pred_region
        _
      $region32: #{_lambda_.3} parent=11 // pred_fallthru
        _
      // Predicated region
      $region33: #{_lambda_.3} parent=11 // pred_check
        %p353 = pneg %p171
      $region34: #{_lambda_.3} parent=11 // pred_check_branch
        %355 = sbr.rel (%p353) target = $region36
      $region35: #{_lambda_.3} parent=11 // pred_region
        _
      $region36: #{_lambda_.3} parent=11 // pred_fallthru
        _
      // Predicated region
      $region37: #{_lambda_.3} parent=11 // pred_check
        %p356 = pneg %p192
      $region38: #{_lambda_.3} parent=11 // pred_check_branch
        %358 = sbr.rel (%p356) target = $region40
      $region39: #{_lambda_.3} parent=11 // pred_region
        _
      $region40: #{_lambda_.3} parent=11 // pred_fallthru
        _
      // Predicated region
      $region41: #{_lambda_.3} parent=11 // pred_check
        %p359 = pneg %p213
      $region42: #{_lambda_.3} parent=11 // pred_check_branch
        %361 = sbr.rel (%p359) target = $region44
      $region43: #{_lambda_.3} parent=11 // pred_region
        _
      $region44: #{_lambda_.3} parent=11 // pred_fallthru
        _
      // Predicated region
      $region45: #{_lambda_.3} parent=11 // pred_check
        %p362 = pneg %p234
      $region46: #{_lambda_.3} parent=11 // pred_check_branch
        %364 = sbr.rel (%p362) target = $region48
      $region47: #{_lambda_.3} parent=11 // pred_region
        _
      $region48: #{_lambda_.3} parent=11 // pred_fallthru
        _
      // Predicated region
      $region49: #{_lambda_.3} parent=11 // pred_check
        %p365 = pneg %p255
      $region50: #{_lambda_.3} parent=11 // pred_check_branch
        %367 = sbr.rel (%p365) target = $region52
      $region51: #{_lambda_.3} parent=11 // pred_region
        _
      $region52: #{_lambda_.3} parent=11 // pred_fallthru
        _
      // Predicated region
      $region53: #{_lambda_.3} parent=11 // pred_check
        %p368 = pneg %p276
      $region54: #{_lambda_.3} parent=11 // pred_check_branch
        %370 = sbr.rel (%p368) target = $region56
      $region55: #{_lambda_.3} parent=11 // pred_region
        _
      $region56: #{_lambda_.3} parent=11 // pred_fallthru
        _
      // Predicated region
      $region57: #{_lambda_.3} parent=11 // pred_check
        %p371 = pneg %p297
      $region58: #{_lambda_.3} parent=11 // pred_check_branch
        %373 = sbr.rel (%p371) target = $region60
      $region59: #{_lambda_.3} parent=11 // pred_region
        _
      $region60: #{_lambda_.3} parent=11 // pred_fallthru
        _
    $region12: #{_lambda_.3} parent=5 // pred_fallthru
      _
    %p374 = scmp.lt.s32.totalorder %s19, 2
    // Predicated region
    $region61: #{_lambda_.3} parent=5 // pred_check
      %p375 = pneg %p374
    $region62: #{_lambda_.3} parent=5 // pred_check_branch
      %377 = sbr.rel (%p375) target = $region64
    $region63: #{_lambda_.3} parent=5 // pred_region
      // Predicated region
      $region65: #{_lambda_.3} parent=63 // pred_check
        %p378 = pneg %p39
      $region66: #{_lambda_.3} parent=63 // pred_check_branch
        %380 = sbr.rel (%p378) target = $region68
      $region67: #{_lambda_.3} parent=63 // pred_region
        %p381 = scmp.lt.s32.totalorder %s19, 1
        %s382 = scalar_select %p381, %s19, 1
        %s383 = smul.addr %s382, 6
        %s384 = smul.addr %s383, 4
        %s385 = scalar_lea.vmem %s0, %s384
      $region68: #{_lambda_.3} parent=63 // pred_fallthru
        _
    $region64: #{_lambda_.3} parent=5 // pred_fallthru
      _
    %p386 = scmp.le.s32.totalorder 1, %s19
    %p387 = scmp.lt.s32.totalorder %s19, 3
    %p388 = pnand %p386, %p387
    %p389 = pneg %p388
    // Predicated region
    $region69: #{_lambda_.3} parent=5 // pred_check
      _
    $region70: #{_lambda_.3} parent=5 // pred_check_branch
      %391 = sbr.rel (%p388) target = $region72
    $region71: #{_lambda_.3} parent=5 // pred_region
      %s392 = ssub.s32 %s19, 1
      %p393 = scmp.lt.s32.totalorder %s24, 1
      %s394 = scalar_select %p393, %s24, 1
      %s395 = smul.addr %s394, 6
      %s396 = smul.addr %s395, 4
      %s397 = scalar_lea.vmem %s0, %s396
      %p398 = pneg %p45
      %p399 = pneg %p42
      %p400 = pneg %p66
      %p401 = pneg %p63
      %p402 = pneg %p87
      %p403 = pneg %p84
      %p404 = pneg %p108
      %p405 = pneg %p105
      %p406 = pneg %p129
      %p407 = pneg %p126
      %p408 = pneg %p150
      %p409 = pneg %p147
      %p410 = pneg %p171
      %p411 = pneg %p168
      %p412 = pneg %p192
      %p413 = pneg %p189
      %p414 = pneg %p213
      %p415 = pneg %p210
      %p416 = pneg %p234
      %p417 = pneg %p231
      %p418 = pneg %p255
      %p419 = pneg %p252
      %p420 = pneg %p276
      %p421 = pneg %p273
      %p422 = pneg %p297
      %p423 = pneg %p294
      %p424 = pneg %p323
      %p425 = pneg %p320
      %p426 = scmp.lt.s32.totalorder %s24, 1
      %s427 = scalar_select %p426, %s24, 1
      %s428 = scalar_lea.vmem %s13, %s427
      %p429 = scmp.lt.s32.totalorder %s24, 1
      %s430 = scalar_select %p429, %s24, 1
      %s431 = smul.addr %s430, 6
      %s432 = smul.addr %s431, 4
      %s433 = scalar_lea.vmem %s0, %s432
      %p434 = scmp.lt.s32.totalorder %s24, 1
      %s435 = scalar_select %p434, %s24, 1
      %s436 = scalar_lea.vmem %s13, %s435
      %v437 = vld [vmem:[%s433] sm:$0xf]
      %v438 = vld [vmem:[%s433 + $0x4] sm:$0x1]
      %v439 = vld [vmem:[%s1] sm:$0xf]
      %v440 = vld [vmem:[%s1 + $0x4] sm:$0xf]
      %v441 = vld [vmem:[%s1 + $0x8] sm:$0xf]
      %v442 = vld [vmem:[%s1 + $0xc] sm:$0xf]
      %v443 = vld [vmem:[%s1 + $0x10] sm:$0xf]
      %v444 = vld [vmem:[%s1 + $0x14] sm:$0xf]
      %v445 = vld [vmem:[%s1 + $0x18] sm:$0xf]
      %v446 = vld [vmem:[%s1 + $0x1c] sm:$0xf]
      %v447 = vld [vmem:[%s1 + $0x20] sm:$0xf]
      %v448 = vld [vmem:[%s1 + $0x24] sm:$0xf]
      %v449 = vld [vmem:[%s1 + $0x28] sm:$0xf]
      %v450 = vld [vmem:[%s1 + $0x2c] sm:$0xf]
      %v451 = vld [vmem:[%s1 + $0x30] sm:$0xf]
      %v452 = vld [vmem:[%s1 + $0x34] sm:$0xf]
      %v453 = vld [vmem:[%s1 + $0x38] sm:$0xf]
      %v454 = vld [vmem:[%s1 + $0x3c] sm:$0xf]
      %s455 = scalar_lea.vmem %s433, 8
      %v456 = vld [vmem:[%s455] sm:$0xf]
      %v457 = vld [vmem:[%s455 + $0x4] sm:$0x1]
      %s458 = scalar_lea.vmem %s1, 64
      %v459 = vld [vmem:[%s458] sm:$0xf]
      %v460 = vld [vmem:[%s458 + $0x4] sm:$0xf]
      %v461 = vld [vmem:[%s458 + $0x8] sm:$0xf]
      %v462 = vld [vmem:[%s458 + $0xc] sm:$0xf]
      %v463 = vld [vmem:[%s458 + $0x10] sm:$0xf]
      %v464 = vld [vmem:[%s458 + $0x14] sm:$0xf]
      %v465 = vld [vmem:[%s458 + $0x18] sm:$0xf]
      %v466 = vld [vmem:[%s458 + $0x1c] sm:$0xf]
      %v467 = vld [vmem:[%s458 + $0x20] sm:$0xf]
      %v468 = vld [vmem:[%s458 + $0x24] sm:$0xf]
      %v469 = vld [vmem:[%s458 + $0x28] sm:$0xf]
      %v470 = vld [vmem:[%s458 + $0x2c] sm:$0xf]
      %v471 = vld [vmem:[%s458 + $0x30] sm:$0xf]
      %v472 = vld [vmem:[%s458 + $0x34] sm:$0xf]
      %v473 = vld [vmem:[%s458 + $0x38] sm:$0xf]
      %v474 = vld [vmem:[%s458 + $0x3c] sm:$0xf]
      %v477 = vunpack.c.l.b16 %v456
      %v478 = vunpack.c.l.b16 %v457
      %v479 = vpack.c.b16 %v478, %v477
      %v497 = vunpack.c.l.b16 %v459
      %v498 = vunpack.c.l.b16 %v460
      %v499 = vunpack.c.l.b16 %v461
      %v500 = vunpack.c.l.b16 %v462
      %v501 = vunpack.c.l.b16 %v463
      %v502 = vunpack.c.l.b16 %v464
      %v503 = vunpack.c.l.b16 %v465
      %v504 = vunpack.c.l.b16 %v466
      %v505 = vunpack.c.l.b16 %v467
      %v506 = vunpack.c.l.b16 %v468
      %v507 = vunpack.c.l.b16 %v469
      %v508 = vunpack.c.l.b16 %v470
      %v509 = vunpack.c.l.b16 %v471
      %v510 = vunpack.c.l.b16 %v472
      %v511 = vunpack.c.l.b16 %v473
      %v512 = vunpack.c.l.b16 %v474
      %v513 = vpack.c.b16 %v498, %v497
      %v514 = vpack.c.b16 %v500, %v499
      %v515 = vpack.c.b16 %v502, %v501
      %v516 = vpack.c.b16 %v504, %v503
      %v517 = vpack.c.b16 %v506, %v505
      %v518 = vpack.c.b16 %v508, %v507
      %v519 = vpack.c.b16 %v510, %v509
      %v520 = vpack.c.b16 %v512, %v511
      %529 = vmatpush.bf16.msra.mxu0 %v520
      %530 = vmatpush.bf16.msra.mxu0 %v519
      %531 = vmatpush.bf16.msra.mxu0 %v518
      %532 = vmatpush.bf16.msra.mxu0 %v517
      %533 = vmatpush.bf16.msra.mxu0 %v516
      %534 = vmatpush.bf16.msra.mxu0 %v515
      %535 = vmatpush.bf16.msra.mxu0 %v514
      %536 = vmatpush.bf16.msra.mxu0 %v513
      %537 = vmatmul.bf16.gmra.mxu0 %v479
      %v538 = vpop.f32.mrf.mxu0
      %v539 = vadd.f32 0.0, %v538
      %v540 = vpop.f32.mrf.mxu0
      %v541 = vadd.f32 0.0, %v540
      %542 = vdwg.mxu0
      %v545 = vunpack.c.l.b16 %v437
      %v546 = vunpack.c.l.b16 %v438
      %v547 = vpack.c.b16 %v546, %v545
      %v565 = vunpack.c.l.b16 %v439
      %v566 = vunpack.c.l.b16 %v440
      %v567 = vunpack.c.l.b16 %v441
      %v568 = vunpack.c.l.b16 %v442
      %v569 = vunpack.c.l.b16 %v443
      %v570 = vunpack.c.l.b16 %v444
      %v571 = vunpack.c.l.b16 %v445
      %v572 = vunpack.c.l.b16 %v446
      %v573 = vunpack.c.l.b16 %v447
      %v574 = vunpack.c.l.b16 %v448
      %v575 = vunpack.c.l.b16 %v449
      %v576 = vunpack.c.l.b16 %v450
      %v577 = vunpack.c.l.b16 %v451
      %v578 = vunpack.c.l.b16 %v452
      %v579 = vunpack.c.l.b16 %v453
      %v580 = vunpack.c.l.b16 %v454
      %v581 = vpack.c.b16 %v566, %v565
      %v582 = vpack.c.b16 %v568, %v567
      %v583 = vpack.c.b16 %v570, %v569
      %v584 = vpack.c.b16 %v572, %v571
      %v585 = vpack.c.b16 %v574, %v573
      %v586 = vpack.c.b16 %v576, %v575
      %v587 = vpack.c.b16 %v578, %v577
      %v588 = vpack.c.b16 %v580, %v579
      %597 = vmatpush.bf16.msra.mxu0 %v588
      %598 = vmatpush.bf16.msra.mxu0 %v587
      %599 = vmatpush.bf16.msra.mxu0 %v586
      %600 = vmatpush.bf16.msra.mxu0 %v585
      %601 = vmatpush.bf16.msra.mxu0 %v584
      %602 = vmatpush.bf16.msra.mxu0 %v583
      %603 = vmatpush.bf16.msra.mxu0 %v582
      %604 = vmatpush.bf16.msra.mxu0 %v581
      %605 = vmatmul.bf16.gmra.mxu0 %v547
      %v606 = vpop.f32.mrf.mxu0
      %v607 = vadd.f32 %v539, %v606
      %v608 = vpop.f32.mrf.mxu0
      %v609 = vadd.f32 %v541, %v608
      %610 = vdwg.mxu0
      %s611 = scalar_lea.vmem %s433, 16
      %v612 = vld [vmem:[%s611] sm:$0xf]
      %v613 = vld [vmem:[%s611 + $0x4] sm:$0x1]
      %s614 = scalar_lea.vmem %s1, 128
      %v615 = vld [vmem:[%s614] sm:$0xf]
      %v616 = vld [vmem:[%s614 + $0x4] sm:$0xf]
      %v617 = vld [vmem:[%s614 + $0x8] sm:$0xf]
      %v618 = vld [vmem:[%s614 + $0xc] sm:$0xf]
      %v619 = vld [vmem:[%s614 + $0x10] sm:$0xf]
      %v620 = vld [vmem:[%s614 + $0x14] sm:$0xf]
      %v621 = vld [vmem:[%s614 + $0x18] sm:$0xf]
      %v622 = vld [vmem:[%s614 + $0x1c] sm:$0xf]
      %v623 = vld [vmem:[%s614 + $0x20] sm:$0xf]
      %v624 = vld [vmem:[%s614 + $0x24] sm:$0xf]
      %v625 = vld [vmem:[%s614 + $0x28] sm:$0xf]
      %v626 = vld [vmem:[%s614 + $0x2c] sm:$0xf]
      %v627 = vld [vmem:[%s614 + $0x30] sm:$0xf]
      %v628 = vld [vmem:[%s614 + $0x34] sm:$0xf]
      %v629 = vld [vmem:[%s614 + $0x38] sm:$0xf]
      %v630 = vld [vmem:[%s614 + $0x3c] sm:$0xf]
      %v633 = vunpack.c.l.b16 %v612
      %v634 = vunpack.c.l.b16 %v613
      %v635 = vpack.c.b16 %v634, %v633
      %v653 = vunpack.c.l.b16 %v615
      %v654 = vunpack.c.l.b16 %v616
      %v655 = vunpack.c.l.b16 %v617
      %v656 = vunpack.c.l.b16 %v618
      %v657 = vunpack.c.l.b16 %v619
      %v658 = vunpack.c.l.b16 %v620
      %v659 = vunpack.c.l.b16 %v621
      %v660 = vunpack.c.l.b16 %v622
      %v661 = vunpack.c.l.b16 %v623
      %v662 = vunpack.c.l.b16 %v624
      %v663 = vunpack.c.l.b16 %v625
      %v664 = vunpack.c.l.b16 %v626
      %v665 = vunpack.c.l.b16 %v627
      %v666 = vunpack.c.l.b16 %v628
      %v667 = vunpack.c.l.b16 %v629
      %v668 = vunpack.c.l.b16 %v630
      %v669 = vpack.c.b16 %v654, %v653
      %v670 = vpack.c.b16 %v656, %v655
      %v671 = vpack.c.b16 %v658, %v657
      %v672 = vpack.c.b16 %v660, %v659
      %v673 = vpack.c.b16 %v662, %v661
      %v674 = vpack.c.b16 %v664, %v663
      %v675 = vpack.c.b16 %v666, %v665
      %v676 = vpack.c.b16 %v668, %v667
      %685 = vmatpush.bf16.msra.mxu0 %v676
      %686 = vmatpush.bf16.msra.mxu0 %v675
      %687 = vmatpush.bf16.msra.mxu0 %v674
      %688 = vmatpush.bf16.msra.mxu0 %v673
      %689 = vmatpush.bf16.msra.mxu0 %v672
      %690 = vmatpush.bf16.msra.mxu0 %v671
      %691 = vmatpush.bf16.msra.mxu0 %v670
      %692 = vmatpush.bf16.msra.mxu0 %v669
      %693 = vmatmul.bf16.gmra.mxu0 %v635
      %v694 = vpop.f32.mrf.mxu0
      %v695 = vadd.f32 0.0, %v694
      %v696 = vpop.f32.mrf.mxu0
      %v697 = vadd.f32 0.0, %v696
      %698 = vdwg.mxu0
      %v699 = vadd.f32 %v607, %v695
      %v700 = vadd.f32 %v609, %v697
      %v701 = vld [vmem:[%s2] sm:$0x1]
      %v703 = vperm.slane %v701, 0
      %v705 = vadd.f32 %v699, %v703
      %v706 = vadd.f32 %v700, %v703
      %v707 = vmax.f32 %v705, 0.0
      %v708 = vmax.f32 %v706, 0.0
      %709 = vst [vmem:[#allocation2] sm:$0xff] %v707
      %710 = vst [vmem:[#allocation2 + $0x8] sm:$0x1] %v708
      %v711 = vld [vmem:[#allocation2] ss:$3 sm:$0x7]
      %s712 = scalar_lea.vmem [#allocation2], 1
      %v713 = vld [vmem:[%s712] ss:$3 sm:$0x7]
      %s714 = scalar_lea.vmem [#allocation2], 2
      %v715 = vld [vmem:[%s714] ss:$3 sm:$0x7]
      %v716 = vpack.c.bf16 %v711, %v711
      %v717 = vld [vmem:[%s3] sm:$0xf]
      %v718 = vld [vmem:[%s3 + $0x4] sm:$0xf]
      %v719 = vld [vmem:[%s3 + $0x8] sm:$0xf]
      %v720 = vld [vmem:[%s3 + $0xc] sm:$0xf]
      %v721 = vld [vmem:[%s3 + $0x10] sm:$0xf]
      %v722 = vld [vmem:[%s3 + $0x14] sm:$0xf]
      %v723 = vld [vmem:[%s3 + $0x18] sm:$0xf]
      %v724 = vld [vmem:[%s3 + $0x1c] sm:$0xf]
      %v725 = vld [vmem:[%s3 + $0x20] sm:$0xf]
      %v726 = vld [vmem:[%s3 + $0x24] sm:$0xf]
      %v727 = vld [vmem:[%s3 + $0x28] sm:$0xf]
      %v728 = vld [vmem:[%s3 + $0x2c] sm:$0xf]
      %v729 = vld [vmem:[%s3 + $0x30] sm:$0xf]
      %v730 = vld [vmem:[%s3 + $0x34] sm:$0xf]
      %v731 = vld [vmem:[%s3 + $0x38] sm:$0xf]
      %v732 = vld [vmem:[%s3 + $0x3c] sm:$0xf]
      %v733 = vpack.c.bf16 %v713, %v713
      %s734 = scalar_lea.vmem %s3, 64
      %v735 = vld [vmem:[%s734] sm:$0xf]
      %v736 = vld [vmem:[%s734 + $0x4] sm:$0xf]
      %v737 = vld [vmem:[%s734 + $0x8] sm:$0xf]
      %v738 = vld [vmem:[%s734 + $0xc] sm:$0xf]
      %v739 = vld [vmem:[%s734 + $0x10] sm:$0xf]
      %v740 = vld [vmem:[%s734 + $0x14] sm:$0xf]
      %v741 = vld [vmem:[%s734 + $0x18] sm:$0xf]
      %v742 = vld [vmem:[%s734 + $0x1c] sm:$0xf]
      %v743 = vld [vmem:[%s734 + $0x20] sm:$0xf]
      %v744 = vld [vmem:[%s734 + $0x24] sm:$0xf]
      %v745 = vld [vmem:[%s734 + $0x28] sm:$0xf]
      %v746 = vld [vmem:[%s734 + $0x2c] sm:$0xf]
      %v747 = vld [vmem:[%s734 + $0x30] sm:$0xf]
      %v748 = vld [vmem:[%s734 + $0x34] sm:$0xf]
      %v749 = vld [vmem:[%s734 + $0x38] sm:$0xf]
      %v750 = vld [vmem:[%s734 + $0x3c] sm:$0xf]
      %v767 = vunpack.c.l.b16 %v735
      %v768 = vunpack.c.l.b16 %v736
      %v769 = vunpack.c.l.b16 %v737
      %v770 = vunpack.c.l.b16 %v738
      %v771 = vunpack.c.l.b16 %v739
      %v772 = vunpack.c.l.b16 %v740
      %v773 = vunpack.c.l.b16 %v741
      %v774 = vunpack.c.l.b16 %v742
      %v775 = vunpack.c.l.b16 %v743
      %v776 = vunpack.c.l.b16 %v744
      %v777 = vunpack.c.l.b16 %v745
      %v778 = vunpack.c.l.b16 %v746
      %v779 = vunpack.c.l.b16 %v747
      %v780 = vunpack.c.l.b16 %v748
      %v781 = vunpack.c.l.b16 %v749
      %v782 = vunpack.c.l.b16 %v750
      %v783 = vpack.c.b16 %v768, %v767
      %v784 = vpack.c.b16 %v770, %v769
      %v785 = vpack.c.b16 %v772, %v771
      %v786 = vpack.c.b16 %v774, %v773
      %v787 = vpack.c.b16 %v776, %v775
      %v788 = vpack.c.b16 %v778, %v777
      %v789 = vpack.c.b16 %v780, %v779
      %v790 = vpack.c.b16 %v782, %v781
      %799 = vmatpush.bf16.msra.mxu0 %v790
      %800 = vmatpush.bf16.msra.mxu0 %v789
      %801 = vmatpush.bf16.msra.mxu0 %v788
      %802 = vmatpush.bf16.msra.mxu0 %v787
      %803 = vmatpush.bf16.msra.mxu0 %v786
      %804 = vmatpush.bf16.msra.mxu0 %v785
      %805 = vmatpush.bf16.msra.mxu0 %v784
      %806 = vmatpush.bf16.msra.mxu0 %v783
      %807 = vmatmul.bf16.gmra.mxu0 %v733
      %v808 = vpop.f32.mrf.mxu0
      %v809 = vadd.f32 0.0, %v808
      %v810 = vpop.f32.mrf.mxu0
      %811 = vdwg.mxu0
      %v828 = vunpack.c.l.b16 %v717
      %v829 = vunpack.c.l.b16 %v718
      %v830 = vunpack.c.l.b16 %v719
      %v831 = vunpack.c.l.b16 %v720
      %v832 = vunpack.c.l.b16 %v721
      %v833 = vunpack.c.l.b16 %v722
      %v834 = vunpack.c.l.b16 %v723
      %v835 = vunpack.c.l.b16 %v724
      %v836 = vunpack.c.l.b16 %v725
      %v837 = vunpack.c.l.b16 %v726
      %v838 = vunpack.c.l.b16 %v727
      %v839 = vunpack.c.l.b16 %v728
      %v840 = vunpack.c.l.b16 %v729
      %v841 = vunpack.c.l.b16 %v730
      %v842 = vunpack.c.l.b16 %v731
      %v843 = vunpack.c.l.b16 %v732
      %v844 = vpack.c.b16 %v829, %v828
      %v845 = vpack.c.b16 %v831, %v830
      %v846 = vpack.c.b16 %v833, %v832
      %v847 = vpack.c.b16 %v835, %v834
      %v848 = vpack.c.b16 %v837, %v836
      %v849 = vpack.c.b16 %v839, %v838
      %v850 = vpack.c.b16 %v841, %v840
      %v851 = vpack.c.b16 %v843, %v842
      %860 = vmatpush.bf16.msra.mxu0 %v851
      %861 = vmatpush.bf16.msra.mxu0 %v850
      %862 = vmatpush.bf16.msra.mxu0 %v849
      %863 = vmatpush.bf16.msra.mxu0 %v848
      %864 = vmatpush.bf16.msra.mxu0 %v847
      %865 = vmatpush.bf16.msra.mxu0 %v846
      %866 = vmatpush.bf16.msra.mxu0 %v845
      %867 = vmatpush.bf16.msra.mxu0 %v844
      %868 = vmatmul.bf16.gmra.mxu0 %v716
      %v869 = vpop.f32.mrf.mxu0
      %v870 = vadd.f32 %v809, %v869
      %v871 = vpop.f32.mrf.mxu0
      %872 = vdwg.mxu0
      %v873 = vpack.c.bf16 %v715, %v715
      %s874 = scalar_lea.vmem %s3, 128
      %v875 = vld [vmem:[%s874] sm:$0xf]
      %v876 = vld [vmem:[%s874 + $0x4] sm:$0xf]
      %v877 = vld [vmem:[%s874 + $0x8] sm:$0xf]
      %v878 = vld [vmem:[%s874 + $0xc] sm:$0xf]
      %v879 = vld [vmem:[%s874 + $0x10] sm:$0xf]
      %v880 = vld [vmem:[%s874 + $0x14] sm:$0xf]
      %v881 = vld [vmem:[%s874 + $0x18] sm:$0xf]
      %v882 = vld [vmem:[%s874 + $0x1c] sm:$0xf]
      %v883 = vld [vmem:[%s874 + $0x20] sm:$0xf]
      %v884 = vld [vmem:[%s874 + $0x24] sm:$0xf]
      %v885 = vld [vmem:[%s874 + $0x28] sm:$0xf]
      %v886 = vld [vmem:[%s874 + $0x2c] sm:$0xf]
      %v887 = vld [vmem:[%s874 + $0x30] sm:$0xf]
      %v888 = vld [vmem:[%s874 + $0x34] sm:$0xf]
      %v889 = vld [vmem:[%s874 + $0x38] sm:$0xf]
      %v890 = vld [vmem:[%s874 + $0x3c] sm:$0xf]
      %v907 = vunpack.c.l.b16 %v875
      %v908 = vunpack.c.l.b16 %v876
      %v909 = vunpack.c.l.b16 %v877
      %v910 = vunpack.c.l.b16 %v878
      %v911 = vunpack.c.l.b16 %v879
      %v912 = vunpack.c.l.b16 %v880
      %v913 = vunpack.c.l.b16 %v881
      %v914 = vunpack.c.l.b16 %v882
      %v915 = vunpack.c.l.b16 %v883
      %v916 = vunpack.c.l.b16 %v884
      %v917 = vunpack.c.l.b16 %v885
      %v918 = vunpack.c.l.b16 %v886
      %v919 = vunpack.c.l.b16 %v887
      %v920 = vunpack.c.l.b16 %v888
      %v921 = vunpack.c.l.b16 %v889
      %v922 = vunpack.c.l.b16 %v890
      %v923 = vpack.c.b16 %v908, %v907
      %v924 = vpack.c.b16 %v910, %v909
      %v925 = vpack.c.b16 %v912, %v911
      %v926 = vpack.c.b16 %v914, %v913
      %v927 = vpack.c.b16 %v916, %v915
      %v928 = vpack.c.b16 %v918, %v917
      %v929 = vpack.c.b16 %v920, %v919
      %v930 = vpack.c.b16 %v922, %v921
      %939 = vmatpush.bf16.msra.mxu0 %v930
      %940 = vmatpush.bf16.msra.mxu0 %v929
      %941 = vmatpush.bf16.msra.mxu0 %v928
      %942 = vmatpush.bf16.msra.mxu0 %v927
      %943 = vmatpush.bf16.msra.mxu0 %v926
      %944 = vmatpush.bf16.msra.mxu0 %v925
      %945 = vmatpush.bf16.msra.mxu0 %v924
      %946 = vmatpush.bf16.msra.mxu0 %v923
      %947 = vmatmul.bf16.gmra.mxu0 %v873
      %v948 = vpop.f32.mrf.mxu0
      %v949 = vadd.f32 0.0, %v948
      %v950 = vpop.f32.mrf.mxu0
      %951 = vdwg.mxu0
      %v952 = vadd.f32 %v870, %v949
      %v953 = vld [vmem:[%s4] sm:$0x1]
      %v955 = vperm.slane %v953, 0
      %v957 = vadd.f32 %v952, %v955
      %v958 = vmax.f32 %v957, 0.0
      %v959 = vpack.c.bf16 %v958, %v958
      %v960 = vld [vmem:[%s5] sm:$0xf]
      %v961 = vld [vmem:[%s5 + $0x4] sm:$0xf]
      %v962 = vld [vmem:[%s5 + $0x8] sm:$0xf]
      %v963 = vld [vmem:[%s5 + $0xc] sm:$0xf]
      %v964 = vld [vmem:[%s5 + $0x10] sm:$0xf]
      %v965 = vld [vmem:[%s5 + $0x14] sm:$0xf]
      %v966 = vld [vmem:[%s5 + $0x18] sm:$0xf]
      %v967 = vld [vmem:[%s5 + $0x1c] sm:$0xf]
      %v968 = vld [vmem:[%s5 + $0x20] sm:$0xf]
      %v969 = vld [vmem:[%s5 + $0x24] sm:$0xf]
      %v970 = vld [vmem:[%s5 + $0x28] sm:$0xf]
      %v971 = vld [vmem:[%s5 + $0x2c] sm:$0xf]
      %v972 = vld [vmem:[%s5 + $0x30] sm:$0xf]
      %v973 = vld [vmem:[%s5 + $0x34] sm:$0xf]
      %v974 = vld [vmem:[%s5 + $0x38] sm:$0xf]
      %v975 = vld [vmem:[%s5 + $0x3c] sm:$0xf]
      %v976 = vld [vmem:[%s6] sm:$0x1]
      %v978 = vperm.slane %v976, 0
      %v996 = vunpack.c.l.b16 %v960
      %v997 = vunpack.c.l.b16 %v961
      %v998 = vunpack.c.l.b16 %v962
      %v999 = vunpack.c.l.b16 %v963
      %v1000 = vunpack.c.l.b16 %v964
      %v1001 = vunpack.c.l.b16 %v965
      %v1002 = vunpack.c.l.b16 %v966
      %v1003 = vunpack.c.l.b16 %v967
      %v1004 = vunpack.c.l.b16 %v968
      %v1005 = vunpack.c.l.b16 %v969
      %v1006 = vunpack.c.l.b16 %v970
      %v1007 = vunpack.c.l.b16 %v971
      %v1008 = vunpack.c.l.b16 %v972
      %v1009 = vunpack.c.l.b16 %v973
      %v1010 = vunpack.c.l.b16 %v974
      %v1011 = vunpack.c.l.b16 %v975
      %v1012 = vpack.c.b16 %v997, %v996
      %v1013 = vpack.c.b16 %v999, %v998
      %v1014 = vpack.c.b16 %v1001, %v1000
      %v1015 = vpack.c.b16 %v1003, %v1002
      %v1016 = vpack.c.b16 %v1005, %v1004
      %v1017 = vpack.c.b16 %v1007, %v1006
      %v1018 = vpack.c.b16 %v1009, %v1008
      %v1019 = vpack.c.b16 %v1011, %v1010
      %1028 = vmatpush.bf16.msra.mxu0 %v1019
      %1029 = vmatpush.bf16.msra.mxu0 %v1018
      %1030 = vmatpush.bf16.msra.mxu0 %v1017
      %1031 = vmatpush.bf16.msra.mxu0 %v1016
      %1032 = vmatpush.bf16.msra.mxu0 %v1015
      %1033 = vmatpush.bf16.msra.mxu0 %v1014
      %1034 = vmatpush.bf16.msra.mxu0 %v1013
      %1035 = vmatpush.bf16.msra.mxu0 %v1012
      %1036 = vmatmul.bf16.gmra.mxu0 %v959
      %v1037 = vpop.f32.mrf.mxu0
      %v1038 = vadd.f32 %v978, %v1037
      %v1039 = vpop.f32.mrf.mxu0
      %1040 = vdwg.mxu0
      %v1041 = vmax.f32 %v1038, 0.0
      %v1042 = vadd.f32 %v713, %v1041
      %1043 = vst [vmem:[#allocation2] sm:$0x7] %v1042
      %v1044 = vld [vmem:[#allocation2] sm:$0x1]
      %v1045 = vld [vmem:[#allocation2 + $0x1] sm:$0x1]
      %v1046 = vld [vmem:[#allocation2 + $0x2] sm:$0x1]
      %v1047 = vpack.c.bf16 %v1044, %v1044
      %v1048 = vld [vmem:[%s7] sm:$0xf]
      %v1049 = vld [vmem:[%s7 + $0x4] sm:$0xf]
      %v1050 = vld [vmem:[%s7 + $0x8] sm:$0xf]
      %v1051 = vld [vmem:[%s7 + $0xc] sm:$0xf]
      %v1052 = vld [vmem:[%s7 + $0x10] sm:$0xf]
      %v1053 = vld [vmem:[%s7 + $0x14] sm:$0xf]
      %v1054 = vld [vmem:[%s7 + $0x18] sm:$0xf]
      %v1055 = vld [vmem:[%s7 + $0x1c] sm:$0xf]
      %v1056 = vld [vmem:[%s7 + $0x20] sm:$0xf]
      %v1057 = vld [vmem:[%s7 + $0x24] sm:$0xf]
      %v1058 = vld [vmem:[%s7 + $0x28] sm:$0xf]
      %v1059 = vld [vmem:[%s7 + $0x2c] sm:$0xf]
      %v1060 = vld [vmem:[%s7 + $0x30] sm:$0xf]
      %v1061 = vld [vmem:[%s7 + $0x34] sm:$0xf]
      %v1062 = vld [vmem:[%s7 + $0x38] sm:$0xf]
      %v1063 = vld [vmem:[%s7 + $0x3c] sm:$0xf]
      %v1064 = vpack.c.bf16 %v1045, %v1045
      %s1065 = scalar_lea.vmem %s7, 64
      %v1066 = vld [vmem:[%s1065] sm:$0xf]
      %v1067 = vld [vmem:[%s1065 + $0x4] sm:$0xf]
      %v1068 = vld [vmem:[%s1065 + $0x8] sm:$0xf]
      %v1069 = vld [vmem:[%s1065 + $0xc] sm:$0xf]
      %v1070 = vld [vmem:[%s1065 + $0x10] sm:$0xf]
      %v1071 = vld [vmem:[%s1065 + $0x14] sm:$0xf]
      %v1072 = vld [vmem:[%s1065 + $0x18] sm:$0xf]
      %v1073 = vld [vmem:[%s1065 + $0x1c] sm:$0xf]
      %v1074 = vld [vmem:[%s1065 + $0x20] sm:$0xf]
      %v1075 = vld [vmem:[%s1065 + $0x24] sm:$0xf]
      %v1076 = vld [vmem:[%s1065 + $0x28] sm:$0xf]
      %v1077 = vld [vmem:[%s1065 + $0x2c] sm:$0xf]
      %v1078 = vld [vmem:[%s1065 + $0x30] sm:$0xf]
      %v1079 = vld [vmem:[%s1065 + $0x34] sm:$0xf]
      %v1080 = vld [vmem:[%s1065 + $0x38] sm:$0xf]
      %v1081 = vld [vmem:[%s1065 + $0x3c] sm:$0xf]
      %v1098 = vunpack.c.l.b16 %v1066
      %v1099 = vunpack.c.l.b16 %v1067
      %v1100 = vunpack.c.l.b16 %v1068
      %v1101 = vunpack.c.l.b16 %v1069
      %v1102 = vunpack.c.l.b16 %v1070
      %v1103 = vunpack.c.l.b16 %v1071
      %v1104 = vunpack.c.l.b16 %v1072
      %v1105 = vunpack.c.l.b16 %v1073
      %v1106 = vunpack.c.l.b16 %v1074
      %v1107 = vunpack.c.l.b16 %v1075
      %v1108 = vunpack.c.l.b16 %v1076
      %v1109 = vunpack.c.l.b16 %v1077
      %v1110 = vunpack.c.l.b16 %v1078
      %v1111 = vunpack.c.l.b16 %v1079
      %v1112 = vunpack.c.l.b16 %v1080
      %v1113 = vunpack.c.l.b16 %v1081
      %v1114 = vpack.c.b16 %v1099, %v1098
      %v1115 = vpack.c.b16 %v1101, %v1100
      %v1116 = vpack.c.b16 %v1103, %v1102
      %v1117 = vpack.c.b16 %v1105, %v1104
      %v1118 = vpack.c.b16 %v1107, %v1106
      %v1119 = vpack.c.b16 %v1109, %v1108
      %v1120 = vpack.c.b16 %v1111, %v1110
      %v1121 = vpack.c.b16 %v1113, %v1112
      %1130 = vmatpush.bf16.msra.mxu0 %v1121
      %1131 = vmatpush.bf16.msra.mxu0 %v1120
      %1132 = vmatpush.bf16.msra.mxu0 %v1119
      %1133 = vmatpush.bf16.msra.mxu0 %v1118
      %1134 = vmatpush.bf16.msra.mxu0 %v1117
      %1135 = vmatpush.bf16.msra.mxu0 %v1116
      %1136 = vmatpush.bf16.msra.mxu0 %v1115
      %1137 = vmatpush.bf16.msra.mxu0 %v1114
      %1138 = vmatmul.bf16.gmra.mxu0 %v1064
      %v1139 = vpop.f32.mrf.mxu0
      %v1140 = vadd.f32 0.0, %v1139
      %v1141 = vpop.f32.mrf.mxu0
      %1142 = vdwg.mxu0
      %v1159 = vunpack.c.l.b16 %v1048
      %v1160 = vunpack.c.l.b16 %v1049
      %v1161 = vunpack.c.l.b16 %v1050
      %v1162 = vunpack.c.l.b16 %v1051
      %v1163 = vunpack.c.l.b16 %v1052
      %v1164 = vunpack.c.l.b16 %v1053
      %v1165 = vunpack.c.l.b16 %v1054
      %v1166 = vunpack.c.l.b16 %v1055
      %v1167 = vunpack.c.l.b16 %v1056
      %v1168 = vunpack.c.l.b16 %v1057
      %v1169 = vunpack.c.l.b16 %v1058
      %v1170 = vunpack.c.l.b16 %v1059
      %v1171 = vunpack.c.l.b16 %v1060
      %v1172 = vunpack.c.l.b16 %v1061
      %v1173 = vunpack.c.l.b16 %v1062
      %v1174 = vunpack.c.l.b16 %v1063
      %v1175 = vpack.c.b16 %v1160, %v1159
      %v1176 = vpack.c.b16 %v1162, %v1161
      %v1177 = vpack.c.b16 %v1164, %v1163
      %v1178 = vpack.c.b16 %v1166, %v1165
      %v1179 = vpack.c.b16 %v1168, %v1167
      %v1180 = vpack.c.b16 %v1170, %v1169
      %v1181 = vpack.c.b16 %v1172, %v1171
      %v1182 = vpack.c.b16 %v1174, %v1173
      %1191 = vmatpush.bf16.msra.mxu0 %v1182
      %1192 = vmatpush.bf16.msra.mxu0 %v1181
      %1193 = vmatpush.bf16.msra.mxu0 %v1180
      %1194 = vmatpush.bf16.msra.mxu0 %v1179
      %1195 = vmatpush.bf16.msra.mxu0 %v1178
      %1196 = vmatpush.bf16.msra.mxu0 %v1177
      %1197 = vmatpush.bf16.msra.mxu0 %v1176
      %1198 = vmatpush.bf16.msra.mxu0 %v1175
      %1199 = vmatmul.bf16.gmra.mxu0 %v1047
      %v1200 = vpop.f32.mrf.mxu0
      %v1201 = vadd.f32 %v1140, %v1200
      %v1202 = vpop.f32.mrf.mxu0
      %1203 = vdwg.mxu0
      %v1204 = vpack.c.bf16 %v1046, %v1046
      %s1205 = scalar_lea.vmem %s7, 128
      %v1206 = vld [vmem:[%s1205] sm:$0xf]
      %v1207 = vld [vmem:[%s1205 + $0x4] sm:$0xf]
      %v1208 = vld [vmem:[%s1205 + $0x8] sm:$0xf]
      %v1209 = vld [vmem:[%s1205 + $0xc] sm:$0xf]
      %v1210 = vld [vmem:[%s1205 + $0x10] sm:$0xf]
      %v1211 = vld [vmem:[%s1205 + $0x14] sm:$0xf]
      %v1212 = vld [vmem:[%s1205 + $0x18] sm:$0xf]
      %v1213 = vld [vmem:[%s1205 + $0x1c] sm:$0xf]
      %v1214 = vld [vmem:[%s1205 + $0x20] sm:$0xf]
      %v1215 = vld [vmem:[%s1205 + $0x24] sm:$0xf]
      %v1216 = vld [vmem:[%s1205 + $0x28] sm:$0xf]
      %v1217 = vld [vmem:[%s1205 + $0x2c] sm:$0xf]
      %v1218 = vld [vmem:[%s1205 + $0x30] sm:$0xf]
      %v1219 = vld [vmem:[%s1205 + $0x34] sm:$0xf]
      %v1220 = vld [vmem:[%s1205 + $0x38] sm:$0xf]
      %v1221 = vld [vmem:[%s1205 + $0x3c] sm:$0xf]
      %v1238 = vunpack.c.l.b16 %v1206
      %v1239 = vunpack.c.l.b16 %v1207
      %v1240 = vunpack.c.l.b16 %v1208
      %v1241 = vunpack.c.l.b16 %v1209
      %v1242 = vunpack.c.l.b16 %v1210
      %v1243 = vunpack.c.l.b16 %v1211
      %v1244 = vunpack.c.l.b16 %v1212
      %v1245 = vunpack.c.l.b16 %v1213
      %v1246 = vunpack.c.l.b16 %v1214
      %v1247 = vunpack.c.l.b16 %v1215
      %v1248 = vunpack.c.l.b16 %v1216
      %v1249 = vunpack.c.l.b16 %v1217
      %v1250 = vunpack.c.l.b16 %v1218
      %v1251 = vunpack.c.l.b16 %v1219
      %v1252 = vunpack.c.l.b16 %v1220
      %v1253 = vunpack.c.l.b16 %v1221
      %v1254 = vpack.c.b16 %v1239, %v1238
      %v1255 = vpack.c.b16 %v1241, %v1240
      %v1256 = vpack.c.b16 %v1243, %v1242
      %v1257 = vpack.c.b16 %v1245, %v1244
      %v1258 = vpack.c.b16 %v1247, %v1246
      %v1259 = vpack.c.b16 %v1249, %v1248
      %v1260 = vpack.c.b16 %v1251, %v1250
      %v1261 = vpack.c.b16 %v1253, %v1252
      %1270 = vmatpush.bf16.msra.mxu0 %v1261
      %1271 = vmatpush.bf16.msra.mxu0 %v1260
      %1272 = vmatpush.bf16.msra.mxu0 %v1259
      %1273 = vmatpush.bf16.msra.mxu0 %v1258
      %1274 = vmatpush.bf16.msra.mxu0 %v1257
      %1275 = vmatpush.bf16.msra.mxu0 %v1256
      %1276 = vmatpush.bf16.msra.mxu0 %v1255
      %1277 = vmatpush.bf16.msra.mxu0 %v1254
      %1278 = vmatmul.bf16.gmra.mxu0 %v1204
      %v1279 = vpop.f32.mrf.mxu0
      %v1280 = vadd.f32 0.0, %v1279
      %v1281 = vpop.f32.mrf.mxu0
      %1282 = vdwg.mxu0
      %v1283 = vadd.f32 %v1201, %v1280
      %v1284 = vld [vmem:[%s8] sm:$0x1]
      %v1285 = vadd.f32 %v1283, %v1284
      %v1286 = vmax.f32 %v1285, 0.0
      %v1287 = vpack.c.bf16 %v1286, %v1286
      %v1288 = vld [vmem:[%s9] sm:$0xf]
      %v1289 = vld [vmem:[%s9 + $0x4] sm:$0xf]
      %v1290 = vld [vmem:[%s9 + $0x8] sm:$0xf]
      %v1291 = vld [vmem:[%s9 + $0xc] sm:$0xf]
      %v1292 = vld [vmem:[%s9 + $0x10] sm:$0xf]
      %v1293 = vld [vmem:[%s9 + $0x14] sm:$0xf]
      %v1294 = vld [vmem:[%s9 + $0x18] sm:$0xf]
      %v1295 = vld [vmem:[%s9 + $0x1c] sm:$0xf]
      %v1296 = vld [vmem:[%s9 + $0x20] sm:$0xf]
      %v1297 = vld [vmem:[%s9 + $0x24] sm:$0xf]
      %v1298 = vld [vmem:[%s9 + $0x28] sm:$0xf]
      %v1299 = vld [vmem:[%s9 + $0x2c] sm:$0xf]
      %v1300 = vld [vmem:[%s9 + $0x30] sm:$0xf]
      %v1301 = vld [vmem:[%s9 + $0x34] sm:$0xf]
      %v1302 = vld [vmem:[%s9 + $0x38] sm:$0xf]
      %v1303 = vld [vmem:[%s9 + $0x3c] sm:$0xf]
      %v1304 = vld [vmem:[%s10] sm:$0x1]
      %v1321 = vunpack.c.l.b16 %v1288
      %v1322 = vunpack.c.l.b16 %v1289
      %v1323 = vunpack.c.l.b16 %v1290
      %v1324 = vunpack.c.l.b16 %v1291
      %v1325 = vunpack.c.l.b16 %v1292
      %v1326 = vunpack.c.l.b16 %v1293
      %v1327 = vunpack.c.l.b16 %v1294
      %v1328 = vunpack.c.l.b16 %v1295
      %v1329 = vunpack.c.l.b16 %v1296
      %v1330 = vunpack.c.l.b16 %v1297
      %v1331 = vunpack.c.l.b16 %v1298
      %v1332 = vunpack.c.l.b16 %v1299
      %v1333 = vunpack.c.l.b16 %v1300
      %v1334 = vunpack.c.l.b16 %v1301
      %v1335 = vunpack.c.l.b16 %v1302
      %v1336 = vunpack.c.l.b16 %v1303
      %v1337 = vpack.c.b16 %v1322, %v1321
      %v1338 = vpack.c.b16 %v1324, %v1323
      %v1339 = vpack.c.b16 %v1326, %v1325
      %v1340 = vpack.c.b16 %v1328, %v1327
      %v1341 = vpack.c.b16 %v1330, %v1329
      %v1342 = vpack.c.b16 %v1332, %v1331
      %v1343 = vpack.c.b16 %v1334, %v1333
      %v1344 = vpack.c.b16 %v1336, %v1335
      %1353 = vmatpush.bf16.msra.mxu0 %v1344
      %1354 = vmatpush.bf16.msra.mxu0 %v1343
      %1355 = vmatpush.bf16.msra.mxu0 %v1342
      %1356 = vmatpush.bf16.msra.mxu0 %v1341
      %1357 = vmatpush.bf16.msra.mxu0 %v1340
      %1358 = vmatpush.bf16.msra.mxu0 %v1339
      %1359 = vmatpush.bf16.msra.mxu0 %v1338
      %1360 = vmatpush.bf16.msra.mxu0 %v1337
      %1361 = vmatmul.bf16.gmra.mxu0 %v1287
      %v1362 = vpop.f32.mrf.mxu0
      %v1363 = vadd.f32 %v1304, %v1362
      %v1364 = vpop.f32.mrf.mxu0
      %1365 = vdwg.mxu0
      %v1366 = vmax.f32 %v1363, 0.0
      %v1367 = vadd.f32 %v1045, %v1366
      %v1368 = vpack.c.bf16 %v1367, %v1367
      %v1369 = vld [vmem:[%s11] sm:$0xf]
      %v1370 = vld [vmem:[%s11 + $0x4] sm:$0xf]
      %v1371 = vld [vmem:[%s11 + $0x8] sm:$0xf]
      %v1372 = vld [vmem:[%s11 + $0xc] sm:$0xf]
      %v1373 = vld [vmem:[%s11 + $0x10] sm:$0xf]
      %v1374 = vld [vmem:[%s11 + $0x14] sm:$0xf]
      %v1375 = vld [vmem:[%s11 + $0x18] sm:$0xf]
      %v1376 = vld [vmem:[%s11 + $0x1c] sm:$0xf]
      %v1377 = vld [vmem:[%s11 + $0x20] sm:$0xf]
      %v1378 = vld [vmem:[%s11 + $0x24] sm:$0xf]
      %v1379 = vld [vmem:[%s11 + $0x28] sm:$0xf]
      %v1380 = vld [vmem:[%s11 + $0x2c] sm:$0xf]
      %v1381 = vld [vmem:[%s11 + $0x30] sm:$0xf]
      %v1382 = vld [vmem:[%s11 + $0x34] sm:$0xf]
      %v1383 = vld [vmem:[%s11 + $0x38] sm:$0xf]
      %v1384 = vld [vmem:[%s11 + $0x3c] sm:$0xf]
      %v1385 = vld [vmem:[%s12] sm:$0x1]
      %v1402 = vunpack.c.l.b16 %v1369
      %v1403 = vunpack.c.l.b16 %v1370
      %v1404 = vunpack.c.l.b16 %v1371
      %v1405 = vunpack.c.l.b16 %v1372
      %v1406 = vunpack.c.l.b16 %v1373
      %v1407 = vunpack.c.l.b16 %v1374
      %v1408 = vunpack.c.l.b16 %v1375
      %v1409 = vunpack.c.l.b16 %v1376
      %v1410 = vunpack.c.l.b16 %v1377
      %v1411 = vunpack.c.l.b16 %v1378
      %v1412 = vunpack.c.l.b16 %v1379
      %v1413 = vunpack.c.l.b16 %v1380
      %v1414 = vunpack.c.l.b16 %v1381
      %v1415 = vunpack.c.l.b16 %v1382
      %v1416 = vunpack.c.l.b16 %v1383
      %v1417 = vunpack.c.l.b16 %v1384
      %v1418 = vpack.c.b16 %v1403, %v1402
      %v1419 = vpack.c.b16 %v1405, %v1404
      %v1420 = vpack.c.b16 %v1407, %v1406
      %v1421 = vpack.c.b16 %v1409, %v1408
      %v1422 = vpack.c.b16 %v1411, %v1410
      %v1423 = vpack.c.b16 %v1413, %v1412
      %v1424 = vpack.c.b16 %v1415, %v1414
      %v1425 = vpack.c.b16 %v1417, %v1416
      %1434 = vmatpush.bf16.msra.mxu0 %v1425
      %1435 = vmatpush.bf16.msra.mxu0 %v1424
      %1436 = vmatpush.bf16.msra.mxu0 %v1423
      %1437 = vmatpush.bf16.msra.mxu0 %v1422
      %1438 = vmatpush.bf16.msra.mxu0 %v1421
      %1439 = vmatpush.bf16.msra.mxu0 %v1420
      %1440 = vmatpush.bf16.msra.mxu0 %v1419
      %1441 = vmatpush.bf16.msra.mxu0 %v1418
      %1442 = vmatmul.bf16.gmra.mxu0 %v1368
      %v1443 = vpop.f32.mrf.mxu0
      %v1444 = vadd.f32 %v1385, %v1443
      %v1445 = vpop.f32.mrf.mxu0
      %1446 = vdwg.mxu0
      %1447 = vst [vmem:[%s436] sm:$0x1] %v1444
      %p1448 = scmp.lt.s32.totalorder %s24, 1
      %s1449 = scalar_select %p1448, %s24, 1
      %s1450 = scalar_lea.vmem %s13, %s1449
      // Predicated region
      $region73: #{_lambda_.3} parent=71 // pred_check
        %p1451 = pneg %p320
      $region74: #{_lambda_.3} parent=71 // pred_check_branch
        %1453 = sbr.rel (%p1451) target = $region76
      $region75: #{_lambda_.3} parent=71 // pred_region
        _
      $region76: #{_lambda_.3} parent=71 // pred_fallthru
        _
    $region72: #{_lambda_.3} parent=5 // pred_fallthru
      _
    %p1454 = scmp.le.s32.totalorder 2, %s19
    // Predicated region
    $region77: #{_lambda_.3} parent=5 // pred_check
      %p1455 = pneg %p1454
    $region78: #{_lambda_.3} parent=5 // pred_check_branch
      %1457 = sbr.rel (%p1455) target = $region80
    $region79: #{_lambda_.3} parent=5 // pred_region
      %s1458 = ssub.s32 %s19, 2
      // Predicated region
      $region81: #{_lambda_.3} parent=79 // pred_check
        %p1459 = pneg %p326
      $region82: #{_lambda_.3} parent=79 // pred_check_branch
        %1461 = sbr.rel (%p1459) target = $region84
      $region83: #{_lambda_.3} parent=79 // pred_region
        %p1462 = scmp.lt.s32.totalorder %s25, 1
        %s1463 = scalar_select %p1462, %s25, 1
        %s1464 = scalar_lea.vmem %s13, %s1463
      $region84: #{_lambda_.3} parent=79 // pred_fallthru
        _
    $region80: #{_lambda_.3} parent=5 // pred_fallthru
      _
  $region6: #{_lambda_.3} parent=0 // loop_footer
    %s23 = sadd.s32 1, %s19
  $region7: #{_lambda_.3} parent=0 // loop_footer_branch
    %18 = sbr.rel target = $region3
  $region8: #{_lambda_.3} parent=0 // loop_exit
    _

// kernel: _lambda_.2
$region0: #{_lambda_.2}
  #allocation0 [shape = 'u32[]', space=smem, size = 0x4, offset = 0x4, fixed_abs, tag = 'smem constant byte address 0x4 - core index']
  #allocation1 [shape = 'u32[72,128]{1,0:T(1,128)}', space=vmem, size = 0x9000, scoped, tag = 'internal scratch']
  %s0 = inlined_call_operand.vmem [shape: bf16[2,27,256,32], index: 0, kind: input, shape index: {}]
  %s1 = inlined_call_operand.vmem [shape: bf16[32,128], index: 1, kind: input, shape index: {}]
  %s2 = inlined_call_operand.vmem [shape: f32[1,128], index: 2, kind: input, shape index: {}]
  %s3 = inlined_call_operand.vmem [shape: bf16[1,256], index: 3, kind: input, shape index: {}]
  %s4 = inlined_call_operand.vmem [shape: bf16[128,128], index: 4, kind: input, shape index: {}]
  %s5 = inlined_call_operand.vmem [shape: f32[1,128], index: 5, kind: input, shape index: {}]
  %s6 = inlined_call_operand.vmem [shape: f32[2,27,128], index: 6, kind: output, shape index: {}]
  %s7 = sld [smem:[#allocation0]]
  $region57: #{_lambda_.2} parent=0
    _
  %s9 = ssub.s32 1, %s7
  %s10 = scalar_select 0, %s9, %s7
  loop: start=0, step=1, limit=4
  $region2: #{_lambda_.2} parent=0 // loop_pre_header
    _
  $region3: #{_lambda_.2} parent=0 // loop_header
    %s12 = sphi 0, %s16
    %p13 = scmp.ge.s32.totalorder %s12, 4
    %s22 = sphi 0, %s24
    %s25 = sphi 0, %s22
    %s26 = sphi 0, %s25
    %s42 = sphi 0, %s26
    %s46 = sphi 0, %s46
    %s48 = sphi 0, %s46
    %s49 = sphi 0, %s48
    %s63 = sphi 0, %s49
    %s67 = sphi 0, %s67
    %s69 = sphi 0, %s67
    %s70 = sphi 0, %s69
    %s84 = sphi 0, %s70
    %s88 = sphi 0, %s88
    %s90 = sphi 0, %s88
    %s91 = sphi 0, %s90
    %s105 = sphi 0, %s91
    %s109 = sphi 0, %s109
    %s111 = sphi 0, %s109
    %s112 = sphi 0, %s111
    %s126 = sphi 0, %s112
    %s130 = sphi 0, %s130
    %s132 = sphi 0, %s130
    %s133 = sphi 0, %s132
    %s147 = sphi 0, %s133
    %s153 = sphi 0, %s155
    %s156 = sphi 0, %s153
    %s157 = sphi 0, %s156
    %s173 = sphi 0, %s157
  $region4: #{_lambda_.2} parent=0 // loop_header_branch
    %15 = sbr.rel (%p13) target = $region8
  $region5: #{_lambda_.2} parent=0 // loop_body
    %s17 = ssub.s32 %s12, 1
    %s18 = ssub.s32 %s12, 2
    %s19 = sadd.s32 %s12, 1
    %s20 = ssub.s32 %s12, %s19
    %p21 = scmp.eq.s32.totalorder %s20, 0
    %s23 = sadd.s32 %s22, 1
    %s24 = scalar_select %p21, %s22, %s23
    %p27 = pneg %p21
    %p28 = scmp.eq.s32.totalorder %s12, 1
    %p29 = por %p27, %p28
    %p30 = scmp.ne.s32.totalorder %s22, %s25
    %p31 = scmp.eq.s32.totalorder %s12, 0
    %p32 = por %p30, %p31
    %p33 = scmp.ne.s32.totalorder %s22, %s25
    %p34 = scmp.eq.s32.totalorder %s17, 1
    %p35 = por %p33, %p34
    %p36 = scmp.ne.s32.totalorder %s25, %s26
    %p37 = scmp.eq.s32.totalorder %s17, 0
    %p38 = por %p36, %p37
    %p39 = scmp.ne.s32.totalorder %s25, %s26
    %p40 = scmp.eq.s32.totalorder %s18, 1
    %p41 = por %p39, %p40
    %p43 = scmp.ne.s32.totalorder %s26, %s42
    %p44 = scmp.eq.s32.totalorder %s18, 0
    %p45 = por %p43, %p44
    %s47 = sadd.s32 %s46, 1
    %p50 = scmp.eq.s32.totalorder %s12, 1
    %p51 = scmp.ne.s32.totalorder %s46, %s48
    %p52 = scmp.eq.s32.totalorder %s12, 0
    %p53 = por %p51, %p52
    %p54 = scmp.ne.s32.totalorder %s46, %s48
    %p55 = scmp.eq.s32.totalorder %s17, 1
    %p56 = por %p54, %p55
    %p57 = scmp.ne.s32.totalorder %s48, %s49
    %p58 = scmp.eq.s32.totalorder %s17, 0
    %p59 = por %p57, %p58
    %p60 = scmp.ne.s32.totalorder %s48, %s49
    %p61 = scmp.eq.s32.totalorder %s18, 1
    %p62 = por %p60, %p61
    %p64 = scmp.ne.s32.totalorder %s49, %s63
    %p65 = scmp.eq.s32.totalorder %s18, 0
    %p66 = por %p64, %p65
    %s68 = sadd.s32 %s67, 1
    %p71 = scmp.eq.s32.totalorder %s12, 1
    %p72 = scmp.ne.s32.totalorder %s67, %s69
    %p73 = scmp.eq.s32.totalorder %s12, 0
    %p74 = por %p72, %p73
    %p75 = scmp.ne.s32.totalorder %s67, %s69
    %p76 = scmp.eq.s32.totalorder %s17, 1
    %p77 = por %p75, %p76
    %p78 = scmp.ne.s32.totalorder %s69, %s70
    %p79 = scmp.eq.s32.totalorder %s17, 0
    %p80 = por %p78, %p79
    %p81 = scmp.ne.s32.totalorder %s69, %s70
    %p82 = scmp.eq.s32.totalorder %s18, 1
    %p83 = por %p81, %p82
    %p85 = scmp.ne.s32.totalorder %s70, %s84
    %p86 = scmp.eq.s32.totalorder %s18, 0
    %p87 = por %p85, %p86
    %s89 = sadd.s32 %s88, 1
    %p92 = scmp.eq.s32.totalorder %s12, 1
    %p93 = scmp.ne.s32.totalorder %s88, %s90
    %p94 = scmp.eq.s32.totalorder %s12, 0
    %p95 = por %p93, %p94
    %p96 = scmp.ne.s32.totalorder %s88, %s90
    %p97 = scmp.eq.s32.totalorder %s17, 1
    %p98 = por %p96, %p97
    %p99 = scmp.ne.s32.totalorder %s90, %s91
    %p100 = scmp.eq.s32.totalorder %s17, 0
    %p101 = por %p99, %p100
    %p102 = scmp.ne.s32.totalorder %s90, %s91
    %p103 = scmp.eq.s32.totalorder %s18, 1
    %p104 = por %p102, %p103
    %p106 = scmp.ne.s32.totalorder %s91, %s105
    %p107 = scmp.eq.s32.totalorder %s18, 0
    %p108 = por %p106, %p107
    %s110 = sadd.s32 %s109, 1
    %p113 = scmp.eq.s32.totalorder %s12, 1
    %p114 = scmp.ne.s32.totalorder %s109, %s111
    %p115 = scmp.eq.s32.totalorder %s12, 0
    %p116 = por %p114, %p115
    %p117 = scmp.ne.s32.totalorder %s109, %s111
    %p118 = scmp.eq.s32.totalorder %s17, 1
    %p119 = por %p117, %p118
    %p120 = scmp.ne.s32.totalorder %s111, %s112
    %p121 = scmp.eq.s32.totalorder %s17, 0
    %p122 = por %p120, %p121
    %p123 = scmp.ne.s32.totalorder %s111, %s112
    %p124 = scmp.eq.s32.totalorder %s18, 1
    %p125 = por %p123, %p124
    %p127 = scmp.ne.s32.totalorder %s112, %s126
    %p128 = scmp.eq.s32.totalorder %s18, 0
    %p129 = por %p127, %p128
    %s131 = sadd.s32 %s130, 1
    %p134 = scmp.eq.s32.totalorder %s12, 1
    %p135 = scmp.ne.s32.totalorder %s130, %s132
    %p136 = scmp.eq.s32.totalorder %s12, 0
    %p137 = por %p135, %p136
    %p138 = scmp.ne.s32.totalorder %s130, %s132
    %p139 = scmp.eq.s32.totalorder %s17, 1
    %p140 = por %p138, %p139
    %p141 = scmp.ne.s32.totalorder %s132, %s133
    %p142 = scmp.eq.s32.totalorder %s17, 0
    %p143 = por %p141, %p142
    %p144 = scmp.ne.s32.totalorder %s132, %s133
    %p145 = scmp.eq.s32.totalorder %s18, 1
    %p146 = por %p144, %p145
    %p148 = scmp.ne.s32.totalorder %s133, %s147
    %p149 = scmp.eq.s32.totalorder %s18, 0
    %p150 = por %p148, %p149
    %s151 = ssub.s32 %s12, %s19
    %p152 = scmp.eq.s32.totalorder %s151, 0
    %s154 = sadd.s32 %s153, 1
    %s155 = scalar_select %p152, %s153, %s154
    %p158 = pneg %p152
    %p159 = scmp.eq.s32.totalorder %s12, 1
    %p160 = por %p158, %p159
    %p161 = scmp.ne.s32.totalorder %s153, %s156
    %p162 = scmp.eq.s32.totalorder %s12, 0
    %p163 = por %p161, %p162
    %p164 = scmp.ne.s32.totalorder %s153, %s156
    %p165 = scmp.eq.s32.totalorder %s17, 1
    %p166 = por %p164, %p165
    %p167 = scmp.ne.s32.totalorder %s156, %s157
    %p168 = scmp.eq.s32.totalorder %s17, 0
    %p169 = por %p167, %p168
    %p170 = scmp.ne.s32.totalorder %s156, %s157
    %p171 = scmp.eq.s32.totalorder %s18, 1
    %p172 = por %p170, %p171
    %p174 = scmp.ne.s32.totalorder %s157, %s173
    %p175 = scmp.eq.s32.totalorder %s18, 0
    %p176 = por %p174, %p175
    %p177 = scmp.le.s32.totalorder 1, %s12
    %p178 = scmp.lt.s32.totalorder %s12, 3
    %p179 = pnand %p177, %p178
    %p180 = pneg %p179
    // Predicated region
    $region9: #{_lambda_.2} parent=5 // pred_check
      _
    $region10: #{_lambda_.2} parent=5 // pred_check_branch
      %182 = sbr.rel (%p179) target = $region12
    $region11: #{_lambda_.2} parent=5 // pred_region
      %s183 = ssub.s32 %s12, 1
      // Predicated region
      $region13: #{_lambda_.2} parent=11 // pred_check
        %p184 = pneg %p59
      $region14: #{_lambda_.2} parent=11 // pred_check_branch
        %186 = sbr.rel (%p184) target = $region16
      $region15: #{_lambda_.2} parent=11 // pred_region
        _
      $region16: #{_lambda_.2} parent=11 // pred_fallthru
        _
      // Predicated region
      $region17: #{_lambda_.2} parent=11 // pred_check
        %p187 = pneg %p80
      $region18: #{_lambda_.2} parent=11 // pred_check_branch
        %189 = sbr.rel (%p187) target = $region20
      $region19: #{_lambda_.2} parent=11 // pred_region
        _
      $region20: #{_lambda_.2} parent=11 // pred_fallthru
        _
      // Predicated region
      $region21: #{_lambda_.2} parent=11 // pred_check
        %p190 = pneg %p101
      $region22: #{_lambda_.2} parent=11 // pred_check_branch
        %192 = sbr.rel (%p190) target = $region24
      $region23: #{_lambda_.2} parent=11 // pred_region
        _
      $region24: #{_lambda_.2} parent=11 // pred_fallthru
        _
      // Predicated region
      $region25: #{_lambda_.2} parent=11 // pred_check
        %p193 = pneg %p122
      $region26: #{_lambda_.2} parent=11 // pred_check_branch
        %195 = sbr.rel (%p193) target = $region28
      $region27: #{_lambda_.2} parent=11 // pred_region
        _
      $region28: #{_lambda_.2} parent=11 // pred_fallthru
        _
      // Predicated region
      $region29: #{_lambda_.2} parent=11 // pred_check
        %p196 = pneg %p143
      $region30: #{_lambda_.2} parent=11 // pred_check_branch
        %198 = sbr.rel (%p196) target = $region32
      $region31: #{_lambda_.2} parent=11 // pred_region
        _
      $region32: #{_lambda_.2} parent=11 // pred_fallthru
        _
    $region12: #{_lambda_.2} parent=5 // pred_fallthru
      _
    %p199 = scmp.lt.s32.totalorder %s12, 2
    // Predicated region
    $region33: #{_lambda_.2} parent=5 // pred_check
      %p200 = pneg %p199
    $region34: #{_lambda_.2} parent=5 // pred_check_branch
      %202 = sbr.rel (%p200) target = $region36
    $region35: #{_lambda_.2} parent=5 // pred_region
      // Predicated region
      $region37: #{_lambda_.2} parent=35 // pred_check
        %p203 = pneg %p32
      $region38: #{_lambda_.2} parent=35 // pred_check_branch
        %205 = sbr.rel (%p203) target = $region40
      $region39: #{_lambda_.2} parent=35 // pred_region
        %p206 = scmp.lt.s32.totalorder %s12, 1
        %s207 = scalar_select %p206, %s12, 1
        %s208 = smul.addr %s207, 864
        %s209 = smul.addr %s208, 4
        %s210 = scalar_lea.vmem %s0, %s209
      $region40: #{_lambda_.2} parent=35 // pred_fallthru
        _
    $region36: #{_lambda_.2} parent=5 // pred_fallthru
      _
    %p211 = scmp.le.s32.totalorder 1, %s12
    %p212 = scmp.lt.s32.totalorder %s12, 3
    %p213 = pnand %p211, %p212
    %p214 = pneg %p213
    // Predicated region
    $region41: #{_lambda_.2} parent=5 // pred_check
      _
    $region42: #{_lambda_.2} parent=5 // pred_check_branch
      %216 = sbr.rel (%p213) target = $region44
    $region43: #{_lambda_.2} parent=5 // pred_region
      %s217 = ssub.s32 %s12, 1
      %p218 = scmp.lt.s32.totalorder %s17, 1
      %s219 = scalar_select %p218, %s17, 1
      %s220 = smul.addr %s219, 864
      %s221 = smul.addr %s220, 4
      %s222 = scalar_lea.vmem %s0, %s221
      %p223 = pneg %p38
      %p224 = pneg %p35
      %p225 = pneg %p59
      %p226 = pneg %p56
      %p227 = pneg %p80
      %p228 = pneg %p77
      %p229 = pneg %p101
      %p230 = pneg %p98
      %p231 = pneg %p122
      %p232 = pneg %p119
      %p233 = pneg %p143
      %p234 = pneg %p140
      %p235 = pneg %p169
      %p236 = pneg %p166
      %p237 = scmp.lt.s32.totalorder %s17, 1
      %s238 = scalar_select %p237, %s17, 1
      %s239 = smul.addr %s238, 4
      %s240 = smul.addr %s239, 8
      %s241 = scalar_lea.vmem %s6, %s240
      %p242 = scmp.lt.s32.totalorder %s17, 1
      %s243 = scalar_select %p242, %s17, 1
      %s244 = smul.addr %s243, 864
      %s245 = smul.addr %s244, 4
      %s246 = scalar_lea.vmem %s0, %s245
      %p247 = scmp.lt.s32.totalorder %s17, 1
      %s248 = scalar_select %p247, %s17, 1
      %s249 = smul.addr %s248, 4
      %s250 = smul.addr %s249, 8
      %s251 = scalar_lea.vmem %s6, %s250
      %v253 = vld [vmem:[%s1] sm:$0xf]
      %v254 = vld [vmem:[%s1 + $0x4] sm:$0xf]
      %v255 = vld [vmem:[%s1 + $0x8] sm:$0xf]
      %v256 = vld [vmem:[%s1 + $0xc] sm:$0xf]
      %v257 = vld [vmem:[%s2] sm:$0x1]
      %v258 = vld [vmem:[%s3] sm:$0x3]
      %v259 = vld [vmem:[%s246] sm:$0xf]
      %v260 = vld [vmem:[%s246 + $0x4] sm:$0xf]
      %v261 = vld [vmem:[%s246 + $0x8] sm:$0xf]
      %v262 = vld [vmem:[%s246 + $0xc] sm:$0xf]
      %v263 = vld [vmem:[%s246 + $0x10] sm:$0xf]
      %v264 = vld [vmem:[%s246 + $0x14] sm:$0xf]
      %v265 = vld [vmem:[%s246 + $0x18] sm:$0xf]
      %v266 = vld [vmem:[%s246 + $0x1c] sm:$0xf]
      %v267 = vld [vmem:[%s246 + $0x20] sm:$0xf]
      %v268 = vld [vmem:[%s246 + $0x24] sm:$0xf]
      %v269 = vld [vmem:[%s246 + $0x28] sm:$0xf]
      %v270 = vld [vmem:[%s246 + $0x2c] sm:$0xf]
      %v271 = vld [vmem:[%s246 + $0x30] sm:$0xf]
      %v272 = vld [vmem:[%s246 + $0x34] sm:$0xf]
      %v273 = vld [vmem:[%s246 + $0x38] sm:$0xf]
      %v274 = vld [vmem:[%s246 + $0x3c] sm:$0xf]
      %v275 = vld [vmem:[%s246 + $0x40] sm:$0xf]
      %v276 = vld [vmem:[%s246 + $0x44] sm:$0xf]
      %v277 = vld [vmem:[%s246 + $0x48] sm:$0xf]
      %v278 = vld [vmem:[%s246 + $0x4c] sm:$0xf]
      %v279 = vld [vmem:[%s246 + $0x50] sm:$0xf]
      %v280 = vld [vmem:[%s246 + $0x54] sm:$0xf]
      %v281 = vld [vmem:[%s246 + $0x58] sm:$0xf]
      %v282 = vld [vmem:[%s246 + $0x5c] sm:$0xf]
      %v283 = vld [vmem:[%s246 + $0x60] sm:$0xf]
      %v284 = vld [vmem:[%s246 + $0x64] sm:$0xf]
      %v285 = vld [vmem:[%s246 + $0x68] sm:$0xf]
      %v286 = vld [vmem:[%s246 + $0x6c] sm:$0xf]
      %v287 = vld [vmem:[%s246 + $0x70] sm:$0xf]
      %v288 = vld [vmem:[%s246 + $0x74] sm:$0xf]
      %v289 = vld [vmem:[%s246 + $0x78] sm:$0xf]
      %v290 = vld [vmem:[%s246 + $0x7c] sm:$0xf]
      %v292 = vperm.slane %v257, 0
      %v326 = vunpack.c.l.b16 %v259
      %v327 = vunpack.c.l.b16 %v260
      %v328 = vunpack.c.l.b16 %v261
      %v329 = vunpack.c.l.b16 %v262
      %v330 = vunpack.c.l.b16 %v263
      %v331 = vunpack.c.l.b16 %v264
      %v332 = vunpack.c.l.b16 %v265
      %v333 = vunpack.c.l.b16 %v266
      %v334 = vunpack.c.l.b16 %v267
      %v335 = vunpack.c.l.b16 %v268
      %v336 = vunpack.c.l.b16 %v269
      %v337 = vunpack.c.l.b16 %v270
      %v338 = vunpack.c.l.b16 %v271
      %v339 = vunpack.c.l.b16 %v272
      %v340 = vunpack.c.l.b16 %v273
      %v341 = vunpack.c.l.b16 %v274
      %v342 = vunpack.c.l.b16 %v275
      %v343 = vunpack.c.l.b16 %v276
      %v344 = vunpack.c.l.b16 %v277
      %v345 = vunpack.c.l.b16 %v278
      %v346 = vunpack.c.l.b16 %v279
      %v347 = vunpack.c.l.b16 %v280
      %v348 = vunpack.c.l.b16 %v281
      %v349 = vunpack.c.l.b16 %v282
      %v350 = vunpack.c.l.b16 %v283
      %v351 = vunpack.c.l.b16 %v284
      %v352 = vunpack.c.l.b16 %v285
      %v353 = vunpack.c.l.b16 %v286
      %v354 = vunpack.c.l.b16 %v287
      %v355 = vunpack.c.l.b16 %v288
      %v356 = vunpack.c.l.b16 %v289
      %v357 = vunpack.c.l.b16 %v290
      %v358 = vpack.c.b16 %v327, %v326
      %v359 = vpack.c.b16 %v329, %v328
      %v360 = vpack.c.b16 %v331, %v330
      %v361 = vpack.c.b16 %v333, %v332
      %v362 = vpack.c.b16 %v335, %v334
      %v363 = vpack.c.b16 %v337, %v336
      %v364 = vpack.c.b16 %v339, %v338
      %v365 = vpack.c.b16 %v341, %v340
      %v366 = vpack.c.b16 %v343, %v342
      %v367 = vpack.c.b16 %v345, %v344
      %v368 = vpack.c.b16 %v347, %v346
      %v369 = vpack.c.b16 %v349, %v348
      %v370 = vpack.c.b16 %v351, %v350
      %v371 = vpack.c.b16 %v353, %v352
      %v372 = vpack.c.b16 %v355, %v354
      %v373 = vpack.c.b16 %v357, %v356
      %v378 = vunpack.c.l.b16 %v253
      %v379 = vunpack.c.l.b16 %v254
      %v380 = vunpack.c.l.b16 %v255
      %v381 = vunpack.c.l.b16 %v256
      %v382 = vpack.c.b16 %v379, %v378
      %v383 = vpack.c.b16 %v381, %v380
      %vm386 = vcmask 261120
      %v388 = vsel %vm386, %v358, 0
      %v391 = vsel %vm386, %v359, 0
      %v394 = vsel %vm386, %v360, 0
      %v397 = vsel %vm386, %v361, 0
      %v400 = vsel %vm386, %v362, 0
      %v403 = vsel %vm386, %v363, 0
      %v406 = vsel %vm386, %v364, 0
      %v409 = vsel %vm386, %v365, 0
      %v412 = vsel %vm386, %v366, 0
      %v415 = vsel %vm386, %v367, 0
      %v418 = vsel %vm386, %v368, 0
      %v421 = vsel %vm386, %v369, 0
      %v424 = vsel %vm386, %v370, 0
      %v427 = vsel %vm386, %v371, 0
      %v430 = vsel %vm386, %v372, 0
      %v433 = vsel %vm386, %v373, 0
      %435 = vmatpush.bf16.msra.mxu0 0
      %436 = vmatpush.bf16.msra.mxu0 0
      %437 = vmatpush.bf16.msra.mxu0 0
      %438 = vmatpush.bf16.msra.mxu0 0
      %439 = vmatpush.bf16.msra.mxu0 0
      %440 = vmatpush.bf16.msra.mxu0 0
      %441 = vmatpush.bf16.msra.mxu0 %v383
      %442 = vmatpush.bf16.msra.mxu0 %v382
      %443 = vmatmul.bf16.gmra.mxu0 %v388
      %v444 = vpop.f32.mrf.mxu0
      %v445 = vadd.f32 %v292, %v444
      %v446 = vpop.f32.mrf.mxu0
      %v447 = vadd.f32 %v292, %v446
      %448 = vmatmul.bf16.gmra.mxu0 %v391
      %v449 = vpop.f32.mrf.mxu0
      %v450 = vadd.f32 %v292, %v449
      %v451 = vpop.f32.mrf.mxu0
      %v452 = vadd.f32 %v292, %v451
      %453 = vmatmul.bf16.gmra.mxu0 %v394
      %v454 = vpop.f32.mrf.mxu0
      %v455 = vadd.f32 %v292, %v454
      %v456 = vpop.f32.mrf.mxu0
      %v457 = vadd.f32 %v292, %v456
      %458 = vmatmul.bf16.gmra.mxu0 %v397
      %v459 = vpop.f32.mrf.mxu0
      %v460 = vadd.f32 %v292, %v459
      %v461 = vpop.f32.mrf.mxu0
      %v462 = vadd.f32 %v292, %v461
      %463 = vmatmul.bf16.gmra.mxu0 %v400
      %v464 = vpop.f32.mrf.mxu0
      %v465 = vadd.f32 %v292, %v464
      %v466 = vpop.f32.mrf.mxu0
      %v467 = vadd.f32 %v292, %v466
      %468 = vmatmul.bf16.gmra.mxu0 %v403
      %v469 = vpop.f32.mrf.mxu0
      %v470 = vadd.f32 %v292, %v469
      %v471 = vpop.f32.mrf.mxu0
      %v472 = vadd.f32 %v292, %v471
      %473 = vmatmul.bf16.gmra.mxu0 %v406
      %v474 = vpop.f32.mrf.mxu0
      %v475 = vadd.f32 %v292, %v474
      %v476 = vpop.f32.mrf.mxu0
      %v477 = vadd.f32 %v292, %v476
      %478 = vmatmul.bf16.gmra.mxu0 %v409
      %v479 = vpop.f32.mrf.mxu0
      %v480 = vadd.f32 %v292, %v479
      %v481 = vpop.f32.mrf.mxu0
      %v482 = vadd.f32 %v292, %v481
      %483 = vmatmul.bf16.gmra.mxu0 %v412
      %v484 = vpop.f32.mrf.mxu0
      %v485 = vadd.f32 %v292, %v484
      %v486 = vpop.f32.mrf.mxu0
      %v487 = vadd.f32 %v292, %v486
      %488 = vmatmul.bf16.gmra.mxu0 %v415
      %v489 = vpop.f32.mrf.mxu0
      %v490 = vadd.f32 %v292, %v489
      %v491 = vpop.f32.mrf.mxu0
      %v492 = vadd.f32 %v292, %v491
      %493 = vmatmul.bf16.gmra.mxu0 %v418
      %v494 = vpop.f32.mrf.mxu0
      %v495 = vadd.f32 %v292, %v494
      %v496 = vpop.f32.mrf.mxu0
      %v497 = vadd.f32 %v292, %v496
      %498 = vmatmul.bf16.gmra.mxu0 %v421
      %v499 = vpop.f32.mrf.mxu0
      %v500 = vadd.f32 %v292, %v499
      %v501 = vpop.f32.mrf.mxu0
      %v502 = vadd.f32 %v292, %v501
      %503 = vmatmul.bf16.gmra.mxu0 %v424
      %v504 = vpop.f32.mrf.mxu0
      %v505 = vadd.f32 %v292, %v504
      %v506 = vpop.f32.mrf.mxu0
      %v507 = vadd.f32 %v292, %v506
      %508 = vmatmul.bf16.gmra.mxu0 %v427
      %v509 = vpop.f32.mrf.mxu0
      %v510 = vadd.f32 %v292, %v509
      %v511 = vpop.f32.mrf.mxu0
      %v512 = vadd.f32 %v292, %v511
      %513 = vmatmul.bf16.gmra.mxu0 %v430
      %v514 = vpop.f32.mrf.mxu0
      %v515 = vadd.f32 %v292, %v514
      %v516 = vpop.f32.mrf.mxu0
      %v517 = vadd.f32 %v292, %v516
      %518 = vmatmul.bf16.gmra.mxu0 %v433
      %v519 = vpop.f32.mrf.mxu0
      %v520 = vadd.f32 %v292, %v519
      %v521 = vpop.f32.mrf.mxu0
      %v522 = vadd.f32 %v292, %v521
      %523 = vdwg.mxu0
      %v524 = vmax.f32 %v445, 0.0
      %v525 = vmax.f32 %v447, 0.0
      %v526 = vmax.f32 %v450, 0.0
      %v527 = vmax.f32 %v452, 0.0
      %v528 = vmax.f32 %v455, 0.0
      %v529 = vmax.f32 %v457, 0.0
      %v530 = vmax.f32 %v460, 0.0
      %v531 = vmax.f32 %v462, 0.0
      %v532 = vmax.f32 %v465, 0.0
      %v533 = vmax.f32 %v467, 0.0
      %v534 = vmax.f32 %v470, 0.0
      %v535 = vmax.f32 %v472, 0.0
      %v536 = vmax.f32 %v475, 0.0
      %v537 = vmax.f32 %v477, 0.0
      %v538 = vmax.f32 %v480, 0.0
      %v539 = vmax.f32 %v482, 0.0
      %v540 = vmax.f32 %v485, 0.0
      %v541 = vmax.f32 %v487, 0.0
      %v542 = vmax.f32 %v490, 0.0
      %v543 = vmax.f32 %v492, 0.0
      %v544 = vmax.f32 %v495, 0.0
      %v545 = vmax.f32 %v497, 0.0
      %v546 = vmax.f32 %v500, 0.0
      %v547 = vmax.f32 %v502, 0.0
      %v548 = vmax.f32 %v505, 0.0
      %v549 = vmax.f32 %v507, 0.0
      %v550 = vmax.f32 %v510, 0.0
      %v551 = vmax.f32 %v512, 0.0
      %v552 = vmax.f32 %v515, 0.0
      %v553 = vmax.f32 %v517, 0.0
      %v554 = vmax.f32 %v520, 0.0
      %v555 = vmax.f32 %v522, 0.0
      %v556 = vpack.c.bf16 %v525, %v524
      %v557 = vpack.c.bf16 %v527, %v526
      %v558 = vpack.c.bf16 %v529, %v528
      %v559 = vpack.c.bf16 %v531, %v530
      %v560 = vpack.c.bf16 %v533, %v532
      %v561 = vpack.c.bf16 %v535, %v534
      %v562 = vpack.c.bf16 %v537, %v536
      %v563 = vpack.c.bf16 %v539, %v538
      %v564 = vpack.c.bf16 %v541, %v540
      %v565 = vpack.c.bf16 %v543, %v542
      %v566 = vpack.c.bf16 %v545, %v544
      %v567 = vpack.c.bf16 %v547, %v546
      %v568 = vpack.c.bf16 %v549, %v548
      %v569 = vpack.c.bf16 %v551, %v550
      %v570 = vpack.c.bf16 %v553, %v552
      %v571 = vpack.c.bf16 %v555, %v554
      %573 = vst [vmem:[#allocation1] ss:$9 sm:$0xff] %v258
      %v574 = vld [vmem:[#allocation1] sm:$0xff]
      %v575 = vld [vmem:[#allocation1 + $0x9] sm:$0xff]
      %578 = vmatpush.bf16.msra.mxu0 %v563
      %579 = vmatpush.bf16.msra.mxu0 %v562
      %580 = vmatpush.bf16.msra.mxu0 %v561
      %581 = vmatpush.bf16.msra.mxu0 %v560
      %582 = vmatpush.bf16.msra.mxu0 %v559
      %583 = vmatpush.bf16.msra.mxu0 %v558
      %584 = vmatpush.bf16.msra.mxu0 %v557
      %585 = vmatpush.bf16.msra.mxu0 %v556
      %586 = vmatmul.bf16.gmra.mxu0 %v574
      %v587 = vpop.f32.mrf.mxu0
      %v588 = vadd.f32 0.0, %v587
      %v589 = vpop.f32.mrf.mxu0
      %590 = vdwg.mxu0
      %591 = vmatpush.bf16.msra.mxu0 %v571
      %592 = vmatpush.bf16.msra.mxu0 %v570
      %593 = vmatpush.bf16.msra.mxu0 %v569
      %594 = vmatpush.bf16.msra.mxu0 %v568
      %595 = vmatpush.bf16.msra.mxu0 %v567
      %596 = vmatpush.bf16.msra.mxu0 %v566
      %597 = vmatpush.bf16.msra.mxu0 %v565
      %598 = vmatpush.bf16.msra.mxu0 %v564
      %599 = vmatmul.bf16.gmra.mxu0 %v575
      %v600 = vpop.f32.mrf.mxu0
      %v601 = vadd.f32 %v588, %v600
      %v602 = vpop.f32.mrf.mxu0
      %603 = vdwg.mxu0
      %s604 = scalar_lea.vmem %s246, 128
      %v605 = vld [vmem:[%s604] sm:$0xf]
      %v606 = vld [vmem:[%s604 + $0x4] sm:$0xf]
      %v607 = vld [vmem:[%s604 + $0x8] sm:$0xf]
      %v608 = vld [vmem:[%s604 + $0xc] sm:$0xf]
      %v609 = vld [vmem:[%s604 + $0x10] sm:$0xf]
      %v610 = vld [vmem:[%s604 + $0x14] sm:$0xf]
      %v611 = vld [vmem:[%s604 + $0x18] sm:$0xf]
      %v612 = vld [vmem:[%s604 + $0x1c] sm:$0xf]
      %v613 = vld [vmem:[%s604 + $0x20] sm:$0xf]
      %v614 = vld [vmem:[%s604 + $0x24] sm:$0xf]
      %v615 = vld [vmem:[%s604 + $0x28] sm:$0xf]
      %v616 = vld [vmem:[%s604 + $0x2c] sm:$0xf]
      %v617 = vld [vmem:[%s604 + $0x30] sm:$0xf]
      %v618 = vld [vmem:[%s604 + $0x34] sm:$0xf]
      %v619 = vld [vmem:[%s604 + $0x38] sm:$0xf]
      %v620 = vld [vmem:[%s604 + $0x3c] sm:$0xf]
      %v621 = vld [vmem:[%s604 + $0x40] sm:$0xf]
      %v622 = vld [vmem:[%s604 + $0x44] sm:$0xf]
      %v623 = vld [vmem:[%s604 + $0x48] sm:$0xf]
      %v624 = vld [vmem:[%s604 + $0x4c] sm:$0xf]
      %v625 = vld [vmem:[%s604 + $0x50] sm:$0xf]
      %v626 = vld [vmem:[%s604 + $0x54] sm:$0xf]
      %v627 = vld [vmem:[%s604 + $0x58] sm:$0xf]
      %v628 = vld [vmem:[%s604 + $0x5c] sm:$0xf]
      %v629 = vld [vmem:[%s604 + $0x60] sm:$0xf]
      %v630 = vld [vmem:[%s604 + $0x64] sm:$0xf]
      %v631 = vld [vmem:[%s604 + $0x68] sm:$0xf]
      %v632 = vld [vmem:[%s604 + $0x6c] sm:$0xf]
      %v633 = vld [vmem:[%s604 + $0x70] sm:$0xf]
      %v634 = vld [vmem:[%s604 + $0x74] sm:$0xf]
      %v635 = vld [vmem:[%s604 + $0x78] sm:$0xf]
      %v636 = vld [vmem:[%s604 + $0x7c] sm:$0xf]
      %v669 = vunpack.c.l.b16 %v605
      %v670 = vunpack.c.l.b16 %v606
      %v671 = vunpack.c.l.b16 %v607
      %v672 = vunpack.c.l.b16 %v608
      %v673 = vunpack.c.l.b16 %v609
      %v674 = vunpack.c.l.b16 %v610
      %v675 = vunpack.c.l.b16 %v611
      %v676 = vunpack.c.l.b16 %v612
      %v677 = vunpack.c.l.b16 %v613
      %v678 = vunpack.c.l.b16 %v614
      %v679 = vunpack.c.l.b16 %v615
      %v680 = vunpack.c.l.b16 %v616
      %v681 = vunpack.c.l.b16 %v617
      %v682 = vunpack.c.l.b16 %v618
      %v683 = vunpack.c.l.b16 %v619
      %v684 = vunpack.c.l.b16 %v620
      %v685 = vunpack.c.l.b16 %v621
      %v686 = vunpack.c.l.b16 %v622
      %v687 = vunpack.c.l.b16 %v623
      %v688 = vunpack.c.l.b16 %v624
      %v689 = vunpack.c.l.b16 %v625
      %v690 = vunpack.c.l.b16 %v626
      %v691 = vunpack.c.l.b16 %v627
      %v692 = vunpack.c.l.b16 %v628
      %v693 = vunpack.c.l.b16 %v629
      %v694 = vunpack.c.l.b16 %v630
      %v695 = vunpack.c.l.b16 %v631
      %v696 = vunpack.c.l.b16 %v632
      %v697 = vunpack.c.l.b16 %v633
      %v698 = vunpack.c.l.b16 %v634
      %v699 = vunpack.c.l.b16 %v635
      %v700 = vunpack.c.l.b16 %v636
      %v701 = vpack.c.b16 %v670, %v669
      %v702 = vpack.c.b16 %v672, %v671
      %v703 = vpack.c.b16 %v674, %v673
      %v704 = vpack.c.b16 %v676, %v675
      %v705 = vpack.c.b16 %v678, %v677
      %v706 = vpack.c.b16 %v680, %v679
      %v707 = vpack.c.b16 %v682, %v681
      %v708 = vpack.c.b16 %v684, %v683
      %v709 = vpack.c.b16 %v686, %v685
      %v710 = vpack.c.b16 %v688, %v687
      %v711 = vpack.c.b16 %v690, %v689
      %v712 = vpack.c.b16 %v692, %v691
      %v713 = vpack.c.b16 %v694, %v693
      %v714 = vpack.c.b16 %v696, %v695
      %v715 = vpack.c.b16 %v698, %v697
      %v716 = vpack.c.b16 %v700, %v699
      %v718 = vsel %vm386, %v701, 0
      %v721 = vsel %vm386, %v702, 0
      %v724 = vsel %vm386, %v703, 0
      %v727 = vsel %vm386, %v704, 0
      %v730 = vsel %vm386, %v705, 0
      %v733 = vsel %vm386, %v706, 0
      %v736 = vsel %vm386, %v707, 0
      %v739 = vsel %vm386, %v708, 0
      %v742 = vsel %vm386, %v709, 0
      %v745 = vsel %vm386, %v710, 0
      %v748 = vsel %vm386, %v711, 0
      %v751 = vsel %vm386, %v712, 0
      %v754 = vsel %vm386, %v713, 0
      %v757 = vsel %vm386, %v714, 0
      %v760 = vsel %vm386, %v715, 0
      %v763 = vsel %vm386, %v716, 0
      %765 = vmatpush.bf16.msra.mxu0 0
      %766 = vmatpush.bf16.msra.mxu0 0
      %767 = vmatpush.bf16.msra.mxu0 0
      %768 = vmatpush.bf16.msra.mxu0 0
      %769 = vmatpush.bf16.msra.mxu0 0
      %770 = vmatpush.bf16.msra.mxu0 0
      %771 = vmatpush.bf16.msra.mxu0 %v383
      %772 = vmatpush.bf16.msra.mxu0 %v382
      %773 = vmatmul.bf16.gmra.mxu0 %v718
      %v774 = vpop.f32.mrf.mxu0
      %v775 = vadd.f32 %v292, %v774
      %v776 = vpop.f32.mrf.mxu0
      %v777 = vadd.f32 %v292, %v776
      %778 = vmatmul.bf16.gmra.mxu0 %v721
      %v779 = vpop.f32.mrf.mxu0
      %v780 = vadd.f32 %v292, %v779
      %v781 = vpop.f32.mrf.mxu0
      %v782 = vadd.f32 %v292, %v781
      %783 = vmatmul.bf16.gmra.mxu0 %v724
      %v784 = vpop.f32.mrf.mxu0
      %v785 = vadd.f32 %v292, %v784
      %v786 = vpop.f32.mrf.mxu0
      %v787 = vadd.f32 %v292, %v786
      %788 = vmatmul.bf16.gmra.mxu0 %v727
      %v789 = vpop.f32.mrf.mxu0
      %v790 = vadd.f32 %v292, %v789
      %v791 = vpop.f32.mrf.mxu0
      %v792 = vadd.f32 %v292, %v791
      %793 = vmatmul.bf16.gmra.mxu0 %v730
      %v794 = vpop.f32.mrf.mxu0
      %v795 = vadd.f32 %v292, %v794
      %v796 = vpop.f32.mrf.mxu0
      %v797 = vadd.f32 %v292, %v796
      %798 = vmatmul.bf16.gmra.mxu0 %v733
      %v799 = vpop.f32.mrf.mxu0
      %v800 = vadd.f32 %v292, %v799
      %v801 = vpop.f32.mrf.mxu0
      %v802 = vadd.f32 %v292, %v801
      %803 = vmatmul.bf16.gmra.mxu0 %v736
      %v804 = vpop.f32.mrf.mxu0
      %v805 = vadd.f32 %v292, %v804
      %v806 = vpop.f32.mrf.mxu0
      %v807 = vadd.f32 %v292, %v806
      %808 = vmatmul.bf16.gmra.mxu0 %v739
      %v809 = vpop.f32.mrf.mxu0
      %v810 = vadd.f32 %v292, %v809
      %v811 = vpop.f32.mrf.mxu0
      %v812 = vadd.f32 %v292, %v811
      %813 = vmatmul.bf16.gmra.mxu0 %v742
      %v814 = vpop.f32.mrf.mxu0
      %v815 = vadd.f32 %v292, %v814
      %v816 = vpop.f32.mrf.mxu0
      %v817 = vadd.f32 %v292, %v816
      %818 = vmatmul.bf16.gmra.mxu0 %v745
      %v819 = vpop.f32.mrf.mxu0
      %v820 = vadd.f32 %v292, %v819
      %v821 = vpop.f32.mrf.mxu0
      %v822 = vadd.f32 %v292, %v821
      %823 = vmatmul.bf16.gmra.mxu0 %v748
      %v824 = vpop.f32.mrf.mxu0
      %v825 = vadd.f32 %v292, %v824
      %v826 = vpop.f32.mrf.mxu0
      %v827 = vadd.f32 %v292, %v826
      %828 = vmatmul.bf16.gmra.mxu0 %v751
      %v829 = vpop.f32.mrf.mxu0
      %v830 = vadd.f32 %v292, %v829
      %v831 = vpop.f32.mrf.mxu0
      %v832 = vadd.f32 %v292, %v831
      %833 = vmatmul.bf16.gmra.mxu0 %v754
      %v834 = vpop.f32.mrf.mxu0
      %v835 = vadd.f32 %v292, %v834
      %v836 = vpop.f32.mrf.mxu0
      %v837 = vadd.f32 %v292, %v836
      %838 = vmatmul.bf16.gmra.mxu0 %v757
      %v839 = vpop.f32.mrf.mxu0
      %v840 = vadd.f32 %v292, %v839
      %v841 = vpop.f32.mrf.mxu0
      %v842 = vadd.f32 %v292, %v841
      %843 = vmatmul.bf16.gmra.mxu0 %v760
      %v844 = vpop.f32.mrf.mxu0
      %v845 = vadd.f32 %v292, %v844
      %v846 = vpop.f32.mrf.mxu0
      %v847 = vadd.f32 %v292, %v846
      %848 = vmatmul.bf16.gmra.mxu0 %v763
      %v849 = vpop.f32.mrf.mxu0
      %v850 = vadd.f32 %v292, %v849
      %v851 = vpop.f32.mrf.mxu0
      %v852 = vadd.f32 %v292, %v851
      %853 = vdwg.mxu0
      %v854 = vmax.f32 %v775, 0.0
      %v855 = vmax.f32 %v777, 0.0
      %v856 = vmax.f32 %v780, 0.0
      %v857 = vmax.f32 %v782, 0.0
      %v858 = vmax.f32 %v785, 0.0
      %v859 = vmax.f32 %v787, 0.0
      %v860 = vmax.f32 %v790, 0.0
      %v861 = vmax.f32 %v792, 0.0
      %v862 = vmax.f32 %v795, 0.0
      %v863 = vmax.f32 %v797, 0.0
      %v864 = vmax.f32 %v800, 0.0
      %v865 = vmax.f32 %v802, 0.0
      %v866 = vmax.f32 %v805, 0.0
      %v867 = vmax.f32 %v807, 0.0
      %v868 = vmax.f32 %v810, 0.0
      %v869 = vmax.f32 %v812, 0.0
      %v870 = vmax.f32 %v815, 0.0
      %v871 = vmax.f32 %v817, 0.0
      %v872 = vmax.f32 %v820, 0.0
      %v873 = vmax.f32 %v822, 0.0
      %v874 = vmax.f32 %v825, 0.0
      %v875 = vmax.f32 %v827, 0.0
      %v876 = vmax.f32 %v830, 0.0
      %v877 = vmax.f32 %v832, 0.0
      %v878 = vmax.f32 %v835, 0.0
      %v879 = vmax.f32 %v837, 0.0
      %v880 = vmax.f32 %v840, 0.0
      %v881 = vmax.f32 %v842, 0.0
      %v882 = vmax.f32 %v845, 0.0
      %v883 = vmax.f32 %v847, 0.0
      %v884 = vmax.f32 %v850, 0.0
      %v885 = vmax.f32 %v852, 0.0
      %v886 = vpack.c.bf16 %v855, %v854
      %v887 = vpack.c.bf16 %v857, %v856
      %v888 = vpack.c.bf16 %v859, %v858
      %v889 = vpack.c.bf16 %v861, %v860
      %v890 = vpack.c.bf16 %v863, %v862
      %v891 = vpack.c.bf16 %v865, %v864
      %v892 = vpack.c.bf16 %v867, %v866
      %v893 = vpack.c.bf16 %v869, %v868
      %v894 = vpack.c.bf16 %v871, %v870
      %v895 = vpack.c.bf16 %v873, %v872
      %v896 = vpack.c.bf16 %v875, %v874
      %v897 = vpack.c.bf16 %v877, %v876
      %v898 = vpack.c.bf16 %v879, %v878
      %v899 = vpack.c.bf16 %v881, %v880
      %v900 = vpack.c.bf16 %v883, %v882
      %v901 = vpack.c.bf16 %v885, %v884
      %902 = vst [vmem:[#allocation1] ss:$9 sm:$0xff] %v258
      %v903 = vld [vmem:[#allocation1] sm:$0xff]
      %v904 = vld [vmem:[#allocation1 + $0x9] sm:$0xff]
      %907 = vmatpush.bf16.msra.mxu0 %v893
      %908 = vmatpush.bf16.msra.mxu0 %v892
      %909 = vmatpush.bf16.msra.mxu0 %v891
      %910 = vmatpush.bf16.msra.mxu0 %v890
      %911 = vmatpush.bf16.msra.mxu0 %v889
      %912 = vmatpush.bf16.msra.mxu0 %v888
      %913 = vmatpush.bf16.msra.mxu0 %v887
      %914 = vmatpush.bf16.msra.mxu0 %v886
      %915 = vmatmul.bf16.gmra.mxu0 %v903
      %v916 = vpop.f32.mrf.mxu0
      %v917 = vadd.f32 0.0, %v916
      %v918 = vpop.f32.mrf.mxu0
      %919 = vdwg.mxu0
      %920 = vmatpush.bf16.msra.mxu0 %v901
      %921 = vmatpush.bf16.msra.mxu0 %v900
      %922 = vmatpush.bf16.msra.mxu0 %v899
      %923 = vmatpush.bf16.msra.mxu0 %v898
      %924 = vmatpush.bf16.msra.mxu0 %v897
      %925 = vmatpush.bf16.msra.mxu0 %v896
      %926 = vmatpush.bf16.msra.mxu0 %v895
      %927 = vmatpush.bf16.msra.mxu0 %v894
      %928 = vmatmul.bf16.gmra.mxu0 %v904
      %v929 = vpop.f32.mrf.mxu0
      %v930 = vadd.f32 %v917, %v929
      %v931 = vpop.f32.mrf.mxu0
      %932 = vdwg.mxu0
      %s933 = scalar_lea.vmem %s246, 256
      %v934 = vld [vmem:[%s933] sm:$0xf]
      %v935 = vld [vmem:[%s933 + $0x4] sm:$0xf]
      %v936 = vld [vmem:[%s933 + $0x8] sm:$0xf]
      %v937 = vld [vmem:[%s933 + $0xc] sm:$0xf]
      %v938 = vld [vmem:[%s933 + $0x10] sm:$0xf]
      %v939 = vld [vmem:[%s933 + $0x14] sm:$0xf]
      %v940 = vld [vmem:[%s933 + $0x18] sm:$0xf]
      %v941 = vld [vmem:[%s933 + $0x1c] sm:$0xf]
      %v942 = vld [vmem:[%s933 + $0x20] sm:$0xf]
      %v943 = vld [vmem:[%s933 + $0x24] sm:$0xf]
      %v944 = vld [vmem:[%s933 + $0x28] sm:$0xf]
      %v945 = vld [vmem:[%s933 + $0x2c] sm:$0xf]
      %v946 = vld [vmem:[%s933 + $0x30] sm:$0xf]
      %v947 = vld [vmem:[%s933 + $0x34] sm:$0xf]
      %v948 = vld [vmem:[%s933 + $0x38] sm:$0xf]
      %v949 = vld [vmem:[%s933 + $0x3c] sm:$0xf]
      %v950 = vld [vmem:[%s933 + $0x40] sm:$0xf]
      %v951 = vld [vmem:[%s933 + $0x44] sm:$0xf]
      %v952 = vld [vmem:[%s933 + $0x48] sm:$0xf]
      %v953 = vld [vmem:[%s933 + $0x4c] sm:$0xf]
      %v954 = vld [vmem:[%s933 + $0x50] sm:$0xf]
      %v955 = vld [vmem:[%s933 + $0x54] sm:$0xf]
      %v956 = vld [vmem:[%s933 + $0x58] sm:$0xf]
      %v957 = vld [vmem:[%s933 + $0x5c] sm:$0xf]
      %v958 = vld [vmem:[%s933 + $0x60] sm:$0xf]
      %v959 = vld [vmem:[%s933 + $0x64] sm:$0xf]
      %v960 = vld [vmem:[%s933 + $0x68] sm:$0xf]
      %v961 = vld [vmem:[%s933 + $0x6c] sm:$0xf]
      %v962 = vld [vmem:[%s933 + $0x70] sm:$0xf]
      %v963 = vld [vmem:[%s933 + $0x74] sm:$0xf]
      %v964 = vld [vmem:[%s933 + $0x78] sm:$0xf]
      %v965 = vld [vmem:[%s933 + $0x7c] sm:$0xf]
      %v998 = vunpack.c.l.b16 %v934
      %v999 = vunpack.c.l.b16 %v935
      %v1000 = vunpack.c.l.b16 %v936
      %v1001 = vunpack.c.l.b16 %v937
      %v1002 = vunpack.c.l.b16 %v938
      %v1003 = vunpack.c.l.b16 %v939
      %v1004 = vunpack.c.l.b16 %v940
      %v1005 = vunpack.c.l.b16 %v941
      %v1006 = vunpack.c.l.b16 %v942
      %v1007 = vunpack.c.l.b16 %v943
      %v1008 = vunpack.c.l.b16 %v944
      %v1009 = vunpack.c.l.b16 %v945
      %v1010 = vunpack.c.l.b16 %v946
      %v1011 = vunpack.c.l.b16 %v947
      %v1012 = vunpack.c.l.b16 %v948
      %v1013 = vunpack.c.l.b16 %v949
      %v1014 = vunpack.c.l.b16 %v950
      %v1015 = vunpack.c.l.b16 %v951
      %v1016 = vunpack.c.l.b16 %v952
      %v1017 = vunpack.c.l.b16 %v953
      %v1018 = vunpack.c.l.b16 %v954
      %v1019 = vunpack.c.l.b16 %v955
      %v1020 = vunpack.c.l.b16 %v956
      %v1021 = vunpack.c.l.b16 %v957
      %v1022 = vunpack.c.l.b16 %v958
      %v1023 = vunpack.c.l.b16 %v959
      %v1024 = vunpack.c.l.b16 %v960
      %v1025 = vunpack.c.l.b16 %v961
      %v1026 = vunpack.c.l.b16 %v962
      %v1027 = vunpack.c.l.b16 %v963
      %v1028 = vunpack.c.l.b16 %v964
      %v1029 = vunpack.c.l.b16 %v965
      %v1030 = vpack.c.b16 %v999, %v998
      %v1031 = vpack.c.b16 %v1001, %v1000
      %v1032 = vpack.c.b16 %v1003, %v1002
      %v1033 = vpack.c.b16 %v1005, %v1004
      %v1034 = vpack.c.b16 %v1007, %v1006
      %v1035 = vpack.c.b16 %v1009, %v1008
      %v1036 = vpack.c.b16 %v1011, %v1010
      %v1037 = vpack.c.b16 %v1013, %v1012
      %v1038 = vpack.c.b16 %v1015, %v1014
      %v1039 = vpack.c.b16 %v1017, %v1016
      %v1040 = vpack.c.b16 %v1019, %v1018
      %v1041 = vpack.c.b16 %v1021, %v1020
      %v1042 = vpack.c.b16 %v1023, %v1022
      %v1043 = vpack.c.b16 %v1025, %v1024
      %v1044 = vpack.c.b16 %v1027, %v1026
      %v1045 = vpack.c.b16 %v1029, %v1028
      %v1047 = vsel %vm386, %v1030, 0
      %v1050 = vsel %vm386, %v1031, 0
      %v1053 = vsel %vm386, %v1032, 0
      %v1056 = vsel %vm386, %v1033, 0
      %v1059 = vsel %vm386, %v1034, 0
      %v1062 = vsel %vm386, %v1035, 0
      %v1065 = vsel %vm386, %v1036, 0
      %v1068 = vsel %vm386, %v1037, 0
      %v1071 = vsel %vm386, %v1038, 0
      %v1074 = vsel %vm386, %v1039, 0
      %v1077 = vsel %vm386, %v1040, 0
      %v1080 = vsel %vm386, %v1041, 0
      %v1083 = vsel %vm386, %v1042, 0
      %v1086 = vsel %vm386, %v1043, 0
      %v1089 = vsel %vm386, %v1044, 0
      %v1092 = vsel %vm386, %v1045, 0
      %1094 = vmatpush.bf16.msra.mxu0 0
      %1095 = vmatpush.bf16.msra.mxu0 0
      %1096 = vmatpush.bf16.msra.mxu0 0
      %1097 = vmatpush.bf16.msra.mxu0 0
      %1098 = vmatpush.bf16.msra.mxu0 0
      %1099 = vmatpush.bf16.msra.mxu0 0
      %1100 = vmatpush.bf16.msra.mxu0 %v383
      %1101 = vmatpush.bf16.msra.mxu0 %v382
      %1102 = vmatmul.bf16.gmra.mxu0 %v1047
      %v1103 = vpop.f32.mrf.mxu0
      %v1104 = vadd.f32 %v292, %v1103
      %v1105 = vpop.f32.mrf.mxu0
      %v1106 = vadd.f32 %v292, %v1105
      %1107 = vmatmul.bf16.gmra.mxu0 %v1050
      %v1108 = vpop.f32.mrf.mxu0
      %v1109 = vadd.f32 %v292, %v1108
      %v1110 = vpop.f32.mrf.mxu0
      %v1111 = vadd.f32 %v292, %v1110
      %1112 = vmatmul.bf16.gmra.mxu0 %v1053
      %v1113 = vpop.f32.mrf.mxu0
      %v1114 = vadd.f32 %v292, %v1113
      %v1115 = vpop.f32.mrf.mxu0
      %v1116 = vadd.f32 %v292, %v1115
      %1117 = vmatmul.bf16.gmra.mxu0 %v1056
      %v1118 = vpop.f32.mrf.mxu0
      %v1119 = vadd.f32 %v292, %v1118
      %v1120 = vpop.f32.mrf.mxu0
      %v1121 = vadd.f32 %v292, %v1120
      %1122 = vmatmul.bf16.gmra.mxu0 %v1059
      %v1123 = vpop.f32.mrf.mxu0
      %v1124 = vadd.f32 %v292, %v1123
      %v1125 = vpop.f32.mrf.mxu0
      %v1126 = vadd.f32 %v292, %v1125
      %1127 = vmatmul.bf16.gmra.mxu0 %v1062
      %v1128 = vpop.f32.mrf.mxu0
      %v1129 = vadd.f32 %v292, %v1128
      %v1130 = vpop.f32.mrf.mxu0
      %v1131 = vadd.f32 %v292, %v1130
      %1132 = vmatmul.bf16.gmra.mxu0 %v1065
      %v1133 = vpop.f32.mrf.mxu0
      %v1134 = vadd.f32 %v292, %v1133
      %v1135 = vpop.f32.mrf.mxu0
      %v1136 = vadd.f32 %v292, %v1135
      %1137 = vmatmul.bf16.gmra.mxu0 %v1068
      %v1138 = vpop.f32.mrf.mxu0
      %v1139 = vadd.f32 %v292, %v1138
      %v1140 = vpop.f32.mrf.mxu0
      %v1141 = vadd.f32 %v292, %v1140
      %1142 = vmatmul.bf16.gmra.mxu0 %v1071
      %v1143 = vpop.f32.mrf.mxu0
      %v1144 = vadd.f32 %v292, %v1143
      %v1145 = vpop.f32.mrf.mxu0
      %v1146 = vadd.f32 %v292, %v1145
      %1147 = vmatmul.bf16.gmra.mxu0 %v1074
      %v1148 = vpop.f32.mrf.mxu0
      %v1149 = vadd.f32 %v292, %v1148
      %v1150 = vpop.f32.mrf.mxu0
      %v1151 = vadd.f32 %v292, %v1150
      %1152 = vmatmul.bf16.gmra.mxu0 %v1077
      %v1153 = vpop.f32.mrf.mxu0
      %v1154 = vadd.f32 %v292, %v1153
      %v1155 = vpop.f32.mrf.mxu0
      %v1156 = vadd.f32 %v292, %v1155
      %1157 = vmatmul.bf16.gmra.mxu0 %v1080
      %v1158 = vpop.f32.mrf.mxu0
      %v1159 = vadd.f32 %v292, %v1158
      %v1160 = vpop.f32.mrf.mxu0
      %v1161 = vadd.f32 %v292, %v1160
      %1162 = vmatmul.bf16.gmra.mxu0 %v1083
      %v1163 = vpop.f32.mrf.mxu0
      %v1164 = vadd.f32 %v292, %v1163
      %v1165 = vpop.f32.mrf.mxu0
      %v1166 = vadd.f32 %v292, %v1165
      %1167 = vmatmul.bf16.gmra.mxu0 %v1086
      %v1168 = vpop.f32.mrf.mxu0
      %v1169 = vadd.f32 %v292, %v1168
      %v1170 = vpop.f32.mrf.mxu0
      %v1171 = vadd.f32 %v292, %v1170
      %1172 = vmatmul.bf16.gmra.mxu0 %v1089
      %v1173 = vpop.f32.mrf.mxu0
      %v1174 = vadd.f32 %v292, %v1173
      %v1175 = vpop.f32.mrf.mxu0
      %v1176 = vadd.f32 %v292, %v1175
      %1177 = vmatmul.bf16.gmra.mxu0 %v1092
      %v1178 = vpop.f32.mrf.mxu0
      %v1179 = vadd.f32 %v292, %v1178
      %v1180 = vpop.f32.mrf.mxu0
      %v1181 = vadd.f32 %v292, %v1180
      %1182 = vdwg.mxu0
      %v1183 = vmax.f32 %v1104, 0.0
      %v1184 = vmax.f32 %v1106, 0.0
      %v1185 = vmax.f32 %v1109, 0.0
      %v1186 = vmax.f32 %v1111, 0.0
      %v1187 = vmax.f32 %v1114, 0.0
      %v1188 = vmax.f32 %v1116, 0.0
      %v1189 = vmax.f32 %v1119, 0.0
      %v1190 = vmax.f32 %v1121, 0.0
      %v1191 = vmax.f32 %v1124, 0.0
      %v1192 = vmax.f32 %v1126, 0.0
      %v1193 = vmax.f32 %v1129, 0.0
      %v1194 = vmax.f32 %v1131, 0.0
      %v1195 = vmax.f32 %v1134, 0.0
      %v1196 = vmax.f32 %v1136, 0.0
      %v1197 = vmax.f32 %v1139, 0.0
      %v1198 = vmax.f32 %v1141, 0.0
      %v1199 = vmax.f32 %v1144, 0.0
      %v1200 = vmax.f32 %v1146, 0.0
      %v1201 = vmax.f32 %v1149, 0.0
      %v1202 = vmax.f32 %v1151, 0.0
      %v1203 = vmax.f32 %v1154, 0.0
      %v1204 = vmax.f32 %v1156, 0.0
      %v1205 = vmax.f32 %v1159, 0.0
      %v1206 = vmax.f32 %v1161, 0.0
      %v1207 = vmax.f32 %v1164, 0.0
      %v1208 = vmax.f32 %v1166, 0.0
      %v1209 = vmax.f32 %v1169, 0.0
      %v1210 = vmax.f32 %v1171, 0.0
      %v1211 = vmax.f32 %v1174, 0.0
      %v1212 = vmax.f32 %v1176, 0.0
      %v1213 = vmax.f32 %v1179, 0.0
      %v1214 = vmax.f32 %v1181, 0.0
      %v1215 = vpack.c.bf16 %v1184, %v1183
      %v1216 = vpack.c.bf16 %v1186, %v1185
      %v1217 = vpack.c.bf16 %v1188, %v1187
      %v1218 = vpack.c.bf16 %v1190, %v1189
      %v1219 = vpack.c.bf16 %v1192, %v1191
      %v1220 = vpack.c.bf16 %v1194, %v1193
      %v1221 = vpack.c.bf16 %v1196, %v1195
      %v1222 = vpack.c.bf16 %v1198, %v1197
      %v1223 = vpack.c.bf16 %v1200, %v1199
      %v1224 = vpack.c.bf16 %v1202, %v1201
      %v1225 = vpack.c.bf16 %v1204, %v1203
      %v1226 = vpack.c.bf16 %v1206, %v1205
      %v1227 = vpack.c.bf16 %v1208, %v1207
      %v1228 = vpack.c.bf16 %v1210, %v1209
      %v1229 = vpack.c.bf16 %v1212, %v1211
      %v1230 = vpack.c.bf16 %v1214, %v1213
      %1231 = vst [vmem:[#allocation1] ss:$9 sm:$0xff] %v258
      %v1232 = vld [vmem:[#allocation1] sm:$0xff]
      %v1233 = vld [vmem:[#allocation1 + $0x9] sm:$0xff]
      %1236 = vmatpush.bf16.msra.mxu0 %v1222
      %1237 = vmatpush.bf16.msra.mxu0 %v1221
      %1238 = vmatpush.bf16.msra.mxu0 %v1220
      %1239 = vmatpush.bf16.msra.mxu0 %v1219
      %1240 = vmatpush.bf16.msra.mxu0 %v1218
      %1241 = vmatpush.bf16.msra.mxu0 %v1217
      %1242 = vmatpush.bf16.msra.mxu0 %v1216
      %1243 = vmatpush.bf16.msra.mxu0 %v1215
      %1244 = vmatmul.bf16.gmra.mxu0 %v1232
      %v1245 = vpop.f32.mrf.mxu0
      %v1246 = vadd.f32 0.0, %v1245
      %v1247 = vpop.f32.mrf.mxu0
      %1248 = vdwg.mxu0
      %1249 = vmatpush.bf16.msra.mxu0 %v1230
      %1250 = vmatpush.bf16.msra.mxu0 %v1229
      %1251 = vmatpush.bf16.msra.mxu0 %v1228
      %1252 = vmatpush.bf16.msra.mxu0 %v1227
      %1253 = vmatpush.bf16.msra.mxu0 %v1226
      %1254 = vmatpush.bf16.msra.mxu0 %v1225
      %1255 = vmatpush.bf16.msra.mxu0 %v1224
      %1256 = vmatpush.bf16.msra.mxu0 %v1223
      %1257 = vmatmul.bf16.gmra.mxu0 %v1233
      %v1258 = vpop.f32.mrf.mxu0
      %v1259 = vadd.f32 %v1246, %v1258
      %v1260 = vpop.f32.mrf.mxu0
      %1261 = vdwg.mxu0
      %s1262 = scalar_lea.vmem %s246, 384
      %v1263 = vld [vmem:[%s1262] sm:$0xf]
      %v1264 = vld [vmem:[%s1262 + $0x4] sm:$0xf]
      %v1265 = vld [vmem:[%s1262 + $0x8] sm:$0xf]
      %v1266 = vld [vmem:[%s1262 + $0xc] sm:$0xf]
      %v1267 = vld [vmem:[%s1262 + $0x10] sm:$0xf]
      %v1268 = vld [vmem:[%s1262 + $0x14] sm:$0xf]
      %v1269 = vld [vmem:[%s1262 + $0x18] sm:$0xf]
      %v1270 = vld [vmem:[%s1262 + $0x1c] sm:$0xf]
      %v1271 = vld [vmem:[%s1262 + $0x20] sm:$0xf]
      %v1272 = vld [vmem:[%s1262 + $0x24] sm:$0xf]
      %v1273 = vld [vmem:[%s1262 + $0x28] sm:$0xf]
      %v1274 = vld [vmem:[%s1262 + $0x2c] sm:$0xf]
      %v1275 = vld [vmem:[%s1262 + $0x30] sm:$0xf]
      %v1276 = vld [vmem:[%s1262 + $0x34] sm:$0xf]
      %v1277 = vld [vmem:[%s1262 + $0x38] sm:$0xf]
      %v1278 = vld [vmem:[%s1262 + $0x3c] sm:$0xf]
      %v1279 = vld [vmem:[%s1262 + $0x40] sm:$0xf]
      %v1280 = vld [vmem:[%s1262 + $0x44] sm:$0xf]
      %v1281 = vld [vmem:[%s1262 + $0x48] sm:$0xf]
      %v1282 = vld [vmem:[%s1262 + $0x4c] sm:$0xf]
      %v1283 = vld [vmem:[%s1262 + $0x50] sm:$0xf]
      %v1284 = vld [vmem:[%s1262 + $0x54] sm:$0xf]
      %v1285 = vld [vmem:[%s1262 + $0x58] sm:$0xf]
      %v1286 = vld [vmem:[%s1262 + $0x5c] sm:$0xf]
      %v1287 = vld [vmem:[%s1262 + $0x60] sm:$0xf]
      %v1288 = vld [vmem:[%s1262 + $0x64] sm:$0xf]
      %v1289 = vld [vmem:[%s1262 + $0x68] sm:$0xf]
      %v1290 = vld [vmem:[%s1262 + $0x6c] sm:$0xf]
      %v1291 = vld [vmem:[%s1262 + $0x70] sm:$0xf]
      %v1292 = vld [vmem:[%s1262 + $0x74] sm:$0xf]
      %v1293 = vld [vmem:[%s1262 + $0x78] sm:$0xf]
      %v1294 = vld [vmem:[%s1262 + $0x7c] sm:$0xf]
      %v1327 = vunpack.c.l.b16 %v1263
      %v1328 = vunpack.c.l.b16 %v1264
      %v1329 = vunpack.c.l.b16 %v1265
      %v1330 = vunpack.c.l.b16 %v1266
      %v1331 = vunpack.c.l.b16 %v1267
      %v1332 = vunpack.c.l.b16 %v1268
      %v1333 = vunpack.c.l.b16 %v1269
      %v1334 = vunpack.c.l.b16 %v1270
      %v1335 = vunpack.c.l.b16 %v1271
      %v1336 = vunpack.c.l.b16 %v1272
      %v1337 = vunpack.c.l.b16 %v1273
      %v1338 = vunpack.c.l.b16 %v1274
      %v1339 = vunpack.c.l.b16 %v1275
      %v1340 = vunpack.c.l.b16 %v1276
      %v1341 = vunpack.c.l.b16 %v1277
      %v1342 = vunpack.c.l.b16 %v1278
      %v1343 = vunpack.c.l.b16 %v1279
      %v1344 = vunpack.c.l.b16 %v1280
      %v1345 = vunpack.c.l.b16 %v1281
      %v1346 = vunpack.c.l.b16 %v1282
      %v1347 = vunpack.c.l.b16 %v1283
      %v1348 = vunpack.c.l.b16 %v1284
      %v1349 = vunpack.c.l.b16 %v1285
      %v1350 = vunpack.c.l.b16 %v1286
      %v1351 = vunpack.c.l.b16 %v1287
      %v1352 = vunpack.c.l.b16 %v1288
      %v1353 = vunpack.c.l.b16 %v1289
      %v1354 = vunpack.c.l.b16 %v1290
      %v1355 = vunpack.c.l.b16 %v1291
      %v1356 = vunpack.c.l.b16 %v1292
      %v1357 = vunpack.c.l.b16 %v1293
      %v1358 = vunpack.c.l.b16 %v1294
      %v1359 = vpack.c.b16 %v1328, %v1327
      %v1360 = vpack.c.b16 %v1330, %v1329
      %v1361 = vpack.c.b16 %v1332, %v1331
      %v1362 = vpack.c.b16 %v1334, %v1333
      %v1363 = vpack.c.b16 %v1336, %v1335
      %v1364 = vpack.c.b16 %v1338, %v1337
      %v1365 = vpack.c.b16 %v1340, %v1339
      %v1366 = vpack.c.b16 %v1342, %v1341
      %v1367 = vpack.c.b16 %v1344, %v1343
      %v1368 = vpack.c.b16 %v1346, %v1345
      %v1369 = vpack.c.b16 %v1348, %v1347
      %v1370 = vpack.c.b16 %v1350, %v1349
      %v1371 = vpack.c.b16 %v1352, %v1351
      %v1372 = vpack.c.b16 %v1354, %v1353
      %v1373 = vpack.c.b16 %v1356, %v1355
      %v1374 = vpack.c.b16 %v1358, %v1357
      %v1376 = vsel %vm386, %v1359, 0
      %v1379 = vsel %vm386, %v1360, 0
      %v1382 = vsel %vm386, %v1361, 0
      %v1385 = vsel %vm386, %v1362, 0
      %v1388 = vsel %vm386, %v1363, 0
      %v1391 = vsel %vm386, %v1364, 0
      %v1394 = vsel %vm386, %v1365, 0
      %v1397 = vsel %vm386, %v1366, 0
      %v1400 = vsel %vm386, %v1367, 0
      %v1403 = vsel %vm386, %v1368, 0
      %v1406 = vsel %vm386, %v1369, 0
      %v1409 = vsel %vm386, %v1370, 0
      %v1412 = vsel %vm386, %v1371, 0
      %v1415 = vsel %vm386, %v1372, 0
      %v1418 = vsel %vm386, %v1373, 0
      %v1421 = vsel %vm386, %v1374, 0
      %1423 = vmatpush.bf16.msra.mxu0 0
      %1424 = vmatpush.bf16.msra.mxu0 0
      %1425 = vmatpush.bf16.msra.mxu0 0
      %1426 = vmatpush.bf16.msra.mxu0 0
      %1427 = vmatpush.bf16.msra.mxu0 0
      %1428 = vmatpush.bf16.msra.mxu0 0
      %1429 = vmatpush.bf16.msra.mxu0 %v383
      %1430 = vmatpush.bf16.msra.mxu0 %v382
      %1431 = vmatmul.bf16.gmra.mxu0 %v1376
      %v1432 = vpop.f32.mrf.mxu0
      %v1433 = vadd.f32 %v292, %v1432
      %v1434 = vpop.f32.mrf.mxu0
      %v1435 = vadd.f32 %v292, %v1434
      %1436 = vmatmul.bf16.gmra.mxu0 %v1379
      %v1437 = vpop.f32.mrf.mxu0
      %v1438 = vadd.f32 %v292, %v1437
      %v1439 = vpop.f32.mrf.mxu0
      %v1440 = vadd.f32 %v292, %v1439
      %1441 = vmatmul.bf16.gmra.mxu0 %v1382
      %v1442 = vpop.f32.mrf.mxu0
      %v1443 = vadd.f32 %v292, %v1442
      %v1444 = vpop.f32.mrf.mxu0
      %v1445 = vadd.f32 %v292, %v1444
      %1446 = vmatmul.bf16.gmra.mxu0 %v1385
      %v1447 = vpop.f32.mrf.mxu0
      %v1448 = vadd.f32 %v292, %v1447
      %v1449 = vpop.f32.mrf.mxu0
      %v1450 = vadd.f32 %v292, %v1449
      %1451 = vmatmul.bf16.gmra.mxu0 %v1388
      %v1452 = vpop.f32.mrf.mxu0
      %v1453 = vadd.f32 %v292, %v1452
      %v1454 = vpop.f32.mrf.mxu0
      %v1455 = vadd.f32 %v292, %v1454
      %1456 = vmatmul.bf16.gmra.mxu0 %v1391
      %v1457 = vpop.f32.mrf.mxu0
      %v1458 = vadd.f32 %v292, %v1457
      %v1459 = vpop.f32.mrf.mxu0
      %v1460 = vadd.f32 %v292, %v1459
      %1461 = vmatmul.bf16.gmra.mxu0 %v1394
      %v1462 = vpop.f32.mrf.mxu0
      %v1463 = vadd.f32 %v292, %v1462
      %v1464 = vpop.f32.mrf.mxu0
      %v1465 = vadd.f32 %v292, %v1464
      %1466 = vmatmul.bf16.gmra.mxu0 %v1397
      %v1467 = vpop.f32.mrf.mxu0
      %v1468 = vadd.f32 %v292, %v1467
      %v1469 = vpop.f32.mrf.mxu0
      %v1470 = vadd.f32 %v292, %v1469
      %1471 = vmatmul.bf16.gmra.mxu0 %v1400
      %v1472 = vpop.f32.mrf.mxu0
      %v1473 = vadd.f32 %v292, %v1472
      %v1474 = vpop.f32.mrf.mxu0
      %v1475 = vadd.f32 %v292, %v1474
      %1476 = vmatmul.bf16.gmra.mxu0 %v1403
      %v1477 = vpop.f32.mrf.mxu0
      %v1478 = vadd.f32 %v292, %v1477
      %v1479 = vpop.f32.mrf.mxu0
      %v1480 = vadd.f32 %v292, %v1479
      %1481 = vmatmul.bf16.gmra.mxu0 %v1406
      %v1482 = vpop.f32.mrf.mxu0
      %v1483 = vadd.f32 %v292, %v1482
      %v1484 = vpop.f32.mrf.mxu0
      %v1485 = vadd.f32 %v292, %v1484
      %1486 = vmatmul.bf16.gmra.mxu0 %v1409
      %v1487 = vpop.f32.mrf.mxu0
      %v1488 = vadd.f32 %v292, %v1487
      %v1489 = vpop.f32.mrf.mxu0
      %v1490 = vadd.f32 %v292, %v1489
      %1491 = vmatmul.bf16.gmra.mxu0 %v1412
      %v1492 = vpop.f32.mrf.mxu0
      %v1493 = vadd.f32 %v292, %v1492
      %v1494 = vpop.f32.mrf.mxu0
      %v1495 = vadd.f32 %v292, %v1494
      %1496 = vmatmul.bf16.gmra.mxu0 %v1415
      %v1497 = vpop.f32.mrf.mxu0
      %v1498 = vadd.f32 %v292, %v1497
      %v1499 = vpop.f32.mrf.mxu0
      %v1500 = vadd.f32 %v292, %v1499
      %1501 = vmatmul.bf16.gmra.mxu0 %v1418
      %v1502 = vpop.f32.mrf.mxu0
      %v1503 = vadd.f32 %v292, %v1502
      %v1504 = vpop.f32.mrf.mxu0
      %v1505 = vadd.f32 %v292, %v1504
      %1506 = vmatmul.bf16.gmra.mxu0 %v1421
      %v1507 = vpop.f32.mrf.mxu0
      %v1508 = vadd.f32 %v292, %v1507
      %v1509 = vpop.f32.mrf.mxu0
      %v1510 = vadd.f32 %v292, %v1509
      %1511 = vdwg.mxu0
      %v1512 = vmax.f32 %v1433, 0.0
      %v1513 = vmax.f32 %v1435, 0.0
      %v1514 = vmax.f32 %v1438, 0.0
      %v1515 = vmax.f32 %v1440, 0.0
      %v1516 = vmax.f32 %v1443, 0.0
      %v1517 = vmax.f32 %v1445, 0.0
      %v1518 = vmax.f32 %v1448, 0.0
      %v1519 = vmax.f32 %v1450, 0.0
      %v1520 = vmax.f32 %v1453, 0.0
      %v1521 = vmax.f32 %v1455, 0.0
      %v1522 = vmax.f32 %v1458, 0.0
      %v1523 = vmax.f32 %v1460, 0.0
      %v1524 = vmax.f32 %v1463, 0.0
      %v1525 = vmax.f32 %v1465, 0.0
      %v1526 = vmax.f32 %v1468, 0.0
      %v1527 = vmax.f32 %v1470, 0.0
      %v1528 = vmax.f32 %v1473, 0.0
      %v1529 = vmax.f32 %v1475, 0.0
      %v1530 = vmax.f32 %v1478, 0.0
      %v1531 = vmax.f32 %v1480, 0.0
      %v1532 = vmax.f32 %v1483, 0.0
      %v1533 = vmax.f32 %v1485, 0.0
      %v1534 = vmax.f32 %v1488, 0.0
      %v1535 = vmax.f32 %v1490, 0.0
      %v1536 = vmax.f32 %v1493, 0.0
      %v1537 = vmax.f32 %v1495, 0.0
      %v1538 = vmax.f32 %v1498, 0.0
      %v1539 = vmax.f32 %v1500, 0.0
      %v1540 = vmax.f32 %v1503, 0.0
      %v1541 = vmax.f32 %v1505, 0.0
      %v1542 = vmax.f32 %v1508, 0.0
      %v1543 = vmax.f32 %v1510, 0.0
      %v1544 = vpack.c.bf16 %v1513, %v1512
      %v1545 = vpack.c.bf16 %v1515, %v1514
      %v1546 = vpack.c.bf16 %v1517, %v1516
      %v1547 = vpack.c.bf16 %v1519, %v1518
      %v1548 = vpack.c.bf16 %v1521, %v1520
      %v1549 = vpack.c.bf16 %v1523, %v1522
      %v1550 = vpack.c.bf16 %v1525, %v1524
      %v1551 = vpack.c.bf16 %v1527, %v1526
      %v1552 = vpack.c.bf16 %v1529, %v1528
      %v1553 = vpack.c.bf16 %v1531, %v1530
      %v1554 = vpack.c.bf16 %v1533, %v1532
      %v1555 = vpack.c.bf16 %v1535, %v1534
      %v1556 = vpack.c.bf16 %v1537, %v1536
      %v1557 = vpack.c.bf16 %v1539, %v1538
      %v1558 = vpack.c.bf16 %v1541, %v1540
      %v1559 = vpack.c.bf16 %v1543, %v1542
      %1560 = vst [vmem:[#allocation1] ss:$9 sm:$0xff] %v258
      %v1561 = vld [vmem:[#allocation1] sm:$0xff]
      %v1562 = vld [vmem:[#allocation1 + $0x9] sm:$0xff]
      %1565 = vmatpush.bf16.msra.mxu0 %v1551
      %1566 = vmatpush.bf16.msra.mxu0 %v1550
      %1567 = vmatpush.bf16.msra.mxu0 %v1549
      %1568 = vmatpush.bf16.msra.mxu0 %v1548
      %1569 = vmatpush.bf16.msra.mxu0 %v1547
      %1570 = vmatpush.bf16.msra.mxu0 %v1546
      %1571 = vmatpush.bf16.msra.mxu0 %v1545
      %1572 = vmatpush.bf16.msra.mxu0 %v1544
      %1573 = vmatmul.bf16.gmra.mxu0 %v1561
      %v1574 = vpop.f32.mrf.mxu0
      %v1575 = vadd.f32 0.0, %v1574
      %v1576 = vpop.f32.mrf.mxu0
      %1577 = vdwg.mxu0
      %1578 = vmatpush.bf16.msra.mxu0 %v1559
      %1579 = vmatpush.bf16.msra.mxu0 %v1558
      %1580 = vmatpush.bf16.msra.mxu0 %v1557
      %1581 = vmatpush.bf16.msra.mxu0 %v1556
      %1582 = vmatpush.bf16.msra.mxu0 %v1555
      %1583 = vmatpush.bf16.msra.mxu0 %v1554
      %1584 = vmatpush.bf16.msra.mxu0 %v1553
      %1585 = vmatpush.bf16.msra.mxu0 %v1552
      %1586 = vmatmul.bf16.gmra.mxu0 %v1562
      %v1587 = vpop.f32.mrf.mxu0
      %v1588 = vadd.f32 %v1575, %v1587
      %v1589 = vpop.f32.mrf.mxu0
      %1590 = vdwg.mxu0
      %s1591 = scalar_lea.vmem %s246, 512
      %v1592 = vld [vmem:[%s1591] sm:$0xf]
      %v1593 = vld [vmem:[%s1591 + $0x4] sm:$0xf]
      %v1594 = vld [vmem:[%s1591 + $0x8] sm:$0xf]
      %v1595 = vld [vmem:[%s1591 + $0xc] sm:$0xf]
      %v1596 = vld [vmem:[%s1591 + $0x10] sm:$0xf]
      %v1597 = vld [vmem:[%s1591 + $0x14] sm:$0xf]
      %v1598 = vld [vmem:[%s1591 + $0x18] sm:$0xf]
      %v1599 = vld [vmem:[%s1591 + $0x1c] sm:$0xf]
      %v1600 = vld [vmem:[%s1591 + $0x20] sm:$0xf]
      %v1601 = vld [vmem:[%s1591 + $0x24] sm:$0xf]
      %v1602 = vld [vmem:[%s1591 + $0x28] sm:$0xf]
      %v1603 = vld [vmem:[%s1591 + $0x2c] sm:$0xf]
      %v1604 = vld [vmem:[%s1591 + $0x30] sm:$0xf]
      %v1605 = vld [vmem:[%s1591 + $0x34] sm:$0xf]
      %v1606 = vld [vmem:[%s1591 + $0x38] sm:$0xf]
      %v1607 = vld [vmem:[%s1591 + $0x3c] sm:$0xf]
      %v1608 = vld [vmem:[%s1591 + $0x40] sm:$0xf]
      %v1609 = vld [vmem:[%s1591 + $0x44] sm:$0xf]
      %v1610 = vld [vmem:[%s1591 + $0x48] sm:$0xf]
      %v1611 = vld [vmem:[%s1591 + $0x4c] sm:$0xf]
      %v1612 = vld [vmem:[%s1591 + $0x50] sm:$0xf]
      %v1613 = vld [vmem:[%s1591 + $0x54] sm:$0xf]
      %v1614 = vld [vmem:[%s1591 + $0x58] sm:$0xf]
      %v1615 = vld [vmem:[%s1591 + $0x5c] sm:$0xf]
      %v1616 = vld [vmem:[%s1591 + $0x60] sm:$0xf]
      %v1617 = vld [vmem:[%s1591 + $0x64] sm:$0xf]
      %v1618 = vld [vmem:[%s1591 + $0x68] sm:$0xf]
      %v1619 = vld [vmem:[%s1591 + $0x6c] sm:$0xf]
      %v1620 = vld [vmem:[%s1591 + $0x70] sm:$0xf]
      %v1621 = vld [vmem:[%s1591 + $0x74] sm:$0xf]
      %v1622 = vld [vmem:[%s1591 + $0x78] sm:$0xf]
      %v1623 = vld [vmem:[%s1591 + $0x7c] sm:$0xf]
      %v1656 = vunpack.c.l.b16 %v1592
      %v1657 = vunpack.c.l.b16 %v1593
      %v1658 = vunpack.c.l.b16 %v1594
      %v1659 = vunpack.c.l.b16 %v1595
      %v1660 = vunpack.c.l.b16 %v1596
      %v1661 = vunpack.c.l.b16 %v1597
      %v1662 = vunpack.c.l.b16 %v1598
      %v1663 = vunpack.c.l.b16 %v1599
      %v1664 = vunpack.c.l.b16 %v1600
      %v1665 = vunpack.c.l.b16 %v1601
      %v1666 = vunpack.c.l.b16 %v1602
      %v1667 = vunpack.c.l.b16 %v1603
      %v1668 = vunpack.c.l.b16 %v1604
      %v1669 = vunpack.c.l.b16 %v1605
      %v1670 = vunpack.c.l.b16 %v1606
      %v1671 = vunpack.c.l.b16 %v1607
      %v1672 = vunpack.c.l.b16 %v1608
      %v1673 = vunpack.c.l.b16 %v1609
      %v1674 = vunpack.c.l.b16 %v1610
      %v1675 = vunpack.c.l.b16 %v1611
      %v1676 = vunpack.c.l.b16 %v1612
      %v1677 = vunpack.c.l.b16 %v1613
      %v1678 = vunpack.c.l.b16 %v1614
      %v1679 = vunpack.c.l.b16 %v1615
      %v1680 = vunpack.c.l.b16 %v1616
      %v1681 = vunpack.c.l.b16 %v1617
      %v1682 = vunpack.c.l.b16 %v1618
      %v1683 = vunpack.c.l.b16 %v1619
      %v1684 = vunpack.c.l.b16 %v1620
      %v1685 = vunpack.c.l.b16 %v1621
      %v1686 = vunpack.c.l.b16 %v1622
      %v1687 = vunpack.c.l.b16 %v1623
      %v1688 = vpack.c.b16 %v1657, %v1656
      %v1689 = vpack.c.b16 %v1659, %v1658
      %v1690 = vpack.c.b16 %v1661, %v1660
      %v1691 = vpack.c.b16 %v1663, %v1662
      %v1692 = vpack.c.b16 %v1665, %v1664
      %v1693 = vpack.c.b16 %v1667, %v1666
      %v1694 = vpack.c.b16 %v1669, %v1668
      %v1695 = vpack.c.b16 %v1671, %v1670
      %v1696 = vpack.c.b16 %v1673, %v1672
      %v1697 = vpack.c.b16 %v1675, %v1674
      %v1698 = vpack.c.b16 %v1677, %v1676
      %v1699 = vpack.c.b16 %v1679, %v1678
      %v1700 = vpack.c.b16 %v1681, %v1680
      %v1701 = vpack.c.b16 %v1683, %v1682
      %v1702 = vpack.c.b16 %v1685, %v1684
      %v1703 = vpack.c.b16 %v1687, %v1686
      %v1705 = vsel %vm386, %v1688, 0
      %v1708 = vsel %vm386, %v1689, 0
      %v1711 = vsel %vm386, %v1690, 0
      %v1714 = vsel %vm386, %v1691, 0
      %v1717 = vsel %vm386, %v1692, 0
      %v1720 = vsel %vm386, %v1693, 0
      %v1723 = vsel %vm386, %v1694, 0
      %v1726 = vsel %vm386, %v1695, 0
      %v1729 = vsel %vm386, %v1696, 0
      %v1732 = vsel %vm386, %v1697, 0
      %v1735 = vsel %vm386, %v1698, 0
      %v1738 = vsel %vm386, %v1699, 0
      %v1741 = vsel %vm386, %v1700, 0
      %v1744 = vsel %vm386, %v1701, 0
      %v1747 = vsel %vm386, %v1702, 0
      %v1750 = vsel %vm386, %v1703, 0
      %1752 = vmatpush.bf16.msra.mxu0 0
      %1753 = vmatpush.bf16.msra.mxu0 0
      %1754 = vmatpush.bf16.msra.mxu0 0
      %1755 = vmatpush.bf16.msra.mxu0 0
      %1756 = vmatpush.bf16.msra.mxu0 0
      %1757 = vmatpush.bf16.msra.mxu0 0
      %1758 = vmatpush.bf16.msra.mxu0 %v383
      %1759 = vmatpush.bf16.msra.mxu0 %v382
      %1760 = vmatmul.bf16.gmra.mxu0 %v1705
      %v1761 = vpop.f32.mrf.mxu0
      %v1762 = vadd.f32 %v292, %v1761
      %v1763 = vpop.f32.mrf.mxu0
      %v1764 = vadd.f32 %v292, %v1763
      %1765 = vmatmul.bf16.gmra.mxu0 %v1708
      %v1766 = vpop.f32.mrf.mxu0
      %v1767 = vadd.f32 %v292, %v1766
      %v1768 = vpop.f32.mrf.mxu0
      %v1769 = vadd.f32 %v292, %v1768
      %1770 = vmatmul.bf16.gmra.mxu0 %v1711
      %v1771 = vpop.f32.mrf.mxu0
      %v1772 = vadd.f32 %v292, %v1771
      %v1773 = vpop.f32.mrf.mxu0
      %v1774 = vadd.f32 %v292, %v1773
      %1775 = vmatmul.bf16.gmra.mxu0 %v1714
      %v1776 = vpop.f32.mrf.mxu0
      %v1777 = vadd.f32 %v292, %v1776
      %v1778 = vpop.f32.mrf.mxu0
      %v1779 = vadd.f32 %v292, %v1778
      %1780 = vmatmul.bf16.gmra.mxu0 %v1717
      %v1781 = vpop.f32.mrf.mxu0
      %v1782 = vadd.f32 %v292, %v1781
      %v1783 = vpop.f32.mrf.mxu0
      %v1784 = vadd.f32 %v292, %v1783
      %1785 = vmatmul.bf16.gmra.mxu0 %v1720
      %v1786 = vpop.f32.mrf.mxu0
      %v1787 = vadd.f32 %v292, %v1786
      %v1788 = vpop.f32.mrf.mxu0
      %v1789 = vadd.f32 %v292, %v1788
      %1790 = vmatmul.bf16.gmra.mxu0 %v1723
      %v1791 = vpop.f32.mrf.mxu0
      %v1792 = vadd.f32 %v292, %v1791
      %v1793 = vpop.f32.mrf.mxu0
      %v1794 = vadd.f32 %v292, %v1793
      %1795 = vmatmul.bf16.gmra.mxu0 %v1726
      %v1796 = vpop.f32.mrf.mxu0
      %v1797 = vadd.f32 %v292, %v1796
      %v1798 = vpop.f32.mrf.mxu0
      %v1799 = vadd.f32 %v292, %v1798
      %1800 = vmatmul.bf16.gmra.mxu0 %v1729
      %v1801 = vpop.f32.mrf.mxu0
      %v1802 = vadd.f32 %v292, %v1801
      %v1803 = vpop.f32.mrf.mxu0
      %v1804 = vadd.f32 %v292, %v1803
      %1805 = vmatmul.bf16.gmra.mxu0 %v1732
      %v1806 = vpop.f32.mrf.mxu0
      %v1807 = vadd.f32 %v292, %v1806
      %v1808 = vpop.f32.mrf.mxu0
      %v1809 = vadd.f32 %v292, %v1808
      %1810 = vmatmul.bf16.gmra.mxu0 %v1735
      %v1811 = vpop.f32.mrf.mxu0
      %v1812 = vadd.f32 %v292, %v1811
      %v1813 = vpop.f32.mrf.mxu0
      %v1814 = vadd.f32 %v292, %v1813
      %1815 = vmatmul.bf16.gmra.mxu0 %v1738
      %v1816 = vpop.f32.mrf.mxu0
      %v1817 = vadd.f32 %v292, %v1816
      %v1818 = vpop.f32.mrf.mxu0
      %v1819 = vadd.f32 %v292, %v1818
      %1820 = vmatmul.bf16.gmra.mxu0 %v1741
      %v1821 = vpop.f32.mrf.mxu0
      %v1822 = vadd.f32 %v292, %v1821
      %v1823 = vpop.f32.mrf.mxu0
      %v1824 = vadd.f32 %v292, %v1823
      %1825 = vmatmul.bf16.gmra.mxu0 %v1744
      %v1826 = vpop.f32.mrf.mxu0
      %v1827 = vadd.f32 %v292, %v1826
      %v1828 = vpop.f32.mrf.mxu0
      %v1829 = vadd.f32 %v292, %v1828
      %1830 = vmatmul.bf16.gmra.mxu0 %v1747
      %v1831 = vpop.f32.mrf.mxu0
      %v1832 = vadd.f32 %v292, %v1831
      %v1833 = vpop.f32.mrf.mxu0
      %v1834 = vadd.f32 %v292, %v1833
      %1835 = vmatmul.bf16.gmra.mxu0 %v1750
      %v1836 = vpop.f32.mrf.mxu0
      %v1837 = vadd.f32 %v292, %v1836
      %v1838 = vpop.f32.mrf.mxu0
      %v1839 = vadd.f32 %v292, %v1838
      %1840 = vdwg.mxu0
      %v1841 = vmax.f32 %v1762, 0.0
      %v1842 = vmax.f32 %v1764, 0.0
      %v1843 = vmax.f32 %v1767, 0.0
      %v1844 = vmax.f32 %v1769, 0.0
      %v1845 = vmax.f32 %v1772, 0.0
      %v1846 = vmax.f32 %v1774, 0.0
      %v1847 = vmax.f32 %v1777, 0.0
      %v1848 = vmax.f32 %v1779, 0.0
      %v1849 = vmax.f32 %v1782, 0.0
      %v1850 = vmax.f32 %v1784, 0.0
      %v1851 = vmax.f32 %v1787, 0.0
      %v1852 = vmax.f32 %v1789, 0.0
      %v1853 = vmax.f32 %v1792, 0.0
      %v1854 = vmax.f32 %v1794, 0.0
      %v1855 = vmax.f32 %v1797, 0.0
      %v1856 = vmax.f32 %v1799, 0.0
      %v1857 = vmax.f32 %v1802, 0.0
      %v1858 = vmax.f32 %v1804, 0.0
      %v1859 = vmax.f32 %v1807, 0.0
      %v1860 = vmax.f32 %v1809, 0.0
      %v1861 = vmax.f32 %v1812, 0.0
      %v1862 = vmax.f32 %v1814, 0.0
      %v1863 = vmax.f32 %v1817, 0.0
      %v1864 = vmax.f32 %v1819, 0.0
      %v1865 = vmax.f32 %v1822, 0.0
      %v1866 = vmax.f32 %v1824, 0.0
      %v1867 = vmax.f32 %v1827, 0.0
      %v1868 = vmax.f32 %v1829, 0.0
      %v1869 = vmax.f32 %v1832, 0.0
      %v1870 = vmax.f32 %v1834, 0.0
      %v1871 = vmax.f32 %v1837, 0.0
      %v1872 = vmax.f32 %v1839, 0.0
      %v1873 = vpack.c.bf16 %v1842, %v1841
      %v1874 = vpack.c.bf16 %v1844, %v1843
      %v1875 = vpack.c.bf16 %v1846, %v1845
      %v1876 = vpack.c.bf16 %v1848, %v1847
      %v1877 = vpack.c.bf16 %v1850, %v1849
      %v1878 = vpack.c.bf16 %v1852, %v1851
      %v1879 = vpack.c.bf16 %v1854, %v1853
      %v1880 = vpack.c.bf16 %v1856, %v1855
      %v1881 = vpack.c.bf16 %v1858, %v1857
      %v1882 = vpack.c.bf16 %v1860, %v1859
      %v1883 = vpack.c.bf16 %v1862, %v1861
      %v1884 = vpack.c.bf16 %v1864, %v1863
      %v1885 = vpack.c.bf16 %v1866, %v1865
      %v1886 = vpack.c.bf16 %v1868, %v1867
      %v1887 = vpack.c.bf16 %v1870, %v1869
      %v1888 = vpack.c.bf16 %v1872, %v1871
      %1889 = vst [vmem:[#allocation1] ss:$9 sm:$0xff] %v258
      %v1890 = vld [vmem:[#allocation1] sm:$0xff]
      %v1891 = vld [vmem:[#allocation1 + $0x9] sm:$0xff]
      %1894 = vmatpush.bf16.msra.mxu0 %v1880
      %1895 = vmatpush.bf16.msra.mxu0 %v1879
      %1896 = vmatpush.bf16.msra.mxu0 %v1878
      %1897 = vmatpush.bf16.msra.mxu0 %v1877
      %1898 = vmatpush.bf16.msra.mxu0 %v1876
      %1899 = vmatpush.bf16.msra.mxu0 %v1875
      %1900 = vmatpush.bf16.msra.mxu0 %v1874
      %1901 = vmatpush.bf16.msra.mxu0 %v1873
      %1902 = vmatmul.bf16.gmra.mxu0 %v1890
      %v1903 = vpop.f32.mrf.mxu0
      %v1904 = vadd.f32 0.0, %v1903
      %v1905 = vpop.f32.mrf.mxu0
      %1906 = vdwg.mxu0
      %1907 = vmatpush.bf16.msra.mxu0 %v1888
      %1908 = vmatpush.bf16.msra.mxu0 %v1887
      %1909 = vmatpush.bf16.msra.mxu0 %v1886
      %1910 = vmatpush.bf16.msra.mxu0 %v1885
      %1911 = vmatpush.bf16.msra.mxu0 %v1884
      %1912 = vmatpush.bf16.msra.mxu0 %v1883
      %1913 = vmatpush.bf16.msra.mxu0 %v1882
      %1914 = vmatpush.bf16.msra.mxu0 %v1881
      %1915 = vmatmul.bf16.gmra.mxu0 %v1891
      %v1916 = vpop.f32.mrf.mxu0
      %v1917 = vadd.f32 %v1904, %v1916
      %v1918 = vpop.f32.mrf.mxu0
      %1919 = vdwg.mxu0
      %s1920 = scalar_lea.vmem %s246, 640
      %v1921 = vld [vmem:[%s1920] sm:$0xf]
      %v1922 = vld [vmem:[%s1920 + $0x4] sm:$0xf]
      %v1923 = vld [vmem:[%s1920 + $0x8] sm:$0xf]
      %v1924 = vld [vmem:[%s1920 + $0xc] sm:$0xf]
      %v1925 = vld [vmem:[%s1920 + $0x10] sm:$0xf]
      %v1926 = vld [vmem:[%s1920 + $0x14] sm:$0xf]
      %v1927 = vld [vmem:[%s1920 + $0x18] sm:$0xf]
      %v1928 = vld [vmem:[%s1920 + $0x1c] sm:$0xf]
      %v1929 = vld [vmem:[%s1920 + $0x20] sm:$0xf]
      %v1930 = vld [vmem:[%s1920 + $0x24] sm:$0xf]
      %v1931 = vld [vmem:[%s1920 + $0x28] sm:$0xf]
      %v1932 = vld [vmem:[%s1920 + $0x2c] sm:$0xf]
      %v1933 = vld [vmem:[%s1920 + $0x30] sm:$0xf]
      %v1934 = vld [vmem:[%s1920 + $0x34] sm:$0xf]
      %v1935 = vld [vmem:[%s1920 + $0x38] sm:$0xf]
      %v1936 = vld [vmem:[%s1920 + $0x3c] sm:$0xf]
      %v1937 = vld [vmem:[%s1920 + $0x40] sm:$0xf]
      %v1938 = vld [vmem:[%s1920 + $0x44] sm:$0xf]
      %v1939 = vld [vmem:[%s1920 + $0x48] sm:$0xf]
      %v1940 = vld [vmem:[%s1920 + $0x4c] sm:$0xf]
      %v1941 = vld [vmem:[%s1920 + $0x50] sm:$0xf]
      %v1942 = vld [vmem:[%s1920 + $0x54] sm:$0xf]
      %v1943 = vld [vmem:[%s1920 + $0x58] sm:$0xf]
      %v1944 = vld [vmem:[%s1920 + $0x5c] sm:$0xf]
      %v1945 = vld [vmem:[%s1920 + $0x60] sm:$0xf]
      %v1946 = vld [vmem:[%s1920 + $0x64] sm:$0xf]
      %v1947 = vld [vmem:[%s1920 + $0x68] sm:$0xf]
      %v1948 = vld [vmem:[%s1920 + $0x6c] sm:$0xf]
      %v1949 = vld [vmem:[%s1920 + $0x70] sm:$0xf]
      %v1950 = vld [vmem:[%s1920 + $0x74] sm:$0xf]
      %v1951 = vld [vmem:[%s1920 + $0x78] sm:$0xf]
      %v1952 = vld [vmem:[%s1920 + $0x7c] sm:$0xf]
      %v1985 = vunpack.c.l.b16 %v1921
      %v1986 = vunpack.c.l.b16 %v1922
      %v1987 = vunpack.c.l.b16 %v1923
      %v1988 = vunpack.c.l.b16 %v1924
      %v1989 = vunpack.c.l.b16 %v1925
      %v1990 = vunpack.c.l.b16 %v1926
      %v1991 = vunpack.c.l.b16 %v1927
      %v1992 = vunpack.c.l.b16 %v1928
      %v1993 = vunpack.c.l.b16 %v1929
      %v1994 = vunpack.c.l.b16 %v1930
      %v1995 = vunpack.c.l.b16 %v1931
      %v1996 = vunpack.c.l.b16 %v1932
      %v1997 = vunpack.c.l.b16 %v1933
      %v1998 = vunpack.c.l.b16 %v1934
      %v1999 = vunpack.c.l.b16 %v1935
      %v2000 = vunpack.c.l.b16 %v1936
      %v2001 = vunpack.c.l.b16 %v1937
      %v2002 = vunpack.c.l.b16 %v1938
      %v2003 = vunpack.c.l.b16 %v1939
      %v2004 = vunpack.c.l.b16 %v1940
      %v2005 = vunpack.c.l.b16 %v1941
      %v2006 = vunpack.c.l.b16 %v1942
      %v2007 = vunpack.c.l.b16 %v1943
      %v2008 = vunpack.c.l.b16 %v1944
      %v2009 = vunpack.c.l.b16 %v1945
      %v2010 = vunpack.c.l.b16 %v1946
      %v2011 = vunpack.c.l.b16 %v1947
      %v2012 = vunpack.c.l.b16 %v1948
      %v2013 = vunpack.c.l.b16 %v1949
      %v2014 = vunpack.c.l.b16 %v1950
      %v2015 = vunpack.c.l.b16 %v1951
      %v2016 = vunpack.c.l.b16 %v1952
      %v2017 = vpack.c.b16 %v1986, %v1985
      %v2018 = vpack.c.b16 %v1988, %v1987
      %v2019 = vpack.c.b16 %v1990, %v1989
      %v2020 = vpack.c.b16 %v1992, %v1991
      %v2021 = vpack.c.b16 %v1994, %v1993
      %v2022 = vpack.c.b16 %v1996, %v1995
      %v2023 = vpack.c.b16 %v1998, %v1997
      %v2024 = vpack.c.b16 %v2000, %v1999
      %v2025 = vpack.c.b16 %v2002, %v2001
      %v2026 = vpack.c.b16 %v2004, %v2003
      %v2027 = vpack.c.b16 %v2006, %v2005
      %v2028 = vpack.c.b16 %v2008, %v2007
      %v2029 = vpack.c.b16 %v2010, %v2009
      %v2030 = vpack.c.b16 %v2012, %v2011
      %v2031 = vpack.c.b16 %v2014, %v2013
      %v2032 = vpack.c.b16 %v2016, %v2015
      %v2034 = vsel %vm386, %v2017, 0
      %v2037 = vsel %vm386, %v2018, 0
      %v2040 = vsel %vm386, %v2019, 0
      %v2043 = vsel %vm386, %v2020, 0
      %v2046 = vsel %vm386, %v2021, 0
      %v2049 = vsel %vm386, %v2022, 0
      %v2052 = vsel %vm386, %v2023, 0
      %v2055 = vsel %vm386, %v2024, 0
      %v2058 = vsel %vm386, %v2025, 0
      %v2061 = vsel %vm386, %v2026, 0
      %v2064 = vsel %vm386, %v2027, 0
      %v2067 = vsel %vm386, %v2028, 0
      %v2070 = vsel %vm386, %v2029, 0
      %v2073 = vsel %vm386, %v2030, 0
      %v2076 = vsel %vm386, %v2031, 0
      %v2079 = vsel %vm386, %v2032, 0
      %2081 = vmatpush.bf16.msra.mxu0 0
      %2082 = vmatpush.bf16.msra.mxu0 0
      %2083 = vmatpush.bf16.msra.mxu0 0
      %2084 = vmatpush.bf16.msra.mxu0 0
      %2085 = vmatpush.bf16.msra.mxu0 0
      %2086 = vmatpush.bf16.msra.mxu0 0
      %2087 = vmatpush.bf16.msra.mxu0 %v383
      %2088 = vmatpush.bf16.msra.mxu0 %v382
      %2089 = vmatmul.bf16.gmra.mxu0 %v2034
      %v2090 = vpop.f32.mrf.mxu0
      %v2091 = vadd.f32 %v292, %v2090
      %v2092 = vpop.f32.mrf.mxu0
      %v2093 = vadd.f32 %v292, %v2092
      %2094 = vmatmul.bf16.gmra.mxu0 %v2037
      %v2095 = vpop.f32.mrf.mxu0
      %v2096 = vadd.f32 %v292, %v2095
      %v2097 = vpop.f32.mrf.mxu0
      %v2098 = vadd.f32 %v292, %v2097
      %2099 = vmatmul.bf16.gmra.mxu0 %v2040
      %v2100 = vpop.f32.mrf.mxu0
      %v2101 = vadd.f32 %v292, %v2100
      %v2102 = vpop.f32.mrf.mxu0
      %v2103 = vadd.f32 %v292, %v2102
      %2104 = vmatmul.bf16.gmra.mxu0 %v2043
      %v2105 = vpop.f32.mrf.mxu0
      %v2106 = vadd.f32 %v292, %v2105
      %v2107 = vpop.f32.mrf.mxu0
      %v2108 = vadd.f32 %v292, %v2107
      %2109 = vmatmul.bf16.gmra.mxu0 %v2046
      %v2110 = vpop.f32.mrf.mxu0
      %v2111 = vadd.f32 %v292, %v2110
      %v2112 = vpop.f32.mrf.mxu0
      %v2113 = vadd.f32 %v292, %v2112
      %2114 = vmatmul.bf16.gmra.mxu0 %v2049
      %v2115 = vpop.f32.mrf.mxu0
      %v2116 = vadd.f32 %v292, %v2115
      %v2117 = vpop.f32.mrf.mxu0
      %v2118 = vadd.f32 %v292, %v2117
      %2119 = vmatmul.bf16.gmra.mxu0 %v2052
      %v2120 = vpop.f32.mrf.mxu0
      %v2121 = vadd.f32 %v292, %v2120
      %v2122 = vpop.f32.mrf.mxu0
      %v2123 = vadd.f32 %v292, %v2122
      %2124 = vmatmul.bf16.gmra.mxu0 %v2055
      %v2125 = vpop.f32.mrf.mxu0
      %v2126 = vadd.f32 %v292, %v2125
      %v2127 = vpop.f32.mrf.mxu0
      %v2128 = vadd.f32 %v292, %v2127
      %2129 = vmatmul.bf16.gmra.mxu0 %v2058
      %v2130 = vpop.f32.mrf.mxu0
      %v2131 = vadd.f32 %v292, %v2130
      %v2132 = vpop.f32.mrf.mxu0
      %v2133 = vadd.f32 %v292, %v2132
      %2134 = vmatmul.bf16.gmra.mxu0 %v2061
      %v2135 = vpop.f32.mrf.mxu0
      %v2136 = vadd.f32 %v292, %v2135
      %v2137 = vpop.f32.mrf.mxu0
      %v2138 = vadd.f32 %v292, %v2137
      %2139 = vmatmul.bf16.gmra.mxu0 %v2064
      %v2140 = vpop.f32.mrf.mxu0
      %v2141 = vadd.f32 %v292, %v2140
      %v2142 = vpop.f32.mrf.mxu0
      %v2143 = vadd.f32 %v292, %v2142
      %2144 = vmatmul.bf16.gmra.mxu0 %v2067
      %v2145 = vpop.f32.mrf.mxu0
      %v2146 = vadd.f32 %v292, %v2145
      %v2147 = vpop.f32.mrf.mxu0
      %v2148 = vadd.f32 %v292, %v2147
      %2149 = vmatmul.bf16.gmra.mxu0 %v2070
      %v2150 = vpop.f32.mrf.mxu0
      %v2151 = vadd.f32 %v292, %v2150
      %v2152 = vpop.f32.mrf.mxu0
      %v2153 = vadd.f32 %v292, %v2152
      %2154 = vmatmul.bf16.gmra.mxu0 %v2073
      %v2155 = vpop.f32.mrf.mxu0
      %v2156 = vadd.f32 %v292, %v2155
      %v2157 = vpop.f32.mrf.mxu0
      %v2158 = vadd.f32 %v292, %v2157
      %2159 = vmatmul.bf16.gmra.mxu0 %v2076
      %v2160 = vpop.f32.mrf.mxu0
      %v2161 = vadd.f32 %v292, %v2160
      %v2162 = vpop.f32.mrf.mxu0
      %v2163 = vadd.f32 %v292, %v2162
      %2164 = vmatmul.bf16.gmra.mxu0 %v2079
      %v2165 = vpop.f32.mrf.mxu0
      %v2166 = vadd.f32 %v292, %v2165
      %v2167 = vpop.f32.mrf.mxu0
      %v2168 = vadd.f32 %v292, %v2167
      %2169 = vdwg.mxu0
      %v2170 = vmax.f32 %v2091, 0.0
      %v2171 = vmax.f32 %v2093, 0.0
      %v2172 = vmax.f32 %v2096, 0.0
      %v2173 = vmax.f32 %v2098, 0.0
      %v2174 = vmax.f32 %v2101, 0.0
      %v2175 = vmax.f32 %v2103, 0.0
      %v2176 = vmax.f32 %v2106, 0.0
      %v2177 = vmax.f32 %v2108, 0.0
      %v2178 = vmax.f32 %v2111, 0.0
      %v2179 = vmax.f32 %v2113, 0.0
      %v2180 = vmax.f32 %v2116, 0.0
      %v2181 = vmax.f32 %v2118, 0.0
      %v2182 = vmax.f32 %v2121, 0.0
      %v2183 = vmax.f32 %v2123, 0.0
      %v2184 = vmax.f32 %v2126, 0.0
      %v2185 = vmax.f32 %v2128, 0.0
      %v2186 = vmax.f32 %v2131, 0.0
      %v2187 = vmax.f32 %v2133, 0.0
      %v2188 = vmax.f32 %v2136, 0.0
      %v2189 = vmax.f32 %v2138, 0.0
      %v2190 = vmax.f32 %v2141, 0.0
      %v2191 = vmax.f32 %v2143, 0.0
      %v2192 = vmax.f32 %v2146, 0.0
      %v2193 = vmax.f32 %v2148, 0.0
      %v2194 = vmax.f32 %v2151, 0.0
      %v2195 = vmax.f32 %v2153, 0.0
      %v2196 = vmax.f32 %v2156, 0.0
      %v2197 = vmax.f32 %v2158, 0.0
      %v2198 = vmax.f32 %v2161, 0.0
      %v2199 = vmax.f32 %v2163, 0.0
      %v2200 = vmax.f32 %v2166, 0.0
      %v2201 = vmax.f32 %v2168, 0.0
      %v2202 = vpack.c.bf16 %v2171, %v2170
      %v2203 = vpack.c.bf16 %v2173, %v2172
      %v2204 = vpack.c.bf16 %v2175, %v2174
      %v2205 = vpack.c.bf16 %v2177, %v2176
      %v2206 = vpack.c.bf16 %v2179, %v2178
      %v2207 = vpack.c.bf16 %v2181, %v2180
      %v2208 = vpack.c.bf16 %v2183, %v2182
      %v2209 = vpack.c.bf16 %v2185, %v2184
      %v2210 = vpack.c.bf16 %v2187, %v2186
      %v2211 = vpack.c.bf16 %v2189, %v2188
      %v2212 = vpack.c.bf16 %v2191, %v2190
      %v2213 = vpack.c.bf16 %v2193, %v2192
      %v2214 = vpack.c.bf16 %v2195, %v2194
      %v2215 = vpack.c.bf16 %v2197, %v2196
      %v2216 = vpack.c.bf16 %v2199, %v2198
      %v2217 = vpack.c.bf16 %v2201, %v2200
      %2218 = vst [vmem:[#allocation1] ss:$9 sm:$0xff] %v258
      %v2219 = vld [vmem:[#allocation1] sm:$0xff]
      %v2220 = vld [vmem:[#allocation1 + $0x9] sm:$0xff]
      %2223 = vmatpush.bf16.msra.mxu0 %v2209
      %2224 = vmatpush.bf16.msra.mxu0 %v2208
      %2225 = vmatpush.bf16.msra.mxu0 %v2207
      %2226 = vmatpush.bf16.msra.mxu0 %v2206
      %2227 = vmatpush.bf16.msra.mxu0 %v2205
      %2228 = vmatpush.bf16.msra.mxu0 %v2204
      %2229 = vmatpush.bf16.msra.mxu0 %v2203
      %2230 = vmatpush.bf16.msra.mxu0 %v2202
      %2231 = vmatmul.bf16.gmra.mxu0 %v2219
      %v2232 = vpop.f32.mrf.mxu0
      %v2233 = vadd.f32 0.0, %v2232
      %v2234 = vpop.f32.mrf.mxu0
      %2235 = vdwg.mxu0
      %2236 = vmatpush.bf16.msra.mxu0 %v2217
      %2237 = vmatpush.bf16.msra.mxu0 %v2216
      %2238 = vmatpush.bf16.msra.mxu0 %v2215
      %2239 = vmatpush.bf16.msra.mxu0 %v2214
      %2240 = vmatpush.bf16.msra.mxu0 %v2213
      %2241 = vmatpush.bf16.msra.mxu0 %v2212
      %2242 = vmatpush.bf16.msra.mxu0 %v2211
      %2243 = vmatpush.bf16.msra.mxu0 %v2210
      %2244 = vmatmul.bf16.gmra.mxu0 %v2220
      %v2245 = vpop.f32.mrf.mxu0
      %v2246 = vadd.f32 %v2233, %v2245
      %v2247 = vpop.f32.mrf.mxu0
      %2248 = vdwg.mxu0
      %s2249 = scalar_lea.vmem %s246, 768
      %v2250 = vld [vmem:[%s2249] sm:$0xf]
      %v2251 = vld [vmem:[%s2249 + $0x4] sm:$0xf]
      %v2252 = vld [vmem:[%s2249 + $0x8] sm:$0xf]
      %v2253 = vld [vmem:[%s2249 + $0xc] sm:$0xf]
      %v2254 = vld [vmem:[%s2249 + $0x10] sm:$0xf]
      %v2255 = vld [vmem:[%s2249 + $0x14] sm:$0xf]
      %v2256 = vld [vmem:[%s2249 + $0x18] sm:$0xf]
      %v2257 = vld [vmem:[%s2249 + $0x1c] sm:$0xf]
      %v2258 = vld [vmem:[%s2249 + $0x20] sm:$0xf]
      %v2259 = vld [vmem:[%s2249 + $0x24] sm:$0xf]
      %v2260 = vld [vmem:[%s2249 + $0x28] sm:$0xf]
      %v2261 = vld [vmem:[%s2249 + $0x2c] sm:$0xf]
      %v2262 = vld [vmem:[%s2249 + $0x30] sm:$0xf]
      %v2263 = vld [vmem:[%s2249 + $0x34] sm:$0xf]
      %v2264 = vld [vmem:[%s2249 + $0x38] sm:$0xf]
      %v2265 = vld [vmem:[%s2249 + $0x3c] sm:$0xf]
      %v2266 = vld [vmem:[%s2249 + $0x40] sm:$0xf]
      %v2267 = vld [vmem:[%s2249 + $0x44] sm:$0xf]
      %v2268 = vld [vmem:[%s2249 + $0x48] sm:$0xf]
      %v2269 = vld [vmem:[%s2249 + $0x4c] sm:$0xf]
      %v2270 = vld [vmem:[%s2249 + $0x50] sm:$0xf]
      %v2271 = vld [vmem:[%s2249 + $0x54] sm:$0xf]
      %v2272 = vld [vmem:[%s2249 + $0x58] sm:$0xf]
      %v2273 = vld [vmem:[%s2249 + $0x5c] sm:$0xf]
      %v2274 = vld [vmem:[%s2249 + $0x60] sm:$0xf]
      %v2275 = vld [vmem:[%s2249 + $0x64] sm:$0xf]
      %v2276 = vld [vmem:[%s2249 + $0x68] sm:$0xf]
      %v2277 = vld [vmem:[%s2249 + $0x6c] sm:$0xf]
      %v2278 = vld [vmem:[%s2249 + $0x70] sm:$0xf]
      %v2279 = vld [vmem:[%s2249 + $0x74] sm:$0xf]
      %v2280 = vld [vmem:[%s2249 + $0x78] sm:$0xf]
      %v2281 = vld [vmem:[%s2249 + $0x7c] sm:$0xf]
      %v2314 = vunpack.c.l.b16 %v2250
      %v2315 = vunpack.c.l.b16 %v2251
      %v2316 = vunpack.c.l.b16 %v2252
      %v2317 = vunpack.c.l.b16 %v2253
      %v2318 = vunpack.c.l.b16 %v2254
      %v2319 = vunpack.c.l.b16 %v2255
      %v2320 = vunpack.c.l.b16 %v2256
      %v2321 = vunpack.c.l.b16 %v2257
      %v2322 = vunpack.c.l.b16 %v2258
      %v2323 = vunpack.c.l.b16 %v2259
      %v2324 = vunpack.c.l.b16 %v2260
      %v2325 = vunpack.c.l.b16 %v2261
      %v2326 = vunpack.c.l.b16 %v2262
      %v2327 = vunpack.c.l.b16 %v2263
      %v2328 = vunpack.c.l.b16 %v2264
      %v2329 = vunpack.c.l.b16 %v2265
      %v2330 = vunpack.c.l.b16 %v2266
      %v2331 = vunpack.c.l.b16 %v2267
      %v2332 = vunpack.c.l.b16 %v2268
      %v2333 = vunpack.c.l.b16 %v2269
      %v2334 = vunpack.c.l.b16 %v2270
      %v2335 = vunpack.c.l.b16 %v2271
      %v2336 = vunpack.c.l.b16 %v2272
      %v2337 = vunpack.c.l.b16 %v2273
      %v2338 = vunpack.c.l.b16 %v2274
      %v2339 = vunpack.c.l.b16 %v2275
      %v2340 = vunpack.c.l.b16 %v2276
      %v2341 = vunpack.c.l.b16 %v2277
      %v2342 = vunpack.c.l.b16 %v2278
      %v2343 = vunpack.c.l.b16 %v2279
      %v2344 = vunpack.c.l.b16 %v2280
      %v2345 = vunpack.c.l.b16 %v2281
      %v2346 = vpack.c.b16 %v2315, %v2314
      %v2347 = vpack.c.b16 %v2317, %v2316
      %v2348 = vpack.c.b16 %v2319, %v2318
      %v2349 = vpack.c.b16 %v2321, %v2320
      %v2350 = vpack.c.b16 %v2323, %v2322
      %v2351 = vpack.c.b16 %v2325, %v2324
      %v2352 = vpack.c.b16 %v2327, %v2326
      %v2353 = vpack.c.b16 %v2329, %v2328
      %v2354 = vpack.c.b16 %v2331, %v2330
      %v2355 = vpack.c.b16 %v2333, %v2332
      %v2356 = vpack.c.b16 %v2335, %v2334
      %v2357 = vpack.c.b16 %v2337, %v2336
      %v2358 = vpack.c.b16 %v2339, %v2338
      %v2359 = vpack.c.b16 %v2341, %v2340
      %v2360 = vpack.c.b16 %v2343, %v2342
      %v2361 = vpack.c.b16 %v2345, %v2344
      %v2363 = vsel %vm386, %v2346, 0
      %v2366 = vsel %vm386, %v2347, 0
      %v2369 = vsel %vm386, %v2348, 0
      %v2372 = vsel %vm386, %v2349, 0
      %v2375 = vsel %vm386, %v2350, 0
      %v2378 = vsel %vm386, %v2351, 0
      %v2381 = vsel %vm386, %v2352, 0
      %v2384 = vsel %vm386, %v2353, 0
      %v2387 = vsel %vm386, %v2354, 0
      %v2390 = vsel %vm386, %v2355, 0
      %v2393 = vsel %vm386, %v2356, 0
      %v2396 = vsel %vm386, %v2357, 0
      %v2399 = vsel %vm386, %v2358, 0
      %v2402 = vsel %vm386, %v2359, 0
      %v2405 = vsel %vm386, %v2360, 0
      %v2408 = vsel %vm386, %v2361, 0
      %2410 = vmatpush.bf16.msra.mxu0 0
      %2411 = vmatpush.bf16.msra.mxu0 0
      %2412 = vmatpush.bf16.msra.mxu0 0
      %2413 = vmatpush.bf16.msra.mxu0 0
      %2414 = vmatpush.bf16.msra.mxu0 0
      %2415 = vmatpush.bf16.msra.mxu0 0
      %2416 = vmatpush.bf16.msra.mxu0 %v383
      %2417 = vmatpush.bf16.msra.mxu0 %v382
      %2418 = vmatmul.bf16.gmra.mxu0 %v2363
      %v2419 = vpop.f32.mrf.mxu0
      %v2420 = vadd.f32 %v292, %v2419
      %v2421 = vpop.f32.mrf.mxu0
      %v2422 = vadd.f32 %v292, %v2421
      %2423 = vmatmul.bf16.gmra.mxu0 %v2366
      %v2424 = vpop.f32.mrf.mxu0
      %v2425 = vadd.f32 %v292, %v2424
      %v2426 = vpop.f32.mrf.mxu0
      %v2427 = vadd.f32 %v292, %v2426
      %2428 = vmatmul.bf16.gmra.mxu0 %v2369
      %v2429 = vpop.f32.mrf.mxu0
      %v2430 = vadd.f32 %v292, %v2429
      %v2431 = vpop.f32.mrf.mxu0
      %v2432 = vadd.f32 %v292, %v2431
      %2433 = vmatmul.bf16.gmra.mxu0 %v2372
      %v2434 = vpop.f32.mrf.mxu0
      %v2435 = vadd.f32 %v292, %v2434
      %v2436 = vpop.f32.mrf.mxu0
      %v2437 = vadd.f32 %v292, %v2436
      %2438 = vmatmul.bf16.gmra.mxu0 %v2375
      %v2439 = vpop.f32.mrf.mxu0
      %v2440 = vadd.f32 %v292, %v2439
      %v2441 = vpop.f32.mrf.mxu0
      %v2442 = vadd.f32 %v292, %v2441
      %2443 = vmatmul.bf16.gmra.mxu0 %v2378
      %v2444 = vpop.f32.mrf.mxu0
      %v2445 = vadd.f32 %v292, %v2444
      %v2446 = vpop.f32.mrf.mxu0
      %v2447 = vadd.f32 %v292, %v2446
      %2448 = vmatmul.bf16.gmra.mxu0 %v2381
      %v2449 = vpop.f32.mrf.mxu0
      %v2450 = vadd.f32 %v292, %v2449
      %v2451 = vpop.f32.mrf.mxu0
      %v2452 = vadd.f32 %v292, %v2451
      %2453 = vmatmul.bf16.gmra.mxu0 %v2384
      %v2454 = vpop.f32.mrf.mxu0
      %v2455 = vadd.f32 %v292, %v2454
      %v2456 = vpop.f32.mrf.mxu0
      %v2457 = vadd.f32 %v292, %v2456
      %2458 = vmatmul.bf16.gmra.mxu0 %v2387
      %v2459 = vpop.f32.mrf.mxu0
      %v2460 = vadd.f32 %v292, %v2459
      %v2461 = vpop.f32.mrf.mxu0
      %v2462 = vadd.f32 %v292, %v2461
      %2463 = vmatmul.bf16.gmra.mxu0 %v2390
      %v2464 = vpop.f32.mrf.mxu0
      %v2465 = vadd.f32 %v292, %v2464
      %v2466 = vpop.f32.mrf.mxu0
      %v2467 = vadd.f32 %v292, %v2466
      %2468 = vmatmul.bf16.gmra.mxu0 %v2393
      %v2469 = vpop.f32.mrf.mxu0
      %v2470 = vadd.f32 %v292, %v2469
      %v2471 = vpop.f32.mrf.mxu0
      %v2472 = vadd.f32 %v292, %v2471
      %2473 = vmatmul.bf16.gmra.mxu0 %v2396
      %v2474 = vpop.f32.mrf.mxu0
      %v2475 = vadd.f32 %v292, %v2474
      %v2476 = vpop.f32.mrf.mxu0
      %v2477 = vadd.f32 %v292, %v2476
      %2478 = vmatmul.bf16.gmra.mxu0 %v2399
      %v2479 = vpop.f32.mrf.mxu0
      %v2480 = vadd.f32 %v292, %v2479
      %v2481 = vpop.f32.mrf.mxu0
      %v2482 = vadd.f32 %v292, %v2481
      %2483 = vmatmul.bf16.gmra.mxu0 %v2402
      %v2484 = vpop.f32.mrf.mxu0
      %v2485 = vadd.f32 %v292, %v2484
      %v2486 = vpop.f32.mrf.mxu0
      %v2487 = vadd.f32 %v292, %v2486
      %2488 = vmatmul.bf16.gmra.mxu0 %v2405
      %v2489 = vpop.f32.mrf.mxu0
      %v2490 = vadd.f32 %v292, %v2489
      %v2491 = vpop.f32.mrf.mxu0
      %v2492 = vadd.f32 %v292, %v2491
      %2493 = vmatmul.bf16.gmra.mxu0 %v2408
      %v2494 = vpop.f32.mrf.mxu0
      %v2495 = vadd.f32 %v292, %v2494
      %v2496 = vpop.f32.mrf.mxu0
      %v2497 = vadd.f32 %v292, %v2496
      %2498 = vdwg.mxu0
      %v2499 = vmax.f32 %v2420, 0.0
      %v2500 = vmax.f32 %v2422, 0.0
      %v2501 = vmax.f32 %v2425, 0.0
      %v2502 = vmax.f32 %v2427, 0.0
      %v2503 = vmax.f32 %v2430, 0.0
      %v2504 = vmax.f32 %v2432, 0.0
      %v2505 = vmax.f32 %v2435, 0.0
      %v2506 = vmax.f32 %v2437, 0.0
      %v2507 = vmax.f32 %v2440, 0.0
      %v2508 = vmax.f32 %v2442, 0.0
      %v2509 = vmax.f32 %v2445, 0.0
      %v2510 = vmax.f32 %v2447, 0.0
      %v2511 = vmax.f32 %v2450, 0.0
      %v2512 = vmax.f32 %v2452, 0.0
      %v2513 = vmax.f32 %v2455, 0.0
      %v2514 = vmax.f32 %v2457, 0.0
      %v2515 = vmax.f32 %v2460, 0.0
      %v2516 = vmax.f32 %v2462, 0.0
      %v2517 = vmax.f32 %v2465, 0.0
      %v2518 = vmax.f32 %v2467, 0.0
      %v2519 = vmax.f32 %v2470, 0.0
      %v2520 = vmax.f32 %v2472, 0.0
      %v2521 = vmax.f32 %v2475, 0.0
      %v2522 = vmax.f32 %v2477, 0.0
      %v2523 = vmax.f32 %v2480, 0.0
      %v2524 = vmax.f32 %v2482, 0.0
      %v2525 = vmax.f32 %v2485, 0.0
      %v2526 = vmax.f32 %v2487, 0.0
      %v2527 = vmax.f32 %v2490, 0.0
      %v2528 = vmax.f32 %v2492, 0.0
      %v2529 = vmax.f32 %v2495, 0.0
      %v2530 = vmax.f32 %v2497, 0.0
      %v2531 = vpack.c.bf16 %v2500, %v2499
      %v2532 = vpack.c.bf16 %v2502, %v2501
      %v2533 = vpack.c.bf16 %v2504, %v2503
      %v2534 = vpack.c.bf16 %v2506, %v2505
      %v2535 = vpack.c.bf16 %v2508, %v2507
      %v2536 = vpack.c.bf16 %v2510, %v2509
      %v2537 = vpack.c.bf16 %v2512, %v2511
      %v2538 = vpack.c.bf16 %v2514, %v2513
      %v2539 = vpack.c.bf16 %v2516, %v2515
      %v2540 = vpack.c.bf16 %v2518, %v2517
      %v2541 = vpack.c.bf16 %v2520, %v2519
      %v2542 = vpack.c.bf16 %v2522, %v2521
      %v2543 = vpack.c.bf16 %v2524, %v2523
      %v2544 = vpack.c.bf16 %v2526, %v2525
      %v2545 = vpack.c.bf16 %v2528, %v2527
      %v2546 = vpack.c.bf16 %v2530, %v2529
      %2547 = vst [vmem:[#allocation1] ss:$9 sm:$0xff] %v258
      %v2548 = vld [vmem:[#allocation1] sm:$0xff]
      %v2549 = vld [vmem:[#allocation1 + $0x9] sm:$0xff]
      %2552 = vmatpush.bf16.msra.mxu0 %v2538
      %2553 = vmatpush.bf16.msra.mxu0 %v2537
      %2554 = vmatpush.bf16.msra.mxu0 %v2536
      %2555 = vmatpush.bf16.msra.mxu0 %v2535
      %2556 = vmatpush.bf16.msra.mxu0 %v2534
      %2557 = vmatpush.bf16.msra.mxu0 %v2533
      %2558 = vmatpush.bf16.msra.mxu0 %v2532
      %2559 = vmatpush.bf16.msra.mxu0 %v2531
      %2560 = vmatmul.bf16.gmra.mxu0 %v2548
      %v2561 = vpop.f32.mrf.mxu0
      %v2562 = vadd.f32 0.0, %v2561
      %v2563 = vpop.f32.mrf.mxu0
      %2564 = vdwg.mxu0
      %2565 = vmatpush.bf16.msra.mxu0 %v2546
      %2566 = vmatpush.bf16.msra.mxu0 %v2545
      %2567 = vmatpush.bf16.msra.mxu0 %v2544
      %2568 = vmatpush.bf16.msra.mxu0 %v2543
      %2569 = vmatpush.bf16.msra.mxu0 %v2542
      %2570 = vmatpush.bf16.msra.mxu0 %v2541
      %2571 = vmatpush.bf16.msra.mxu0 %v2540
      %2572 = vmatpush.bf16.msra.mxu0 %v2539
      %2573 = vmatmul.bf16.gmra.mxu0 %v2549
      %v2574 = vpop.f32.mrf.mxu0
      %v2575 = vadd.f32 %v2562, %v2574
      %v2576 = vpop.f32.mrf.mxu0
      %2577 = vdwg.mxu0
      %s2578 = scalar_lea.vmem %s246, 896
      %v2579 = vld [vmem:[%s2578] sm:$0xf]
      %v2580 = vld [vmem:[%s2578 + $0x4] sm:$0xf]
      %v2581 = vld [vmem:[%s2578 + $0x8] sm:$0xf]
      %v2582 = vld [vmem:[%s2578 + $0xc] sm:$0xf]
      %v2583 = vld [vmem:[%s2578 + $0x10] sm:$0xf]
      %v2584 = vld [vmem:[%s2578 + $0x14] sm:$0xf]
      %v2585 = vld [vmem:[%s2578 + $0x18] sm:$0xf]
      %v2586 = vld [vmem:[%s2578 + $0x1c] sm:$0xf]
      %v2587 = vld [vmem:[%s2578 + $0x20] sm:$0xf]
      %v2588 = vld [vmem:[%s2578 + $0x24] sm:$0xf]
      %v2589 = vld [vmem:[%s2578 + $0x28] sm:$0xf]
      %v2590 = vld [vmem:[%s2578 + $0x2c] sm:$0xf]
      %v2591 = vld [vmem:[%s2578 + $0x30] sm:$0xf]
      %v2592 = vld [vmem:[%s2578 + $0x34] sm:$0xf]
      %v2593 = vld [vmem:[%s2578 + $0x38] sm:$0xf]
      %v2594 = vld [vmem:[%s2578 + $0x3c] sm:$0xf]
      %v2595 = vld [vmem:[%s2578 + $0x40] sm:$0xf]
      %v2596 = vld [vmem:[%s2578 + $0x44] sm:$0xf]
      %v2597 = vld [vmem:[%s2578 + $0x48] sm:$0xf]
      %v2598 = vld [vmem:[%s2578 + $0x4c] sm:$0xf]
      %v2599 = vld [vmem:[%s2578 + $0x50] sm:$0xf]
      %v2600 = vld [vmem:[%s2578 + $0x54] sm:$0xf]
      %v2601 = vld [vmem:[%s2578 + $0x58] sm:$0xf]
      %v2602 = vld [vmem:[%s2578 + $0x5c] sm:$0xf]
      %v2603 = vld [vmem:[%s2578 + $0x60] sm:$0xf]
      %v2604 = vld [vmem:[%s2578 + $0x64] sm:$0xf]
      %v2605 = vld [vmem:[%s2578 + $0x68] sm:$0xf]
      %v2606 = vld [vmem:[%s2578 + $0x6c] sm:$0xf]
      %v2607 = vld [vmem:[%s2578 + $0x70] sm:$0xf]
      %v2608 = vld [vmem:[%s2578 + $0x74] sm:$0xf]
      %v2609 = vld [vmem:[%s2578 + $0x78] sm:$0xf]
      %v2610 = vld [vmem:[%s2578 + $0x7c] sm:$0xf]
      %v2643 = vunpack.c.l.b16 %v2579
      %v2644 = vunpack.c.l.b16 %v2580
      %v2645 = vunpack.c.l.b16 %v2581
      %v2646 = vunpack.c.l.b16 %v2582
      %v2647 = vunpack.c.l.b16 %v2583
      %v2648 = vunpack.c.l.b16 %v2584
      %v2649 = vunpack.c.l.b16 %v2585
      %v2650 = vunpack.c.l.b16 %v2586
      %v2651 = vunpack.c.l.b16 %v2587
      %v2652 = vunpack.c.l.b16 %v2588
      %v2653 = vunpack.c.l.b16 %v2589
      %v2654 = vunpack.c.l.b16 %v2590
      %v2655 = vunpack.c.l.b16 %v2591
      %v2656 = vunpack.c.l.b16 %v2592
      %v2657 = vunpack.c.l.b16 %v2593
      %v2658 = vunpack.c.l.b16 %v2594
      %v2659 = vunpack.c.l.b16 %v2595
      %v2660 = vunpack.c.l.b16 %v2596
      %v2661 = vunpack.c.l.b16 %v2597
      %v2662 = vunpack.c.l.b16 %v2598
      %v2663 = vunpack.c.l.b16 %v2599
      %v2664 = vunpack.c.l.b16 %v2600
      %v2665 = vunpack.c.l.b16 %v2601
      %v2666 = vunpack.c.l.b16 %v2602
      %v2667 = vunpack.c.l.b16 %v2603
      %v2668 = vunpack.c.l.b16 %v2604
      %v2669 = vunpack.c.l.b16 %v2605
      %v2670 = vunpack.c.l.b16 %v2606
      %v2671 = vunpack.c.l.b16 %v2607
      %v2672 = vunpack.c.l.b16 %v2608
      %v2673 = vunpack.c.l.b16 %v2609
      %v2674 = vunpack.c.l.b16 %v2610
      %v2675 = vpack.c.b16 %v2644, %v2643
      %v2676 = vpack.c.b16 %v2646, %v2645
      %v2677 = vpack.c.b16 %v2648, %v2647
      %v2678 = vpack.c.b16 %v2650, %v2649
      %v2679 = vpack.c.b16 %v2652, %v2651
      %v2680 = vpack.c.b16 %v2654, %v2653
      %v2681 = vpack.c.b16 %v2656, %v2655
      %v2682 = vpack.c.b16 %v2658, %v2657
      %v2683 = vpack.c.b16 %v2660, %v2659
      %v2684 = vpack.c.b16 %v2662, %v2661
      %v2685 = vpack.c.b16 %v2664, %v2663
      %v2686 = vpack.c.b16 %v2666, %v2665
      %v2687 = vpack.c.b16 %v2668, %v2667
      %v2688 = vpack.c.b16 %v2670, %v2669
      %v2689 = vpack.c.b16 %v2672, %v2671
      %v2690 = vpack.c.b16 %v2674, %v2673
      %v2692 = vsel %vm386, %v2675, 0
      %v2695 = vsel %vm386, %v2676, 0
      %v2698 = vsel %vm386, %v2677, 0
      %v2701 = vsel %vm386, %v2678, 0
      %v2704 = vsel %vm386, %v2679, 0
      %v2707 = vsel %vm386, %v2680, 0
      %v2710 = vsel %vm386, %v2681, 0
      %v2713 = vsel %vm386, %v2682, 0
      %v2716 = vsel %vm386, %v2683, 0
      %v2719 = vsel %vm386, %v2684, 0
      %v2722 = vsel %vm386, %v2685, 0
      %v2725 = vsel %vm386, %v2686, 0
      %v2728 = vsel %vm386, %v2687, 0
      %v2731 = vsel %vm386, %v2688, 0
      %v2734 = vsel %vm386, %v2689, 0
      %v2737 = vsel %vm386, %v2690, 0
      %2739 = vmatpush.bf16.msra.mxu0 0
      %2740 = vmatpush.bf16.msra.mxu0 0
      %2741 = vmatpush.bf16.msra.mxu0 0
      %2742 = vmatpush.bf16.msra.mxu0 0
      %2743 = vmatpush.bf16.msra.mxu0 0
      %2744 = vmatpush.bf16.msra.mxu0 0
      %2745 = vmatpush.bf16.msra.mxu0 %v383
      %2746 = vmatpush.bf16.msra.mxu0 %v382
      %2747 = vmatmul.bf16.gmra.mxu0 %v2692
      %v2748 = vpop.f32.mrf.mxu0
      %v2749 = vadd.f32 %v292, %v2748
      %v2750 = vpop.f32.mrf.mxu0
      %v2751 = vadd.f32 %v292, %v2750
      %2752 = vmatmul.bf16.gmra.mxu0 %v2695
      %v2753 = vpop.f32.mrf.mxu0
      %v2754 = vadd.f32 %v292, %v2753
      %v2755 = vpop.f32.mrf.mxu0
      %v2756 = vadd.f32 %v292, %v2755
      %2757 = vmatmul.bf16.gmra.mxu0 %v2698
      %v2758 = vpop.f32.mrf.mxu0
      %v2759 = vadd.f32 %v292, %v2758
      %v2760 = vpop.f32.mrf.mxu0
      %v2761 = vadd.f32 %v292, %v2760
      %2762 = vmatmul.bf16.gmra.mxu0 %v2701
      %v2763 = vpop.f32.mrf.mxu0
      %v2764 = vadd.f32 %v292, %v2763
      %v2765 = vpop.f32.mrf.mxu0
      %v2766 = vadd.f32 %v292, %v2765
      %2767 = vmatmul.bf16.gmra.mxu0 %v2704
      %v2768 = vpop.f32.mrf.mxu0
      %v2769 = vadd.f32 %v292, %v2768
      %v2770 = vpop.f32.mrf.mxu0
      %v2771 = vadd.f32 %v292, %v2770
      %2772 = vmatmul.bf16.gmra.mxu0 %v2707
      %v2773 = vpop.f32.mrf.mxu0
      %v2774 = vadd.f32 %v292, %v2773
      %v2775 = vpop.f32.mrf.mxu0
      %v2776 = vadd.f32 %v292, %v2775
      %2777 = vmatmul.bf16.gmra.mxu0 %v2710
      %v2778 = vpop.f32.mrf.mxu0
      %v2779 = vadd.f32 %v292, %v2778
      %v2780 = vpop.f32.mrf.mxu0
      %v2781 = vadd.f32 %v292, %v2780
      %2782 = vmatmul.bf16.gmra.mxu0 %v2713
      %v2783 = vpop.f32.mrf.mxu0
      %v2784 = vadd.f32 %v292, %v2783
      %v2785 = vpop.f32.mrf.mxu0
      %v2786 = vadd.f32 %v292, %v2785
      %2787 = vmatmul.bf16.gmra.mxu0 %v2716
      %v2788 = vpop.f32.mrf.mxu0
      %v2789 = vadd.f32 %v292, %v2788
      %v2790 = vpop.f32.mrf.mxu0
      %v2791 = vadd.f32 %v292, %v2790
      %2792 = vmatmul.bf16.gmra.mxu0 %v2719
      %v2793 = vpop.f32.mrf.mxu0
      %v2794 = vadd.f32 %v292, %v2793
      %v2795 = vpop.f32.mrf.mxu0
      %v2796 = vadd.f32 %v292, %v2795
      %2797 = vmatmul.bf16.gmra.mxu0 %v2722
      %v2798 = vpop.f32.mrf.mxu0
      %v2799 = vadd.f32 %v292, %v2798
      %v2800 = vpop.f32.mrf.mxu0
      %v2801 = vadd.f32 %v292, %v2800
      %2802 = vmatmul.bf16.gmra.mxu0 %v2725
      %v2803 = vpop.f32.mrf.mxu0
      %v2804 = vadd.f32 %v292, %v2803
      %v2805 = vpop.f32.mrf.mxu0
      %v2806 = vadd.f32 %v292, %v2805
      %2807 = vmatmul.bf16.gmra.mxu0 %v2728
      %v2808 = vpop.f32.mrf.mxu0
      %v2809 = vadd.f32 %v292, %v2808
      %v2810 = vpop.f32.mrf.mxu0
      %v2811 = vadd.f32 %v292, %v2810
      %2812 = vmatmul.bf16.gmra.mxu0 %v2731
      %v2813 = vpop.f32.mrf.mxu0
      %v2814 = vadd.f32 %v292, %v2813
      %v2815 = vpop.f32.mrf.mxu0
      %v2816 = vadd.f32 %v292, %v2815
      %2817 = vmatmul.bf16.gmra.mxu0 %v2734
      %v2818 = vpop.f32.mrf.mxu0
      %v2819 = vadd.f32 %v292, %v2818
      %v2820 = vpop.f32.mrf.mxu0
      %v2821 = vadd.f32 %v292, %v2820
      %2822 = vmatmul.bf16.gmra.mxu0 %v2737
      %v2823 = vpop.f32.mrf.mxu0
      %v2824 = vadd.f32 %v292, %v2823
      %v2825 = vpop.f32.mrf.mxu0
      %v2826 = vadd.f32 %v292, %v2825
      %2827 = vdwg.mxu0
      %v2828 = vmax.f32 %v2749, 0.0
      %v2829 = vmax.f32 %v2751, 0.0
      %v2830 = vmax.f32 %v2754, 0.0
      %v2831 = vmax.f32 %v2756, 0.0
      %v2832 = vmax.f32 %v2759, 0.0
      %v2833 = vmax.f32 %v2761, 0.0
      %v2834 = vmax.f32 %v2764, 0.0
      %v2835 = vmax.f32 %v2766, 0.0
      %v2836 = vmax.f32 %v2769, 0.0
      %v2837 = vmax.f32 %v2771, 0.0
      %v2838 = vmax.f32 %v2774, 0.0
      %v2839 = vmax.f32 %v2776, 0.0
      %v2840 = vmax.f32 %v2779, 0.0
      %v2841 = vmax.f32 %v2781, 0.0
      %v2842 = vmax.f32 %v2784, 0.0
      %v2843 = vmax.f32 %v2786, 0.0
      %v2844 = vmax.f32 %v2789, 0.0
      %v2845 = vmax.f32 %v2791, 0.0
      %v2846 = vmax.f32 %v2794, 0.0
      %v2847 = vmax.f32 %v2796, 0.0
      %v2848 = vmax.f32 %v2799, 0.0
      %v2849 = vmax.f32 %v2801, 0.0
      %v2850 = vmax.f32 %v2804, 0.0
      %v2851 = vmax.f32 %v2806, 0.0
      %v2852 = vmax.f32 %v2809, 0.0
      %v2853 = vmax.f32 %v2811, 0.0
      %v2854 = vmax.f32 %v2814, 0.0
      %v2855 = vmax.f32 %v2816, 0.0
      %v2856 = vmax.f32 %v2819, 0.0
      %v2857 = vmax.f32 %v2821, 0.0
      %v2858 = vmax.f32 %v2824, 0.0
      %v2859 = vmax.f32 %v2826, 0.0
      %v2860 = vpack.c.bf16 %v2829, %v2828
      %v2861 = vpack.c.bf16 %v2831, %v2830
      %v2862 = vpack.c.bf16 %v2833, %v2832
      %v2863 = vpack.c.bf16 %v2835, %v2834
      %v2864 = vpack.c.bf16 %v2837, %v2836
      %v2865 = vpack.c.bf16 %v2839, %v2838
      %v2866 = vpack.c.bf16 %v2841, %v2840
      %v2867 = vpack.c.bf16 %v2843, %v2842
      %v2868 = vpack.c.bf16 %v2845, %v2844
      %v2869 = vpack.c.bf16 %v2847, %v2846
      %v2870 = vpack.c.bf16 %v2849, %v2848
      %v2871 = vpack.c.bf16 %v2851, %v2850
      %v2872 = vpack.c.bf16 %v2853, %v2852
      %v2873 = vpack.c.bf16 %v2855, %v2854
      %v2874 = vpack.c.bf16 %v2857, %v2856
      %v2875 = vpack.c.bf16 %v2859, %v2858
      %2876 = vst [vmem:[#allocation1] ss:$9 sm:$0xff] %v258
      %v2877 = vld [vmem:[#allocation1] sm:$0xff]
      %v2878 = vld [vmem:[#allocation1 + $0x9] sm:$0xff]
      %2881 = vmatpush.bf16.msra.mxu0 %v2867
      %2882 = vmatpush.bf16.msra.mxu0 %v2866
      %2883 = vmatpush.bf16.msra.mxu0 %v2865
      %2884 = vmatpush.bf16.msra.mxu0 %v2864
      %2885 = vmatpush.bf16.msra.mxu0 %v2863
      %2886 = vmatpush.bf16.msra.mxu0 %v2862
      %2887 = vmatpush.bf16.msra.mxu0 %v2861
      %2888 = vmatpush.bf16.msra.mxu0 %v2860
      %2889 = vmatmul.bf16.gmra.mxu0 %v2877
      %v2890 = vpop.f32.mrf.mxu0
      %v2891 = vadd.f32 0.0, %v2890
      %v2892 = vpop.f32.mrf.mxu0
      %2893 = vdwg.mxu0
      %2894 = vmatpush.bf16.msra.mxu0 %v2875
      %2895 = vmatpush.bf16.msra.mxu0 %v2874
      %2896 = vmatpush.bf16.msra.mxu0 %v2873
      %2897 = vmatpush.bf16.msra.mxu0 %v2872
      %2898 = vmatpush.bf16.msra.mxu0 %v2871
      %2899 = vmatpush.bf16.msra.mxu0 %v2870
      %2900 = vmatpush.bf16.msra.mxu0 %v2869
      %2901 = vmatpush.bf16.msra.mxu0 %v2868
      %2902 = vmatmul.bf16.gmra.mxu0 %v2878
      %v2903 = vpop.f32.mrf.mxu0
      %v2904 = vadd.f32 %v2891, %v2903
      %v2905 = vpop.f32.mrf.mxu0
      %2906 = vdwg.mxu0
      %s2907 = scalar_lea.vmem %s246, 1024
      %v2908 = vld [vmem:[%s2907] sm:$0xf]
      %v2909 = vld [vmem:[%s2907 + $0x4] sm:$0xf]
      %v2910 = vld [vmem:[%s2907 + $0x8] sm:$0xf]
      %v2911 = vld [vmem:[%s2907 + $0xc] sm:$0xf]
      %v2912 = vld [vmem:[%s2907 + $0x10] sm:$0xf]
      %v2913 = vld [vmem:[%s2907 + $0x14] sm:$0xf]
      %v2914 = vld [vmem:[%s2907 + $0x18] sm:$0xf]
      %v2915 = vld [vmem:[%s2907 + $0x1c] sm:$0xf]
      %v2916 = vld [vmem:[%s2907 + $0x20] sm:$0xf]
      %v2917 = vld [vmem:[%s2907 + $0x24] sm:$0xf]
      %v2918 = vld [vmem:[%s2907 + $0x28] sm:$0xf]
      %v2919 = vld [vmem:[%s2907 + $0x2c] sm:$0xf]
      %v2920 = vld [vmem:[%s2907 + $0x30] sm:$0xf]
      %v2921 = vld [vmem:[%s2907 + $0x34] sm:$0xf]
      %v2922 = vld [vmem:[%s2907 + $0x38] sm:$0xf]
      %v2923 = vld [vmem:[%s2907 + $0x3c] sm:$0xf]
      %v2924 = vld [vmem:[%s2907 + $0x40] sm:$0xf]
      %v2925 = vld [vmem:[%s2907 + $0x44] sm:$0xf]
      %v2926 = vld [vmem:[%s2907 + $0x48] sm:$0xf]
      %v2927 = vld [vmem:[%s2907 + $0x4c] sm:$0xf]
      %v2928 = vld [vmem:[%s2907 + $0x50] sm:$0xf]
      %v2929 = vld [vmem:[%s2907 + $0x54] sm:$0xf]
      %v2930 = vld [vmem:[%s2907 + $0x58] sm:$0xf]
      %v2931 = vld [vmem:[%s2907 + $0x5c] sm:$0xf]
      %v2932 = vld [vmem:[%s2907 + $0x60] sm:$0xf]
      %v2933 = vld [vmem:[%s2907 + $0x64] sm:$0xf]
      %v2934 = vld [vmem:[%s2907 + $0x68] sm:$0xf]
      %v2935 = vld [vmem:[%s2907 + $0x6c] sm:$0xf]
      %v2936 = vld [vmem:[%s2907 + $0x70] sm:$0xf]
      %v2937 = vld [vmem:[%s2907 + $0x74] sm:$0xf]
      %v2938 = vld [vmem:[%s2907 + $0x78] sm:$0xf]
      %v2939 = vld [vmem:[%s2907 + $0x7c] sm:$0xf]
      %v2972 = vunpack.c.l.b16 %v2908
      %v2973 = vunpack.c.l.b16 %v2909
      %v2974 = vunpack.c.l.b16 %v2910
      %v2975 = vunpack.c.l.b16 %v2911
      %v2976 = vunpack.c.l.b16 %v2912
      %v2977 = vunpack.c.l.b16 %v2913
      %v2978 = vunpack.c.l.b16 %v2914
      %v2979 = vunpack.c.l.b16 %v2915
      %v2980 = vunpack.c.l.b16 %v2916
      %v2981 = vunpack.c.l.b16 %v2917
      %v2982 = vunpack.c.l.b16 %v2918
      %v2983 = vunpack.c.l.b16 %v2919
      %v2984 = vunpack.c.l.b16 %v2920
      %v2985 = vunpack.c.l.b16 %v2921
      %v2986 = vunpack.c.l.b16 %v2922
      %v2987 = vunpack.c.l.b16 %v2923
      %v2988 = vunpack.c.l.b16 %v2924
      %v2989 = vunpack.c.l.b16 %v2925
      %v2990 = vunpack.c.l.b16 %v2926
      %v2991 = vunpack.c.l.b16 %v2927
      %v2992 = vunpack.c.l.b16 %v2928
      %v2993 = vunpack.c.l.b16 %v2929
      %v2994 = vunpack.c.l.b16 %v2930
      %v2995 = vunpack.c.l.b16 %v2931
      %v2996 = vunpack.c.l.b16 %v2932
      %v2997 = vunpack.c.l.b16 %v2933
      %v2998 = vunpack.c.l.b16 %v2934
      %v2999 = vunpack.c.l.b16 %v2935
      %v3000 = vunpack.c.l.b16 %v2936
      %v3001 = vunpack.c.l.b16 %v2937
      %v3002 = vunpack.c.l.b16 %v2938
      %v3003 = vunpack.c.l.b16 %v2939
      %v3004 = vpack.c.b16 %v2973, %v2972
      %v3005 = vpack.c.b16 %v2975, %v2974
      %v3006 = vpack.c.b16 %v2977, %v2976
      %v3007 = vpack.c.b16 %v2979, %v2978
      %v3008 = vpack.c.b16 %v2981, %v2980
      %v3009 = vpack.c.b16 %v2983, %v2982
      %v3010 = vpack.c.b16 %v2985, %v2984
      %v3011 = vpack.c.b16 %v2987, %v2986
      %v3012 = vpack.c.b16 %v2989, %v2988
      %v3013 = vpack.c.b16 %v2991, %v2990
      %v3014 = vpack.c.b16 %v2993, %v2992
      %v3015 = vpack.c.b16 %v2995, %v2994
      %v3016 = vpack.c.b16 %v2997, %v2996
      %v3017 = vpack.c.b16 %v2999, %v2998
      %v3018 = vpack.c.b16 %v3001, %v3000
      %v3019 = vpack.c.b16 %v3003, %v3002
      %v3021 = vsel %vm386, %v3004, 0
      %v3024 = vsel %vm386, %v3005, 0
      %v3027 = vsel %vm386, %v3006, 0
      %v3030 = vsel %vm386, %v3007, 0
      %v3033 = vsel %vm386, %v3008, 0
      %v3036 = vsel %vm386, %v3009, 0
      %v3039 = vsel %vm386, %v3010, 0
      %v3042 = vsel %vm386, %v3011, 0
      %v3045 = vsel %vm386, %v3012, 0
      %v3048 = vsel %vm386, %v3013, 0
      %v3051 = vsel %vm386, %v3014, 0
      %v3054 = vsel %vm386, %v3015, 0
      %v3057 = vsel %vm386, %v3016, 0
      %v3060 = vsel %vm386, %v3017, 0
      %v3063 = vsel %vm386, %v3018, 0
      %v3066 = vsel %vm386, %v3019, 0
      %3068 = vmatpush.bf16.msra.mxu0 0
      %3069 = vmatpush.bf16.msra.mxu0 0
      %3070 = vmatpush.bf16.msra.mxu0 0
      %3071 = vmatpush.bf16.msra.mxu0 0
      %3072 = vmatpush.bf16.msra.mxu0 0
      %3073 = vmatpush.bf16.msra.mxu0 0
      %3074 = vmatpush.bf16.msra.mxu0 %v383
      %3075 = vmatpush.bf16.msra.mxu0 %v382
      %3076 = vmatmul.bf16.gmra.mxu0 %v3021
      %v3077 = vpop.f32.mrf.mxu0
      %v3078 = vadd.f32 %v292, %v3077
      %v3079 = vpop.f32.mrf.mxu0
      %v3080 = vadd.f32 %v292, %v3079
      %3081 = vmatmul.bf16.gmra.mxu0 %v3024
      %v3082 = vpop.f32.mrf.mxu0
      %v3083 = vadd.f32 %v292, %v3082
      %v3084 = vpop.f32.mrf.mxu0
      %v3085 = vadd.f32 %v292, %v3084
      %3086 = vmatmul.bf16.gmra.mxu0 %v3027
      %v3087 = vpop.f32.mrf.mxu0
      %v3088 = vadd.f32 %v292, %v3087
      %v3089 = vpop.f32.mrf.mxu0
      %v3090 = vadd.f32 %v292, %v3089
      %3091 = vmatmul.bf16.gmra.mxu0 %v3030
      %v3092 = vpop.f32.mrf.mxu0
      %v3093 = vadd.f32 %v292, %v3092
      %v3094 = vpop.f32.mrf.mxu0
      %v3095 = vadd.f32 %v292, %v3094
      %3096 = vmatmul.bf16.gmra.mxu0 %v3033
      %v3097 = vpop.f32.mrf.mxu0
      %v3098 = vadd.f32 %v292, %v3097
      %v3099 = vpop.f32.mrf.mxu0
      %v3100 = vadd.f32 %v292, %v3099
      %3101 = vmatmul.bf16.gmra.mxu0 %v3036
      %v3102 = vpop.f32.mrf.mxu0
      %v3103 = vadd.f32 %v292, %v3102
      %v3104 = vpop.f32.mrf.mxu0
      %v3105 = vadd.f32 %v292, %v3104
      %3106 = vmatmul.bf16.gmra.mxu0 %v3039
      %v3107 = vpop.f32.mrf.mxu0
      %v3108 = vadd.f32 %v292, %v3107
      %v3109 = vpop.f32.mrf.mxu0
      %v3110 = vadd.f32 %v292, %v3109
      %3111 = vmatmul.bf16.gmra.mxu0 %v3042
      %v3112 = vpop.f32.mrf.mxu0
      %v3113 = vadd.f32 %v292, %v3112
      %v3114 = vpop.f32.mrf.mxu0
      %v3115 = vadd.f32 %v292, %v3114
      %3116 = vmatmul.bf16.gmra.mxu0 %v3045
      %v3117 = vpop.f32.mrf.mxu0
      %v3118 = vadd.f32 %v292, %v3117
      %v3119 = vpop.f32.mrf.mxu0
      %v3120 = vadd.f32 %v292, %v3119
      %3121 = vmatmul.bf16.gmra.mxu0 %v3048
      %v3122 = vpop.f32.mrf.mxu0
      %v3123 = vadd.f32 %v292, %v3122
      %v3124 = vpop.f32.mrf.mxu0
      %v3125 = vadd.f32 %v292, %v3124
      %3126 = vmatmul.bf16.gmra.mxu0 %v3051
      %v3127 = vpop.f32.mrf.mxu0
      %v3128 = vadd.f32 %v292, %v3127
      %v3129 = vpop.f32.mrf.mxu0
      %v3130 = vadd.f32 %v292, %v3129
      %3131 = vmatmul.bf16.gmra.mxu0 %v3054
      %v3132 = vpop.f32.mrf.mxu0
      %v3133 = vadd.f32 %v292, %v3132
      %v3134 = vpop.f32.mrf.mxu0
      %v3135 = vadd.f32 %v292, %v3134
      %3136 = vmatmul.bf16.gmra.mxu0 %v3057
      %v3137 = vpop.f32.mrf.mxu0
      %v3138 = vadd.f32 %v292, %v3137
      %v3139 = vpop.f32.mrf.mxu0
      %v3140 = vadd.f32 %v292, %v3139
      %3141 = vmatmul.bf16.gmra.mxu0 %v3060
      %v3142 = vpop.f32.mrf.mxu0
      %v3143 = vadd.f32 %v292, %v3142
      %v3144 = vpop.f32.mrf.mxu0
      %v3145 = vadd.f32 %v292, %v3144
      %3146 = vmatmul.bf16.gmra.mxu0 %v3063
      %v3147 = vpop.f32.mrf.mxu0
      %v3148 = vadd.f32 %v292, %v3147
      %v3149 = vpop.f32.mrf.mxu0
      %v3150 = vadd.f32 %v292, %v3149
      %3151 = vmatmul.bf16.gmra.mxu0 %v3066
      %v3152 = vpop.f32.mrf.mxu0
      %v3153 = vadd.f32 %v292, %v3152
      %v3154 = vpop.f32.mrf.mxu0
      %v3155 = vadd.f32 %v292, %v3154
      %3156 = vdwg.mxu0
      %v3157 = vmax.f32 %v3078, 0.0
      %v3158 = vmax.f32 %v3080, 0.0
      %v3159 = vmax.f32 %v3083, 0.0
      %v3160 = vmax.f32 %v3085, 0.0
      %v3161 = vmax.f32 %v3088, 0.0
      %v3162 = vmax.f32 %v3090, 0.0
      %v3163 = vmax.f32 %v3093, 0.0
      %v3164 = vmax.f32 %v3095, 0.0
      %v3165 = vmax.f32 %v3098, 0.0
      %v3166 = vmax.f32 %v3100, 0.0
      %v3167 = vmax.f32 %v3103, 0.0
      %v3168 = vmax.f32 %v3105, 0.0
      %v3169 = vmax.f32 %v3108, 0.0
      %v3170 = vmax.f32 %v3110, 0.0
      %v3171 = vmax.f32 %v3113, 0.0
      %v3172 = vmax.f32 %v3115, 0.0
      %v3173 = vmax.f32 %v3118, 0.0
      %v3174 = vmax.f32 %v3120, 0.0
      %v3175 = vmax.f32 %v3123, 0.0
      %v3176 = vmax.f32 %v3125, 0.0
      %v3177 = vmax.f32 %v3128, 0.0
      %v3178 = vmax.f32 %v3130, 0.0
      %v3179 = vmax.f32 %v3133, 0.0
      %v3180 = vmax.f32 %v3135, 0.0
      %v3181 = vmax.f32 %v3138, 0.0
      %v3182 = vmax.f32 %v3140, 0.0
      %v3183 = vmax.f32 %v3143, 0.0
      %v3184 = vmax.f32 %v3145, 0.0
      %v3185 = vmax.f32 %v3148, 0.0
      %v3186 = vmax.f32 %v3150, 0.0
      %v3187 = vmax.f32 %v3153, 0.0
      %v3188 = vmax.f32 %v3155, 0.0
      %v3189 = vpack.c.bf16 %v3158, %v3157
      %v3190 = vpack.c.bf16 %v3160, %v3159
      %v3191 = vpack.c.bf16 %v3162, %v3161
      %v3192 = vpack.c.bf16 %v3164, %v3163
      %v3193 = vpack.c.bf16 %v3166, %v3165
      %v3194 = vpack.c.bf16 %v3168, %v3167
      %v3195 = vpack.c.bf16 %v3170, %v3169
      %v3196 = vpack.c.bf16 %v3172, %v3171
      %v3197 = vpack.c.bf16 %v3174, %v3173
      %v3198 = vpack.c.bf16 %v3176, %v3175
      %v3199 = vpack.c.bf16 %v3178, %v3177
      %v3200 = vpack.c.bf16 %v3180, %v3179
      %v3201 = vpack.c.bf16 %v3182, %v3181
      %v3202 = vpack.c.bf16 %v3184, %v3183
      %v3203 = vpack.c.bf16 %v3186, %v3185
      %v3204 = vpack.c.bf16 %v3188, %v3187
      %3205 = vst [vmem:[#allocation1] ss:$9 sm:$0xff] %v258
      %v3206 = vld [vmem:[#allocation1] sm:$0xff]
      %v3207 = vld [vmem:[#allocation1 + $0x9] sm:$0xff]
      %3210 = vmatpush.bf16.msra.mxu0 %v3196
      %3211 = vmatpush.bf16.msra.mxu0 %v3195
      %3212 = vmatpush.bf16.msra.mxu0 %v3194
      %3213 = vmatpush.bf16.msra.mxu0 %v3193
      %3214 = vmatpush.bf16.msra.mxu0 %v3192
      %3215 = vmatpush.bf16.msra.mxu0 %v3191
      %3216 = vmatpush.bf16.msra.mxu0 %v3190
      %3217 = vmatpush.bf16.msra.mxu0 %v3189
      %3218 = vmatmul.bf16.gmra.mxu0 %v3206
      %v3219 = vpop.f32.mrf.mxu0
      %v3220 = vadd.f32 0.0, %v3219
      %v3221 = vpop.f32.mrf.mxu0
      %3222 = vdwg.mxu0
      %3223 = vmatpush.bf16.msra.mxu0 %v3204
      %3224 = vmatpush.bf16.msra.mxu0 %v3203
      %3225 = vmatpush.bf16.msra.mxu0 %v3202
      %3226 = vmatpush.bf16.msra.mxu0 %v3201
      %3227 = vmatpush.bf16.msra.mxu0 %v3200
      %3228 = vmatpush.bf16.msra.mxu0 %v3199
      %3229 = vmatpush.bf16.msra.mxu0 %v3198
      %3230 = vmatpush.bf16.msra.mxu0 %v3197
      %3231 = vmatmul.bf16.gmra.mxu0 %v3207
      %v3232 = vpop.f32.mrf.mxu0
      %v3233 = vadd.f32 %v3220, %v3232
      %v3234 = vpop.f32.mrf.mxu0
      %3235 = vdwg.mxu0
      %s3236 = scalar_lea.vmem %s246, 1152
      %v3237 = vld [vmem:[%s3236] sm:$0xf]
      %v3238 = vld [vmem:[%s3236 + $0x4] sm:$0xf]
      %v3239 = vld [vmem:[%s3236 + $0x8] sm:$0xf]
      %v3240 = vld [vmem:[%s3236 + $0xc] sm:$0xf]
      %v3241 = vld [vmem:[%s3236 + $0x10] sm:$0xf]
      %v3242 = vld [vmem:[%s3236 + $0x14] sm:$0xf]
      %v3243 = vld [vmem:[%s3236 + $0x18] sm:$0xf]
      %v3244 = vld [vmem:[%s3236 + $0x1c] sm:$0xf]
      %v3245 = vld [vmem:[%s3236 + $0x20] sm:$0xf]
      %v3246 = vld [vmem:[%s3236 + $0x24] sm:$0xf]
      %v3247 = vld [vmem:[%s3236 + $0x28] sm:$0xf]
      %v3248 = vld [vmem:[%s3236 + $0x2c] sm:$0xf]
      %v3249 = vld [vmem:[%s3236 + $0x30] sm:$0xf]
      %v3250 = vld [vmem:[%s3236 + $0x34] sm:$0xf]
      %v3251 = vld [vmem:[%s3236 + $0x38] sm:$0xf]
      %v3252 = vld [vmem:[%s3236 + $0x3c] sm:$0xf]
      %v3253 = vld [vmem:[%s3236 + $0x40] sm:$0xf]
      %v3254 = vld [vmem:[%s3236 + $0x44] sm:$0xf]
      %v3255 = vld [vmem:[%s3236 + $0x48] sm:$0xf]
      %v3256 = vld [vmem:[%s3236 + $0x4c] sm:$0xf]
      %v3257 = vld [vmem:[%s3236 + $0x50] sm:$0xf]
      %v3258 = vld [vmem:[%s3236 + $0x54] sm:$0xf]
      %v3259 = vld [vmem:[%s3236 + $0x58] sm:$0xf]
      %v3260 = vld [vmem:[%s3236 + $0x5c] sm:$0xf]
      %v3261 = vld [vmem:[%s3236 + $0x60] sm:$0xf]
      %v3262 = vld [vmem:[%s3236 + $0x64] sm:$0xf]
      %v3263 = vld [vmem:[%s3236 + $0x68] sm:$0xf]
      %v3264 = vld [vmem:[%s3236 + $0x6c] sm:$0xf]
      %v3265 = vld [vmem:[%s3236 + $0x70] sm:$0xf]
      %v3266 = vld [vmem:[%s3236 + $0x74] sm:$0xf]
      %v3267 = vld [vmem:[%s3236 + $0x78] sm:$0xf]
      %v3268 = vld [vmem:[%s3236 + $0x7c] sm:$0xf]
      %v3301 = vunpack.c.l.b16 %v3237
      %v3302 = vunpack.c.l.b16 %v3238
      %v3303 = vunpack.c.l.b16 %v3239
      %v3304 = vunpack.c.l.b16 %v3240
      %v3305 = vunpack.c.l.b16 %v3241
      %v3306 = vunpack.c.l.b16 %v3242
      %v3307 = vunpack.c.l.b16 %v3243
      %v3308 = vunpack.c.l.b16 %v3244
      %v3309 = vunpack.c.l.b16 %v3245
      %v3310 = vunpack.c.l.b16 %v3246
      %v3311 = vunpack.c.l.b16 %v3247
      %v3312 = vunpack.c.l.b16 %v3248
      %v3313 = vunpack.c.l.b16 %v3249
      %v3314 = vunpack.c.l.b16 %v3250
      %v3315 = vunpack.c.l.b16 %v3251
      %v3316 = vunpack.c.l.b16 %v3252
      %v3317 = vunpack.c.l.b16 %v3253
      %v3318 = vunpack.c.l.b16 %v3254
      %v3319 = vunpack.c.l.b16 %v3255
      %v3320 = vunpack.c.l.b16 %v3256
      %v3321 = vunpack.c.l.b16 %v3257
      %v3322 = vunpack.c.l.b16 %v3258
      %v3323 = vunpack.c.l.b16 %v3259
      %v3324 = vunpack.c.l.b16 %v3260
      %v3325 = vunpack.c.l.b16 %v3261
      %v3326 = vunpack.c.l.b16 %v3262
      %v3327 = vunpack.c.l.b16 %v3263
      %v3328 = vunpack.c.l.b16 %v3264
      %v3329 = vunpack.c.l.b16 %v3265
      %v3330 = vunpack.c.l.b16 %v3266
      %v3331 = vunpack.c.l.b16 %v3267
      %v3332 = vunpack.c.l.b16 %v3268
      %v3333 = vpack.c.b16 %v3302, %v3301
      %v3334 = vpack.c.b16 %v3304, %v3303
      %v3335 = vpack.c.b16 %v3306, %v3305
      %v3336 = vpack.c.b16 %v3308, %v3307
      %v3337 = vpack.c.b16 %v3310, %v3309
      %v3338 = vpack.c.b16 %v3312, %v3311
      %v3339 = vpack.c.b16 %v3314, %v3313
      %v3340 = vpack.c.b16 %v3316, %v3315
      %v3341 = vpack.c.b16 %v3318, %v3317
      %v3342 = vpack.c.b16 %v3320, %v3319
      %v3343 = vpack.c.b16 %v3322, %v3321
      %v3344 = vpack.c.b16 %v3324, %v3323
      %v3345 = vpack.c.b16 %v3326, %v3325
      %v3346 = vpack.c.b16 %v3328, %v3327
      %v3347 = vpack.c.b16 %v3330, %v3329
      %v3348 = vpack.c.b16 %v3332, %v3331
      %v3350 = vsel %vm386, %v3333, 0
      %v3353 = vsel %vm386, %v3334, 0
      %v3356 = vsel %vm386, %v3335, 0
      %v3359 = vsel %vm386, %v3336, 0
      %v3362 = vsel %vm386, %v3337, 0
      %v3365 = vsel %vm386, %v3338, 0
      %v3368 = vsel %vm386, %v3339, 0
      %v3371 = vsel %vm386, %v3340, 0
      %v3374 = vsel %vm386, %v3341, 0
      %v3377 = vsel %vm386, %v3342, 0
      %v3380 = vsel %vm386, %v3343, 0
      %v3383 = vsel %vm386, %v3344, 0
      %v3386 = vsel %vm386, %v3345, 0
      %v3389 = vsel %vm386, %v3346, 0
      %v3392 = vsel %vm386, %v3347, 0
      %v3395 = vsel %vm386, %v3348, 0
      %3397 = vmatpush.bf16.msra.mxu0 0
      %3398 = vmatpush.bf16.msra.mxu0 0
      %3399 = vmatpush.bf16.msra.mxu0 0
      %3400 = vmatpush.bf16.msra.mxu0 0
      %3401 = vmatpush.bf16.msra.mxu0 0
      %3402 = vmatpush.bf16.msra.mxu0 0
      %3403 = vmatpush.bf16.msra.mxu0 %v383
      %3404 = vmatpush.bf16.msra.mxu0 %v382
      %3405 = vmatmul.bf16.gmra.mxu0 %v3350
      %v3406 = vpop.f32.mrf.mxu0
      %v3407 = vadd.f32 %v292, %v3406
      %v3408 = vpop.f32.mrf.mxu0
      %v3409 = vadd.f32 %v292, %v3408
      %3410 = vmatmul.bf16.gmra.mxu0 %v3353
      %v3411 = vpop.f32.mrf.mxu0
      %v3412 = vadd.f32 %v292, %v3411
      %v3413 = vpop.f32.mrf.mxu0
      %v3414 = vadd.f32 %v292, %v3413
      %3415 = vmatmul.bf16.gmra.mxu0 %v3356
      %v3416 = vpop.f32.mrf.mxu0
      %v3417 = vadd.f32 %v292, %v3416
      %v3418 = vpop.f32.mrf.mxu0
      %v3419 = vadd.f32 %v292, %v3418
      %3420 = vmatmul.bf16.gmra.mxu0 %v3359
      %v3421 = vpop.f32.mrf.mxu0
      %v3422 = vadd.f32 %v292, %v3421
      %v3423 = vpop.f32.mrf.mxu0
      %v3424 = vadd.f32 %v292, %v3423
      %3425 = vmatmul.bf16.gmra.mxu0 %v3362
      %v3426 = vpop.f32.mrf.mxu0
      %v3427 = vadd.f32 %v292, %v3426
      %v3428 = vpop.f32.mrf.mxu0
      %v3429 = vadd.f32 %v292, %v3428
      %3430 = vmatmul.bf16.gmra.mxu0 %v3365
      %v3431 = vpop.f32.mrf.mxu0
      %v3432 = vadd.f32 %v292, %v3431
      %v3433 = vpop.f32.mrf.mxu0
      %v3434 = vadd.f32 %v292, %v3433
      %3435 = vmatmul.bf16.gmra.mxu0 %v3368
      %v3436 = vpop.f32.mrf.mxu0
      %v3437 = vadd.f32 %v292, %v3436
      %v3438 = vpop.f32.mrf.mxu0
      %v3439 = vadd.f32 %v292, %v3438
      %3440 = vmatmul.bf16.gmra.mxu0 %v3371
      %v3441 = vpop.f32.mrf.mxu0
      %v3442 = vadd.f32 %v292, %v3441
      %v3443 = vpop.f32.mrf.mxu0
      %v3444 = vadd.f32 %v292, %v3443
      %3445 = vmatmul.bf16.gmra.mxu0 %v3374
      %v3446 = vpop.f32.mrf.mxu0
      %v3447 = vadd.f32 %v292, %v3446
      %v3448 = vpop.f32.mrf.mxu0
      %v3449 = vadd.f32 %v292, %v3448
      %3450 = vmatmul.bf16.gmra.mxu0 %v3377
      %v3451 = vpop.f32.mrf.mxu0
      %v3452 = vadd.f32 %v292, %v3451
      %v3453 = vpop.f32.mrf.mxu0
      %v3454 = vadd.f32 %v292, %v3453
      %3455 = vmatmul.bf16.gmra.mxu0 %v3380
      %v3456 = vpop.f32.mrf.mxu0
      %v3457 = vadd.f32 %v292, %v3456
      %v3458 = vpop.f32.mrf.mxu0
      %v3459 = vadd.f32 %v292, %v3458
      %3460 = vmatmul.bf16.gmra.mxu0 %v3383
      %v3461 = vpop.f32.mrf.mxu0
      %v3462 = vadd.f32 %v292, %v3461
      %v3463 = vpop.f32.mrf.mxu0
      %v3464 = vadd.f32 %v292, %v3463
      %3465 = vmatmul.bf16.gmra.mxu0 %v3386
      %v3466 = vpop.f32.mrf.mxu0
      %v3467 = vadd.f32 %v292, %v3466
      %v3468 = vpop.f32.mrf.mxu0
      %v3469 = vadd.f32 %v292, %v3468
      %3470 = vmatmul.bf16.gmra.mxu0 %v3389
      %v3471 = vpop.f32.mrf.mxu0
      %v3472 = vadd.f32 %v292, %v3471
      %v3473 = vpop.f32.mrf.mxu0
      %v3474 = vadd.f32 %v292, %v3473
      %3475 = vmatmul.bf16.gmra.mxu0 %v3392
      %v3476 = vpop.f32.mrf.mxu0
      %v3477 = vadd.f32 %v292, %v3476
      %v3478 = vpop.f32.mrf.mxu0
      %v3479 = vadd.f32 %v292, %v3478
      %3480 = vmatmul.bf16.gmra.mxu0 %v3395
      %v3481 = vpop.f32.mrf.mxu0
      %v3482 = vadd.f32 %v292, %v3481
      %v3483 = vpop.f32.mrf.mxu0
      %v3484 = vadd.f32 %v292, %v3483
      %3485 = vdwg.mxu0
      %v3486 = vmax.f32 %v3407, 0.0
      %v3487 = vmax.f32 %v3409, 0.0
      %v3488 = vmax.f32 %v3412, 0.0
      %v3489 = vmax.f32 %v3414, 0.0
      %v3490 = vmax.f32 %v3417, 0.0
      %v3491 = vmax.f32 %v3419, 0.0
      %v3492 = vmax.f32 %v3422, 0.0
      %v3493 = vmax.f32 %v3424, 0.0
      %v3494 = vmax.f32 %v3427, 0.0
      %v3495 = vmax.f32 %v3429, 0.0
      %v3496 = vmax.f32 %v3432, 0.0
      %v3497 = vmax.f32 %v3434, 0.0
      %v3498 = vmax.f32 %v3437, 0.0
      %v3499 = vmax.f32 %v3439, 0.0
      %v3500 = vmax.f32 %v3442, 0.0
      %v3501 = vmax.f32 %v3444, 0.0
      %v3502 = vmax.f32 %v3447, 0.0
      %v3503 = vmax.f32 %v3449, 0.0
      %v3504 = vmax.f32 %v3452, 0.0
      %v3505 = vmax.f32 %v3454, 0.0
      %v3506 = vmax.f32 %v3457, 0.0
      %v3507 = vmax.f32 %v3459, 0.0
      %v3508 = vmax.f32 %v3462, 0.0
      %v3509 = vmax.f32 %v3464, 0.0
      %v3510 = vmax.f32 %v3467, 0.0
      %v3511 = vmax.f32 %v3469, 0.0
      %v3512 = vmax.f32 %v3472, 0.0
      %v3513 = vmax.f32 %v3474, 0.0
      %v3514 = vmax.f32 %v3477, 0.0
      %v3515 = vmax.f32 %v3479, 0.0
      %v3516 = vmax.f32 %v3482, 0.0
      %v3517 = vmax.f32 %v3484, 0.0
      %v3518 = vpack.c.bf16 %v3487, %v3486
      %v3519 = vpack.c.bf16 %v3489, %v3488
      %v3520 = vpack.c.bf16 %v3491, %v3490
      %v3521 = vpack.c.bf16 %v3493, %v3492
      %v3522 = vpack.c.bf16 %v3495, %v3494
      %v3523 = vpack.c.bf16 %v3497, %v3496
      %v3524 = vpack.c.bf16 %v3499, %v3498
      %v3525 = vpack.c.bf16 %v3501, %v3500
      %v3526 = vpack.c.bf16 %v3503, %v3502
      %v3527 = vpack.c.bf16 %v3505, %v3504
      %v3528 = vpack.c.bf16 %v3507, %v3506
      %v3529 = vpack.c.bf16 %v3509, %v3508
      %v3530 = vpack.c.bf16 %v3511, %v3510
      %v3531 = vpack.c.bf16 %v3513, %v3512
      %v3532 = vpack.c.bf16 %v3515, %v3514
      %v3533 = vpack.c.bf16 %v3517, %v3516
      %3534 = vst [vmem:[#allocation1] ss:$9 sm:$0xff] %v258
      %v3535 = vld [vmem:[#allocation1] sm:$0xff]
      %v3536 = vld [vmem:[#allocation1 + $0x9] sm:$0xff]
      %3539 = vmatpush.bf16.msra.mxu0 %v3525
      %3540 = vmatpush.bf16.msra.mxu0 %v3524
      %3541 = vmatpush.bf16.msra.mxu0 %v3523
      %3542 = vmatpush.bf16.msra.mxu0 %v3522
      %3543 = vmatpush.bf16.msra.mxu0 %v3521
      %3544 = vmatpush.bf16.msra.mxu0 %v3520
      %3545 = vmatpush.bf16.msra.mxu0 %v3519
      %3546 = vmatpush.bf16.msra.mxu0 %v3518
      %3547 = vmatmul.bf16.gmra.mxu0 %v3535
      %v3548 = vpop.f32.mrf.mxu0
      %v3549 = vadd.f32 0.0, %v3548
      %v3550 = vpop.f32.mrf.mxu0
      %3551 = vdwg.mxu0
      %3552 = vmatpush.bf16.msra.mxu0 %v3533
      %3553 = vmatpush.bf16.msra.mxu0 %v3532
      %3554 = vmatpush.bf16.msra.mxu0 %v3531
      %3555 = vmatpush.bf16.msra.mxu0 %v3530
      %3556 = vmatpush.bf16.msra.mxu0 %v3529
      %3557 = vmatpush.bf16.msra.mxu0 %v3528
      %3558 = vmatpush.bf16.msra.mxu0 %v3527
      %3559 = vmatpush.bf16.msra.mxu0 %v3526
      %3560 = vmatmul.bf16.gmra.mxu0 %v3536
      %v3561 = vpop.f32.mrf.mxu0
      %v3562 = vadd.f32 %v3549, %v3561
      %v3563 = vpop.f32.mrf.mxu0
      %3564 = vdwg.mxu0
      %s3565 = scalar_lea.vmem %s246, 1280
      %v3566 = vld [vmem:[%s3565] sm:$0xf]
      %v3567 = vld [vmem:[%s3565 + $0x4] sm:$0xf]
      %v3568 = vld [vmem:[%s3565 + $0x8] sm:$0xf]
      %v3569 = vld [vmem:[%s3565 + $0xc] sm:$0xf]
      %v3570 = vld [vmem:[%s3565 + $0x10] sm:$0xf]
      %v3571 = vld [vmem:[%s3565 + $0x14] sm:$0xf]
      %v3572 = vld [vmem:[%s3565 + $0x18] sm:$0xf]
      %v3573 = vld [vmem:[%s3565 + $0x1c] sm:$0xf]
      %v3574 = vld [vmem:[%s3565 + $0x20] sm:$0xf]
      %v3575 = vld [vmem:[%s3565 + $0x24] sm:$0xf]
      %v3576 = vld [vmem:[%s3565 + $0x28] sm:$0xf]
      %v3577 = vld [vmem:[%s3565 + $0x2c] sm:$0xf]
      %v3578 = vld [vmem:[%s3565 + $0x30] sm:$0xf]
      %v3579 = vld [vmem:[%s3565 + $0x34] sm:$0xf]
      %v3580 = vld [vmem:[%s3565 + $0x38] sm:$0xf]
      %v3581 = vld [vmem:[%s3565 + $0x3c] sm:$0xf]
      %v3582 = vld [vmem:[%s3565 + $0x40] sm:$0xf]
      %v3583 = vld [vmem:[%s3565 + $0x44] sm:$0xf]
      %v3584 = vld [vmem:[%s3565 + $0x48] sm:$0xf]
      %v3585 = vld [vmem:[%s3565 + $0x4c] sm:$0xf]
      %v3586 = vld [vmem:[%s3565 + $0x50] sm:$0xf]
      %v3587 = vld [vmem:[%s3565 + $0x54] sm:$0xf]
      %v3588 = vld [vmem:[%s3565 + $0x58] sm:$0xf]
      %v3589 = vld [vmem:[%s3565 + $0x5c] sm:$0xf]
      %v3590 = vld [vmem:[%s3565 + $0x60] sm:$0xf]
      %v3591 = vld [vmem:[%s3565 + $0x64] sm:$0xf]
      %v3592 = vld [vmem:[%s3565 + $0x68] sm:$0xf]
      %v3593 = vld [vmem:[%s3565 + $0x6c] sm:$0xf]
      %v3594 = vld [vmem:[%s3565 + $0x70] sm:$0xf]
      %v3595 = vld [vmem:[%s3565 + $0x74] sm:$0xf]
      %v3596 = vld [vmem:[%s3565 + $0x78] sm:$0xf]
      %v3597 = vld [vmem:[%s3565 + $0x7c] sm:$0xf]
      %v3630 = vunpack.c.l.b16 %v3566
      %v3631 = vunpack.c.l.b16 %v3567
      %v3632 = vunpack.c.l.b16 %v3568
      %v3633 = vunpack.c.l.b16 %v3569
      %v3634 = vunpack.c.l.b16 %v3570
      %v3635 = vunpack.c.l.b16 %v3571
      %v3636 = vunpack.c.l.b16 %v3572
      %v3637 = vunpack.c.l.b16 %v3573
      %v3638 = vunpack.c.l.b16 %v3574
      %v3639 = vunpack.c.l.b16 %v3575
      %v3640 = vunpack.c.l.b16 %v3576
      %v3641 = vunpack.c.l.b16 %v3577
      %v3642 = vunpack.c.l.b16 %v3578
      %v3643 = vunpack.c.l.b16 %v3579
      %v3644 = vunpack.c.l.b16 %v3580
      %v3645 = vunpack.c.l.b16 %v3581
      %v3646 = vunpack.c.l.b16 %v3582
      %v3647 = vunpack.c.l.b16 %v3583
      %v3648 = vunpack.c.l.b16 %v3584
      %v3649 = vunpack.c.l.b16 %v3585
      %v3650 = vunpack.c.l.b16 %v3586
      %v3651 = vunpack.c.l.b16 %v3587
      %v3652 = vunpack.c.l.b16 %v3588
      %v3653 = vunpack.c.l.b16 %v3589
      %v3654 = vunpack.c.l.b16 %v3590
      %v3655 = vunpack.c.l.b16 %v3591
      %v3656 = vunpack.c.l.b16 %v3592
      %v3657 = vunpack.c.l.b16 %v3593
      %v3658 = vunpack.c.l.b16 %v3594
      %v3659 = vunpack.c.l.b16 %v3595
      %v3660 = vunpack.c.l.b16 %v3596
      %v3661 = vunpack.c.l.b16 %v3597
      %v3662 = vpack.c.b16 %v3631, %v3630
      %v3663 = vpack.c.b16 %v3633, %v3632
      %v3664 = vpack.c.b16 %v3635, %v3634
      %v3665 = vpack.c.b16 %v3637, %v3636
      %v3666 = vpack.c.b16 %v3639, %v3638
      %v3667 = vpack.c.b16 %v3641, %v3640
      %v3668 = vpack.c.b16 %v3643, %v3642
      %v3669 = vpack.c.b16 %v3645, %v3644
      %v3670 = vpack.c.b16 %v3647, %v3646
      %v3671 = vpack.c.b16 %v3649, %v3648
      %v3672 = vpack.c.b16 %v3651, %v3650
      %v3673 = vpack.c.b16 %v3653, %v3652
      %v3674 = vpack.c.b16 %v3655, %v3654
      %v3675 = vpack.c.b16 %v3657, %v3656
      %v3676 = vpack.c.b16 %v3659, %v3658
      %v3677 = vpack.c.b16 %v3661, %v3660
      %v3679 = vsel %vm386, %v3662, 0
      %v3682 = vsel %vm386, %v3663, 0
      %v3685 = vsel %vm386, %v3664, 0
      %v3688 = vsel %vm386, %v3665, 0
      %v3691 = vsel %vm386, %v3666, 0
      %v3694 = vsel %vm386, %v3667, 0
      %v3697 = vsel %vm386, %v3668, 0
      %v3700 = vsel %vm386, %v3669, 0
      %v3703 = vsel %vm386, %v3670, 0
      %v3706 = vsel %vm386, %v3671, 0
      %v3709 = vsel %vm386, %v3672, 0
      %v3712 = vsel %vm386, %v3673, 0
      %v3715 = vsel %vm386, %v3674, 0
      %v3718 = vsel %vm386, %v3675, 0
      %v3721 = vsel %vm386, %v3676, 0
      %v3724 = vsel %vm386, %v3677, 0
      %3726 = vmatpush.bf16.msra.mxu0 0
      %3727 = vmatpush.bf16.msra.mxu0 0
      %3728 = vmatpush.bf16.msra.mxu0 0
      %3729 = vmatpush.bf16.msra.mxu0 0
      %3730 = vmatpush.bf16.msra.mxu0 0
      %3731 = vmatpush.bf16.msra.mxu0 0
      %3732 = vmatpush.bf16.msra.mxu0 %v383
      %3733 = vmatpush.bf16.msra.mxu0 %v382
      %3734 = vmatmul.bf16.gmra.mxu0 %v3679
      %v3735 = vpop.f32.mrf.mxu0
      %v3736 = vadd.f32 %v292, %v3735
      %v3737 = vpop.f32.mrf.mxu0
      %v3738 = vadd.f32 %v292, %v3737
      %3739 = vmatmul.bf16.gmra.mxu0 %v3682
      %v3740 = vpop.f32.mrf.mxu0
      %v3741 = vadd.f32 %v292, %v3740
      %v3742 = vpop.f32.mrf.mxu0
      %v3743 = vadd.f32 %v292, %v3742
      %3744 = vmatmul.bf16.gmra.mxu0 %v3685
      %v3745 = vpop.f32.mrf.mxu0
      %v3746 = vadd.f32 %v292, %v3745
      %v3747 = vpop.f32.mrf.mxu0
      %v3748 = vadd.f32 %v292, %v3747
      %3749 = vmatmul.bf16.gmra.mxu0 %v3688
      %v3750 = vpop.f32.mrf.mxu0
      %v3751 = vadd.f32 %v292, %v3750
      %v3752 = vpop.f32.mrf.mxu0
      %v3753 = vadd.f32 %v292, %v3752
      %3754 = vmatmul.bf16.gmra.mxu0 %v3691
      %v3755 = vpop.f32.mrf.mxu0
      %v3756 = vadd.f32 %v292, %v3755
      %v3757 = vpop.f32.mrf.mxu0
      %v3758 = vadd.f32 %v292, %v3757
      %3759 = vmatmul.bf16.gmra.mxu0 %v3694
      %v3760 = vpop.f32.mrf.mxu0
      %v3761 = vadd.f32 %v292, %v3760
      %v3762 = vpop.f32.mrf.mxu0
      %v3763 = vadd.f32 %v292, %v3762
      %3764 = vmatmul.bf16.gmra.mxu0 %v3697
      %v3765 = vpop.f32.mrf.mxu0
      %v3766 = vadd.f32 %v292, %v3765
      %v3767 = vpop.f32.mrf.mxu0
      %v3768 = vadd.f32 %v292, %v3767
      %3769 = vmatmul.bf16.gmra.mxu0 %v3700
      %v3770 = vpop.f32.mrf.mxu0
      %v3771 = vadd.f32 %v292, %v3770
      %v3772 = vpop.f32.mrf.mxu0
      %v3773 = vadd.f32 %v292, %v3772
      %3774 = vmatmul.bf16.gmra.mxu0 %v3703
      %v3775 = vpop.f32.mrf.mxu0
      %v3776 = vadd.f32 %v292, %v3775
      %v3777 = vpop.f32.mrf.mxu0
      %v3778 = vadd.f32 %v292, %v3777
      %3779 = vmatmul.bf16.gmra.mxu0 %v3706
      %v3780 = vpop.f32.mrf.mxu0
      %v3781 = vadd.f32 %v292, %v3780
      %v3782 = vpop.f32.mrf.mxu0
      %v3783 = vadd.f32 %v292, %v3782
      %3784 = vmatmul.bf16.gmra.mxu0 %v3709
      %v3785 = vpop.f32.mrf.mxu0
      %v3786 = vadd.f32 %v292, %v3785
      %v3787 = vpop.f32.mrf.mxu0
      %v3788 = vadd.f32 %v292, %v3787
      %3789 = vmatmul.bf16.gmra.mxu0 %v3712
      %v3790 = vpop.f32.mrf.mxu0
      %v3791 = vadd.f32 %v292, %v3790
      %v3792 = vpop.f32.mrf.mxu0
      %v3793 = vadd.f32 %v292, %v3792
      %3794 = vmatmul.bf16.gmra.mxu0 %v3715
      %v3795 = vpop.f32.mrf.mxu0
      %v3796 = vadd.f32 %v292, %v3795
      %v3797 = vpop.f32.mrf.mxu0
      %v3798 = vadd.f32 %v292, %v3797
      %3799 = vmatmul.bf16.gmra.mxu0 %v3718
      %v3800 = vpop.f32.mrf.mxu0
      %v3801 = vadd.f32 %v292, %v3800
      %v3802 = vpop.f32.mrf.mxu0
      %v3803 = vadd.f32 %v292, %v3802
      %3804 = vmatmul.bf16.gmra.mxu0 %v3721
      %v3805 = vpop.f32.mrf.mxu0
      %v3806 = vadd.f32 %v292, %v3805
      %v3807 = vpop.f32.mrf.mxu0
      %v3808 = vadd.f32 %v292, %v3807
      %3809 = vmatmul.bf16.gmra.mxu0 %v3724
      %v3810 = vpop.f32.mrf.mxu0
      %v3811 = vadd.f32 %v292, %v3810
      %v3812 = vpop.f32.mrf.mxu0
      %v3813 = vadd.f32 %v292, %v3812
      %3814 = vdwg.mxu0
      %v3815 = vmax.f32 %v3736, 0.0
      %v3816 = vmax.f32 %v3738, 0.0
      %v3817 = vmax.f32 %v3741, 0.0
      %v3818 = vmax.f32 %v3743, 0.0
      %v3819 = vmax.f32 %v3746, 0.0
      %v3820 = vmax.f32 %v3748, 0.0
      %v3821 = vmax.f32 %v3751, 0.0
      %v3822 = vmax.f32 %v3753, 0.0
      %v3823 = vmax.f32 %v3756, 0.0
      %v3824 = vmax.f32 %v3758, 0.0
      %v3825 = vmax.f32 %v3761, 0.0
      %v3826 = vmax.f32 %v3763, 0.0
      %v3827 = vmax.f32 %v3766, 0.0
      %v3828 = vmax.f32 %v3768, 0.0
      %v3829 = vmax.f32 %v3771, 0.0
      %v3830 = vmax.f32 %v3773, 0.0
      %v3831 = vmax.f32 %v3776, 0.0
      %v3832 = vmax.f32 %v3778, 0.0
      %v3833 = vmax.f32 %v3781, 0.0
      %v3834 = vmax.f32 %v3783, 0.0
      %v3835 = vmax.f32 %v3786, 0.0
      %v3836 = vmax.f32 %v3788, 0.0
      %v3837 = vmax.f32 %v3791, 0.0
      %v3838 = vmax.f32 %v3793, 0.0
      %v3839 = vmax.f32 %v3796, 0.0
      %v3840 = vmax.f32 %v3798, 0.0
      %v3841 = vmax.f32 %v3801, 0.0
      %v3842 = vmax.f32 %v3803, 0.0
      %v3843 = vmax.f32 %v3806, 0.0
      %v3844 = vmax.f32 %v3808, 0.0
      %v3845 = vmax.f32 %v3811, 0.0
      %v3846 = vmax.f32 %v3813, 0.0
      %v3847 = vpack.c.bf16 %v3816, %v3815
      %v3848 = vpack.c.bf16 %v3818, %v3817
      %v3849 = vpack.c.bf16 %v3820, %v3819
      %v3850 = vpack.c.bf16 %v3822, %v3821
      %v3851 = vpack.c.bf16 %v3824, %v3823
      %v3852 = vpack.c.bf16 %v3826, %v3825
      %v3853 = vpack.c.bf16 %v3828, %v3827
      %v3854 = vpack.c.bf16 %v3830, %v3829
      %v3855 = vpack.c.bf16 %v3832, %v3831
      %v3856 = vpack.c.bf16 %v3834, %v3833
      %v3857 = vpack.c.bf16 %v3836, %v3835
      %v3858 = vpack.c.bf16 %v3838, %v3837
      %v3859 = vpack.c.bf16 %v3840, %v3839
      %v3860 = vpack.c.bf16 %v3842, %v3841
      %v3861 = vpack.c.bf16 %v3844, %v3843
      %v3862 = vpack.c.bf16 %v3846, %v3845
      %3863 = vst [vmem:[#allocation1] ss:$9 sm:$0xff] %v258
      %v3864 = vld [vmem:[#allocation1] sm:$0xff]
      %v3865 = vld [vmem:[#allocation1 + $0x9] sm:$0xff]
      %3868 = vmatpush.bf16.msra.mxu0 %v3854
      %3869 = vmatpush.bf16.msra.mxu0 %v3853
      %3870 = vmatpush.bf16.msra.mxu0 %v3852
      %3871 = vmatpush.bf16.msra.mxu0 %v3851
      %3872 = vmatpush.bf16.msra.mxu0 %v3850
      %3873 = vmatpush.bf16.msra.mxu0 %v3849
      %3874 = vmatpush.bf16.msra.mxu0 %v3848
      %3875 = vmatpush.bf16.msra.mxu0 %v3847
      %3876 = vmatmul.bf16.gmra.mxu0 %v3864
      %v3877 = vpop.f32.mrf.mxu0
      %v3878 = vadd.f32 0.0, %v3877
      %v3879 = vpop.f32.mrf.mxu0
      %3880 = vdwg.mxu0
      %3881 = vmatpush.bf16.msra.mxu0 %v3862
      %3882 = vmatpush.bf16.msra.mxu0 %v3861
      %3883 = vmatpush.bf16.msra.mxu0 %v3860
      %3884 = vmatpush.bf16.msra.mxu0 %v3859
      %3885 = vmatpush.bf16.msra.mxu0 %v3858
      %3886 = vmatpush.bf16.msra.mxu0 %v3857
      %3887 = vmatpush.bf16.msra.mxu0 %v3856
      %3888 = vmatpush.bf16.msra.mxu0 %v3855
      %3889 = vmatmul.bf16.gmra.mxu0 %v3865
      %v3890 = vpop.f32.mrf.mxu0
      %v3891 = vadd.f32 %v3878, %v3890
      %v3892 = vpop.f32.mrf.mxu0
      %3893 = vdwg.mxu0
      %s3894 = scalar_lea.vmem %s246, 1408
      %v3895 = vld [vmem:[%s3894] sm:$0xf]
      %v3896 = vld [vmem:[%s3894 + $0x4] sm:$0xf]
      %v3897 = vld [vmem:[%s3894 + $0x8] sm:$0xf]
      %v3898 = vld [vmem:[%s3894 + $0xc] sm:$0xf]
      %v3899 = vld [vmem:[%s3894 + $0x10] sm:$0xf]
      %v3900 = vld [vmem:[%s3894 + $0x14] sm:$0xf]
      %v3901 = vld [vmem:[%s3894 + $0x18] sm:$0xf]
      %v3902 = vld [vmem:[%s3894 + $0x1c] sm:$0xf]
      %v3903 = vld [vmem:[%s3894 + $0x20] sm:$0xf]
      %v3904 = vld [vmem:[%s3894 + $0x24] sm:$0xf]
      %v3905 = vld [vmem:[%s3894 + $0x28] sm:$0xf]
      %v3906 = vld [vmem:[%s3894 + $0x2c] sm:$0xf]
      %v3907 = vld [vmem:[%s3894 + $0x30] sm:$0xf]
      %v3908 = vld [vmem:[%s3894 + $0x34] sm:$0xf]
      %v3909 = vld [vmem:[%s3894 + $0x38] sm:$0xf]
      %v3910 = vld [vmem:[%s3894 + $0x3c] sm:$0xf]
      %v3911 = vld [vmem:[%s3894 + $0x40] sm:$0xf]
      %v3912 = vld [vmem:[%s3894 + $0x44] sm:$0xf]
      %v3913 = vld [vmem:[%s3894 + $0x48] sm:$0xf]
      %v3914 = vld [vmem:[%s3894 + $0x4c] sm:$0xf]
      %v3915 = vld [vmem:[%s3894 + $0x50] sm:$0xf]
      %v3916 = vld [vmem:[%s3894 + $0x54] sm:$0xf]
      %v3917 = vld [vmem:[%s3894 + $0x58] sm:$0xf]
      %v3918 = vld [vmem:[%s3894 + $0x5c] sm:$0xf]
      %v3919 = vld [vmem:[%s3894 + $0x60] sm:$0xf]
      %v3920 = vld [vmem:[%s3894 + $0x64] sm:$0xf]
      %v3921 = vld [vmem:[%s3894 + $0x68] sm:$0xf]
      %v3922 = vld [vmem:[%s3894 + $0x6c] sm:$0xf]
      %v3923 = vld [vmem:[%s3894 + $0x70] sm:$0xf]
      %v3924 = vld [vmem:[%s3894 + $0x74] sm:$0xf]
      %v3925 = vld [vmem:[%s3894 + $0x78] sm:$0xf]
      %v3926 = vld [vmem:[%s3894 + $0x7c] sm:$0xf]
      %v3959 = vunpack.c.l.b16 %v3895
      %v3960 = vunpack.c.l.b16 %v3896
      %v3961 = vunpack.c.l.b16 %v3897
      %v3962 = vunpack.c.l.b16 %v3898
      %v3963 = vunpack.c.l.b16 %v3899
      %v3964 = vunpack.c.l.b16 %v3900
      %v3965 = vunpack.c.l.b16 %v3901
      %v3966 = vunpack.c.l.b16 %v3902
      %v3967 = vunpack.c.l.b16 %v3903
      %v3968 = vunpack.c.l.b16 %v3904
      %v3969 = vunpack.c.l.b16 %v3905
      %v3970 = vunpack.c.l.b16 %v3906
      %v3971 = vunpack.c.l.b16 %v3907
      %v3972 = vunpack.c.l.b16 %v3908
      %v3973 = vunpack.c.l.b16 %v3909
      %v3974 = vunpack.c.l.b16 %v3910
      %v3975 = vunpack.c.l.b16 %v3911
      %v3976 = vunpack.c.l.b16 %v3912
      %v3977 = vunpack.c.l.b16 %v3913
      %v3978 = vunpack.c.l.b16 %v3914
      %v3979 = vunpack.c.l.b16 %v3915
      %v3980 = vunpack.c.l.b16 %v3916
      %v3981 = vunpack.c.l.b16 %v3917
      %v3982 = vunpack.c.l.b16 %v3918
      %v3983 = vunpack.c.l.b16 %v3919
      %v3984 = vunpack.c.l.b16 %v3920
      %v3985 = vunpack.c.l.b16 %v3921
      %v3986 = vunpack.c.l.b16 %v3922
      %v3987 = vunpack.c.l.b16 %v3923
      %v3988 = vunpack.c.l.b16 %v3924
      %v3989 = vunpack.c.l.b16 %v3925
      %v3990 = vunpack.c.l.b16 %v3926
      %v3991 = vpack.c.b16 %v3960, %v3959
      %v3992 = vpack.c.b16 %v3962, %v3961
      %v3993 = vpack.c.b16 %v3964, %v3963
      %v3994 = vpack.c.b16 %v3966, %v3965
      %v3995 = vpack.c.b16 %v3968, %v3967
      %v3996 = vpack.c.b16 %v3970, %v3969
      %v3997 = vpack.c.b16 %v3972, %v3971
      %v3998 = vpack.c.b16 %v3974, %v3973
      %v3999 = vpack.c.b16 %v3976, %v3975
      %v4000 = vpack.c.b16 %v3978, %v3977
      %v4001 = vpack.c.b16 %v3980, %v3979
      %v4002 = vpack.c.b16 %v3982, %v3981
      %v4003 = vpack.c.b16 %v3984, %v3983
      %v4004 = vpack.c.b16 %v3986, %v3985
      %v4005 = vpack.c.b16 %v3988, %v3987
      %v4006 = vpack.c.b16 %v3990, %v3989
      %v4008 = vsel %vm386, %v3991, 0
      %v4011 = vsel %vm386, %v3992, 0
      %v4014 = vsel %vm386, %v3993, 0
      %v4017 = vsel %vm386, %v3994, 0
      %v4020 = vsel %vm386, %v3995, 0
      %v4023 = vsel %vm386, %v3996, 0
      %v4026 = vsel %vm386, %v3997, 0
      %v4029 = vsel %vm386, %v3998, 0
      %v4032 = vsel %vm386, %v3999, 0
      %v4035 = vsel %vm386, %v4000, 0
      %v4038 = vsel %vm386, %v4001, 0
      %v4041 = vsel %vm386, %v4002, 0
      %v4044 = vsel %vm386, %v4003, 0
      %v4047 = vsel %vm386, %v4004, 0
      %v4050 = vsel %vm386, %v4005, 0
      %v4053 = vsel %vm386, %v4006, 0
      %4055 = vmatpush.bf16.msra.mxu0 0
      %4056 = vmatpush.bf16.msra.mxu0 0
      %4057 = vmatpush.bf16.msra.mxu0 0
      %4058 = vmatpush.bf16.msra.mxu0 0
      %4059 = vmatpush.bf16.msra.mxu0 0
      %4060 = vmatpush.bf16.msra.mxu0 0
      %4061 = vmatpush.bf16.msra.mxu0 %v383
      %4062 = vmatpush.bf16.msra.mxu0 %v382
      %4063 = vmatmul.bf16.gmra.mxu0 %v4008
      %v4064 = vpop.f32.mrf.mxu0
      %v4065 = vadd.f32 %v292, %v4064
      %v4066 = vpop.f32.mrf.mxu0
      %v4067 = vadd.f32 %v292, %v4066
      %4068 = vmatmul.bf16.gmra.mxu0 %v4011
      %v4069 = vpop.f32.mrf.mxu0
      %v4070 = vadd.f32 %v292, %v4069
      %v4071 = vpop.f32.mrf.mxu0
      %v4072 = vadd.f32 %v292, %v4071
      %4073 = vmatmul.bf16.gmra.mxu0 %v4014
      %v4074 = vpop.f32.mrf.mxu0
      %v4075 = vadd.f32 %v292, %v4074
      %v4076 = vpop.f32.mrf.mxu0
      %v4077 = vadd.f32 %v292, %v4076
      %4078 = vmatmul.bf16.gmra.mxu0 %v4017
      %v4079 = vpop.f32.mrf.mxu0
      %v4080 = vadd.f32 %v292, %v4079
      %v4081 = vpop.f32.mrf.mxu0
      %v4082 = vadd.f32 %v292, %v4081
      %4083 = vmatmul.bf16.gmra.mxu0 %v4020
      %v4084 = vpop.f32.mrf.mxu0
      %v4085 = vadd.f32 %v292, %v4084
      %v4086 = vpop.f32.mrf.mxu0
      %v4087 = vadd.f32 %v292, %v4086
      %4088 = vmatmul.bf16.gmra.mxu0 %v4023
      %v4089 = vpop.f32.mrf.mxu0
      %v4090 = vadd.f32 %v292, %v4089
      %v4091 = vpop.f32.mrf.mxu0
      %v4092 = vadd.f32 %v292, %v4091
      %4093 = vmatmul.bf16.gmra.mxu0 %v4026
      %v4094 = vpop.f32.mrf.mxu0
      %v4095 = vadd.f32 %v292, %v4094
      %v4096 = vpop.f32.mrf.mxu0
      %v4097 = vadd.f32 %v292, %v4096
      %4098 = vmatmul.bf16.gmra.mxu0 %v4029
      %v4099 = vpop.f32.mrf.mxu0
      %v4100 = vadd.f32 %v292, %v4099
      %v4101 = vpop.f32.mrf.mxu0
      %v4102 = vadd.f32 %v292, %v4101
      %4103 = vmatmul.bf16.gmra.mxu0 %v4032
      %v4104 = vpop.f32.mrf.mxu0
      %v4105 = vadd.f32 %v292, %v4104
      %v4106 = vpop.f32.mrf.mxu0
      %v4107 = vadd.f32 %v292, %v4106
      %4108 = vmatmul.bf16.gmra.mxu0 %v4035
      %v4109 = vpop.f32.mrf.mxu0
      %v4110 = vadd.f32 %v292, %v4109
      %v4111 = vpop.f32.mrf.mxu0
      %v4112 = vadd.f32 %v292, %v4111
      %4113 = vmatmul.bf16.gmra.mxu0 %v4038
      %v4114 = vpop.f32.mrf.mxu0
      %v4115 = vadd.f32 %v292, %v4114
      %v4116 = vpop.f32.mrf.mxu0
      %v4117 = vadd.f32 %v292, %v4116
      %4118 = vmatmul.bf16.gmra.mxu0 %v4041
      %v4119 = vpop.f32.mrf.mxu0
      %v4120 = vadd.f32 %v292, %v4119
      %v4121 = vpop.f32.mrf.mxu0
      %v4122 = vadd.f32 %v292, %v4121
      %4123 = vmatmul.bf16.gmra.mxu0 %v4044
      %v4124 = vpop.f32.mrf.mxu0
      %v4125 = vadd.f32 %v292, %v4124
      %v4126 = vpop.f32.mrf.mxu0
      %v4127 = vadd.f32 %v292, %v4126
      %4128 = vmatmul.bf16.gmra.mxu0 %v4047
      %v4129 = vpop.f32.mrf.mxu0
      %v4130 = vadd.f32 %v292, %v4129
      %v4131 = vpop.f32.mrf.mxu0
      %v4132 = vadd.f32 %v292, %v4131
      %4133 = vmatmul.bf16.gmra.mxu0 %v4050
      %v4134 = vpop.f32.mrf.mxu0
      %v4135 = vadd.f32 %v292, %v4134
      %v4136 = vpop.f32.mrf.mxu0
      %v4137 = vadd.f32 %v292, %v4136
      %4138 = vmatmul.bf16.gmra.mxu0 %v4053
      %v4139 = vpop.f32.mrf.mxu0
      %v4140 = vadd.f32 %v292, %v4139
      %v4141 = vpop.f32.mrf.mxu0
      %v4142 = vadd.f32 %v292, %v4141
      %4143 = vdwg.mxu0
      %v4144 = vmax.f32 %v4065, 0.0
      %v4145 = vmax.f32 %v4067, 0.0
      %v4146 = vmax.f32 %v4070, 0.0
      %v4147 = vmax.f32 %v4072, 0.0
      %v4148 = vmax.f32 %v4075, 0.0
      %v4149 = vmax.f32 %v4077, 0.0
      %v4150 = vmax.f32 %v4080, 0.0
      %v4151 = vmax.f32 %v4082, 0.0
      %v4152 = vmax.f32 %v4085, 0.0
      %v4153 = vmax.f32 %v4087, 0.0
      %v4154 = vmax.f32 %v4090, 0.0
      %v4155 = vmax.f32 %v4092, 0.0
      %v4156 = vmax.f32 %v4095, 0.0
      %v4157 = vmax.f32 %v4097, 0.0
      %v4158 = vmax.f32 %v4100, 0.0
      %v4159 = vmax.f32 %v4102, 0.0
      %v4160 = vmax.f32 %v4105, 0.0
      %v4161 = vmax.f32 %v4107, 0.0
      %v4162 = vmax.f32 %v4110, 0.0
      %v4163 = vmax.f32 %v4112, 0.0
      %v4164 = vmax.f32 %v4115, 0.0
      %v4165 = vmax.f32 %v4117, 0.0
      %v4166 = vmax.f32 %v4120, 0.0
      %v4167 = vmax.f32 %v4122, 0.0
      %v4168 = vmax.f32 %v4125, 0.0
      %v4169 = vmax.f32 %v4127, 0.0
      %v4170 = vmax.f32 %v4130, 0.0
      %v4171 = vmax.f32 %v4132, 0.0
      %v4172 = vmax.f32 %v4135, 0.0
      %v4173 = vmax.f32 %v4137, 0.0
      %v4174 = vmax.f32 %v4140, 0.0
      %v4175 = vmax.f32 %v4142, 0.0
      %v4176 = vpack.c.bf16 %v4145, %v4144
      %v4177 = vpack.c.bf16 %v4147, %v4146
      %v4178 = vpack.c.bf16 %v4149, %v4148
      %v4179 = vpack.c.bf16 %v4151, %v4150
      %v4180 = vpack.c.bf16 %v4153, %v4152
      %v4181 = vpack.c.bf16 %v4155, %v4154
      %v4182 = vpack.c.bf16 %v4157, %v4156
      %v4183 = vpack.c.bf16 %v4159, %v4158
      %v4184 = vpack.c.bf16 %v4161, %v4160
      %v4185 = vpack.c.bf16 %v4163, %v4162
      %v4186 = vpack.c.bf16 %v4165, %v4164
      %v4187 = vpack.c.bf16 %v4167, %v4166
      %v4188 = vpack.c.bf16 %v4169, %v4168
      %v4189 = vpack.c.bf16 %v4171, %v4170
      %v4190 = vpack.c.bf16 %v4173, %v4172
      %v4191 = vpack.c.bf16 %v4175, %v4174
      %4192 = vst [vmem:[#allocation1] ss:$9 sm:$0xff] %v258
      %v4193 = vld [vmem:[#allocation1] sm:$0xff]
      %v4194 = vld [vmem:[#allocation1 + $0x9] sm:$0xff]
      %4197 = vmatpush.bf16.msra.mxu0 %v4183
      %4198 = vmatpush.bf16.msra.mxu0 %v4182
      %4199 = vmatpush.bf16.msra.mxu0 %v4181
      %4200 = vmatpush.bf16.msra.mxu0 %v4180
      %4201 = vmatpush.bf16.msra.mxu0 %v4179
      %4202 = vmatpush.bf16.msra.mxu0 %v4178
      %4203 = vmatpush.bf16.msra.mxu0 %v4177
      %4204 = vmatpush.bf16.msra.mxu0 %v4176
      %4205 = vmatmul.bf16.gmra.mxu0 %v4193
      %v4206 = vpop.f32.mrf.mxu0
      %v4207 = vadd.f32 0.0, %v4206
      %v4208 = vpop.f32.mrf.mxu0
      %4209 = vdwg.mxu0
      %4210 = vmatpush.bf16.msra.mxu0 %v4191
      %4211 = vmatpush.bf16.msra.mxu0 %v4190
      %4212 = vmatpush.bf16.msra.mxu0 %v4189
      %4213 = vmatpush.bf16.msra.mxu0 %v4188
      %4214 = vmatpush.bf16.msra.mxu0 %v4187
      %4215 = vmatpush.bf16.msra.mxu0 %v4186
      %4216 = vmatpush.bf16.msra.mxu0 %v4185
      %4217 = vmatpush.bf16.msra.mxu0 %v4184
      %4218 = vmatmul.bf16.gmra.mxu0 %v4194
      %v4219 = vpop.f32.mrf.mxu0
      %v4220 = vadd.f32 %v4207, %v4219
      %v4221 = vpop.f32.mrf.mxu0
      %4222 = vdwg.mxu0
      %s4223 = scalar_lea.vmem %s246, 1536
      %v4224 = vld [vmem:[%s4223] sm:$0xf]
      %v4225 = vld [vmem:[%s4223 + $0x4] sm:$0xf]
      %v4226 = vld [vmem:[%s4223 + $0x8] sm:$0xf]
      %v4227 = vld [vmem:[%s4223 + $0xc] sm:$0xf]
      %v4228 = vld [vmem:[%s4223 + $0x10] sm:$0xf]
      %v4229 = vld [vmem:[%s4223 + $0x14] sm:$0xf]
      %v4230 = vld [vmem:[%s4223 + $0x18] sm:$0xf]
      %v4231 = vld [vmem:[%s4223 + $0x1c] sm:$0xf]
      %v4232 = vld [vmem:[%s4223 + $0x20] sm:$0xf]
      %v4233 = vld [vmem:[%s4223 + $0x24] sm:$0xf]
      %v4234 = vld [vmem:[%s4223 + $0x28] sm:$0xf]
      %v4235 = vld [vmem:[%s4223 + $0x2c] sm:$0xf]
      %v4236 = vld [vmem:[%s4223 + $0x30] sm:$0xf]
      %v4237 = vld [vmem:[%s4223 + $0x34] sm:$0xf]
      %v4238 = vld [vmem:[%s4223 + $0x38] sm:$0xf]
      %v4239 = vld [vmem:[%s4223 + $0x3c] sm:$0xf]
      %v4240 = vld [vmem:[%s4223 + $0x40] sm:$0xf]
      %v4241 = vld [vmem:[%s4223 + $0x44] sm:$0xf]
      %v4242 = vld [vmem:[%s4223 + $0x48] sm:$0xf]
      %v4243 = vld [vmem:[%s4223 + $0x4c] sm:$0xf]
      %v4244 = vld [vmem:[%s4223 + $0x50] sm:$0xf]
      %v4245 = vld [vmem:[%s4223 + $0x54] sm:$0xf]
      %v4246 = vld [vmem:[%s4223 + $0x58] sm:$0xf]
      %v4247 = vld [vmem:[%s4223 + $0x5c] sm:$0xf]
      %v4248 = vld [vmem:[%s4223 + $0x60] sm:$0xf]
      %v4249 = vld [vmem:[%s4223 + $0x64] sm:$0xf]
      %v4250 = vld [vmem:[%s4223 + $0x68] sm:$0xf]
      %v4251 = vld [vmem:[%s4223 + $0x6c] sm:$0xf]
      %v4252 = vld [vmem:[%s4223 + $0x70] sm:$0xf]
      %v4253 = vld [vmem:[%s4223 + $0x74] sm:$0xf]
      %v4254 = vld [vmem:[%s4223 + $0x78] sm:$0xf]
      %v4255 = vld [vmem:[%s4223 + $0x7c] sm:$0xf]
      %v4288 = vunpack.c.l.b16 %v4224
      %v4289 = vunpack.c.l.b16 %v4225
      %v4290 = vunpack.c.l.b16 %v4226
      %v4291 = vunpack.c.l.b16 %v4227
      %v4292 = vunpack.c.l.b16 %v4228
      %v4293 = vunpack.c.l.b16 %v4229
      %v4294 = vunpack.c.l.b16 %v4230
      %v4295 = vunpack.c.l.b16 %v4231
      %v4296 = vunpack.c.l.b16 %v4232
      %v4297 = vunpack.c.l.b16 %v4233
      %v4298 = vunpack.c.l.b16 %v4234
      %v4299 = vunpack.c.l.b16 %v4235
      %v4300 = vunpack.c.l.b16 %v4236
      %v4301 = vunpack.c.l.b16 %v4237
      %v4302 = vunpack.c.l.b16 %v4238
      %v4303 = vunpack.c.l.b16 %v4239
      %v4304 = vunpack.c.l.b16 %v4240
      %v4305 = vunpack.c.l.b16 %v4241
      %v4306 = vunpack.c.l.b16 %v4242
      %v4307 = vunpack.c.l.b16 %v4243
      %v4308 = vunpack.c.l.b16 %v4244
      %v4309 = vunpack.c.l.b16 %v4245
      %v4310 = vunpack.c.l.b16 %v4246
      %v4311 = vunpack.c.l.b16 %v4247
      %v4312 = vunpack.c.l.b16 %v4248
      %v4313 = vunpack.c.l.b16 %v4249
      %v4314 = vunpack.c.l.b16 %v4250
      %v4315 = vunpack.c.l.b16 %v4251
      %v4316 = vunpack.c.l.b16 %v4252
      %v4317 = vunpack.c.l.b16 %v4253
      %v4318 = vunpack.c.l.b16 %v4254
      %v4319 = vunpack.c.l.b16 %v4255
      %v4320 = vpack.c.b16 %v4289, %v4288
      %v4321 = vpack.c.b16 %v4291, %v4290
      %v4322 = vpack.c.b16 %v4293, %v4292
      %v4323 = vpack.c.b16 %v4295, %v4294
      %v4324 = vpack.c.b16 %v4297, %v4296
      %v4325 = vpack.c.b16 %v4299, %v4298
      %v4326 = vpack.c.b16 %v4301, %v4300
      %v4327 = vpack.c.b16 %v4303, %v4302
      %v4328 = vpack.c.b16 %v4305, %v4304
      %v4329 = vpack.c.b16 %v4307, %v4306
      %v4330 = vpack.c.b16 %v4309, %v4308
      %v4331 = vpack.c.b16 %v4311, %v4310
      %v4332 = vpack.c.b16 %v4313, %v4312
      %v4333 = vpack.c.b16 %v4315, %v4314
      %v4334 = vpack.c.b16 %v4317, %v4316
      %v4335 = vpack.c.b16 %v4319, %v4318
      %v4337 = vsel %vm386, %v4320, 0
      %v4340 = vsel %vm386, %v4321, 0
      %v4343 = vsel %vm386, %v4322, 0
      %v4346 = vsel %vm386, %v4323, 0
      %v4349 = vsel %vm386, %v4324, 0
      %v4352 = vsel %vm386, %v4325, 0
      %v4355 = vsel %vm386, %v4326, 0
      %v4358 = vsel %vm386, %v4327, 0
      %v4361 = vsel %vm386, %v4328, 0
      %v4364 = vsel %vm386, %v4329, 0
      %v4367 = vsel %vm386, %v4330, 0
      %v4370 = vsel %vm386, %v4331, 0
      %v4373 = vsel %vm386, %v4332, 0
      %v4376 = vsel %vm386, %v4333, 0
      %v4379 = vsel %vm386, %v4334, 0
      %v4382 = vsel %vm386, %v4335, 0
      %4384 = vmatpush.bf16.msra.mxu0 0
      %4385 = vmatpush.bf16.msra.mxu0 0
      %4386 = vmatpush.bf16.msra.mxu0 0
      %4387 = vmatpush.bf16.msra.mxu0 0
      %4388 = vmatpush.bf16.msra.mxu0 0
      %4389 = vmatpush.bf16.msra.mxu0 0
      %4390 = vmatpush.bf16.msra.mxu0 %v383
      %4391 = vmatpush.bf16.msra.mxu0 %v382
      %4392 = vmatmul.bf16.gmra.mxu0 %v4337
      %v4393 = vpop.f32.mrf.mxu0
      %v4394 = vadd.f32 %v292, %v4393
      %v4395 = vpop.f32.mrf.mxu0
      %v4396 = vadd.f32 %v292, %v4395
      %4397 = vmatmul.bf16.gmra.mxu0 %v4340
      %v4398 = vpop.f32.mrf.mxu0
      %v4399 = vadd.f32 %v292, %v4398
      %v4400 = vpop.f32.mrf.mxu0
      %v4401 = vadd.f32 %v292, %v4400
      %4402 = vmatmul.bf16.gmra.mxu0 %v4343
      %v4403 = vpop.f32.mrf.mxu0
      %v4404 = vadd.f32 %v292, %v4403
      %v4405 = vpop.f32.mrf.mxu0
      %v4406 = vadd.f32 %v292, %v4405
      %4407 = vmatmul.bf16.gmra.mxu0 %v4346
      %v4408 = vpop.f32.mrf.mxu0
      %v4409 = vadd.f32 %v292, %v4408
      %v4410 = vpop.f32.mrf.mxu0
      %v4411 = vadd.f32 %v292, %v4410
      %4412 = vmatmul.bf16.gmra.mxu0 %v4349
      %v4413 = vpop.f32.mrf.mxu0
      %v4414 = vadd.f32 %v292, %v4413
      %v4415 = vpop.f32.mrf.mxu0
      %v4416 = vadd.f32 %v292, %v4415
      %4417 = vmatmul.bf16.gmra.mxu0 %v4352
      %v4418 = vpop.f32.mrf.mxu0
      %v4419 = vadd.f32 %v292, %v4418
      %v4420 = vpop.f32.mrf.mxu0
      %v4421 = vadd.f32 %v292, %v4420
      %4422 = vmatmul.bf16.gmra.mxu0 %v4355
      %v4423 = vpop.f32.mrf.mxu0
      %v4424 = vadd.f32 %v292, %v4423
      %v4425 = vpop.f32.mrf.mxu0
      %v4426 = vadd.f32 %v292, %v4425
      %4427 = vmatmul.bf16.gmra.mxu0 %v4358
      %v4428 = vpop.f32.mrf.mxu0
      %v4429 = vadd.f32 %v292, %v4428
      %v4430 = vpop.f32.mrf.mxu0
      %v4431 = vadd.f32 %v292, %v4430
      %4432 = vmatmul.bf16.gmra.mxu0 %v4361
      %v4433 = vpop.f32.mrf.mxu0
      %v4434 = vadd.f32 %v292, %v4433
      %v4435 = vpop.f32.mrf.mxu0
      %v4436 = vadd.f32 %v292, %v4435
      %4437 = vmatmul.bf16.gmra.mxu0 %v4364
      %v4438 = vpop.f32.mrf.mxu0
      %v4439 = vadd.f32 %v292, %v4438
      %v4440 = vpop.f32.mrf.mxu0
      %v4441 = vadd.f32 %v292, %v4440
      %4442 = vmatmul.bf16.gmra.mxu0 %v4367
      %v4443 = vpop.f32.mrf.mxu0
      %v4444 = vadd.f32 %v292, %v4443
      %v4445 = vpop.f32.mrf.mxu0
      %v4446 = vadd.f32 %v292, %v4445
      %4447 = vmatmul.bf16.gmra.mxu0 %v4370
      %v4448 = vpop.f32.mrf.mxu0
      %v4449 = vadd.f32 %v292, %v4448
      %v4450 = vpop.f32.mrf.mxu0
      %v4451 = vadd.f32 %v292, %v4450
      %4452 = vmatmul.bf16.gmra.mxu0 %v4373
      %v4453 = vpop.f32.mrf.mxu0
      %v4454 = vadd.f32 %v292, %v4453
      %v4455 = vpop.f32.mrf.mxu0
      %v4456 = vadd.f32 %v292, %v4455
      %4457 = vmatmul.bf16.gmra.mxu0 %v4376
      %v4458 = vpop.f32.mrf.mxu0
      %v4459 = vadd.f32 %v292, %v4458
      %v4460 = vpop.f32.mrf.mxu0
      %v4461 = vadd.f32 %v292, %v4460
      %4462 = vmatmul.bf16.gmra.mxu0 %v4379
      %v4463 = vpop.f32.mrf.mxu0
      %v4464 = vadd.f32 %v292, %v4463
      %v4465 = vpop.f32.mrf.mxu0
      %v4466 = vadd.f32 %v292, %v4465
      %4467 = vmatmul.bf16.gmra.mxu0 %v4382
      %v4468 = vpop.f32.mrf.mxu0
      %v4469 = vadd.f32 %v292, %v4468
      %v4470 = vpop.f32.mrf.mxu0
      %v4471 = vadd.f32 %v292, %v4470
      %4472 = vdwg.mxu0
      %v4473 = vmax.f32 %v4394, 0.0
      %v4474 = vmax.f32 %v4396, 0.0
      %v4475 = vmax.f32 %v4399, 0.0
      %v4476 = vmax.f32 %v4401, 0.0
      %v4477 = vmax.f32 %v4404, 0.0
      %v4478 = vmax.f32 %v4406, 0.0
      %v4479 = vmax.f32 %v4409, 0.0
      %v4480 = vmax.f32 %v4411, 0.0
      %v4481 = vmax.f32 %v4414, 0.0
      %v4482 = vmax.f32 %v4416, 0.0
      %v4483 = vmax.f32 %v4419, 0.0
      %v4484 = vmax.f32 %v4421, 0.0
      %v4485 = vmax.f32 %v4424, 0.0
      %v4486 = vmax.f32 %v4426, 0.0
      %v4487 = vmax.f32 %v4429, 0.0
      %v4488 = vmax.f32 %v4431, 0.0
      %v4489 = vmax.f32 %v4434, 0.0
      %v4490 = vmax.f32 %v4436, 0.0
      %v4491 = vmax.f32 %v4439, 0.0
      %v4492 = vmax.f32 %v4441, 0.0
      %v4493 = vmax.f32 %v4444, 0.0
      %v4494 = vmax.f32 %v4446, 0.0
      %v4495 = vmax.f32 %v4449, 0.0
      %v4496 = vmax.f32 %v4451, 0.0
      %v4497 = vmax.f32 %v4454, 0.0
      %v4498 = vmax.f32 %v4456, 0.0
      %v4499 = vmax.f32 %v4459, 0.0
      %v4500 = vmax.f32 %v4461, 0.0
      %v4501 = vmax.f32 %v4464, 0.0
      %v4502 = vmax.f32 %v4466, 0.0
      %v4503 = vmax.f32 %v4469, 0.0
      %v4504 = vmax.f32 %v4471, 0.0
      %v4505 = vpack.c.bf16 %v4474, %v4473
      %v4506 = vpack.c.bf16 %v4476, %v4475
      %v4507 = vpack.c.bf16 %v4478, %v4477
      %v4508 = vpack.c.bf16 %v4480, %v4479
      %v4509 = vpack.c.bf16 %v4482, %v4481
      %v4510 = vpack.c.bf16 %v4484, %v4483
      %v4511 = vpack.c.bf16 %v4486, %v4485
      %v4512 = vpack.c.bf16 %v4488, %v4487
      %v4513 = vpack.c.bf16 %v4490, %v4489
      %v4514 = vpack.c.bf16 %v4492, %v4491
      %v4515 = vpack.c.bf16 %v4494, %v4493
      %v4516 = vpack.c.bf16 %v4496, %v4495
      %v4517 = vpack.c.bf16 %v4498, %v4497
      %v4518 = vpack.c.bf16 %v4500, %v4499
      %v4519 = vpack.c.bf16 %v4502, %v4501
      %v4520 = vpack.c.bf16 %v4504, %v4503
      %4521 = vst [vmem:[#allocation1] ss:$9 sm:$0xff] %v258
      %v4522 = vld [vmem:[#allocation1] sm:$0xff]
      %v4523 = vld [vmem:[#allocation1 + $0x9] sm:$0xff]
      %4526 = vmatpush.bf16.msra.mxu0 %v4512
      %4527 = vmatpush.bf16.msra.mxu0 %v4511
      %4528 = vmatpush.bf16.msra.mxu0 %v4510
      %4529 = vmatpush.bf16.msra.mxu0 %v4509
      %4530 = vmatpush.bf16.msra.mxu0 %v4508
      %4531 = vmatpush.bf16.msra.mxu0 %v4507
      %4532 = vmatpush.bf16.msra.mxu0 %v4506
      %4533 = vmatpush.bf16.msra.mxu0 %v4505
      %4534 = vmatmul.bf16.gmra.mxu0 %v4522
      %v4535 = vpop.f32.mrf.mxu0
      %v4536 = vadd.f32 0.0, %v4535
      %v4537 = vpop.f32.mrf.mxu0
      %4538 = vdwg.mxu0
      %4539 = vmatpush.bf16.msra.mxu0 %v4520
      %4540 = vmatpush.bf16.msra.mxu0 %v4519
      %4541 = vmatpush.bf16.msra.mxu0 %v4518
      %4542 = vmatpush.bf16.msra.mxu0 %v4517
      %4543 = vmatpush.bf16.msra.mxu0 %v4516
      %4544 = vmatpush.bf16.msra.mxu0 %v4515
      %4545 = vmatpush.bf16.msra.mxu0 %v4514
      %4546 = vmatpush.bf16.msra.mxu0 %v4513
      %4547 = vmatmul.bf16.gmra.mxu0 %v4523
      %v4548 = vpop.f32.mrf.mxu0
      %v4549 = vadd.f32 %v4536, %v4548
      %v4550 = vpop.f32.mrf.mxu0
      %4551 = vdwg.mxu0
      %s4552 = scalar_lea.vmem %s246, 1664
      %v4553 = vld [vmem:[%s4552] sm:$0xf]
      %v4554 = vld [vmem:[%s4552 + $0x4] sm:$0xf]
      %v4555 = vld [vmem:[%s4552 + $0x8] sm:$0xf]
      %v4556 = vld [vmem:[%s4552 + $0xc] sm:$0xf]
      %v4557 = vld [vmem:[%s4552 + $0x10] sm:$0xf]
      %v4558 = vld [vmem:[%s4552 + $0x14] sm:$0xf]
      %v4559 = vld [vmem:[%s4552 + $0x18] sm:$0xf]
      %v4560 = vld [vmem:[%s4552 + $0x1c] sm:$0xf]
      %v4561 = vld [vmem:[%s4552 + $0x20] sm:$0xf]
      %v4562 = vld [vmem:[%s4552 + $0x24] sm:$0xf]
      %v4563 = vld [vmem:[%s4552 + $0x28] sm:$0xf]
      %v4564 = vld [vmem:[%s4552 + $0x2c] sm:$0xf]
      %v4565 = vld [vmem:[%s4552 + $0x30] sm:$0xf]
      %v4566 = vld [vmem:[%s4552 + $0x34] sm:$0xf]
      %v4567 = vld [vmem:[%s4552 + $0x38] sm:$0xf]
      %v4568 = vld [vmem:[%s4552 + $0x3c] sm:$0xf]
      %v4569 = vld [vmem:[%s4552 + $0x40] sm:$0xf]
      %v4570 = vld [vmem:[%s4552 + $0x44] sm:$0xf]
      %v4571 = vld [vmem:[%s4552 + $0x48] sm:$0xf]
      %v4572 = vld [vmem:[%s4552 + $0x4c] sm:$0xf]
      %v4573 = vld [vmem:[%s4552 + $0x50] sm:$0xf]
      %v4574 = vld [vmem:[%s4552 + $0x54] sm:$0xf]
      %v4575 = vld [vmem:[%s4552 + $0x58] sm:$0xf]
      %v4576 = vld [vmem:[%s4552 + $0x5c] sm:$0xf]
      %v4577 = vld [vmem:[%s4552 + $0x60] sm:$0xf]
      %v4578 = vld [vmem:[%s4552 + $0x64] sm:$0xf]
      %v4579 = vld [vmem:[%s4552 + $0x68] sm:$0xf]
      %v4580 = vld [vmem:[%s4552 + $0x6c] sm:$0xf]
      %v4581 = vld [vmem:[%s4552 + $0x70] sm:$0xf]
      %v4582 = vld [vmem:[%s4552 + $0x74] sm:$0xf]
      %v4583 = vld [vmem:[%s4552 + $0x78] sm:$0xf]
      %v4584 = vld [vmem:[%s4552 + $0x7c] sm:$0xf]
      %v4617 = vunpack.c.l.b16 %v4553
      %v4618 = vunpack.c.l.b16 %v4554
      %v4619 = vunpack.c.l.b16 %v4555
      %v4620 = vunpack.c.l.b16 %v4556
      %v4621 = vunpack.c.l.b16 %v4557
      %v4622 = vunpack.c.l.b16 %v4558
      %v4623 = vunpack.c.l.b16 %v4559
      %v4624 = vunpack.c.l.b16 %v4560
      %v4625 = vunpack.c.l.b16 %v4561
      %v4626 = vunpack.c.l.b16 %v4562
      %v4627 = vunpack.c.l.b16 %v4563
      %v4628 = vunpack.c.l.b16 %v4564
      %v4629 = vunpack.c.l.b16 %v4565
      %v4630 = vunpack.c.l.b16 %v4566
      %v4631 = vunpack.c.l.b16 %v4567
      %v4632 = vunpack.c.l.b16 %v4568
      %v4633 = vunpack.c.l.b16 %v4569
      %v4634 = vunpack.c.l.b16 %v4570
      %v4635 = vunpack.c.l.b16 %v4571
      %v4636 = vunpack.c.l.b16 %v4572
      %v4637 = vunpack.c.l.b16 %v4573
      %v4638 = vunpack.c.l.b16 %v4574
      %v4639 = vunpack.c.l.b16 %v4575
      %v4640 = vunpack.c.l.b16 %v4576
      %v4641 = vunpack.c.l.b16 %v4577
      %v4642 = vunpack.c.l.b16 %v4578
      %v4643 = vunpack.c.l.b16 %v4579
      %v4644 = vunpack.c.l.b16 %v4580
      %v4645 = vunpack.c.l.b16 %v4581
      %v4646 = vunpack.c.l.b16 %v4582
      %v4647 = vunpack.c.l.b16 %v4583
      %v4648 = vunpack.c.l.b16 %v4584
      %v4649 = vpack.c.b16 %v4618, %v4617
      %v4650 = vpack.c.b16 %v4620, %v4619
      %v4651 = vpack.c.b16 %v4622, %v4621
      %v4652 = vpack.c.b16 %v4624, %v4623
      %v4653 = vpack.c.b16 %v4626, %v4625
      %v4654 = vpack.c.b16 %v4628, %v4627
      %v4655 = vpack.c.b16 %v4630, %v4629
      %v4656 = vpack.c.b16 %v4632, %v4631
      %v4657 = vpack.c.b16 %v4634, %v4633
      %v4658 = vpack.c.b16 %v4636, %v4635
      %v4659 = vpack.c.b16 %v4638, %v4637
      %v4660 = vpack.c.b16 %v4640, %v4639
      %v4661 = vpack.c.b16 %v4642, %v4641
      %v4662 = vpack.c.b16 %v4644, %v4643
      %v4663 = vpack.c.b16 %v4646, %v4645
      %v4664 = vpack.c.b16 %v4648, %v4647
      %v4666 = vsel %vm386, %v4649, 0
      %v4669 = vsel %vm386, %v4650, 0
      %v4672 = vsel %vm386, %v4651, 0
      %v4675 = vsel %vm386, %v4652, 0
      %v4678 = vsel %vm386, %v4653, 0
      %v4681 = vsel %vm386, %v4654, 0
      %v4684 = vsel %vm386, %v4655, 0
      %v4687 = vsel %vm386, %v4656, 0
      %v4690 = vsel %vm386, %v4657, 0
      %v4693 = vsel %vm386, %v4658, 0
      %v4696 = vsel %vm386, %v4659, 0
      %v4699 = vsel %vm386, %v4660, 0
      %v4702 = vsel %vm386, %v4661, 0
      %v4705 = vsel %vm386, %v4662, 0
      %v4708 = vsel %vm386, %v4663, 0
      %v4711 = vsel %vm386, %v4664, 0
      %4713 = vmatpush.bf16.msra.mxu0 0
      %4714 = vmatpush.bf16.msra.mxu0 0
      %4715 = vmatpush.bf16.msra.mxu0 0
      %4716 = vmatpush.bf16.msra.mxu0 0
      %4717 = vmatpush.bf16.msra.mxu0 0
      %4718 = vmatpush.bf16.msra.mxu0 0
      %4719 = vmatpush.bf16.msra.mxu0 %v383
      %4720 = vmatpush.bf16.msra.mxu0 %v382
      %4721 = vmatmul.bf16.gmra.mxu0 %v4666
      %v4722 = vpop.f32.mrf.mxu0
      %v4723 = vadd.f32 %v292, %v4722
      %v4724 = vpop.f32.mrf.mxu0
      %v4725 = vadd.f32 %v292, %v4724
      %4726 = vmatmul.bf16.gmra.mxu0 %v4669
      %v4727 = vpop.f32.mrf.mxu0
      %v4728 = vadd.f32 %v292, %v4727
      %v4729 = vpop.f32.mrf.mxu0
      %v4730 = vadd.f32 %v292, %v4729
      %4731 = vmatmul.bf16.gmra.mxu0 %v4672
      %v4732 = vpop.f32.mrf.mxu0
      %v4733 = vadd.f32 %v292, %v4732
      %v4734 = vpop.f32.mrf.mxu0
      %v4735 = vadd.f32 %v292, %v4734
      %4736 = vmatmul.bf16.gmra.mxu0 %v4675
      %v4737 = vpop.f32.mrf.mxu0
      %v4738 = vadd.f32 %v292, %v4737
      %v4739 = vpop.f32.mrf.mxu0
      %v4740 = vadd.f32 %v292, %v4739
      %4741 = vmatmul.bf16.gmra.mxu0 %v4678
      %v4742 = vpop.f32.mrf.mxu0
      %v4743 = vadd.f32 %v292, %v4742
      %v4744 = vpop.f32.mrf.mxu0
      %v4745 = vadd.f32 %v292, %v4744
      %4746 = vmatmul.bf16.gmra.mxu0 %v4681
      %v4747 = vpop.f32.mrf.mxu0
      %v4748 = vadd.f32 %v292, %v4747
      %v4749 = vpop.f32.mrf.mxu0
      %v4750 = vadd.f32 %v292, %v4749
      %4751 = vmatmul.bf16.gmra.mxu0 %v4684
      %v4752 = vpop.f32.mrf.mxu0
      %v4753 = vadd.f32 %v292, %v4752
      %v4754 = vpop.f32.mrf.mxu0
      %v4755 = vadd.f32 %v292, %v4754
      %4756 = vmatmul.bf16.gmra.mxu0 %v4687
      %v4757 = vpop.f32.mrf.mxu0
      %v4758 = vadd.f32 %v292, %v4757
      %v4759 = vpop.f32.mrf.mxu0
      %v4760 = vadd.f32 %v292, %v4759
      %4761 = vmatmul.bf16.gmra.mxu0 %v4690
      %v4762 = vpop.f32.mrf.mxu0
      %v4763 = vadd.f32 %v292, %v4762
      %v4764 = vpop.f32.mrf.mxu0
      %v4765 = vadd.f32 %v292, %v4764
      %4766 = vmatmul.bf16.gmra.mxu0 %v4693
      %v4767 = vpop.f32.mrf.mxu0
      %v4768 = vadd.f32 %v292, %v4767
      %v4769 = vpop.f32.mrf.mxu0
      %v4770 = vadd.f32 %v292, %v4769
      %4771 = vmatmul.bf16.gmra.mxu0 %v4696
      %v4772 = vpop.f32.mrf.mxu0
      %v4773 = vadd.f32 %v292, %v4772
      %v4774 = vpop.f32.mrf.mxu0
      %v4775 = vadd.f32 %v292, %v4774
      %4776 = vmatmul.bf16.gmra.mxu0 %v4699
      %v4777 = vpop.f32.mrf.mxu0
      %v4778 = vadd.f32 %v292, %v4777
      %v4779 = vpop.f32.mrf.mxu0
      %v4780 = vadd.f32 %v292, %v4779
      %4781 = vmatmul.bf16.gmra.mxu0 %v4702
      %v4782 = vpop.f32.mrf.mxu0
      %v4783 = vadd.f32 %v292, %v4782
      %v4784 = vpop.f32.mrf.mxu0
      %v4785 = vadd.f32 %v292, %v4784
      %4786 = vmatmul.bf16.gmra.mxu0 %v4705
      %v4787 = vpop.f32.mrf.mxu0
      %v4788 = vadd.f32 %v292, %v4787
      %v4789 = vpop.f32.mrf.mxu0
      %v4790 = vadd.f32 %v292, %v4789
      %4791 = vmatmul.bf16.gmra.mxu0 %v4708
      %v4792 = vpop.f32.mrf.mxu0
      %v4793 = vadd.f32 %v292, %v4792
      %v4794 = vpop.f32.mrf.mxu0
      %v4795 = vadd.f32 %v292, %v4794
      %4796 = vmatmul.bf16.gmra.mxu0 %v4711
      %v4797 = vpop.f32.mrf.mxu0
      %v4798 = vadd.f32 %v292, %v4797
      %v4799 = vpop.f32.mrf.mxu0
      %v4800 = vadd.f32 %v292, %v4799
      %4801 = vdwg.mxu0
      %v4802 = vmax.f32 %v4723, 0.0
      %v4803 = vmax.f32 %v4725, 0.0
      %v4804 = vmax.f32 %v4728, 0.0
      %v4805 = vmax.f32 %v4730, 0.0
      %v4806 = vmax.f32 %v4733, 0.0
      %v4807 = vmax.f32 %v4735, 0.0
      %v4808 = vmax.f32 %v4738, 0.0
      %v4809 = vmax.f32 %v4740, 0.0
      %v4810 = vmax.f32 %v4743, 0.0
      %v4811 = vmax.f32 %v4745, 0.0
      %v4812 = vmax.f32 %v4748, 0.0
      %v4813 = vmax.f32 %v4750, 0.0
      %v4814 = vmax.f32 %v4753, 0.0
      %v4815 = vmax.f32 %v4755, 0.0
      %v4816 = vmax.f32 %v4758, 0.0
      %v4817 = vmax.f32 %v4760, 0.0
      %v4818 = vmax.f32 %v4763, 0.0
      %v4819 = vmax.f32 %v4765, 0.0
      %v4820 = vmax.f32 %v4768, 0.0
      %v4821 = vmax.f32 %v4770, 0.0
      %v4822 = vmax.f32 %v4773, 0.0
      %v4823 = vmax.f32 %v4775, 0.0
      %v4824 = vmax.f32 %v4778, 0.0
      %v4825 = vmax.f32 %v4780, 0.0
      %v4826 = vmax.f32 %v4783, 0.0
      %v4827 = vmax.f32 %v4785, 0.0
      %v4828 = vmax.f32 %v4788, 0.0
      %v4829 = vmax.f32 %v4790, 0.0
      %v4830 = vmax.f32 %v4793, 0.0
      %v4831 = vmax.f32 %v4795, 0.0
      %v4832 = vmax.f32 %v4798, 0.0
      %v4833 = vmax.f32 %v4800, 0.0
      %v4834 = vpack.c.bf16 %v4803, %v4802
      %v4835 = vpack.c.bf16 %v4805, %v4804
      %v4836 = vpack.c.bf16 %v4807, %v4806
      %v4837 = vpack.c.bf16 %v4809, %v4808
      %v4838 = vpack.c.bf16 %v4811, %v4810
      %v4839 = vpack.c.bf16 %v4813, %v4812
      %v4840 = vpack.c.bf16 %v4815, %v4814
      %v4841 = vpack.c.bf16 %v4817, %v4816
      %v4842 = vpack.c.bf16 %v4819, %v4818
      %v4843 = vpack.c.bf16 %v4821, %v4820
      %v4844 = vpack.c.bf16 %v4823, %v4822
      %v4845 = vpack.c.bf16 %v4825, %v4824
      %v4846 = vpack.c.bf16 %v4827, %v4826
      %v4847 = vpack.c.bf16 %v4829, %v4828
      %v4848 = vpack.c.bf16 %v4831, %v4830
      %v4849 = vpack.c.bf16 %v4833, %v4832
      %4850 = vst [vmem:[#allocation1] ss:$9 sm:$0xff] %v258
      %v4851 = vld [vmem:[#allocation1] sm:$0xff]
      %v4852 = vld [vmem:[#allocation1 + $0x9] sm:$0xff]
      %4855 = vmatpush.bf16.msra.mxu0 %v4841
      %4856 = vmatpush.bf16.msra.mxu0 %v4840
      %4857 = vmatpush.bf16.msra.mxu0 %v4839
      %4858 = vmatpush.bf16.msra.mxu0 %v4838
      %4859 = vmatpush.bf16.msra.mxu0 %v4837
      %4860 = vmatpush.bf16.msra.mxu0 %v4836
      %4861 = vmatpush.bf16.msra.mxu0 %v4835
      %4862 = vmatpush.bf16.msra.mxu0 %v4834
      %4863 = vmatmul.bf16.gmra.mxu0 %v4851
      %v4864 = vpop.f32.mrf.mxu0
      %v4865 = vadd.f32 0.0, %v4864
      %v4866 = vpop.f32.mrf.mxu0
      %4867 = vdwg.mxu0
      %4868 = vmatpush.bf16.msra.mxu0 %v4849
      %4869 = vmatpush.bf16.msra.mxu0 %v4848
      %4870 = vmatpush.bf16.msra.mxu0 %v4847
      %4871 = vmatpush.bf16.msra.mxu0 %v4846
      %4872 = vmatpush.bf16.msra.mxu0 %v4845
      %4873 = vmatpush.bf16.msra.mxu0 %v4844
      %4874 = vmatpush.bf16.msra.mxu0 %v4843
      %4875 = vmatpush.bf16.msra.mxu0 %v4842
      %4876 = vmatmul.bf16.gmra.mxu0 %v4852
      %v4877 = vpop.f32.mrf.mxu0
      %v4878 = vadd.f32 %v4865, %v4877
      %v4879 = vpop.f32.mrf.mxu0
      %4880 = vdwg.mxu0
      %s4881 = scalar_lea.vmem %s246, 1792
      %v4882 = vld [vmem:[%s4881] sm:$0xf]
      %v4883 = vld [vmem:[%s4881 + $0x4] sm:$0xf]
      %v4884 = vld [vmem:[%s4881 + $0x8] sm:$0xf]
      %v4885 = vld [vmem:[%s4881 + $0xc] sm:$0xf]
      %v4886 = vld [vmem:[%s4881 + $0x10] sm:$0xf]
      %v4887 = vld [vmem:[%s4881 + $0x14] sm:$0xf]
      %v4888 = vld [vmem:[%s4881 + $0x18] sm:$0xf]
      %v4889 = vld [vmem:[%s4881 + $0x1c] sm:$0xf]
      %v4890 = vld [vmem:[%s4881 + $0x20] sm:$0xf]
      %v4891 = vld [vmem:[%s4881 + $0x24] sm:$0xf]
      %v4892 = vld [vmem:[%s4881 + $0x28] sm:$0xf]
      %v4893 = vld [vmem:[%s4881 + $0x2c] sm:$0xf]
      %v4894 = vld [vmem:[%s4881 + $0x30] sm:$0xf]
      %v4895 = vld [vmem:[%s4881 + $0x34] sm:$0xf]
      %v4896 = vld [vmem:[%s4881 + $0x38] sm:$0xf]
      %v4897 = vld [vmem:[%s4881 + $0x3c] sm:$0xf]
      %v4898 = vld [vmem:[%s4881 + $0x40] sm:$0xf]
      %v4899 = vld [vmem:[%s4881 + $0x44] sm:$0xf]
      %v4900 = vld [vmem:[%s4881 + $0x48] sm:$0xf]
      %v4901 = vld [vmem:[%s4881 + $0x4c] sm:$0xf]
      %v4902 = vld [vmem:[%s4881 + $0x50] sm:$0xf]
      %v4903 = vld [vmem:[%s4881 + $0x54] sm:$0xf]
      %v4904 = vld [vmem:[%s4881 + $0x58] sm:$0xf]
      %v4905 = vld [vmem:[%s4881 + $0x5c] sm:$0xf]
      %v4906 = vld [vmem:[%s4881 + $0x60] sm:$0xf]
      %v4907 = vld [vmem:[%s4881 + $0x64] sm:$0xf]
      %v4908 = vld [vmem:[%s4881 + $0x68] sm:$0xf]
      %v4909 = vld [vmem:[%s4881 + $0x6c] sm:$0xf]
      %v4910 = vld [vmem:[%s4881 + $0x70] sm:$0xf]
      %v4911 = vld [vmem:[%s4881 + $0x74] sm:$0xf]
      %v4912 = vld [vmem:[%s4881 + $0x78] sm:$0xf]
      %v4913 = vld [vmem:[%s4881 + $0x7c] sm:$0xf]
      %v4946 = vunpack.c.l.b16 %v4882
      %v4947 = vunpack.c.l.b16 %v4883
      %v4948 = vunpack.c.l.b16 %v4884
      %v4949 = vunpack.c.l.b16 %v4885
      %v4950 = vunpack.c.l.b16 %v4886
      %v4951 = vunpack.c.l.b16 %v4887
      %v4952 = vunpack.c.l.b16 %v4888
      %v4953 = vunpack.c.l.b16 %v4889
      %v4954 = vunpack.c.l.b16 %v4890
      %v4955 = vunpack.c.l.b16 %v4891
      %v4956 = vunpack.c.l.b16 %v4892
      %v4957 = vunpack.c.l.b16 %v4893
      %v4958 = vunpack.c.l.b16 %v4894
      %v4959 = vunpack.c.l.b16 %v4895
      %v4960 = vunpack.c.l.b16 %v4896
      %v4961 = vunpack.c.l.b16 %v4897
      %v4962 = vunpack.c.l.b16 %v4898
      %v4963 = vunpack.c.l.b16 %v4899
      %v4964 = vunpack.c.l.b16 %v4900
      %v4965 = vunpack.c.l.b16 %v4901
      %v4966 = vunpack.c.l.b16 %v4902
      %v4967 = vunpack.c.l.b16 %v4903
      %v4968 = vunpack.c.l.b16 %v4904
      %v4969 = vunpack.c.l.b16 %v4905
      %v4970 = vunpack.c.l.b16 %v4906
      %v4971 = vunpack.c.l.b16 %v4907
      %v4972 = vunpack.c.l.b16 %v4908
      %v4973 = vunpack.c.l.b16 %v4909
      %v4974 = vunpack.c.l.b16 %v4910
      %v4975 = vunpack.c.l.b16 %v4911
      %v4976 = vunpack.c.l.b16 %v4912
      %v4977 = vunpack.c.l.b16 %v4913
      %v4978 = vpack.c.b16 %v4947, %v4946
      %v4979 = vpack.c.b16 %v4949, %v4948
      %v4980 = vpack.c.b16 %v4951, %v4950
      %v4981 = vpack.c.b16 %v4953, %v4952
      %v4982 = vpack.c.b16 %v4955, %v4954
      %v4983 = vpack.c.b16 %v4957, %v4956
      %v4984 = vpack.c.b16 %v4959, %v4958
      %v4985 = vpack.c.b16 %v4961, %v4960
      %v4986 = vpack.c.b16 %v4963, %v4962
      %v4987 = vpack.c.b16 %v4965, %v4964
      %v4988 = vpack.c.b16 %v4967, %v4966
      %v4989 = vpack.c.b16 %v4969, %v4968
      %v4990 = vpack.c.b16 %v4971, %v4970
      %v4991 = vpack.c.b16 %v4973, %v4972
      %v4992 = vpack.c.b16 %v4975, %v4974
      %v4993 = vpack.c.b16 %v4977, %v4976
      %v4995 = vsel %vm386, %v4978, 0
      %v4998 = vsel %vm386, %v4979, 0
      %v5001 = vsel %vm386, %v4980, 0
      %v5004 = vsel %vm386, %v4981, 0
      %v5007 = vsel %vm386, %v4982, 0
      %v5010 = vsel %vm386, %v4983, 0
      %v5013 = vsel %vm386, %v4984, 0
      %v5016 = vsel %vm386, %v4985, 0
      %v5019 = vsel %vm386, %v4986, 0
      %v5022 = vsel %vm386, %v4987, 0
      %v5025 = vsel %vm386, %v4988, 0
      %v5028 = vsel %vm386, %v4989, 0
      %v5031 = vsel %vm386, %v4990, 0
      %v5034 = vsel %vm386, %v4991, 0
      %v5037 = vsel %vm386, %v4992, 0
      %v5040 = vsel %vm386, %v4993, 0
      %5042 = vmatpush.bf16.msra.mxu0 0
      %5043 = vmatpush.bf16.msra.mxu0 0
      %5044 = vmatpush.bf16.msra.mxu0 0
      %5045 = vmatpush.bf16.msra.mxu0 0
      %5046 = vmatpush.bf16.msra.mxu0 0
      %5047 = vmatpush.bf16.msra.mxu0 0
      %5048 = vmatpush.bf16.msra.mxu0 %v383
      %5049 = vmatpush.bf16.msra.mxu0 %v382
      %5050 = vmatmul.bf16.gmra.mxu0 %v4995
      %v5051 = vpop.f32.mrf.mxu0
      %v5052 = vadd.f32 %v292, %v5051
      %v5053 = vpop.f32.mrf.mxu0
      %v5054 = vadd.f32 %v292, %v5053
      %5055 = vmatmul.bf16.gmra.mxu0 %v4998
      %v5056 = vpop.f32.mrf.mxu0
      %v5057 = vadd.f32 %v292, %v5056
      %v5058 = vpop.f32.mrf.mxu0
      %v5059 = vadd.f32 %v292, %v5058
      %5060 = vmatmul.bf16.gmra.mxu0 %v5001
      %v5061 = vpop.f32.mrf.mxu0
      %v5062 = vadd.f32 %v292, %v5061
      %v5063 = vpop.f32.mrf.mxu0
      %v5064 = vadd.f32 %v292, %v5063
      %5065 = vmatmul.bf16.gmra.mxu0 %v5004
      %v5066 = vpop.f32.mrf.mxu0
      %v5067 = vadd.f32 %v292, %v5066
      %v5068 = vpop.f32.mrf.mxu0
      %v5069 = vadd.f32 %v292, %v5068
      %5070 = vmatmul.bf16.gmra.mxu0 %v5007
      %v5071 = vpop.f32.mrf.mxu0
      %v5072 = vadd.f32 %v292, %v5071
      %v5073 = vpop.f32.mrf.mxu0
      %v5074 = vadd.f32 %v292, %v5073
      %5075 = vmatmul.bf16.gmra.mxu0 %v5010
      %v5076 = vpop.f32.mrf.mxu0
      %v5077 = vadd.f32 %v292, %v5076
      %v5078 = vpop.f32.mrf.mxu0
      %v5079 = vadd.f32 %v292, %v5078
      %5080 = vmatmul.bf16.gmra.mxu0 %v5013
      %v5081 = vpop.f32.mrf.mxu0
      %v5082 = vadd.f32 %v292, %v5081
      %v5083 = vpop.f32.mrf.mxu0
      %v5084 = vadd.f32 %v292, %v5083
      %5085 = vmatmul.bf16.gmra.mxu0 %v5016
      %v5086 = vpop.f32.mrf.mxu0
      %v5087 = vadd.f32 %v292, %v5086
      %v5088 = vpop.f32.mrf.mxu0
      %v5089 = vadd.f32 %v292, %v5088
      %5090 = vmatmul.bf16.gmra.mxu0 %v5019
      %v5091 = vpop.f32.mrf.mxu0
      %v5092 = vadd.f32 %v292, %v5091
      %v5093 = vpop.f32.mrf.mxu0
      %v5094 = vadd.f32 %v292, %v5093
      %5095 = vmatmul.bf16.gmra.mxu0 %v5022
      %v5096 = vpop.f32.mrf.mxu0
      %v5097 = vadd.f32 %v292, %v5096
      %v5098 = vpop.f32.mrf.mxu0
      %v5099 = vadd.f32 %v292, %v5098
      %5100 = vmatmul.bf16.gmra.mxu0 %v5025
      %v5101 = vpop.f32.mrf.mxu0
      %v5102 = vadd.f32 %v292, %v5101
      %v5103 = vpop.f32.mrf.mxu0
      %v5104 = vadd.f32 %v292, %v5103
      %5105 = vmatmul.bf16.gmra.mxu0 %v5028
      %v5106 = vpop.f32.mrf.mxu0
      %v5107 = vadd.f32 %v292, %v5106
      %v5108 = vpop.f32.mrf.mxu0
      %v5109 = vadd.f32 %v292, %v5108
      %5110 = vmatmul.bf16.gmra.mxu0 %v5031
      %v5111 = vpop.f32.mrf.mxu0
      %v5112 = vadd.f32 %v292, %v5111
      %v5113 = vpop.f32.mrf.mxu0
      %v5114 = vadd.f32 %v292, %v5113
      %5115 = vmatmul.bf16.gmra.mxu0 %v5034
      %v5116 = vpop.f32.mrf.mxu0
      %v5117 = vadd.f32 %v292, %v5116
      %v5118 = vpop.f32.mrf.mxu0
      %v5119 = vadd.f32 %v292, %v5118
      %5120 = vmatmul.bf16.gmra.mxu0 %v5037
      %v5121 = vpop.f32.mrf.mxu0
      %v5122 = vadd.f32 %v292, %v5121
      %v5123 = vpop.f32.mrf.mxu0
      %v5124 = vadd.f32 %v292, %v5123
      %5125 = vmatmul.bf16.gmra.mxu0 %v5040
      %v5126 = vpop.f32.mrf.mxu0
      %v5127 = vadd.f32 %v292, %v5126
      %v5128 = vpop.f32.mrf.mxu0
      %v5129 = vadd.f32 %v292, %v5128
      %5130 = vdwg.mxu0
      %v5131 = vmax.f32 %v5052, 0.0
      %v5132 = vmax.f32 %v5054, 0.0
      %v5133 = vmax.f32 %v5057, 0.0
      %v5134 = vmax.f32 %v5059, 0.0
      %v5135 = vmax.f32 %v5062, 0.0
      %v5136 = vmax.f32 %v5064, 0.0
      %v5137 = vmax.f32 %v5067, 0.0
      %v5138 = vmax.f32 %v5069, 0.0
      %v5139 = vmax.f32 %v5072, 0.0
      %v5140 = vmax.f32 %v5074, 0.0
      %v5141 = vmax.f32 %v5077, 0.0
      %v5142 = vmax.f32 %v5079, 0.0
      %v5143 = vmax.f32 %v5082, 0.0
      %v5144 = vmax.f32 %v5084, 0.0
      %v5145 = vmax.f32 %v5087, 0.0
      %v5146 = vmax.f32 %v5089, 0.0
      %v5147 = vmax.f32 %v5092, 0.0
      %v5148 = vmax.f32 %v5094, 0.0
      %v5149 = vmax.f32 %v5097, 0.0
      %v5150 = vmax.f32 %v5099, 0.0
      %v5151 = vmax.f32 %v5102, 0.0
      %v5152 = vmax.f32 %v5104, 0.0
      %v5153 = vmax.f32 %v5107, 0.0
      %v5154 = vmax.f32 %v5109, 0.0
      %v5155 = vmax.f32 %v5112, 0.0
      %v5156 = vmax.f32 %v5114, 0.0
      %v5157 = vmax.f32 %v5117, 0.0
      %v5158 = vmax.f32 %v5119, 0.0
      %v5159 = vmax.f32 %v5122, 0.0
      %v5160 = vmax.f32 %v5124, 0.0
      %v5161 = vmax.f32 %v5127, 0.0
      %v5162 = vmax.f32 %v5129, 0.0
      %v5163 = vpack.c.bf16 %v5132, %v5131
      %v5164 = vpack.c.bf16 %v5134, %v5133
      %v5165 = vpack.c.bf16 %v5136, %v5135
      %v5166 = vpack.c.bf16 %v5138, %v5137
      %v5167 = vpack.c.bf16 %v5140, %v5139
      %v5168 = vpack.c.bf16 %v5142, %v5141
      %v5169 = vpack.c.bf16 %v5144, %v5143
      %v5170 = vpack.c.bf16 %v5146, %v5145
      %v5171 = vpack.c.bf16 %v5148, %v5147
      %v5172 = vpack.c.bf16 %v5150, %v5149
      %v5173 = vpack.c.bf16 %v5152, %v5151
      %v5174 = vpack.c.bf16 %v5154, %v5153
      %v5175 = vpack.c.bf16 %v5156, %v5155
      %v5176 = vpack.c.bf16 %v5158, %v5157
      %v5177 = vpack.c.bf16 %v5160, %v5159
      %v5178 = vpack.c.bf16 %v5162, %v5161
      %5179 = vst [vmem:[#allocation1] ss:$9 sm:$0xff] %v258
      %v5180 = vld [vmem:[#allocation1] sm:$0xff]
      %v5181 = vld [vmem:[#allocation1 + $0x9] sm:$0xff]
      %5184 = vmatpush.bf16.msra.mxu0 %v5170
      %5185 = vmatpush.bf16.msra.mxu0 %v5169
      %5186 = vmatpush.bf16.msra.mxu0 %v5168
      %5187 = vmatpush.bf16.msra.mxu0 %v5167
      %5188 = vmatpush.bf16.msra.mxu0 %v5166
      %5189 = vmatpush.bf16.msra.mxu0 %v5165
      %5190 = vmatpush.bf16.msra.mxu0 %v5164
      %5191 = vmatpush.bf16.msra.mxu0 %v5163
      %5192 = vmatmul.bf16.gmra.mxu0 %v5180
      %v5193 = vpop.f32.mrf.mxu0
      %v5194 = vadd.f32 0.0, %v5193
      %v5195 = vpop.f32.mrf.mxu0
      %5196 = vdwg.mxu0
      %5197 = vmatpush.bf16.msra.mxu0 %v5178
      %5198 = vmatpush.bf16.msra.mxu0 %v5177
      %5199 = vmatpush.bf16.msra.mxu0 %v5176
      %5200 = vmatpush.bf16.msra.mxu0 %v5175
      %5201 = vmatpush.bf16.msra.mxu0 %v5174
      %5202 = vmatpush.bf16.msra.mxu0 %v5173
      %5203 = vmatpush.bf16.msra.mxu0 %v5172
      %5204 = vmatpush.bf16.msra.mxu0 %v5171
      %5205 = vmatmul.bf16.gmra.mxu0 %v5181
      %v5206 = vpop.f32.mrf.mxu0
      %v5207 = vadd.f32 %v5194, %v5206
      %v5208 = vpop.f32.mrf.mxu0
      %5209 = vdwg.mxu0
      %s5210 = scalar_lea.vmem %s246, 1920
      %v5211 = vld [vmem:[%s5210] sm:$0xf]
      %v5212 = vld [vmem:[%s5210 + $0x4] sm:$0xf]
      %v5213 = vld [vmem:[%s5210 + $0x8] sm:$0xf]
      %v5214 = vld [vmem:[%s5210 + $0xc] sm:$0xf]
      %v5215 = vld [vmem:[%s5210 + $0x10] sm:$0xf]
      %v5216 = vld [vmem:[%s5210 + $0x14] sm:$0xf]
      %v5217 = vld [vmem:[%s5210 + $0x18] sm:$0xf]
      %v5218 = vld [vmem:[%s5210 + $0x1c] sm:$0xf]
      %v5219 = vld [vmem:[%s5210 + $0x20] sm:$0xf]
      %v5220 = vld [vmem:[%s5210 + $0x24] sm:$0xf]
      %v5221 = vld [vmem:[%s5210 + $0x28] sm:$0xf]
      %v5222 = vld [vmem:[%s5210 + $0x2c] sm:$0xf]
      %v5223 = vld [vmem:[%s5210 + $0x30] sm:$0xf]
      %v5224 = vld [vmem:[%s5210 + $0x34] sm:$0xf]
      %v5225 = vld [vmem:[%s5210 + $0x38] sm:$0xf]
      %v5226 = vld [vmem:[%s5210 + $0x3c] sm:$0xf]
      %v5227 = vld [vmem:[%s5210 + $0x40] sm:$0xf]
      %v5228 = vld [vmem:[%s5210 + $0x44] sm:$0xf]
      %v5229 = vld [vmem:[%s5210 + $0x48] sm:$0xf]
      %v5230 = vld [vmem:[%s5210 + $0x4c] sm:$0xf]
      %v5231 = vld [vmem:[%s5210 + $0x50] sm:$0xf]
      %v5232 = vld [vmem:[%s5210 + $0x54] sm:$0xf]
      %v5233 = vld [vmem:[%s5210 + $0x58] sm:$0xf]
      %v5234 = vld [vmem:[%s5210 + $0x5c] sm:$0xf]
      %v5235 = vld [vmem:[%s5210 + $0x60] sm:$0xf]
      %v5236 = vld [vmem:[%s5210 + $0x64] sm:$0xf]
      %v5237 = vld [vmem:[%s5210 + $0x68] sm:$0xf]
      %v5238 = vld [vmem:[%s5210 + $0x6c] sm:$0xf]
      %v5239 = vld [vmem:[%s5210 + $0x70] sm:$0xf]
      %v5240 = vld [vmem:[%s5210 + $0x74] sm:$0xf]
      %v5241 = vld [vmem:[%s5210 + $0x78] sm:$0xf]
      %v5242 = vld [vmem:[%s5210 + $0x7c] sm:$0xf]
      %v5275 = vunpack.c.l.b16 %v5211
      %v5276 = vunpack.c.l.b16 %v5212
      %v5277 = vunpack.c.l.b16 %v5213
      %v5278 = vunpack.c.l.b16 %v5214
      %v5279 = vunpack.c.l.b16 %v5215
      %v5280 = vunpack.c.l.b16 %v5216
      %v5281 = vunpack.c.l.b16 %v5217
      %v5282 = vunpack.c.l.b16 %v5218
      %v5283 = vunpack.c.l.b16 %v5219
      %v5284 = vunpack.c.l.b16 %v5220
      %v5285 = vunpack.c.l.b16 %v5221
      %v5286 = vunpack.c.l.b16 %v5222
      %v5287 = vunpack.c.l.b16 %v5223
      %v5288 = vunpack.c.l.b16 %v5224
      %v5289 = vunpack.c.l.b16 %v5225
      %v5290 = vunpack.c.l.b16 %v5226
      %v5291 = vunpack.c.l.b16 %v5227
      %v5292 = vunpack.c.l.b16 %v5228
      %v5293 = vunpack.c.l.b16 %v5229
      %v5294 = vunpack.c.l.b16 %v5230
      %v5295 = vunpack.c.l.b16 %v5231
      %v5296 = vunpack.c.l.b16 %v5232
      %v5297 = vunpack.c.l.b16 %v5233
      %v5298 = vunpack.c.l.b16 %v5234
      %v5299 = vunpack.c.l.b16 %v5235
      %v5300 = vunpack.c.l.b16 %v5236
      %v5301 = vunpack.c.l.b16 %v5237
      %v5302 = vunpack.c.l.b16 %v5238
      %v5303 = vunpack.c.l.b16 %v5239
      %v5304 = vunpack.c.l.b16 %v5240
      %v5305 = vunpack.c.l.b16 %v5241
      %v5306 = vunpack.c.l.b16 %v5242
      %v5307 = vpack.c.b16 %v5276, %v5275
      %v5308 = vpack.c.b16 %v5278, %v5277
      %v5309 = vpack.c.b16 %v5280, %v5279
      %v5310 = vpack.c.b16 %v5282, %v5281
      %v5311 = vpack.c.b16 %v5284, %v5283
      %v5312 = vpack.c.b16 %v5286, %v5285
      %v5313 = vpack.c.b16 %v5288, %v5287
      %v5314 = vpack.c.b16 %v5290, %v5289
      %v5315 = vpack.c.b16 %v5292, %v5291
      %v5316 = vpack.c.b16 %v5294, %v5293
      %v5317 = vpack.c.b16 %v5296, %v5295
      %v5318 = vpack.c.b16 %v5298, %v5297
      %v5319 = vpack.c.b16 %v5300, %v5299
      %v5320 = vpack.c.b16 %v5302, %v5301
      %v5321 = vpack.c.b16 %v5304, %v5303
      %v5322 = vpack.c.b16 %v5306, %v5305
      %v5324 = vsel %vm386, %v5307, 0
      %v5327 = vsel %vm386, %v5308, 0
      %v5330 = vsel %vm386, %v5309, 0
      %v5333 = vsel %vm386, %v5310, 0
      %v5336 = vsel %vm386, %v5311, 0
      %v5339 = vsel %vm386, %v5312, 0
      %v5342 = vsel %vm386, %v5313, 0
      %v5345 = vsel %vm386, %v5314, 0
      %v5348 = vsel %vm386, %v5315, 0
      %v5351 = vsel %vm386, %v5316, 0
      %v5354 = vsel %vm386, %v5317, 0
      %v5357 = vsel %vm386, %v5318, 0
      %v5360 = vsel %vm386, %v5319, 0
      %v5363 = vsel %vm386, %v5320, 0
      %v5366 = vsel %vm386, %v5321, 0
      %v5369 = vsel %vm386, %v5322, 0
      %5371 = vmatpush.bf16.msra.mxu0 0
      %5372 = vmatpush.bf16.msra.mxu0 0
      %5373 = vmatpush.bf16.msra.mxu0 0
      %5374 = vmatpush.bf16.msra.mxu0 0
      %5375 = vmatpush.bf16.msra.mxu0 0
      %5376 = vmatpush.bf16.msra.mxu0 0
      %5377 = vmatpush.bf16.msra.mxu0 %v383
      %5378 = vmatpush.bf16.msra.mxu0 %v382
      %5379 = vmatmul.bf16.gmra.mxu0 %v5324
      %v5380 = vpop.f32.mrf.mxu0
      %v5381 = vadd.f32 %v292, %v5380
      %v5382 = vpop.f32.mrf.mxu0
      %v5383 = vadd.f32 %v292, %v5382
      %5384 = vmatmul.bf16.gmra.mxu0 %v5327
      %v5385 = vpop.f32.mrf.mxu0
      %v5386 = vadd.f32 %v292, %v5385
      %v5387 = vpop.f32.mrf.mxu0
      %v5388 = vadd.f32 %v292, %v5387
      %5389 = vmatmul.bf16.gmra.mxu0 %v5330
      %v5390 = vpop.f32.mrf.mxu0
      %v5391 = vadd.f32 %v292, %v5390
      %v5392 = vpop.f32.mrf.mxu0
      %v5393 = vadd.f32 %v292, %v5392
      %5394 = vmatmul.bf16.gmra.mxu0 %v5333
      %v5395 = vpop.f32.mrf.mxu0
      %v5396 = vadd.f32 %v292, %v5395
      %v5397 = vpop.f32.mrf.mxu0
      %v5398 = vadd.f32 %v292, %v5397
      %5399 = vmatmul.bf16.gmra.mxu0 %v5336
      %v5400 = vpop.f32.mrf.mxu0
      %v5401 = vadd.f32 %v292, %v5400
      %v5402 = vpop.f32.mrf.mxu0
      %v5403 = vadd.f32 %v292, %v5402
      %5404 = vmatmul.bf16.gmra.mxu0 %v5339
      %v5405 = vpop.f32.mrf.mxu0
      %v5406 = vadd.f32 %v292, %v5405
      %v5407 = vpop.f32.mrf.mxu0
      %v5408 = vadd.f32 %v292, %v5407
      %5409 = vmatmul.bf16.gmra.mxu0 %v5342
      %v5410 = vpop.f32.mrf.mxu0
      %v5411 = vadd.f32 %v292, %v5410
      %v5412 = vpop.f32.mrf.mxu0
      %v5413 = vadd.f32 %v292, %v5412
      %5414 = vmatmul.bf16.gmra.mxu0 %v5345
      %v5415 = vpop.f32.mrf.mxu0
      %v5416 = vadd.f32 %v292, %v5415
      %v5417 = vpop.f32.mrf.mxu0
      %v5418 = vadd.f32 %v292, %v5417
      %5419 = vmatmul.bf16.gmra.mxu0 %v5348
      %v5420 = vpop.f32.mrf.mxu0
      %v5421 = vadd.f32 %v292, %v5420
      %v5422 = vpop.f32.mrf.mxu0
      %v5423 = vadd.f32 %v292, %v5422
      %5424 = vmatmul.bf16.gmra.mxu0 %v5351
      %v5425 = vpop.f32.mrf.mxu0
      %v5426 = vadd.f32 %v292, %v5425
      %v5427 = vpop.f32.mrf.mxu0
      %v5428 = vadd.f32 %v292, %v5427
      %5429 = vmatmul.bf16.gmra.mxu0 %v5354
      %v5430 = vpop.f32.mrf.mxu0
      %v5431 = vadd.f32 %v292, %v5430
      %v5432 = vpop.f32.mrf.mxu0
      %v5433 = vadd.f32 %v292, %v5432
      %5434 = vmatmul.bf16.gmra.mxu0 %v5357
      %v5435 = vpop.f32.mrf.mxu0
      %v5436 = vadd.f32 %v292, %v5435
      %v5437 = vpop.f32.mrf.mxu0
      %v5438 = vadd.f32 %v292, %v5437
      %5439 = vmatmul.bf16.gmra.mxu0 %v5360
      %v5440 = vpop.f32.mrf.mxu0
      %v5441 = vadd.f32 %v292, %v5440
      %v5442 = vpop.f32.mrf.mxu0
      %v5443 = vadd.f32 %v292, %v5442
      %5444 = vmatmul.bf16.gmra.mxu0 %v5363
      %v5445 = vpop.f32.mrf.mxu0
      %v5446 = vadd.f32 %v292, %v5445
      %v5447 = vpop.f32.mrf.mxu0
      %v5448 = vadd.f32 %v292, %v5447
      %5449 = vmatmul.bf16.gmra.mxu0 %v5366
      %v5450 = vpop.f32.mrf.mxu0
      %v5451 = vadd.f32 %v292, %v5450
      %v5452 = vpop.f32.mrf.mxu0
      %v5453 = vadd.f32 %v292, %v5452
      %5454 = vmatmul.bf16.gmra.mxu0 %v5369
      %v5455 = vpop.f32.mrf.mxu0
      %v5456 = vadd.f32 %v292, %v5455
      %v5457 = vpop.f32.mrf.mxu0
      %v5458 = vadd.f32 %v292, %v5457
      %5459 = vdwg.mxu0
      %v5460 = vmax.f32 %v5381, 0.0
      %v5461 = vmax.f32 %v5383, 0.0
      %v5462 = vmax.f32 %v5386, 0.0
      %v5463 = vmax.f32 %v5388, 0.0
      %v5464 = vmax.f32 %v5391, 0.0
      %v5465 = vmax.f32 %v5393, 0.0
      %v5466 = vmax.f32 %v5396, 0.0
      %v5467 = vmax.f32 %v5398, 0.0
      %v5468 = vmax.f32 %v5401, 0.0
      %v5469 = vmax.f32 %v5403, 0.0
      %v5470 = vmax.f32 %v5406, 0.0
      %v5471 = vmax.f32 %v5408, 0.0
      %v5472 = vmax.f32 %v5411, 0.0
      %v5473 = vmax.f32 %v5413, 0.0
      %v5474 = vmax.f32 %v5416, 0.0
      %v5475 = vmax.f32 %v5418, 0.0
      %v5476 = vmax.f32 %v5421, 0.0
      %v5477 = vmax.f32 %v5423, 0.0
      %v5478 = vmax.f32 %v5426, 0.0
      %v5479 = vmax.f32 %v5428, 0.0
      %v5480 = vmax.f32 %v5431, 0.0
      %v5481 = vmax.f32 %v5433, 0.0
      %v5482 = vmax.f32 %v5436, 0.0
      %v5483 = vmax.f32 %v5438, 0.0
      %v5484 = vmax.f32 %v5441, 0.0
      %v5485 = vmax.f32 %v5443, 0.0
      %v5486 = vmax.f32 %v5446, 0.0
      %v5487 = vmax.f32 %v5448, 0.0
      %v5488 = vmax.f32 %v5451, 0.0
      %v5489 = vmax.f32 %v5453, 0.0
      %v5490 = vmax.f32 %v5456, 0.0
      %v5491 = vmax.f32 %v5458, 0.0
      %v5492 = vpack.c.bf16 %v5461, %v5460
      %v5493 = vpack.c.bf16 %v5463, %v5462
      %v5494 = vpack.c.bf16 %v5465, %v5464
      %v5495 = vpack.c.bf16 %v5467, %v5466
      %v5496 = vpack.c.bf16 %v5469, %v5468
      %v5497 = vpack.c.bf16 %v5471, %v5470
      %v5498 = vpack.c.bf16 %v5473, %v5472
      %v5499 = vpack.c.bf16 %v5475, %v5474
      %v5500 = vpack.c.bf16 %v5477, %v5476
      %v5501 = vpack.c.bf16 %v5479, %v5478
      %v5502 = vpack.c.bf16 %v5481, %v5480
      %v5503 = vpack.c.bf16 %v5483, %v5482
      %v5504 = vpack.c.bf16 %v5485, %v5484
      %v5505 = vpack.c.bf16 %v5487, %v5486
      %v5506 = vpack.c.bf16 %v5489, %v5488
      %v5507 = vpack.c.bf16 %v5491, %v5490
      %5508 = vst [vmem:[#allocation1] ss:$9 sm:$0xff] %v258
      %v5509 = vld [vmem:[#allocation1] sm:$0xff]
      %v5510 = vld [vmem:[#allocation1 + $0x9] sm:$0xff]
      %5513 = vmatpush.bf16.msra.mxu0 %v5499
      %5514 = vmatpush.bf16.msra.mxu0 %v5498
      %5515 = vmatpush.bf16.msra.mxu0 %v5497
      %5516 = vmatpush.bf16.msra.mxu0 %v5496
      %5517 = vmatpush.bf16.msra.mxu0 %v5495
      %5518 = vmatpush.bf16.msra.mxu0 %v5494
      %5519 = vmatpush.bf16.msra.mxu0 %v5493
      %5520 = vmatpush.bf16.msra.mxu0 %v5492
      %5521 = vmatmul.bf16.gmra.mxu0 %v5509
      %v5522 = vpop.f32.mrf.mxu0
      %v5523 = vadd.f32 0.0, %v5522
      %v5524 = vpop.f32.mrf.mxu0
      %5525 = vdwg.mxu0
      %5526 = vmatpush.bf16.msra.mxu0 %v5507
      %5527 = vmatpush.bf16.msra.mxu0 %v5506
      %5528 = vmatpush.bf16.msra.mxu0 %v5505
      %5529 = vmatpush.bf16.msra.mxu0 %v5504
      %5530 = vmatpush.bf16.msra.mxu0 %v5503
      %5531 = vmatpush.bf16.msra.mxu0 %v5502
      %5532 = vmatpush.bf16.msra.mxu0 %v5501
      %5533 = vmatpush.bf16.msra.mxu0 %v5500
      %5534 = vmatmul.bf16.gmra.mxu0 %v5510
      %v5535 = vpop.f32.mrf.mxu0
      %v5536 = vadd.f32 %v5523, %v5535
      %v5537 = vpop.f32.mrf.mxu0
      %5538 = vdwg.mxu0
      %s5539 = scalar_lea.vmem %s246, 2048
      %v5540 = vld [vmem:[%s5539] sm:$0xf]
      %v5541 = vld [vmem:[%s5539 + $0x4] sm:$0xf]
      %v5542 = vld [vmem:[%s5539 + $0x8] sm:$0xf]
      %v5543 = vld [vmem:[%s5539 + $0xc] sm:$0xf]
      %v5544 = vld [vmem:[%s5539 + $0x10] sm:$0xf]
      %v5545 = vld [vmem:[%s5539 + $0x14] sm:$0xf]
      %v5546 = vld [vmem:[%s5539 + $0x18] sm:$0xf]
      %v5547 = vld [vmem:[%s5539 + $0x1c] sm:$0xf]
      %v5548 = vld [vmem:[%s5539 + $0x20] sm:$0xf]
      %v5549 = vld [vmem:[%s5539 + $0x24] sm:$0xf]
      %v5550 = vld [vmem:[%s5539 + $0x28] sm:$0xf]
      %v5551 = vld [vmem:[%s5539 + $0x2c] sm:$0xf]
      %v5552 = vld [vmem:[%s5539 + $0x30] sm:$0xf]
      %v5553 = vld [vmem:[%s5539 + $0x34] sm:$0xf]
      %v5554 = vld [vmem:[%s5539 + $0x38] sm:$0xf]
      %v5555 = vld [vmem:[%s5539 + $0x3c] sm:$0xf]
      %v5556 = vld [vmem:[%s5539 + $0x40] sm:$0xf]
      %v5557 = vld [vmem:[%s5539 + $0x44] sm:$0xf]
      %v5558 = vld [vmem:[%s5539 + $0x48] sm:$0xf]
      %v5559 = vld [vmem:[%s5539 + $0x4c] sm:$0xf]
      %v5560 = vld [vmem:[%s5539 + $0x50] sm:$0xf]
      %v5561 = vld [vmem:[%s5539 + $0x54] sm:$0xf]
      %v5562 = vld [vmem:[%s5539 + $0x58] sm:$0xf]
      %v5563 = vld [vmem:[%s5539 + $0x5c] sm:$0xf]
      %v5564 = vld [vmem:[%s5539 + $0x60] sm:$0xf]
      %v5565 = vld [vmem:[%s5539 + $0x64] sm:$0xf]
      %v5566 = vld [vmem:[%s5539 + $0x68] sm:$0xf]
      %v5567 = vld [vmem:[%s5539 + $0x6c] sm:$0xf]
      %v5568 = vld [vmem:[%s5539 + $0x70] sm:$0xf]
      %v5569 = vld [vmem:[%s5539 + $0x74] sm:$0xf]
      %v5570 = vld [vmem:[%s5539 + $0x78] sm:$0xf]
      %v5571 = vld [vmem:[%s5539 + $0x7c] sm:$0xf]
      %v5604 = vunpack.c.l.b16 %v5540
      %v5605 = vunpack.c.l.b16 %v5541
      %v5606 = vunpack.c.l.b16 %v5542
      %v5607 = vunpack.c.l.b16 %v5543
      %v5608 = vunpack.c.l.b16 %v5544
      %v5609 = vunpack.c.l.b16 %v5545
      %v5610 = vunpack.c.l.b16 %v5546
      %v5611 = vunpack.c.l.b16 %v5547
      %v5612 = vunpack.c.l.b16 %v5548
      %v5613 = vunpack.c.l.b16 %v5549
      %v5614 = vunpack.c.l.b16 %v5550
      %v5615 = vunpack.c.l.b16 %v5551
      %v5616 = vunpack.c.l.b16 %v5552
      %v5617 = vunpack.c.l.b16 %v5553
      %v5618 = vunpack.c.l.b16 %v5554
      %v5619 = vunpack.c.l.b16 %v5555
      %v5620 = vunpack.c.l.b16 %v5556
      %v5621 = vunpack.c.l.b16 %v5557
      %v5622 = vunpack.c.l.b16 %v5558
      %v5623 = vunpack.c.l.b16 %v5559
      %v5624 = vunpack.c.l.b16 %v5560
      %v5625 = vunpack.c.l.b16 %v5561
      %v5626 = vunpack.c.l.b16 %v5562
      %v5627 = vunpack.c.l.b16 %v5563
      %v5628 = vunpack.c.l.b16 %v5564
      %v5629 = vunpack.c.l.b16 %v5565
      %v5630 = vunpack.c.l.b16 %v5566
      %v5631 = vunpack.c.l.b16 %v5567
      %v5632 = vunpack.c.l.b16 %v5568
      %v5633 = vunpack.c.l.b16 %v5569
      %v5634 = vunpack.c.l.b16 %v5570
      %v5635 = vunpack.c.l.b16 %v5571
      %v5636 = vpack.c.b16 %v5605, %v5604
      %v5637 = vpack.c.b16 %v5607, %v5606
      %v5638 = vpack.c.b16 %v5609, %v5608
      %v5639 = vpack.c.b16 %v5611, %v5610
      %v5640 = vpack.c.b16 %v5613, %v5612
      %v5641 = vpack.c.b16 %v5615, %v5614
      %v5642 = vpack.c.b16 %v5617, %v5616
      %v5643 = vpack.c.b16 %v5619, %v5618
      %v5644 = vpack.c.b16 %v5621, %v5620
      %v5645 = vpack.c.b16 %v5623, %v5622
      %v5646 = vpack.c.b16 %v5625, %v5624
      %v5647 = vpack.c.b16 %v5627, %v5626
      %v5648 = vpack.c.b16 %v5629, %v5628
      %v5649 = vpack.c.b16 %v5631, %v5630
      %v5650 = vpack.c.b16 %v5633, %v5632
      %v5651 = vpack.c.b16 %v5635, %v5634
      %v5653 = vsel %vm386, %v5636, 0
      %v5656 = vsel %vm386, %v5637, 0
      %v5659 = vsel %vm386, %v5638, 0
      %v5662 = vsel %vm386, %v5639, 0
      %v5665 = vsel %vm386, %v5640, 0
      %v5668 = vsel %vm386, %v5641, 0
      %v5671 = vsel %vm386, %v5642, 0
      %v5674 = vsel %vm386, %v5643, 0
      %v5677 = vsel %vm386, %v5644, 0
      %v5680 = vsel %vm386, %v5645, 0
      %v5683 = vsel %vm386, %v5646, 0
      %v5686 = vsel %vm386, %v5647, 0
      %v5689 = vsel %vm386, %v5648, 0
      %v5692 = vsel %vm386, %v5649, 0
      %v5695 = vsel %vm386, %v5650, 0
      %v5698 = vsel %vm386, %v5651, 0
      %5700 = vmatpush.bf16.msra.mxu0 0
      %5701 = vmatpush.bf16.msra.mxu0 0
      %5702 = vmatpush.bf16.msra.mxu0 0
      %5703 = vmatpush.bf16.msra.mxu0 0
      %5704 = vmatpush.bf16.msra.mxu0 0
      %5705 = vmatpush.bf16.msra.mxu0 0
      %5706 = vmatpush.bf16.msra.mxu0 %v383
      %5707 = vmatpush.bf16.msra.mxu0 %v382
      %5708 = vmatmul.bf16.gmra.mxu0 %v5653
      %v5709 = vpop.f32.mrf.mxu0
      %v5710 = vadd.f32 %v292, %v5709
      %v5711 = vpop.f32.mrf.mxu0
      %v5712 = vadd.f32 %v292, %v5711
      %5713 = vmatmul.bf16.gmra.mxu0 %v5656
      %v5714 = vpop.f32.mrf.mxu0
      %v5715 = vadd.f32 %v292, %v5714
      %v5716 = vpop.f32.mrf.mxu0
      %v5717 = vadd.f32 %v292, %v5716
      %5718 = vmatmul.bf16.gmra.mxu0 %v5659
      %v5719 = vpop.f32.mrf.mxu0
      %v5720 = vadd.f32 %v292, %v5719
      %v5721 = vpop.f32.mrf.mxu0
      %v5722 = vadd.f32 %v292, %v5721
      %5723 = vmatmul.bf16.gmra.mxu0 %v5662
      %v5724 = vpop.f32.mrf.mxu0
      %v5725 = vadd.f32 %v292, %v5724
      %v5726 = vpop.f32.mrf.mxu0
      %v5727 = vadd.f32 %v292, %v5726
      %5728 = vmatmul.bf16.gmra.mxu0 %v5665
      %v5729 = vpop.f32.mrf.mxu0
      %v5730 = vadd.f32 %v292, %v5729
      %v5731 = vpop.f32.mrf.mxu0
      %v5732 = vadd.f32 %v292, %v5731
      %5733 = vmatmul.bf16.gmra.mxu0 %v5668
      %v5734 = vpop.f32.mrf.mxu0
      %v5735 = vadd.f32 %v292, %v5734
      %v5736 = vpop.f32.mrf.mxu0
      %v5737 = vadd.f32 %v292, %v5736
      %5738 = vmatmul.bf16.gmra.mxu0 %v5671
      %v5739 = vpop.f32.mrf.mxu0
      %v5740 = vadd.f32 %v292, %v5739
      %v5741 = vpop.f32.mrf.mxu0
      %v5742 = vadd.f32 %v292, %v5741
      %5743 = vmatmul.bf16.gmra.mxu0 %v5674
      %v5744 = vpop.f32.mrf.mxu0
      %v5745 = vadd.f32 %v292, %v5744
      %v5746 = vpop.f32.mrf.mxu0
      %v5747 = vadd.f32 %v292, %v5746
      %5748 = vmatmul.bf16.gmra.mxu0 %v5677
      %v5749 = vpop.f32.mrf.mxu0
      %v5750 = vadd.f32 %v292, %v5749
      %v5751 = vpop.f32.mrf.mxu0
      %v5752 = vadd.f32 %v292, %v5751
      %5753 = vmatmul.bf16.gmra.mxu0 %v5680
      %v5754 = vpop.f32.mrf.mxu0
      %v5755 = vadd.f32 %v292, %v5754
      %v5756 = vpop.f32.mrf.mxu0
      %v5757 = vadd.f32 %v292, %v5756
      %5758 = vmatmul.bf16.gmra.mxu0 %v5683
      %v5759 = vpop.f32.mrf.mxu0
      %v5760 = vadd.f32 %v292, %v5759
      %v5761 = vpop.f32.mrf.mxu0
      %v5762 = vadd.f32 %v292, %v5761
      %5763 = vmatmul.bf16.gmra.mxu0 %v5686
      %v5764 = vpop.f32.mrf.mxu0
      %v5765 = vadd.f32 %v292, %v5764
      %v5766 = vpop.f32.mrf.mxu0
      %v5767 = vadd.f32 %v292, %v5766
      %5768 = vmatmul.bf16.gmra.mxu0 %v5689
      %v5769 = vpop.f32.mrf.mxu0
      %v5770 = vadd.f32 %v292, %v5769
      %v5771 = vpop.f32.mrf.mxu0
      %v5772 = vadd.f32 %v292, %v5771
      %5773 = vmatmul.bf16.gmra.mxu0 %v5692
      %v5774 = vpop.f32.mrf.mxu0
      %v5775 = vadd.f32 %v292, %v5774
      %v5776 = vpop.f32.mrf.mxu0
      %v5777 = vadd.f32 %v292, %v5776
      %5778 = vmatmul.bf16.gmra.mxu0 %v5695
      %v5779 = vpop.f32.mrf.mxu0
      %v5780 = vadd.f32 %v292, %v5779
      %v5781 = vpop.f32.mrf.mxu0
      %v5782 = vadd.f32 %v292, %v5781
      %5783 = vmatmul.bf16.gmra.mxu0 %v5698
      %v5784 = vpop.f32.mrf.mxu0
      %v5785 = vadd.f32 %v292, %v5784
      %v5786 = vpop.f32.mrf.mxu0
      %v5787 = vadd.f32 %v292, %v5786
      %5788 = vdwg.mxu0
      %v5789 = vmax.f32 %v5710, 0.0
      %v5790 = vmax.f32 %v5712, 0.0
      %v5791 = vmax.f32 %v5715, 0.0
      %v5792 = vmax.f32 %v5717, 0.0
      %v5793 = vmax.f32 %v5720, 0.0
      %v5794 = vmax.f32 %v5722, 0.0
      %v5795 = vmax.f32 %v5725, 0.0
      %v5796 = vmax.f32 %v5727, 0.0
      %v5797 = vmax.f32 %v5730, 0.0
      %v5798 = vmax.f32 %v5732, 0.0
      %v5799 = vmax.f32 %v5735, 0.0
      %v5800 = vmax.f32 %v5737, 0.0
      %v5801 = vmax.f32 %v5740, 0.0
      %v5802 = vmax.f32 %v5742, 0.0
      %v5803 = vmax.f32 %v5745, 0.0
      %v5804 = vmax.f32 %v5747, 0.0
      %v5805 = vmax.f32 %v5750, 0.0
      %v5806 = vmax.f32 %v5752, 0.0
      %v5807 = vmax.f32 %v5755, 0.0
      %v5808 = vmax.f32 %v5757, 0.0
      %v5809 = vmax.f32 %v5760, 0.0
      %v5810 = vmax.f32 %v5762, 0.0
      %v5811 = vmax.f32 %v5765, 0.0
      %v5812 = vmax.f32 %v5767, 0.0
      %v5813 = vmax.f32 %v5770, 0.0
      %v5814 = vmax.f32 %v5772, 0.0
      %v5815 = vmax.f32 %v5775, 0.0
      %v5816 = vmax.f32 %v5777, 0.0
      %v5817 = vmax.f32 %v5780, 0.0
      %v5818 = vmax.f32 %v5782, 0.0
      %v5819 = vmax.f32 %v5785, 0.0
      %v5820 = vmax.f32 %v5787, 0.0
      %v5821 = vpack.c.bf16 %v5790, %v5789
      %v5822 = vpack.c.bf16 %v5792, %v5791
      %v5823 = vpack.c.bf16 %v5794, %v5793
      %v5824 = vpack.c.bf16 %v5796, %v5795
      %v5825 = vpack.c.bf16 %v5798, %v5797
      %v5826 = vpack.c.bf16 %v5800, %v5799
      %v5827 = vpack.c.bf16 %v5802, %v5801
      %v5828 = vpack.c.bf16 %v5804, %v5803
      %v5829 = vpack.c.bf16 %v5806, %v5805
      %v5830 = vpack.c.bf16 %v5808, %v5807
      %v5831 = vpack.c.bf16 %v5810, %v5809
      %v5832 = vpack.c.bf16 %v5812, %v5811
      %v5833 = vpack.c.bf16 %v5814, %v5813
      %v5834 = vpack.c.bf16 %v5816, %v5815
      %v5835 = vpack.c.bf16 %v5818, %v5817
      %v5836 = vpack.c.bf16 %v5820, %v5819
      %5837 = vst [vmem:[#allocation1] ss:$9 sm:$0xff] %v258
      %v5838 = vld [vmem:[#allocation1] sm:$0xff]
      %v5839 = vld [vmem:[#allocation1 + $0x9] sm:$0xff]
      %5842 = vmatpush.bf16.msra.mxu0 %v5828
      %5843 = vmatpush.bf16.msra.mxu0 %v5827
      %5844 = vmatpush.bf16.msra.mxu0 %v5826
      %5845 = vmatpush.bf16.msra.mxu0 %v5825
      %5846 = vmatpush.bf16.msra.mxu0 %v5824
      %5847 = vmatpush.bf16.msra.mxu0 %v5823
      %5848 = vmatpush.bf16.msra.mxu0 %v5822
      %5849 = vmatpush.bf16.msra.mxu0 %v5821
      %5850 = vmatmul.bf16.gmra.mxu0 %v5838
      %v5851 = vpop.f32.mrf.mxu0
      %v5852 = vadd.f32 0.0, %v5851
      %v5853 = vpop.f32.mrf.mxu0
      %5854 = vdwg.mxu0
      %5855 = vmatpush.bf16.msra.mxu0 %v5836
      %5856 = vmatpush.bf16.msra.mxu0 %v5835
      %5857 = vmatpush.bf16.msra.mxu0 %v5834
      %5858 = vmatpush.bf16.msra.mxu0 %v5833
      %5859 = vmatpush.bf16.msra.mxu0 %v5832
      %5860 = vmatpush.bf16.msra.mxu0 %v5831
      %5861 = vmatpush.bf16.msra.mxu0 %v5830
      %5862 = vmatpush.bf16.msra.mxu0 %v5829
      %5863 = vmatmul.bf16.gmra.mxu0 %v5839
      %v5864 = vpop.f32.mrf.mxu0
      %v5865 = vadd.f32 %v5852, %v5864
      %v5866 = vpop.f32.mrf.mxu0
      %5867 = vdwg.mxu0
      %s5868 = scalar_lea.vmem %s246, 2176
      %v5869 = vld [vmem:[%s5868] sm:$0xf]
      %v5870 = vld [vmem:[%s5868 + $0x4] sm:$0xf]
      %v5871 = vld [vmem:[%s5868 + $0x8] sm:$0xf]
      %v5872 = vld [vmem:[%s5868 + $0xc] sm:$0xf]
      %v5873 = vld [vmem:[%s5868 + $0x10] sm:$0xf]
      %v5874 = vld [vmem:[%s5868 + $0x14] sm:$0xf]
      %v5875 = vld [vmem:[%s5868 + $0x18] sm:$0xf]
      %v5876 = vld [vmem:[%s5868 + $0x1c] sm:$0xf]
      %v5877 = vld [vmem:[%s5868 + $0x20] sm:$0xf]
      %v5878 = vld [vmem:[%s5868 + $0x24] sm:$0xf]
      %v5879 = vld [vmem:[%s5868 + $0x28] sm:$0xf]
      %v5880 = vld [vmem:[%s5868 + $0x2c] sm:$0xf]
      %v5881 = vld [vmem:[%s5868 + $0x30] sm:$0xf]
      %v5882 = vld [vmem:[%s5868 + $0x34] sm:$0xf]
      %v5883 = vld [vmem:[%s5868 + $0x38] sm:$0xf]
      %v5884 = vld [vmem:[%s5868 + $0x3c] sm:$0xf]
      %v5885 = vld [vmem:[%s5868 + $0x40] sm:$0xf]
      %v5886 = vld [vmem:[%s5868 + $0x44] sm:$0xf]
      %v5887 = vld [vmem:[%s5868 + $0x48] sm:$0xf]
      %v5888 = vld [vmem:[%s5868 + $0x4c] sm:$0xf]
      %v5889 = vld [vmem:[%s5868 + $0x50] sm:$0xf]
      %v5890 = vld [vmem:[%s5868 + $0x54] sm:$0xf]
      %v5891 = vld [vmem:[%s5868 + $0x58] sm:$0xf]
      %v5892 = vld [vmem:[%s5868 + $0x5c] sm:$0xf]
      %v5893 = vld [vmem:[%s5868 + $0x60] sm:$0xf]
      %v5894 = vld [vmem:[%s5868 + $0x64] sm:$0xf]
      %v5895 = vld [vmem:[%s5868 + $0x68] sm:$0xf]
      %v5896 = vld [vmem:[%s5868 + $0x6c] sm:$0xf]
      %v5897 = vld [vmem:[%s5868 + $0x70] sm:$0xf]
      %v5898 = vld [vmem:[%s5868 + $0x74] sm:$0xf]
      %v5899 = vld [vmem:[%s5868 + $0x78] sm:$0xf]
      %v5900 = vld [vmem:[%s5868 + $0x7c] sm:$0xf]
      %v5933 = vunpack.c.l.b16 %v5869
      %v5934 = vunpack.c.l.b16 %v5870
      %v5935 = vunpack.c.l.b16 %v5871
      %v5936 = vunpack.c.l.b16 %v5872
      %v5937 = vunpack.c.l.b16 %v5873
      %v5938 = vunpack.c.l.b16 %v5874
      %v5939 = vunpack.c.l.b16 %v5875
      %v5940 = vunpack.c.l.b16 %v5876
      %v5941 = vunpack.c.l.b16 %v5877
      %v5942 = vunpack.c.l.b16 %v5878
      %v5943 = vunpack.c.l.b16 %v5879
      %v5944 = vunpack.c.l.b16 %v5880
      %v5945 = vunpack.c.l.b16 %v5881
      %v5946 = vunpack.c.l.b16 %v5882
      %v5947 = vunpack.c.l.b16 %v5883
      %v5948 = vunpack.c.l.b16 %v5884
      %v5949 = vunpack.c.l.b16 %v5885
      %v5950 = vunpack.c.l.b16 %v5886
      %v5951 = vunpack.c.l.b16 %v5887
      %v5952 = vunpack.c.l.b16 %v5888
      %v5953 = vunpack.c.l.b16 %v5889
      %v5954 = vunpack.c.l.b16 %v5890
      %v5955 = vunpack.c.l.b16 %v5891
      %v5956 = vunpack.c.l.b16 %v5892
      %v5957 = vunpack.c.l.b16 %v5893
      %v5958 = vunpack.c.l.b16 %v5894
      %v5959 = vunpack.c.l.b16 %v5895
      %v5960 = vunpack.c.l.b16 %v5896
      %v5961 = vunpack.c.l.b16 %v5897
      %v5962 = vunpack.c.l.b16 %v5898
      %v5963 = vunpack.c.l.b16 %v5899
      %v5964 = vunpack.c.l.b16 %v5900
      %v5965 = vpack.c.b16 %v5934, %v5933
      %v5966 = vpack.c.b16 %v5936, %v5935
      %v5967 = vpack.c.b16 %v5938, %v5937
      %v5968 = vpack.c.b16 %v5940, %v5939
      %v5969 = vpack.c.b16 %v5942, %v5941
      %v5970 = vpack.c.b16 %v5944, %v5943
      %v5971 = vpack.c.b16 %v5946, %v5945
      %v5972 = vpack.c.b16 %v5948, %v5947
      %v5973 = vpack.c.b16 %v5950, %v5949
      %v5974 = vpack.c.b16 %v5952, %v5951
      %v5975 = vpack.c.b16 %v5954, %v5953
      %v5976 = vpack.c.b16 %v5956, %v5955
      %v5977 = vpack.c.b16 %v5958, %v5957
      %v5978 = vpack.c.b16 %v5960, %v5959
      %v5979 = vpack.c.b16 %v5962, %v5961
      %v5980 = vpack.c.b16 %v5964, %v5963
      %v5982 = vsel %vm386, %v5965, 0
      %v5985 = vsel %vm386, %v5966, 0
      %v5988 = vsel %vm386, %v5967, 0
      %v5991 = vsel %vm386, %v5968, 0
      %v5994 = vsel %vm386, %v5969, 0
      %v5997 = vsel %vm386, %v5970, 0
      %v6000 = vsel %vm386, %v5971, 0
      %v6003 = vsel %vm386, %v5972, 0
      %v6006 = vsel %vm386, %v5973, 0
      %v6009 = vsel %vm386, %v5974, 0
      %v6012 = vsel %vm386, %v5975, 0
      %v6015 = vsel %vm386, %v5976, 0
      %v6018 = vsel %vm386, %v5977, 0
      %v6021 = vsel %vm386, %v5978, 0
      %v6024 = vsel %vm386, %v5979, 0
      %v6027 = vsel %vm386, %v5980, 0
      %6029 = vmatpush.bf16.msra.mxu0 0
      %6030 = vmatpush.bf16.msra.mxu0 0
      %6031 = vmatpush.bf16.msra.mxu0 0
      %6032 = vmatpush.bf16.msra.mxu0 0
      %6033 = vmatpush.bf16.msra.mxu0 0
      %6034 = vmatpush.bf16.msra.mxu0 0
      %6035 = vmatpush.bf16.msra.mxu0 %v383
      %6036 = vmatpush.bf16.msra.mxu0 %v382
      %6037 = vmatmul.bf16.gmra.mxu0 %v5982
      %v6038 = vpop.f32.mrf.mxu0
      %v6039 = vadd.f32 %v292, %v6038
      %v6040 = vpop.f32.mrf.mxu0
      %v6041 = vadd.f32 %v292, %v6040
      %6042 = vmatmul.bf16.gmra.mxu0 %v5985
      %v6043 = vpop.f32.mrf.mxu0
      %v6044 = vadd.f32 %v292, %v6043
      %v6045 = vpop.f32.mrf.mxu0
      %v6046 = vadd.f32 %v292, %v6045
      %6047 = vmatmul.bf16.gmra.mxu0 %v5988
      %v6048 = vpop.f32.mrf.mxu0
      %v6049 = vadd.f32 %v292, %v6048
      %v6050 = vpop.f32.mrf.mxu0
      %v6051 = vadd.f32 %v292, %v6050
      %6052 = vmatmul.bf16.gmra.mxu0 %v5991
      %v6053 = vpop.f32.mrf.mxu0
      %v6054 = vadd.f32 %v292, %v6053
      %v6055 = vpop.f32.mrf.mxu0
      %v6056 = vadd.f32 %v292, %v6055
      %6057 = vmatmul.bf16.gmra.mxu0 %v5994
      %v6058 = vpop.f32.mrf.mxu0
      %v6059 = vadd.f32 %v292, %v6058
      %v6060 = vpop.f32.mrf.mxu0
      %v6061 = vadd.f32 %v292, %v6060
      %6062 = vmatmul.bf16.gmra.mxu0 %v5997
      %v6063 = vpop.f32.mrf.mxu0
      %v6064 = vadd.f32 %v292, %v6063
      %v6065 = vpop.f32.mrf.mxu0
      %v6066 = vadd.f32 %v292, %v6065
      %6067 = vmatmul.bf16.gmra.mxu0 %v6000
      %v6068 = vpop.f32.mrf.mxu0
      %v6069 = vadd.f32 %v292, %v6068
      %v6070 = vpop.f32.mrf.mxu0
      %v6071 = vadd.f32 %v292, %v6070
      %6072 = vmatmul.bf16.gmra.mxu0 %v6003
      %v6073 = vpop.f32.mrf.mxu0
      %v6074 = vadd.f32 %v292, %v6073
      %v6075 = vpop.f32.mrf.mxu0
      %v6076 = vadd.f32 %v292, %v6075
      %6077 = vmatmul.bf16.gmra.mxu0 %v6006
      %v6078 = vpop.f32.mrf.mxu0
      %v6079 = vadd.f32 %v292, %v6078
      %v6080 = vpop.f32.mrf.mxu0
      %v6081 = vadd.f32 %v292, %v6080
      %6082 = vmatmul.bf16.gmra.mxu0 %v6009
      %v6083 = vpop.f32.mrf.mxu0
      %v6084 = vadd.f32 %v292, %v6083
      %v6085 = vpop.f32.mrf.mxu0
      %v6086 = vadd.f32 %v292, %v6085
      %6087 = vmatmul.bf16.gmra.mxu0 %v6012
      %v6088 = vpop.f32.mrf.mxu0
      %v6089 = vadd.f32 %v292, %v6088
      %v6090 = vpop.f32.mrf.mxu0
      %v6091 = vadd.f32 %v292, %v6090
      %6092 = vmatmul.bf16.gmra.mxu0 %v6015
      %v6093 = vpop.f32.mrf.mxu0
      %v6094 = vadd.f32 %v292, %v6093
      %v6095 = vpop.f32.mrf.mxu0
      %v6096 = vadd.f32 %v292, %v6095
      %6097 = vmatmul.bf16.gmra.mxu0 %v6018
      %v6098 = vpop.f32.mrf.mxu0
      %v6099 = vadd.f32 %v292, %v6098
      %v6100 = vpop.f32.mrf.mxu0
      %v6101 = vadd.f32 %v292, %v6100
      %6102 = vmatmul.bf16.gmra.mxu0 %v6021
      %v6103 = vpop.f32.mrf.mxu0
      %v6104 = vadd.f32 %v292, %v6103
      %v6105 = vpop.f32.mrf.mxu0
      %v6106 = vadd.f32 %v292, %v6105
      %6107 = vmatmul.bf16.gmra.mxu0 %v6024
      %v6108 = vpop.f32.mrf.mxu0
      %v6109 = vadd.f32 %v292, %v6108
      %v6110 = vpop.f32.mrf.mxu0
      %v6111 = vadd.f32 %v292, %v6110
      %6112 = vmatmul.bf16.gmra.mxu0 %v6027
      %v6113 = vpop.f32.mrf.mxu0
      %v6114 = vadd.f32 %v292, %v6113
      %v6115 = vpop.f32.mrf.mxu0
      %v6116 = vadd.f32 %v292, %v6115
      %6117 = vdwg.mxu0
      %v6118 = vmax.f32 %v6039, 0.0
      %v6119 = vmax.f32 %v6041, 0.0
      %v6120 = vmax.f32 %v6044, 0.0
      %v6121 = vmax.f32 %v6046, 0.0
      %v6122 = vmax.f32 %v6049, 0.0
      %v6123 = vmax.f32 %v6051, 0.0
      %v6124 = vmax.f32 %v6054, 0.0
      %v6125 = vmax.f32 %v6056, 0.0
      %v6126 = vmax.f32 %v6059, 0.0
      %v6127 = vmax.f32 %v6061, 0.0
      %v6128 = vmax.f32 %v6064, 0.0
      %v6129 = vmax.f32 %v6066, 0.0
      %v6130 = vmax.f32 %v6069, 0.0
      %v6131 = vmax.f32 %v6071, 0.0
      %v6132 = vmax.f32 %v6074, 0.0
      %v6133 = vmax.f32 %v6076, 0.0
      %v6134 = vmax.f32 %v6079, 0.0
      %v6135 = vmax.f32 %v6081, 0.0
      %v6136 = vmax.f32 %v6084, 0.0
      %v6137 = vmax.f32 %v6086, 0.0
      %v6138 = vmax.f32 %v6089, 0.0
      %v6139 = vmax.f32 %v6091, 0.0
      %v6140 = vmax.f32 %v6094, 0.0
      %v6141 = vmax.f32 %v6096, 0.0
      %v6142 = vmax.f32 %v6099, 0.0
      %v6143 = vmax.f32 %v6101, 0.0
      %v6144 = vmax.f32 %v6104, 0.0
      %v6145 = vmax.f32 %v6106, 0.0
      %v6146 = vmax.f32 %v6109, 0.0
      %v6147 = vmax.f32 %v6111, 0.0
      %v6148 = vmax.f32 %v6114, 0.0
      %v6149 = vmax.f32 %v6116, 0.0
      %v6150 = vpack.c.bf16 %v6119, %v6118
      %v6151 = vpack.c.bf16 %v6121, %v6120
      %v6152 = vpack.c.bf16 %v6123, %v6122
      %v6153 = vpack.c.bf16 %v6125, %v6124
      %v6154 = vpack.c.bf16 %v6127, %v6126
      %v6155 = vpack.c.bf16 %v6129, %v6128
      %v6156 = vpack.c.bf16 %v6131, %v6130
      %v6157 = vpack.c.bf16 %v6133, %v6132
      %v6158 = vpack.c.bf16 %v6135, %v6134
      %v6159 = vpack.c.bf16 %v6137, %v6136
      %v6160 = vpack.c.bf16 %v6139, %v6138
      %v6161 = vpack.c.bf16 %v6141, %v6140
      %v6162 = vpack.c.bf16 %v6143, %v6142
      %v6163 = vpack.c.bf16 %v6145, %v6144
      %v6164 = vpack.c.bf16 %v6147, %v6146
      %v6165 = vpack.c.bf16 %v6149, %v6148
      %6166 = vst [vmem:[#allocation1] ss:$9 sm:$0xff] %v258
      %v6167 = vld [vmem:[#allocation1] sm:$0xff]
      %v6168 = vld [vmem:[#allocation1 + $0x9] sm:$0xff]
      %6171 = vmatpush.bf16.msra.mxu0 %v6157
      %6172 = vmatpush.bf16.msra.mxu0 %v6156
      %6173 = vmatpush.bf16.msra.mxu0 %v6155
      %6174 = vmatpush.bf16.msra.mxu0 %v6154
      %6175 = vmatpush.bf16.msra.mxu0 %v6153
      %6176 = vmatpush.bf16.msra.mxu0 %v6152
      %6177 = vmatpush.bf16.msra.mxu0 %v6151
      %6178 = vmatpush.bf16.msra.mxu0 %v6150
      %6179 = vmatmul.bf16.gmra.mxu0 %v6167
      %v6180 = vpop.f32.mrf.mxu0
      %v6181 = vadd.f32 0.0, %v6180
      %v6182 = vpop.f32.mrf.mxu0
      %6183 = vdwg.mxu0
      %6184 = vmatpush.bf16.msra.mxu0 %v6165
      %6185 = vmatpush.bf16.msra.mxu0 %v6164
      %6186 = vmatpush.bf16.msra.mxu0 %v6163
      %6187 = vmatpush.bf16.msra.mxu0 %v6162
      %6188 = vmatpush.bf16.msra.mxu0 %v6161
      %6189 = vmatpush.bf16.msra.mxu0 %v6160
      %6190 = vmatpush.bf16.msra.mxu0 %v6159
      %6191 = vmatpush.bf16.msra.mxu0 %v6158
      %6192 = vmatmul.bf16.gmra.mxu0 %v6168
      %v6193 = vpop.f32.mrf.mxu0
      %v6194 = vadd.f32 %v6181, %v6193
      %v6195 = vpop.f32.mrf.mxu0
      %6196 = vdwg.mxu0
      %s6197 = scalar_lea.vmem %s246, 2304
      %v6198 = vld [vmem:[%s6197] sm:$0xf]
      %v6199 = vld [vmem:[%s6197 + $0x4] sm:$0xf]
      %v6200 = vld [vmem:[%s6197 + $0x8] sm:$0xf]
      %v6201 = vld [vmem:[%s6197 + $0xc] sm:$0xf]
      %v6202 = vld [vmem:[%s6197 + $0x10] sm:$0xf]
      %v6203 = vld [vmem:[%s6197 + $0x14] sm:$0xf]
      %v6204 = vld [vmem:[%s6197 + $0x18] sm:$0xf]
      %v6205 = vld [vmem:[%s6197 + $0x1c] sm:$0xf]
      %v6206 = vld [vmem:[%s6197 + $0x20] sm:$0xf]
      %v6207 = vld [vmem:[%s6197 + $0x24] sm:$0xf]
      %v6208 = vld [vmem:[%s6197 + $0x28] sm:$0xf]
      %v6209 = vld [vmem:[%s6197 + $0x2c] sm:$0xf]
      %v6210 = vld [vmem:[%s6197 + $0x30] sm:$0xf]
      %v6211 = vld [vmem:[%s6197 + $0x34] sm:$0xf]
      %v6212 = vld [vmem:[%s6197 + $0x38] sm:$0xf]
      %v6213 = vld [vmem:[%s6197 + $0x3c] sm:$0xf]
      %v6214 = vld [vmem:[%s6197 + $0x40] sm:$0xf]
      %v6215 = vld [vmem:[%s6197 + $0x44] sm:$0xf]
      %v6216 = vld [vmem:[%s6197 + $0x48] sm:$0xf]
      %v6217 = vld [vmem:[%s6197 + $0x4c] sm:$0xf]
      %v6218 = vld [vmem:[%s6197 + $0x50] sm:$0xf]
      %v6219 = vld [vmem:[%s6197 + $0x54] sm:$0xf]
      %v6220 = vld [vmem:[%s6197 + $0x58] sm:$0xf]
      %v6221 = vld [vmem:[%s6197 + $0x5c] sm:$0xf]
      %v6222 = vld [vmem:[%s6197 + $0x60] sm:$0xf]
      %v6223 = vld [vmem:[%s6197 + $0x64] sm:$0xf]
      %v6224 = vld [vmem:[%s6197 + $0x68] sm:$0xf]
      %v6225 = vld [vmem:[%s6197 + $0x6c] sm:$0xf]
      %v6226 = vld [vmem:[%s6197 + $0x70] sm:$0xf]
      %v6227 = vld [vmem:[%s6197 + $0x74] sm:$0xf]
      %v6228 = vld [vmem:[%s6197 + $0x78] sm:$0xf]
      %v6229 = vld [vmem:[%s6197 + $0x7c] sm:$0xf]
      %v6262 = vunpack.c.l.b16 %v6198
      %v6263 = vunpack.c.l.b16 %v6199
      %v6264 = vunpack.c.l.b16 %v6200
      %v6265 = vunpack.c.l.b16 %v6201
      %v6266 = vunpack.c.l.b16 %v6202
      %v6267 = vunpack.c.l.b16 %v6203
      %v6268 = vunpack.c.l.b16 %v6204
      %v6269 = vunpack.c.l.b16 %v6205
      %v6270 = vunpack.c.l.b16 %v6206
      %v6271 = vunpack.c.l.b16 %v6207
      %v6272 = vunpack.c.l.b16 %v6208
      %v6273 = vunpack.c.l.b16 %v6209
      %v6274 = vunpack.c.l.b16 %v6210
      %v6275 = vunpack.c.l.b16 %v6211
      %v6276 = vunpack.c.l.b16 %v6212
      %v6277 = vunpack.c.l.b16 %v6213
      %v6278 = vunpack.c.l.b16 %v6214
      %v6279 = vunpack.c.l.b16 %v6215
      %v6280 = vunpack.c.l.b16 %v6216
      %v6281 = vunpack.c.l.b16 %v6217
      %v6282 = vunpack.c.l.b16 %v6218
      %v6283 = vunpack.c.l.b16 %v6219
      %v6284 = vunpack.c.l.b16 %v6220
      %v6285 = vunpack.c.l.b16 %v6221
      %v6286 = vunpack.c.l.b16 %v6222
      %v6287 = vunpack.c.l.b16 %v6223
      %v6288 = vunpack.c.l.b16 %v6224
      %v6289 = vunpack.c.l.b16 %v6225
      %v6290 = vunpack.c.l.b16 %v6226
      %v6291 = vunpack.c.l.b16 %v6227
      %v6292 = vunpack.c.l.b16 %v6228
      %v6293 = vunpack.c.l.b16 %v6229
      %v6294 = vpack.c.b16 %v6263, %v6262
      %v6295 = vpack.c.b16 %v6265, %v6264
      %v6296 = vpack.c.b16 %v6267, %v6266
      %v6297 = vpack.c.b16 %v6269, %v6268
      %v6298 = vpack.c.b16 %v6271, %v6270
      %v6299 = vpack.c.b16 %v6273, %v6272
      %v6300 = vpack.c.b16 %v6275, %v6274
      %v6301 = vpack.c.b16 %v6277, %v6276
      %v6302 = vpack.c.b16 %v6279, %v6278
      %v6303 = vpack.c.b16 %v6281, %v6280
      %v6304 = vpack.c.b16 %v6283, %v6282
      %v6305 = vpack.c.b16 %v6285, %v6284
      %v6306 = vpack.c.b16 %v6287, %v6286
      %v6307 = vpack.c.b16 %v6289, %v6288
      %v6308 = vpack.c.b16 %v6291, %v6290
      %v6309 = vpack.c.b16 %v6293, %v6292
      %v6311 = vsel %vm386, %v6294, 0
      %v6314 = vsel %vm386, %v6295, 0
      %v6317 = vsel %vm386, %v6296, 0
      %v6320 = vsel %vm386, %v6297, 0
      %v6323 = vsel %vm386, %v6298, 0
      %v6326 = vsel %vm386, %v6299, 0
      %v6329 = vsel %vm386, %v6300, 0
      %v6332 = vsel %vm386, %v6301, 0
      %v6335 = vsel %vm386, %v6302, 0
      %v6338 = vsel %vm386, %v6303, 0
      %v6341 = vsel %vm386, %v6304, 0
      %v6344 = vsel %vm386, %v6305, 0
      %v6347 = vsel %vm386, %v6306, 0
      %v6350 = vsel %vm386, %v6307, 0
      %v6353 = vsel %vm386, %v6308, 0
      %v6356 = vsel %vm386, %v6309, 0
      %6358 = vmatpush.bf16.msra.mxu0 0
      %6359 = vmatpush.bf16.msra.mxu0 0
      %6360 = vmatpush.bf16.msra.mxu0 0
      %6361 = vmatpush.bf16.msra.mxu0 0
      %6362 = vmatpush.bf16.msra.mxu0 0
      %6363 = vmatpush.bf16.msra.mxu0 0
      %6364 = vmatpush.bf16.msra.mxu0 %v383
      %6365 = vmatpush.bf16.msra.mxu0 %v382
      %6366 = vmatmul.bf16.gmra.mxu0 %v6311
      %v6367 = vpop.f32.mrf.mxu0
      %v6368 = vadd.f32 %v292, %v6367
      %v6369 = vpop.f32.mrf.mxu0
      %v6370 = vadd.f32 %v292, %v6369
      %6371 = vmatmul.bf16.gmra.mxu0 %v6314
      %v6372 = vpop.f32.mrf.mxu0
      %v6373 = vadd.f32 %v292, %v6372
      %v6374 = vpop.f32.mrf.mxu0
      %v6375 = vadd.f32 %v292, %v6374
      %6376 = vmatmul.bf16.gmra.mxu0 %v6317
      %v6377 = vpop.f32.mrf.mxu0
      %v6378 = vadd.f32 %v292, %v6377
      %v6379 = vpop.f32.mrf.mxu0
      %v6380 = vadd.f32 %v292, %v6379
      %6381 = vmatmul.bf16.gmra.mxu0 %v6320
      %v6382 = vpop.f32.mrf.mxu0
      %v6383 = vadd.f32 %v292, %v6382
      %v6384 = vpop.f32.mrf.mxu0
      %v6385 = vadd.f32 %v292, %v6384
      %6386 = vmatmul.bf16.gmra.mxu0 %v6323
      %v6387 = vpop.f32.mrf.mxu0
      %v6388 = vadd.f32 %v292, %v6387
      %v6389 = vpop.f32.mrf.mxu0
      %v6390 = vadd.f32 %v292, %v6389
      %6391 = vmatmul.bf16.gmra.mxu0 %v6326
      %v6392 = vpop.f32.mrf.mxu0
      %v6393 = vadd.f32 %v292, %v6392
      %v6394 = vpop.f32.mrf.mxu0
      %v6395 = vadd.f32 %v292, %v6394
      %6396 = vmatmul.bf16.gmra.mxu0 %v6329
      %v6397 = vpop.f32.mrf.mxu0
      %v6398 = vadd.f32 %v292, %v6397
      %v6399 = vpop.f32.mrf.mxu0
      %v6400 = vadd.f32 %v292, %v6399
      %6401 = vmatmul.bf16.gmra.mxu0 %v6332
      %v6402 = vpop.f32.mrf.mxu0
      %v6403 = vadd.f32 %v292, %v6402
      %v6404 = vpop.f32.mrf.mxu0
      %v6405 = vadd.f32 %v292, %v6404
      %6406 = vmatmul.bf16.gmra.mxu0 %v6335
      %v6407 = vpop.f32.mrf.mxu0
      %v6408 = vadd.f32 %v292, %v6407
      %v6409 = vpop.f32.mrf.mxu0
      %v6410 = vadd.f32 %v292, %v6409
      %6411 = vmatmul.bf16.gmra.mxu0 %v6338
      %v6412 = vpop.f32.mrf.mxu0
      %v6413 = vadd.f32 %v292, %v6412
      %v6414 = vpop.f32.mrf.mxu0
      %v6415 = vadd.f32 %v292, %v6414
      %6416 = vmatmul.bf16.gmra.mxu0 %v6341
      %v6417 = vpop.f32.mrf.mxu0
      %v6418 = vadd.f32 %v292, %v6417
      %v6419 = vpop.f32.mrf.mxu0
      %v6420 = vadd.f32 %v292, %v6419
      %6421 = vmatmul.bf16.gmra.mxu0 %v6344
      %v6422 = vpop.f32.mrf.mxu0
      %v6423 = vadd.f32 %v292, %v6422
      %v6424 = vpop.f32.mrf.mxu0
      %v6425 = vadd.f32 %v292, %v6424
      %6426 = vmatmul.bf16.gmra.mxu0 %v6347
      %v6427 = vpop.f32.mrf.mxu0
      %v6428 = vadd.f32 %v292, %v6427
      %v6429 = vpop.f32.mrf.mxu0
      %v6430 = vadd.f32 %v292, %v6429
      %6431 = vmatmul.bf16.gmra.mxu0 %v6350
      %v6432 = vpop.f32.mrf.mxu0
      %v6433 = vadd.f32 %v292, %v6432
      %v6434 = vpop.f32.mrf.mxu0
      %v6435 = vadd.f32 %v292, %v6434
      %6436 = vmatmul.bf16.gmra.mxu0 %v6353
      %v6437 = vpop.f32.mrf.mxu0
      %v6438 = vadd.f32 %v292, %v6437
      %v6439 = vpop.f32.mrf.mxu0
      %v6440 = vadd.f32 %v292, %v6439
      %6441 = vmatmul.bf16.gmra.mxu0 %v6356
      %v6442 = vpop.f32.mrf.mxu0
      %v6443 = vadd.f32 %v292, %v6442
      %v6444 = vpop.f32.mrf.mxu0
      %v6445 = vadd.f32 %v292, %v6444
      %6446 = vdwg.mxu0
      %v6447 = vmax.f32 %v6368, 0.0
      %v6448 = vmax.f32 %v6370, 0.0
      %v6449 = vmax.f32 %v6373, 0.0
      %v6450 = vmax.f32 %v6375, 0.0
      %v6451 = vmax.f32 %v6378, 0.0
      %v6452 = vmax.f32 %v6380, 0.0
      %v6453 = vmax.f32 %v6383, 0.0
      %v6454 = vmax.f32 %v6385, 0.0
      %v6455 = vmax.f32 %v6388, 0.0
      %v6456 = vmax.f32 %v6390, 0.0
      %v6457 = vmax.f32 %v6393, 0.0
      %v6458 = vmax.f32 %v6395, 0.0
      %v6459 = vmax.f32 %v6398, 0.0
      %v6460 = vmax.f32 %v6400, 0.0
      %v6461 = vmax.f32 %v6403, 0.0
      %v6462 = vmax.f32 %v6405, 0.0
      %v6463 = vmax.f32 %v6408, 0.0
      %v6464 = vmax.f32 %v6410, 0.0
      %v6465 = vmax.f32 %v6413, 0.0
      %v6466 = vmax.f32 %v6415, 0.0
      %v6467 = vmax.f32 %v6418, 0.0
      %v6468 = vmax.f32 %v6420, 0.0
      %v6469 = vmax.f32 %v6423, 0.0
      %v6470 = vmax.f32 %v6425, 0.0
      %v6471 = vmax.f32 %v6428, 0.0
      %v6472 = vmax.f32 %v6430, 0.0
      %v6473 = vmax.f32 %v6433, 0.0
      %v6474 = vmax.f32 %v6435, 0.0
      %v6475 = vmax.f32 %v6438, 0.0
      %v6476 = vmax.f32 %v6440, 0.0
      %v6477 = vmax.f32 %v6443, 0.0
      %v6478 = vmax.f32 %v6445, 0.0
      %v6479 = vpack.c.bf16 %v6448, %v6447
      %v6480 = vpack.c.bf16 %v6450, %v6449
      %v6481 = vpack.c.bf16 %v6452, %v6451
      %v6482 = vpack.c.bf16 %v6454, %v6453
      %v6483 = vpack.c.bf16 %v6456, %v6455
      %v6484 = vpack.c.bf16 %v6458, %v6457
      %v6485 = vpack.c.bf16 %v6460, %v6459
      %v6486 = vpack.c.bf16 %v6462, %v6461
      %v6487 = vpack.c.bf16 %v6464, %v6463
      %v6488 = vpack.c.bf16 %v6466, %v6465
      %v6489 = vpack.c.bf16 %v6468, %v6467
      %v6490 = vpack.c.bf16 %v6470, %v6469
      %v6491 = vpack.c.bf16 %v6472, %v6471
      %v6492 = vpack.c.bf16 %v6474, %v6473
      %v6493 = vpack.c.bf16 %v6476, %v6475
      %v6494 = vpack.c.bf16 %v6478, %v6477
      %6495 = vst [vmem:[#allocation1] ss:$9 sm:$0xff] %v258
      %v6496 = vld [vmem:[#allocation1] sm:$0xff]
      %v6497 = vld [vmem:[#allocation1 + $0x9] sm:$0xff]
      %6500 = vmatpush.bf16.msra.mxu0 %v6486
      %6501 = vmatpush.bf16.msra.mxu0 %v6485
      %6502 = vmatpush.bf16.msra.mxu0 %v6484
      %6503 = vmatpush.bf16.msra.mxu0 %v6483
      %6504 = vmatpush.bf16.msra.mxu0 %v6482
      %6505 = vmatpush.bf16.msra.mxu0 %v6481
      %6506 = vmatpush.bf16.msra.mxu0 %v6480
      %6507 = vmatpush.bf16.msra.mxu0 %v6479
      %6508 = vmatmul.bf16.gmra.mxu0 %v6496
      %v6509 = vpop.f32.mrf.mxu0
      %v6510 = vadd.f32 0.0, %v6509
      %v6511 = vpop.f32.mrf.mxu0
      %6512 = vdwg.mxu0
      %6513 = vmatpush.bf16.msra.mxu0 %v6494
      %6514 = vmatpush.bf16.msra.mxu0 %v6493
      %6515 = vmatpush.bf16.msra.mxu0 %v6492
      %6516 = vmatpush.bf16.msra.mxu0 %v6491
      %6517 = vmatpush.bf16.msra.mxu0 %v6490
      %6518 = vmatpush.bf16.msra.mxu0 %v6489
      %6519 = vmatpush.bf16.msra.mxu0 %v6488
      %6520 = vmatpush.bf16.msra.mxu0 %v6487
      %6521 = vmatmul.bf16.gmra.mxu0 %v6497
      %v6522 = vpop.f32.mrf.mxu0
      %v6523 = vadd.f32 %v6510, %v6522
      %v6524 = vpop.f32.mrf.mxu0
      %6525 = vdwg.mxu0
      %s6526 = scalar_lea.vmem %s246, 2432
      %v6527 = vld [vmem:[%s6526] sm:$0xf]
      %v6528 = vld [vmem:[%s6526 + $0x4] sm:$0xf]
      %v6529 = vld [vmem:[%s6526 + $0x8] sm:$0xf]
      %v6530 = vld [vmem:[%s6526 + $0xc] sm:$0xf]
      %v6531 = vld [vmem:[%s6526 + $0x10] sm:$0xf]
      %v6532 = vld [vmem:[%s6526 + $0x14] sm:$0xf]
      %v6533 = vld [vmem:[%s6526 + $0x18] sm:$0xf]
      %v6534 = vld [vmem:[%s6526 + $0x1c] sm:$0xf]
      %v6535 = vld [vmem:[%s6526 + $0x20] sm:$0xf]
      %v6536 = vld [vmem:[%s6526 + $0x24] sm:$0xf]
      %v6537 = vld [vmem:[%s6526 + $0x28] sm:$0xf]
      %v6538 = vld [vmem:[%s6526 + $0x2c] sm:$0xf]
      %v6539 = vld [vmem:[%s6526 + $0x30] sm:$0xf]
      %v6540 = vld [vmem:[%s6526 + $0x34] sm:$0xf]
      %v6541 = vld [vmem:[%s6526 + $0x38] sm:$0xf]
      %v6542 = vld [vmem:[%s6526 + $0x3c] sm:$0xf]
      %v6543 = vld [vmem:[%s6526 + $0x40] sm:$0xf]
      %v6544 = vld [vmem:[%s6526 + $0x44] sm:$0xf]
      %v6545 = vld [vmem:[%s6526 + $0x48] sm:$0xf]
      %v6546 = vld [vmem:[%s6526 + $0x4c] sm:$0xf]
      %v6547 = vld [vmem:[%s6526 + $0x50] sm:$0xf]
      %v6548 = vld [vmem:[%s6526 + $0x54] sm:$0xf]
      %v6549 = vld [vmem:[%s6526 + $0x58] sm:$0xf]
      %v6550 = vld [vmem:[%s6526 + $0x5c] sm:$0xf]
      %v6551 = vld [vmem:[%s6526 + $0x60] sm:$0xf]
      %v6552 = vld [vmem:[%s6526 + $0x64] sm:$0xf]
      %v6553 = vld [vmem:[%s6526 + $0x68] sm:$0xf]
      %v6554 = vld [vmem:[%s6526 + $0x6c] sm:$0xf]
      %v6555 = vld [vmem:[%s6526 + $0x70] sm:$0xf]
      %v6556 = vld [vmem:[%s6526 + $0x74] sm:$0xf]
      %v6557 = vld [vmem:[%s6526 + $0x78] sm:$0xf]
      %v6558 = vld [vmem:[%s6526 + $0x7c] sm:$0xf]
      %v6591 = vunpack.c.l.b16 %v6527
      %v6592 = vunpack.c.l.b16 %v6528
      %v6593 = vunpack.c.l.b16 %v6529
      %v6594 = vunpack.c.l.b16 %v6530
      %v6595 = vunpack.c.l.b16 %v6531
      %v6596 = vunpack.c.l.b16 %v6532
      %v6597 = vunpack.c.l.b16 %v6533
      %v6598 = vunpack.c.l.b16 %v6534
      %v6599 = vunpack.c.l.b16 %v6535
      %v6600 = vunpack.c.l.b16 %v6536
      %v6601 = vunpack.c.l.b16 %v6537
      %v6602 = vunpack.c.l.b16 %v6538
      %v6603 = vunpack.c.l.b16 %v6539
      %v6604 = vunpack.c.l.b16 %v6540
      %v6605 = vunpack.c.l.b16 %v6541
      %v6606 = vunpack.c.l.b16 %v6542
      %v6607 = vunpack.c.l.b16 %v6543
      %v6608 = vunpack.c.l.b16 %v6544
      %v6609 = vunpack.c.l.b16 %v6545
      %v6610 = vunpack.c.l.b16 %v6546
      %v6611 = vunpack.c.l.b16 %v6547
      %v6612 = vunpack.c.l.b16 %v6548
      %v6613 = vunpack.c.l.b16 %v6549
      %v6614 = vunpack.c.l.b16 %v6550
      %v6615 = vunpack.c.l.b16 %v6551
      %v6616 = vunpack.c.l.b16 %v6552
      %v6617 = vunpack.c.l.b16 %v6553
      %v6618 = vunpack.c.l.b16 %v6554
      %v6619 = vunpack.c.l.b16 %v6555
      %v6620 = vunpack.c.l.b16 %v6556
      %v6621 = vunpack.c.l.b16 %v6557
      %v6622 = vunpack.c.l.b16 %v6558
      %v6623 = vpack.c.b16 %v6592, %v6591
      %v6624 = vpack.c.b16 %v6594, %v6593
      %v6625 = vpack.c.b16 %v6596, %v6595
      %v6626 = vpack.c.b16 %v6598, %v6597
      %v6627 = vpack.c.b16 %v6600, %v6599
      %v6628 = vpack.c.b16 %v6602, %v6601
      %v6629 = vpack.c.b16 %v6604, %v6603
      %v6630 = vpack.c.b16 %v6606, %v6605
      %v6631 = vpack.c.b16 %v6608, %v6607
      %v6632 = vpack.c.b16 %v6610, %v6609
      %v6633 = vpack.c.b16 %v6612, %v6611
      %v6634 = vpack.c.b16 %v6614, %v6613
      %v6635 = vpack.c.b16 %v6616, %v6615
      %v6636 = vpack.c.b16 %v6618, %v6617
      %v6637 = vpack.c.b16 %v6620, %v6619
      %v6638 = vpack.c.b16 %v6622, %v6621
      %v6640 = vsel %vm386, %v6623, 0
      %v6643 = vsel %vm386, %v6624, 0
      %v6646 = vsel %vm386, %v6625, 0
      %v6649 = vsel %vm386, %v6626, 0
      %v6652 = vsel %vm386, %v6627, 0
      %v6655 = vsel %vm386, %v6628, 0
      %v6658 = vsel %vm386, %v6629, 0
      %v6661 = vsel %vm386, %v6630, 0
      %v6664 = vsel %vm386, %v6631, 0
      %v6667 = vsel %vm386, %v6632, 0
      %v6670 = vsel %vm386, %v6633, 0
      %v6673 = vsel %vm386, %v6634, 0
      %v6676 = vsel %vm386, %v6635, 0
      %v6679 = vsel %vm386, %v6636, 0
      %v6682 = vsel %vm386, %v6637, 0
      %v6685 = vsel %vm386, %v6638, 0
      %6687 = vmatpush.bf16.msra.mxu0 0
      %6688 = vmatpush.bf16.msra.mxu0 0
      %6689 = vmatpush.bf16.msra.mxu0 0
      %6690 = vmatpush.bf16.msra.mxu0 0
      %6691 = vmatpush.bf16.msra.mxu0 0
      %6692 = vmatpush.bf16.msra.mxu0 0
      %6693 = vmatpush.bf16.msra.mxu0 %v383
      %6694 = vmatpush.bf16.msra.mxu0 %v382
      %6695 = vmatmul.bf16.gmra.mxu0 %v6640
      %v6696 = vpop.f32.mrf.mxu0
      %v6697 = vadd.f32 %v292, %v6696
      %v6698 = vpop.f32.mrf.mxu0
      %v6699 = vadd.f32 %v292, %v6698
      %6700 = vmatmul.bf16.gmra.mxu0 %v6643
      %v6701 = vpop.f32.mrf.mxu0
      %v6702 = vadd.f32 %v292, %v6701
      %v6703 = vpop.f32.mrf.mxu0
      %v6704 = vadd.f32 %v292, %v6703
      %6705 = vmatmul.bf16.gmra.mxu0 %v6646
      %v6706 = vpop.f32.mrf.mxu0
      %v6707 = vadd.f32 %v292, %v6706
      %v6708 = vpop.f32.mrf.mxu0
      %v6709 = vadd.f32 %v292, %v6708
      %6710 = vmatmul.bf16.gmra.mxu0 %v6649
      %v6711 = vpop.f32.mrf.mxu0
      %v6712 = vadd.f32 %v292, %v6711
      %v6713 = vpop.f32.mrf.mxu0
      %v6714 = vadd.f32 %v292, %v6713
      %6715 = vmatmul.bf16.gmra.mxu0 %v6652
      %v6716 = vpop.f32.mrf.mxu0
      %v6717 = vadd.f32 %v292, %v6716
      %v6718 = vpop.f32.mrf.mxu0
      %v6719 = vadd.f32 %v292, %v6718
      %6720 = vmatmul.bf16.gmra.mxu0 %v6655
      %v6721 = vpop.f32.mrf.mxu0
      %v6722 = vadd.f32 %v292, %v6721
      %v6723 = vpop.f32.mrf.mxu0
      %v6724 = vadd.f32 %v292, %v6723
      %6725 = vmatmul.bf16.gmra.mxu0 %v6658
      %v6726 = vpop.f32.mrf.mxu0
      %v6727 = vadd.f32 %v292, %v6726
      %v6728 = vpop.f32.mrf.mxu0
      %v6729 = vadd.f32 %v292, %v6728
      %6730 = vmatmul.bf16.gmra.mxu0 %v6661
      %v6731 = vpop.f32.mrf.mxu0
      %v6732 = vadd.f32 %v292, %v6731
      %v6733 = vpop.f32.mrf.mxu0
      %v6734 = vadd.f32 %v292, %v6733
      %6735 = vmatmul.bf16.gmra.mxu0 %v6664
      %v6736 = vpop.f32.mrf.mxu0
      %v6737 = vadd.f32 %v292, %v6736
      %v6738 = vpop.f32.mrf.mxu0
      %v6739 = vadd.f32 %v292, %v6738
      %6740 = vmatmul.bf16.gmra.mxu0 %v6667
      %v6741 = vpop.f32.mrf.mxu0
      %v6742 = vadd.f32 %v292, %v6741
      %v6743 = vpop.f32.mrf.mxu0
      %v6744 = vadd.f32 %v292, %v6743
      %6745 = vmatmul.bf16.gmra.mxu0 %v6670
      %v6746 = vpop.f32.mrf.mxu0
      %v6747 = vadd.f32 %v292, %v6746
      %v6748 = vpop.f32.mrf.mxu0
      %v6749 = vadd.f32 %v292, %v6748
      %6750 = vmatmul.bf16.gmra.mxu0 %v6673
      %v6751 = vpop.f32.mrf.mxu0
      %v6752 = vadd.f32 %v292, %v6751
      %v6753 = vpop.f32.mrf.mxu0
      %v6754 = vadd.f32 %v292, %v6753
      %6755 = vmatmul.bf16.gmra.mxu0 %v6676
      %v6756 = vpop.f32.mrf.mxu0
      %v6757 = vadd.f32 %v292, %v6756
      %v6758 = vpop.f32.mrf.mxu0
      %v6759 = vadd.f32 %v292, %v6758
      %6760 = vmatmul.bf16.gmra.mxu0 %v6679
      %v6761 = vpop.f32.mrf.mxu0
      %v6762 = vadd.f32 %v292, %v6761
      %v6763 = vpop.f32.mrf.mxu0
      %v6764 = vadd.f32 %v292, %v6763
      %6765 = vmatmul.bf16.gmra.mxu0 %v6682
      %v6766 = vpop.f32.mrf.mxu0
      %v6767 = vadd.f32 %v292, %v6766
      %v6768 = vpop.f32.mrf.mxu0
      %v6769 = vadd.f32 %v292, %v6768
      %6770 = vmatmul.bf16.gmra.mxu0 %v6685
      %v6771 = vpop.f32.mrf.mxu0
      %v6772 = vadd.f32 %v292, %v6771
      %v6773 = vpop.f32.mrf.mxu0
      %v6774 = vadd.f32 %v292, %v6773
      %6775 = vdwg.mxu0
      %v6776 = vmax.f32 %v6697, 0.0
      %v6777 = vmax.f32 %v6699, 0.0
      %v6778 = vmax.f32 %v6702, 0.0
      %v6779 = vmax.f32 %v6704, 0.0
      %v6780 = vmax.f32 %v6707, 0.0
      %v6781 = vmax.f32 %v6709, 0.0
      %v6782 = vmax.f32 %v6712, 0.0
      %v6783 = vmax.f32 %v6714, 0.0
      %v6784 = vmax.f32 %v6717, 0.0
      %v6785 = vmax.f32 %v6719, 0.0
      %v6786 = vmax.f32 %v6722, 0.0
      %v6787 = vmax.f32 %v6724, 0.0
      %v6788 = vmax.f32 %v6727, 0.0
      %v6789 = vmax.f32 %v6729, 0.0
      %v6790 = vmax.f32 %v6732, 0.0
      %v6791 = vmax.f32 %v6734, 0.0
      %v6792 = vmax.f32 %v6737, 0.0
      %v6793 = vmax.f32 %v6739, 0.0
      %v6794 = vmax.f32 %v6742, 0.0
      %v6795 = vmax.f32 %v6744, 0.0
      %v6796 = vmax.f32 %v6747, 0.0
      %v6797 = vmax.f32 %v6749, 0.0
      %v6798 = vmax.f32 %v6752, 0.0
      %v6799 = vmax.f32 %v6754, 0.0
      %v6800 = vmax.f32 %v6757, 0.0
      %v6801 = vmax.f32 %v6759, 0.0
      %v6802 = vmax.f32 %v6762, 0.0
      %v6803 = vmax.f32 %v6764, 0.0
      %v6804 = vmax.f32 %v6767, 0.0
      %v6805 = vmax.f32 %v6769, 0.0
      %v6806 = vmax.f32 %v6772, 0.0
      %v6807 = vmax.f32 %v6774, 0.0
      %v6808 = vpack.c.bf16 %v6777, %v6776
      %v6809 = vpack.c.bf16 %v6779, %v6778
      %v6810 = vpack.c.bf16 %v6781, %v6780
      %v6811 = vpack.c.bf16 %v6783, %v6782
      %v6812 = vpack.c.bf16 %v6785, %v6784
      %v6813 = vpack.c.bf16 %v6787, %v6786
      %v6814 = vpack.c.bf16 %v6789, %v6788
      %v6815 = vpack.c.bf16 %v6791, %v6790
      %v6816 = vpack.c.bf16 %v6793, %v6792
      %v6817 = vpack.c.bf16 %v6795, %v6794
      %v6818 = vpack.c.bf16 %v6797, %v6796
      %v6819 = vpack.c.bf16 %v6799, %v6798
      %v6820 = vpack.c.bf16 %v6801, %v6800
      %v6821 = vpack.c.bf16 %v6803, %v6802
      %v6822 = vpack.c.bf16 %v6805, %v6804
      %v6823 = vpack.c.bf16 %v6807, %v6806
      %6824 = vst [vmem:[#allocation1] ss:$9 sm:$0xff] %v258
      %v6825 = vld [vmem:[#allocation1] sm:$0xff]
      %v6826 = vld [vmem:[#allocation1 + $0x9] sm:$0xff]
      %6829 = vmatpush.bf16.msra.mxu0 %v6815
      %6830 = vmatpush.bf16.msra.mxu0 %v6814
      %6831 = vmatpush.bf16.msra.mxu0 %v6813
      %6832 = vmatpush.bf16.msra.mxu0 %v6812
      %6833 = vmatpush.bf16.msra.mxu0 %v6811
      %6834 = vmatpush.bf16.msra.mxu0 %v6810
      %6835 = vmatpush.bf16.msra.mxu0 %v6809
      %6836 = vmatpush.bf16.msra.mxu0 %v6808
      %6837 = vmatmul.bf16.gmra.mxu0 %v6825
      %v6838 = vpop.f32.mrf.mxu0
      %v6839 = vadd.f32 0.0, %v6838
      %v6840 = vpop.f32.mrf.mxu0
      %6841 = vdwg.mxu0
      %6842 = vmatpush.bf16.msra.mxu0 %v6823
      %6843 = vmatpush.bf16.msra.mxu0 %v6822
      %6844 = vmatpush.bf16.msra.mxu0 %v6821
      %6845 = vmatpush.bf16.msra.mxu0 %v6820
      %6846 = vmatpush.bf16.msra.mxu0 %v6819
      %6847 = vmatpush.bf16.msra.mxu0 %v6818
      %6848 = vmatpush.bf16.msra.mxu0 %v6817
      %6849 = vmatpush.bf16.msra.mxu0 %v6816
      %6850 = vmatmul.bf16.gmra.mxu0 %v6826
      %v6851 = vpop.f32.mrf.mxu0
      %v6852 = vadd.f32 %v6839, %v6851
      %v6853 = vpop.f32.mrf.mxu0
      %6854 = vdwg.mxu0
      %s6855 = scalar_lea.vmem %s246, 2560
      %v6856 = vld [vmem:[%s6855] sm:$0xf]
      %v6857 = vld [vmem:[%s6855 + $0x4] sm:$0xf]
      %v6858 = vld [vmem:[%s6855 + $0x8] sm:$0xf]
      %v6859 = vld [vmem:[%s6855 + $0xc] sm:$0xf]
      %v6860 = vld [vmem:[%s6855 + $0x10] sm:$0xf]
      %v6861 = vld [vmem:[%s6855 + $0x14] sm:$0xf]
      %v6862 = vld [vmem:[%s6855 + $0x18] sm:$0xf]
      %v6863 = vld [vmem:[%s6855 + $0x1c] sm:$0xf]
      %v6864 = vld [vmem:[%s6855 + $0x20] sm:$0xf]
      %v6865 = vld [vmem:[%s6855 + $0x24] sm:$0xf]
      %v6866 = vld [vmem:[%s6855 + $0x28] sm:$0xf]
      %v6867 = vld [vmem:[%s6855 + $0x2c] sm:$0xf]
      %v6868 = vld [vmem:[%s6855 + $0x30] sm:$0xf]
      %v6869 = vld [vmem:[%s6855 + $0x34] sm:$0xf]
      %v6870 = vld [vmem:[%s6855 + $0x38] sm:$0xf]
      %v6871 = vld [vmem:[%s6855 + $0x3c] sm:$0xf]
      %v6872 = vld [vmem:[%s6855 + $0x40] sm:$0xf]
      %v6873 = vld [vmem:[%s6855 + $0x44] sm:$0xf]
      %v6874 = vld [vmem:[%s6855 + $0x48] sm:$0xf]
      %v6875 = vld [vmem:[%s6855 + $0x4c] sm:$0xf]
      %v6876 = vld [vmem:[%s6855 + $0x50] sm:$0xf]
      %v6877 = vld [vmem:[%s6855 + $0x54] sm:$0xf]
      %v6878 = vld [vmem:[%s6855 + $0x58] sm:$0xf]
      %v6879 = vld [vmem:[%s6855 + $0x5c] sm:$0xf]
      %v6880 = vld [vmem:[%s6855 + $0x60] sm:$0xf]
      %v6881 = vld [vmem:[%s6855 + $0x64] sm:$0xf]
      %v6882 = vld [vmem:[%s6855 + $0x68] sm:$0xf]
      %v6883 = vld [vmem:[%s6855 + $0x6c] sm:$0xf]
      %v6884 = vld [vmem:[%s6855 + $0x70] sm:$0xf]
      %v6885 = vld [vmem:[%s6855 + $0x74] sm:$0xf]
      %v6886 = vld [vmem:[%s6855 + $0x78] sm:$0xf]
      %v6887 = vld [vmem:[%s6855 + $0x7c] sm:$0xf]
      %v6920 = vunpack.c.l.b16 %v6856
      %v6921 = vunpack.c.l.b16 %v6857
      %v6922 = vunpack.c.l.b16 %v6858
      %v6923 = vunpack.c.l.b16 %v6859
      %v6924 = vunpack.c.l.b16 %v6860
      %v6925 = vunpack.c.l.b16 %v6861
      %v6926 = vunpack.c.l.b16 %v6862
      %v6927 = vunpack.c.l.b16 %v6863
      %v6928 = vunpack.c.l.b16 %v6864
      %v6929 = vunpack.c.l.b16 %v6865
      %v6930 = vunpack.c.l.b16 %v6866
      %v6931 = vunpack.c.l.b16 %v6867
      %v6932 = vunpack.c.l.b16 %v6868
      %v6933 = vunpack.c.l.b16 %v6869
      %v6934 = vunpack.c.l.b16 %v6870
      %v6935 = vunpack.c.l.b16 %v6871
      %v6936 = vunpack.c.l.b16 %v6872
      %v6937 = vunpack.c.l.b16 %v6873
      %v6938 = vunpack.c.l.b16 %v6874
      %v6939 = vunpack.c.l.b16 %v6875
      %v6940 = vunpack.c.l.b16 %v6876
      %v6941 = vunpack.c.l.b16 %v6877
      %v6942 = vunpack.c.l.b16 %v6878
      %v6943 = vunpack.c.l.b16 %v6879
      %v6944 = vunpack.c.l.b16 %v6880
      %v6945 = vunpack.c.l.b16 %v6881
      %v6946 = vunpack.c.l.b16 %v6882
      %v6947 = vunpack.c.l.b16 %v6883
      %v6948 = vunpack.c.l.b16 %v6884
      %v6949 = vunpack.c.l.b16 %v6885
      %v6950 = vunpack.c.l.b16 %v6886
      %v6951 = vunpack.c.l.b16 %v6887
      %v6952 = vpack.c.b16 %v6921, %v6920
      %v6953 = vpack.c.b16 %v6923, %v6922
      %v6954 = vpack.c.b16 %v6925, %v6924
      %v6955 = vpack.c.b16 %v6927, %v6926
      %v6956 = vpack.c.b16 %v6929, %v6928
      %v6957 = vpack.c.b16 %v6931, %v6930
      %v6958 = vpack.c.b16 %v6933, %v6932
      %v6959 = vpack.c.b16 %v6935, %v6934
      %v6960 = vpack.c.b16 %v6937, %v6936
      %v6961 = vpack.c.b16 %v6939, %v6938
      %v6962 = vpack.c.b16 %v6941, %v6940
      %v6963 = vpack.c.b16 %v6943, %v6942
      %v6964 = vpack.c.b16 %v6945, %v6944
      %v6965 = vpack.c.b16 %v6947, %v6946
      %v6966 = vpack.c.b16 %v6949, %v6948
      %v6967 = vpack.c.b16 %v6951, %v6950
      %v6969 = vsel %vm386, %v6952, 0
      %v6972 = vsel %vm386, %v6953, 0
      %v6975 = vsel %vm386, %v6954, 0
      %v6978 = vsel %vm386, %v6955, 0
      %v6981 = vsel %vm386, %v6956, 0
      %v6984 = vsel %vm386, %v6957, 0
      %v6987 = vsel %vm386, %v6958, 0
      %v6990 = vsel %vm386, %v6959, 0
      %v6993 = vsel %vm386, %v6960, 0
      %v6996 = vsel %vm386, %v6961, 0
      %v6999 = vsel %vm386, %v6962, 0
      %v7002 = vsel %vm386, %v6963, 0
      %v7005 = vsel %vm386, %v6964, 0
      %v7008 = vsel %vm386, %v6965, 0
      %v7011 = vsel %vm386, %v6966, 0
      %v7014 = vsel %vm386, %v6967, 0
      %7016 = vmatpush.bf16.msra.mxu0 0
      %7017 = vmatpush.bf16.msra.mxu0 0
      %7018 = vmatpush.bf16.msra.mxu0 0
      %7019 = vmatpush.bf16.msra.mxu0 0
      %7020 = vmatpush.bf16.msra.mxu0 0
      %7021 = vmatpush.bf16.msra.mxu0 0
      %7022 = vmatpush.bf16.msra.mxu0 %v383
      %7023 = vmatpush.bf16.msra.mxu0 %v382
      %7024 = vmatmul.bf16.gmra.mxu0 %v6969
      %v7025 = vpop.f32.mrf.mxu0
      %v7026 = vadd.f32 %v292, %v7025
      %v7027 = vpop.f32.mrf.mxu0
      %v7028 = vadd.f32 %v292, %v7027
      %7029 = vmatmul.bf16.gmra.mxu0 %v6972
      %v7030 = vpop.f32.mrf.mxu0
      %v7031 = vadd.f32 %v292, %v7030
      %v7032 = vpop.f32.mrf.mxu0
      %v7033 = vadd.f32 %v292, %v7032
      %7034 = vmatmul.bf16.gmra.mxu0 %v6975
      %v7035 = vpop.f32.mrf.mxu0
      %v7036 = vadd.f32 %v292, %v7035
      %v7037 = vpop.f32.mrf.mxu0
      %v7038 = vadd.f32 %v292, %v7037
      %7039 = vmatmul.bf16.gmra.mxu0 %v6978
      %v7040 = vpop.f32.mrf.mxu0
      %v7041 = vadd.f32 %v292, %v7040
      %v7042 = vpop.f32.mrf.mxu0
      %v7043 = vadd.f32 %v292, %v7042
      %7044 = vmatmul.bf16.gmra.mxu0 %v6981
      %v7045 = vpop.f32.mrf.mxu0
      %v7046 = vadd.f32 %v292, %v7045
      %v7047 = vpop.f32.mrf.mxu0
      %v7048 = vadd.f32 %v292, %v7047
      %7049 = vmatmul.bf16.gmra.mxu0 %v6984
      %v7050 = vpop.f32.mrf.mxu0
      %v7051 = vadd.f32 %v292, %v7050
      %v7052 = vpop.f32.mrf.mxu0
      %v7053 = vadd.f32 %v292, %v7052
      %7054 = vmatmul.bf16.gmra.mxu0 %v6987
      %v7055 = vpop.f32.mrf.mxu0
      %v7056 = vadd.f32 %v292, %v7055
      %v7057 = vpop.f32.mrf.mxu0
      %v7058 = vadd.f32 %v292, %v7057
      %7059 = vmatmul.bf16.gmra.mxu0 %v6990
      %v7060 = vpop.f32.mrf.mxu0
      %v7061 = vadd.f32 %v292, %v7060
      %v7062 = vpop.f32.mrf.mxu0
      %v7063 = vadd.f32 %v292, %v7062
      %7064 = vmatmul.bf16.gmra.mxu0 %v6993
      %v7065 = vpop.f32.mrf.mxu0
      %v7066 = vadd.f32 %v292, %v7065
      %v7067 = vpop.f32.mrf.mxu0
      %v7068 = vadd.f32 %v292, %v7067
      %7069 = vmatmul.bf16.gmra.mxu0 %v6996
      %v7070 = vpop.f32.mrf.mxu0
      %v7071 = vadd.f32 %v292, %v7070
      %v7072 = vpop.f32.mrf.mxu0
      %v7073 = vadd.f32 %v292, %v7072
      %7074 = vmatmul.bf16.gmra.mxu0 %v6999
      %v7075 = vpop.f32.mrf.mxu0
      %v7076 = vadd.f32 %v292, %v7075
      %v7077 = vpop.f32.mrf.mxu0
      %v7078 = vadd.f32 %v292, %v7077
      %7079 = vmatmul.bf16.gmra.mxu0 %v7002
      %v7080 = vpop.f32.mrf.mxu0
      %v7081 = vadd.f32 %v292, %v7080
      %v7082 = vpop.f32.mrf.mxu0
      %v7083 = vadd.f32 %v292, %v7082
      %7084 = vmatmul.bf16.gmra.mxu0 %v7005
      %v7085 = vpop.f32.mrf.mxu0
      %v7086 = vadd.f32 %v292, %v7085
      %v7087 = vpop.f32.mrf.mxu0
      %v7088 = vadd.f32 %v292, %v7087
      %7089 = vmatmul.bf16.gmra.mxu0 %v7008
      %v7090 = vpop.f32.mrf.mxu0
      %v7091 = vadd.f32 %v292, %v7090
      %v7092 = vpop.f32.mrf.mxu0
      %v7093 = vadd.f32 %v292, %v7092
      %7094 = vmatmul.bf16.gmra.mxu0 %v7011
      %v7095 = vpop.f32.mrf.mxu0
      %v7096 = vadd.f32 %v292, %v7095
      %v7097 = vpop.f32.mrf.mxu0
      %v7098 = vadd.f32 %v292, %v7097
      %7099 = vmatmul.bf16.gmra.mxu0 %v7014
      %v7100 = vpop.f32.mrf.mxu0
      %v7101 = vadd.f32 %v292, %v7100
      %v7102 = vpop.f32.mrf.mxu0
      %v7103 = vadd.f32 %v292, %v7102
      %7104 = vdwg.mxu0
      %v7105 = vmax.f32 %v7026, 0.0
      %v7106 = vmax.f32 %v7028, 0.0
      %v7107 = vmax.f32 %v7031, 0.0
      %v7108 = vmax.f32 %v7033, 0.0
      %v7109 = vmax.f32 %v7036, 0.0
      %v7110 = vmax.f32 %v7038, 0.0
      %v7111 = vmax.f32 %v7041, 0.0
      %v7112 = vmax.f32 %v7043, 0.0
      %v7113 = vmax.f32 %v7046, 0.0
      %v7114 = vmax.f32 %v7048, 0.0
      %v7115 = vmax.f32 %v7051, 0.0
      %v7116 = vmax.f32 %v7053, 0.0
      %v7117 = vmax.f32 %v7056, 0.0
      %v7118 = vmax.f32 %v7058, 0.0
      %v7119 = vmax.f32 %v7061, 0.0
      %v7120 = vmax.f32 %v7063, 0.0
      %v7121 = vmax.f32 %v7066, 0.0
      %v7122 = vmax.f32 %v7068, 0.0
      %v7123 = vmax.f32 %v7071, 0.0
      %v7124 = vmax.f32 %v7073, 0.0
      %v7125 = vmax.f32 %v7076, 0.0
      %v7126 = vmax.f32 %v7078, 0.0
      %v7127 = vmax.f32 %v7081, 0.0
      %v7128 = vmax.f32 %v7083, 0.0
      %v7129 = vmax.f32 %v7086, 0.0
      %v7130 = vmax.f32 %v7088, 0.0
      %v7131 = vmax.f32 %v7091, 0.0
      %v7132 = vmax.f32 %v7093, 0.0
      %v7133 = vmax.f32 %v7096, 0.0
      %v7134 = vmax.f32 %v7098, 0.0
      %v7135 = vmax.f32 %v7101, 0.0
      %v7136 = vmax.f32 %v7103, 0.0
      %v7137 = vpack.c.bf16 %v7106, %v7105
      %v7138 = vpack.c.bf16 %v7108, %v7107
      %v7139 = vpack.c.bf16 %v7110, %v7109
      %v7140 = vpack.c.bf16 %v7112, %v7111
      %v7141 = vpack.c.bf16 %v7114, %v7113
      %v7142 = vpack.c.bf16 %v7116, %v7115
      %v7143 = vpack.c.bf16 %v7118, %v7117
      %v7144 = vpack.c.bf16 %v7120, %v7119
      %v7145 = vpack.c.bf16 %v7122, %v7121
      %v7146 = vpack.c.bf16 %v7124, %v7123
      %v7147 = vpack.c.bf16 %v7126, %v7125
      %v7148 = vpack.c.bf16 %v7128, %v7127
      %v7149 = vpack.c.bf16 %v7130, %v7129
      %v7150 = vpack.c.bf16 %v7132, %v7131
      %v7151 = vpack.c.bf16 %v7134, %v7133
      %v7152 = vpack.c.bf16 %v7136, %v7135
      %7153 = vst [vmem:[#allocation1] ss:$9 sm:$0xff] %v258
      %v7154 = vld [vmem:[#allocation1] sm:$0xff]
      %v7155 = vld [vmem:[#allocation1 + $0x9] sm:$0xff]
      %7158 = vmatpush.bf16.msra.mxu0 %v7144
      %7159 = vmatpush.bf16.msra.mxu0 %v7143
      %7160 = vmatpush.bf16.msra.mxu0 %v7142
      %7161 = vmatpush.bf16.msra.mxu0 %v7141
      %7162 = vmatpush.bf16.msra.mxu0 %v7140
      %7163 = vmatpush.bf16.msra.mxu0 %v7139
      %7164 = vmatpush.bf16.msra.mxu0 %v7138
      %7165 = vmatpush.bf16.msra.mxu0 %v7137
      %7166 = vmatmul.bf16.gmra.mxu0 %v7154
      %v7167 = vpop.f32.mrf.mxu0
      %v7168 = vadd.f32 0.0, %v7167
      %v7169 = vpop.f32.mrf.mxu0
      %7170 = vdwg.mxu0
      %7171 = vmatpush.bf16.msra.mxu0 %v7152
      %7172 = vmatpush.bf16.msra.mxu0 %v7151
      %7173 = vmatpush.bf16.msra.mxu0 %v7150
      %7174 = vmatpush.bf16.msra.mxu0 %v7149
      %7175 = vmatpush.bf16.msra.mxu0 %v7148
      %7176 = vmatpush.bf16.msra.mxu0 %v7147
      %7177 = vmatpush.bf16.msra.mxu0 %v7146
      %7178 = vmatpush.bf16.msra.mxu0 %v7145
      %7179 = vmatmul.bf16.gmra.mxu0 %v7155
      %v7180 = vpop.f32.mrf.mxu0
      %v7181 = vadd.f32 %v7168, %v7180
      %v7182 = vpop.f32.mrf.mxu0
      %7183 = vdwg.mxu0
      %s7184 = scalar_lea.vmem %s246, 2688
      %v7185 = vld [vmem:[%s7184] sm:$0xf]
      %v7186 = vld [vmem:[%s7184 + $0x4] sm:$0xf]
      %v7187 = vld [vmem:[%s7184 + $0x8] sm:$0xf]
      %v7188 = vld [vmem:[%s7184 + $0xc] sm:$0xf]
      %v7189 = vld [vmem:[%s7184 + $0x10] sm:$0xf]
      %v7190 = vld [vmem:[%s7184 + $0x14] sm:$0xf]
      %v7191 = vld [vmem:[%s7184 + $0x18] sm:$0xf]
      %v7192 = vld [vmem:[%s7184 + $0x1c] sm:$0xf]
      %v7193 = vld [vmem:[%s7184 + $0x20] sm:$0xf]
      %v7194 = vld [vmem:[%s7184 + $0x24] sm:$0xf]
      %v7195 = vld [vmem:[%s7184 + $0x28] sm:$0xf]
      %v7196 = vld [vmem:[%s7184 + $0x2c] sm:$0xf]
      %v7197 = vld [vmem:[%s7184 + $0x30] sm:$0xf]
      %v7198 = vld [vmem:[%s7184 + $0x34] sm:$0xf]
      %v7199 = vld [vmem:[%s7184 + $0x38] sm:$0xf]
      %v7200 = vld [vmem:[%s7184 + $0x3c] sm:$0xf]
      %v7201 = vld [vmem:[%s7184 + $0x40] sm:$0xf]
      %v7202 = vld [vmem:[%s7184 + $0x44] sm:$0xf]
      %v7203 = vld [vmem:[%s7184 + $0x48] sm:$0xf]
      %v7204 = vld [vmem:[%s7184 + $0x4c] sm:$0xf]
      %v7205 = vld [vmem:[%s7184 + $0x50] sm:$0xf]
      %v7206 = vld [vmem:[%s7184 + $0x54] sm:$0xf]
      %v7207 = vld [vmem:[%s7184 + $0x58] sm:$0xf]
      %v7208 = vld [vmem:[%s7184 + $0x5c] sm:$0xf]
      %v7209 = vld [vmem:[%s7184 + $0x60] sm:$0xf]
      %v7210 = vld [vmem:[%s7184 + $0x64] sm:$0xf]
      %v7211 = vld [vmem:[%s7184 + $0x68] sm:$0xf]
      %v7212 = vld [vmem:[%s7184 + $0x6c] sm:$0xf]
      %v7213 = vld [vmem:[%s7184 + $0x70] sm:$0xf]
      %v7214 = vld [vmem:[%s7184 + $0x74] sm:$0xf]
      %v7215 = vld [vmem:[%s7184 + $0x78] sm:$0xf]
      %v7216 = vld [vmem:[%s7184 + $0x7c] sm:$0xf]
      %v7249 = vunpack.c.l.b16 %v7185
      %v7250 = vunpack.c.l.b16 %v7186
      %v7251 = vunpack.c.l.b16 %v7187
      %v7252 = vunpack.c.l.b16 %v7188
      %v7253 = vunpack.c.l.b16 %v7189
      %v7254 = vunpack.c.l.b16 %v7190
      %v7255 = vunpack.c.l.b16 %v7191
      %v7256 = vunpack.c.l.b16 %v7192
      %v7257 = vunpack.c.l.b16 %v7193
      %v7258 = vunpack.c.l.b16 %v7194
      %v7259 = vunpack.c.l.b16 %v7195
      %v7260 = vunpack.c.l.b16 %v7196
      %v7261 = vunpack.c.l.b16 %v7197
      %v7262 = vunpack.c.l.b16 %v7198
      %v7263 = vunpack.c.l.b16 %v7199
      %v7264 = vunpack.c.l.b16 %v7200
      %v7265 = vunpack.c.l.b16 %v7201
      %v7266 = vunpack.c.l.b16 %v7202
      %v7267 = vunpack.c.l.b16 %v7203
      %v7268 = vunpack.c.l.b16 %v7204
      %v7269 = vunpack.c.l.b16 %v7205
      %v7270 = vunpack.c.l.b16 %v7206
      %v7271 = vunpack.c.l.b16 %v7207
      %v7272 = vunpack.c.l.b16 %v7208
      %v7273 = vunpack.c.l.b16 %v7209
      %v7274 = vunpack.c.l.b16 %v7210
      %v7275 = vunpack.c.l.b16 %v7211
      %v7276 = vunpack.c.l.b16 %v7212
      %v7277 = vunpack.c.l.b16 %v7213
      %v7278 = vunpack.c.l.b16 %v7214
      %v7279 = vunpack.c.l.b16 %v7215
      %v7280 = vunpack.c.l.b16 %v7216
      %v7281 = vpack.c.b16 %v7250, %v7249
      %v7282 = vpack.c.b16 %v7252, %v7251
      %v7283 = vpack.c.b16 %v7254, %v7253
      %v7284 = vpack.c.b16 %v7256, %v7255
      %v7285 = vpack.c.b16 %v7258, %v7257
      %v7286 = vpack.c.b16 %v7260, %v7259
      %v7287 = vpack.c.b16 %v7262, %v7261
      %v7288 = vpack.c.b16 %v7264, %v7263
      %v7289 = vpack.c.b16 %v7266, %v7265
      %v7290 = vpack.c.b16 %v7268, %v7267
      %v7291 = vpack.c.b16 %v7270, %v7269
      %v7292 = vpack.c.b16 %v7272, %v7271
      %v7293 = vpack.c.b16 %v7274, %v7273
      %v7294 = vpack.c.b16 %v7276, %v7275
      %v7295 = vpack.c.b16 %v7278, %v7277
      %v7296 = vpack.c.b16 %v7280, %v7279
      %v7298 = vsel %vm386, %v7281, 0
      %v7301 = vsel %vm386, %v7282, 0
      %v7304 = vsel %vm386, %v7283, 0
      %v7307 = vsel %vm386, %v7284, 0
      %v7310 = vsel %vm386, %v7285, 0
      %v7313 = vsel %vm386, %v7286, 0
      %v7316 = vsel %vm386, %v7287, 0
      %v7319 = vsel %vm386, %v7288, 0
      %v7322 = vsel %vm386, %v7289, 0
      %v7325 = vsel %vm386, %v7290, 0
      %v7328 = vsel %vm386, %v7291, 0
      %v7331 = vsel %vm386, %v7292, 0
      %v7334 = vsel %vm386, %v7293, 0
      %v7337 = vsel %vm386, %v7294, 0
      %v7340 = vsel %vm386, %v7295, 0
      %v7343 = vsel %vm386, %v7296, 0
      %7345 = vmatpush.bf16.msra.mxu0 0
      %7346 = vmatpush.bf16.msra.mxu0 0
      %7347 = vmatpush.bf16.msra.mxu0 0
      %7348 = vmatpush.bf16.msra.mxu0 0
      %7349 = vmatpush.bf16.msra.mxu0 0
      %7350 = vmatpush.bf16.msra.mxu0 0
      %7351 = vmatpush.bf16.msra.mxu0 %v383
      %7352 = vmatpush.bf16.msra.mxu0 %v382
      %7353 = vmatmul.bf16.gmra.mxu0 %v7298
      %v7354 = vpop.f32.mrf.mxu0
      %v7355 = vadd.f32 %v292, %v7354
      %v7356 = vpop.f32.mrf.mxu0
      %v7357 = vadd.f32 %v292, %v7356
      %7358 = vmatmul.bf16.gmra.mxu0 %v7301
      %v7359 = vpop.f32.mrf.mxu0
      %v7360 = vadd.f32 %v292, %v7359
      %v7361 = vpop.f32.mrf.mxu0
      %v7362 = vadd.f32 %v292, %v7361
      %7363 = vmatmul.bf16.gmra.mxu0 %v7304
      %v7364 = vpop.f32.mrf.mxu0
      %v7365 = vadd.f32 %v292, %v7364
      %v7366 = vpop.f32.mrf.mxu0
      %v7367 = vadd.f32 %v292, %v7366
      %7368 = vmatmul.bf16.gmra.mxu0 %v7307
      %v7369 = vpop.f32.mrf.mxu0
      %v7370 = vadd.f32 %v292, %v7369
      %v7371 = vpop.f32.mrf.mxu0
      %v7372 = vadd.f32 %v292, %v7371
      %7373 = vmatmul.bf16.gmra.mxu0 %v7310
      %v7374 = vpop.f32.mrf.mxu0
      %v7375 = vadd.f32 %v292, %v7374
      %v7376 = vpop.f32.mrf.mxu0
      %v7377 = vadd.f32 %v292, %v7376
      %7378 = vmatmul.bf16.gmra.mxu0 %v7313
      %v7379 = vpop.f32.mrf.mxu0
      %v7380 = vadd.f32 %v292, %v7379
      %v7381 = vpop.f32.mrf.mxu0
      %v7382 = vadd.f32 %v292, %v7381
      %7383 = vmatmul.bf16.gmra.mxu0 %v7316
      %v7384 = vpop.f32.mrf.mxu0
      %v7385 = vadd.f32 %v292, %v7384
      %v7386 = vpop.f32.mrf.mxu0
      %v7387 = vadd.f32 %v292, %v7386
      %7388 = vmatmul.bf16.gmra.mxu0 %v7319
      %v7389 = vpop.f32.mrf.mxu0
      %v7390 = vadd.f32 %v292, %v7389
      %v7391 = vpop.f32.mrf.mxu0
      %v7392 = vadd.f32 %v292, %v7391
      %7393 = vmatmul.bf16.gmra.mxu0 %v7322
      %v7394 = vpop.f32.mrf.mxu0
      %v7395 = vadd.f32 %v292, %v7394
      %v7396 = vpop.f32.mrf.mxu0
      %v7397 = vadd.f32 %v292, %v7396
      %7398 = vmatmul.bf16.gmra.mxu0 %v7325
      %v7399 = vpop.f32.mrf.mxu0
      %v7400 = vadd.f32 %v292, %v7399
      %v7401 = vpop.f32.mrf.mxu0
      %v7402 = vadd.f32 %v292, %v7401
      %7403 = vmatmul.bf16.gmra.mxu0 %v7328
      %v7404 = vpop.f32.mrf.mxu0
      %v7405 = vadd.f32 %v292, %v7404
      %v7406 = vpop.f32.mrf.mxu0
      %v7407 = vadd.f32 %v292, %v7406
      %7408 = vmatmul.bf16.gmra.mxu0 %v7331
      %v7409 = vpop.f32.mrf.mxu0
      %v7410 = vadd.f32 %v292, %v7409
      %v7411 = vpop.f32.mrf.mxu0
      %v7412 = vadd.f32 %v292, %v7411
      %7413 = vmatmul.bf16.gmra.mxu0 %v7334
      %v7414 = vpop.f32.mrf.mxu0
      %v7415 = vadd.f32 %v292, %v7414
      %v7416 = vpop.f32.mrf.mxu0
      %v7417 = vadd.f32 %v292, %v7416
      %7418 = vmatmul.bf16.gmra.mxu0 %v7337
      %v7419 = vpop.f32.mrf.mxu0
      %v7420 = vadd.f32 %v292, %v7419
      %v7421 = vpop.f32.mrf.mxu0
      %v7422 = vadd.f32 %v292, %v7421
      %7423 = vmatmul.bf16.gmra.mxu0 %v7340
      %v7424 = vpop.f32.mrf.mxu0
      %v7425 = vadd.f32 %v292, %v7424
      %v7426 = vpop.f32.mrf.mxu0
      %v7427 = vadd.f32 %v292, %v7426
      %7428 = vmatmul.bf16.gmra.mxu0 %v7343
      %v7429 = vpop.f32.mrf.mxu0
      %v7430 = vadd.f32 %v292, %v7429
      %v7431 = vpop.f32.mrf.mxu0
      %v7432 = vadd.f32 %v292, %v7431
      %7433 = vdwg.mxu0
      %v7434 = vmax.f32 %v7355, 0.0
      %v7435 = vmax.f32 %v7357, 0.0
      %v7436 = vmax.f32 %v7360, 0.0
      %v7437 = vmax.f32 %v7362, 0.0
      %v7438 = vmax.f32 %v7365, 0.0
      %v7439 = vmax.f32 %v7367, 0.0
      %v7440 = vmax.f32 %v7370, 0.0
      %v7441 = vmax.f32 %v7372, 0.0
      %v7442 = vmax.f32 %v7375, 0.0
      %v7443 = vmax.f32 %v7377, 0.0
      %v7444 = vmax.f32 %v7380, 0.0
      %v7445 = vmax.f32 %v7382, 0.0
      %v7446 = vmax.f32 %v7385, 0.0
      %v7447 = vmax.f32 %v7387, 0.0
      %v7448 = vmax.f32 %v7390, 0.0
      %v7449 = vmax.f32 %v7392, 0.0
      %v7450 = vmax.f32 %v7395, 0.0
      %v7451 = vmax.f32 %v7397, 0.0
      %v7452 = vmax.f32 %v7400, 0.0
      %v7453 = vmax.f32 %v7402, 0.0
      %v7454 = vmax.f32 %v7405, 0.0
      %v7455 = vmax.f32 %v7407, 0.0
      %v7456 = vmax.f32 %v7410, 0.0
      %v7457 = vmax.f32 %v7412, 0.0
      %v7458 = vmax.f32 %v7415, 0.0
      %v7459 = vmax.f32 %v7417, 0.0
      %v7460 = vmax.f32 %v7420, 0.0
      %v7461 = vmax.f32 %v7422, 0.0
      %v7462 = vmax.f32 %v7425, 0.0
      %v7463 = vmax.f32 %v7427, 0.0
      %v7464 = vmax.f32 %v7430, 0.0
      %v7465 = vmax.f32 %v7432, 0.0
      %v7466 = vpack.c.bf16 %v7435, %v7434
      %v7467 = vpack.c.bf16 %v7437, %v7436
      %v7468 = vpack.c.bf16 %v7439, %v7438
      %v7469 = vpack.c.bf16 %v7441, %v7440
      %v7470 = vpack.c.bf16 %v7443, %v7442
      %v7471 = vpack.c.bf16 %v7445, %v7444
      %v7472 = vpack.c.bf16 %v7447, %v7446
      %v7473 = vpack.c.bf16 %v7449, %v7448
      %v7474 = vpack.c.bf16 %v7451, %v7450
      %v7475 = vpack.c.bf16 %v7453, %v7452
      %v7476 = vpack.c.bf16 %v7455, %v7454
      %v7477 = vpack.c.bf16 %v7457, %v7456
      %v7478 = vpack.c.bf16 %v7459, %v7458
      %v7479 = vpack.c.bf16 %v7461, %v7460
      %v7480 = vpack.c.bf16 %v7463, %v7462
      %v7481 = vpack.c.bf16 %v7465, %v7464
      %7482 = vst [vmem:[#allocation1] ss:$9 sm:$0xff] %v258
      %v7483 = vld [vmem:[#allocation1] sm:$0xff]
      %v7484 = vld [vmem:[#allocation1 + $0x9] sm:$0xff]
      %7487 = vmatpush.bf16.msra.mxu0 %v7473
      %7488 = vmatpush.bf16.msra.mxu0 %v7472
      %7489 = vmatpush.bf16.msra.mxu0 %v7471
      %7490 = vmatpush.bf16.msra.mxu0 %v7470
      %7491 = vmatpush.bf16.msra.mxu0 %v7469
      %7492 = vmatpush.bf16.msra.mxu0 %v7468
      %7493 = vmatpush.bf16.msra.mxu0 %v7467
      %7494 = vmatpush.bf16.msra.mxu0 %v7466
      %7495 = vmatmul.bf16.gmra.mxu0 %v7483
      %v7496 = vpop.f32.mrf.mxu0
      %v7497 = vadd.f32 0.0, %v7496
      %v7498 = vpop.f32.mrf.mxu0
      %7499 = vdwg.mxu0
      %7500 = vmatpush.bf16.msra.mxu0 %v7481
      %7501 = vmatpush.bf16.msra.mxu0 %v7480
      %7502 = vmatpush.bf16.msra.mxu0 %v7479
      %7503 = vmatpush.bf16.msra.mxu0 %v7478
      %7504 = vmatpush.bf16.msra.mxu0 %v7477
      %7505 = vmatpush.bf16.msra.mxu0 %v7476
      %7506 = vmatpush.bf16.msra.mxu0 %v7475
      %7507 = vmatpush.bf16.msra.mxu0 %v7474
      %7508 = vmatmul.bf16.gmra.mxu0 %v7484
      %v7509 = vpop.f32.mrf.mxu0
      %v7510 = vadd.f32 %v7497, %v7509
      %v7511 = vpop.f32.mrf.mxu0
      %7512 = vdwg.mxu0
      %s7513 = scalar_lea.vmem %s246, 2816
      %v7514 = vld [vmem:[%s7513] sm:$0xf]
      %v7515 = vld [vmem:[%s7513 + $0x4] sm:$0xf]
      %v7516 = vld [vmem:[%s7513 + $0x8] sm:$0xf]
      %v7517 = vld [vmem:[%s7513 + $0xc] sm:$0xf]
      %v7518 = vld [vmem:[%s7513 + $0x10] sm:$0xf]
      %v7519 = vld [vmem:[%s7513 + $0x14] sm:$0xf]
      %v7520 = vld [vmem:[%s7513 + $0x18] sm:$0xf]
      %v7521 = vld [vmem:[%s7513 + $0x1c] sm:$0xf]
      %v7522 = vld [vmem:[%s7513 + $0x20] sm:$0xf]
      %v7523 = vld [vmem:[%s7513 + $0x24] sm:$0xf]
      %v7524 = vld [vmem:[%s7513 + $0x28] sm:$0xf]
      %v7525 = vld [vmem:[%s7513 + $0x2c] sm:$0xf]
      %v7526 = vld [vmem:[%s7513 + $0x30] sm:$0xf]
      %v7527 = vld [vmem:[%s7513 + $0x34] sm:$0xf]
      %v7528 = vld [vmem:[%s7513 + $0x38] sm:$0xf]
      %v7529 = vld [vmem:[%s7513 + $0x3c] sm:$0xf]
      %v7530 = vld [vmem:[%s7513 + $0x40] sm:$0xf]
      %v7531 = vld [vmem:[%s7513 + $0x44] sm:$0xf]
      %v7532 = vld [vmem:[%s7513 + $0x48] sm:$0xf]
      %v7533 = vld [vmem:[%s7513 + $0x4c] sm:$0xf]
      %v7534 = vld [vmem:[%s7513 + $0x50] sm:$0xf]
      %v7535 = vld [vmem:[%s7513 + $0x54] sm:$0xf]
      %v7536 = vld [vmem:[%s7513 + $0x58] sm:$0xf]
      %v7537 = vld [vmem:[%s7513 + $0x5c] sm:$0xf]
      %v7538 = vld [vmem:[%s7513 + $0x60] sm:$0xf]
      %v7539 = vld [vmem:[%s7513 + $0x64] sm:$0xf]
      %v7540 = vld [vmem:[%s7513 + $0x68] sm:$0xf]
      %v7541 = vld [vmem:[%s7513 + $0x6c] sm:$0xf]
      %v7542 = vld [vmem:[%s7513 + $0x70] sm:$0xf]
      %v7543 = vld [vmem:[%s7513 + $0x74] sm:$0xf]
      %v7544 = vld [vmem:[%s7513 + $0x78] sm:$0xf]
      %v7545 = vld [vmem:[%s7513 + $0x7c] sm:$0xf]
      %v7578 = vunpack.c.l.b16 %v7514
      %v7579 = vunpack.c.l.b16 %v7515
      %v7580 = vunpack.c.l.b16 %v7516
      %v7581 = vunpack.c.l.b16 %v7517
      %v7582 = vunpack.c.l.b16 %v7518
      %v7583 = vunpack.c.l.b16 %v7519
      %v7584 = vunpack.c.l.b16 %v7520
      %v7585 = vunpack.c.l.b16 %v7521
      %v7586 = vunpack.c.l.b16 %v7522
      %v7587 = vunpack.c.l.b16 %v7523
      %v7588 = vunpack.c.l.b16 %v7524
      %v7589 = vunpack.c.l.b16 %v7525
      %v7590 = vunpack.c.l.b16 %v7526
      %v7591 = vunpack.c.l.b16 %v7527
      %v7592 = vunpack.c.l.b16 %v7528
      %v7593 = vunpack.c.l.b16 %v7529
      %v7594 = vunpack.c.l.b16 %v7530
      %v7595 = vunpack.c.l.b16 %v7531
      %v7596 = vunpack.c.l.b16 %v7532
      %v7597 = vunpack.c.l.b16 %v7533
      %v7598 = vunpack.c.l.b16 %v7534
      %v7599 = vunpack.c.l.b16 %v7535
      %v7600 = vunpack.c.l.b16 %v7536
      %v7601 = vunpack.c.l.b16 %v7537
      %v7602 = vunpack.c.l.b16 %v7538
      %v7603 = vunpack.c.l.b16 %v7539
      %v7604 = vunpack.c.l.b16 %v7540
      %v7605 = vunpack.c.l.b16 %v7541
      %v7606 = vunpack.c.l.b16 %v7542
      %v7607 = vunpack.c.l.b16 %v7543
      %v7608 = vunpack.c.l.b16 %v7544
      %v7609 = vunpack.c.l.b16 %v7545
      %v7610 = vpack.c.b16 %v7579, %v7578
      %v7611 = vpack.c.b16 %v7581, %v7580
      %v7612 = vpack.c.b16 %v7583, %v7582
      %v7613 = vpack.c.b16 %v7585, %v7584
      %v7614 = vpack.c.b16 %v7587, %v7586
      %v7615 = vpack.c.b16 %v7589, %v7588
      %v7616 = vpack.c.b16 %v7591, %v7590
      %v7617 = vpack.c.b16 %v7593, %v7592
      %v7618 = vpack.c.b16 %v7595, %v7594
      %v7619 = vpack.c.b16 %v7597, %v7596
      %v7620 = vpack.c.b16 %v7599, %v7598
      %v7621 = vpack.c.b16 %v7601, %v7600
      %v7622 = vpack.c.b16 %v7603, %v7602
      %v7623 = vpack.c.b16 %v7605, %v7604
      %v7624 = vpack.c.b16 %v7607, %v7606
      %v7625 = vpack.c.b16 %v7609, %v7608
      %v7627 = vsel %vm386, %v7610, 0
      %v7630 = vsel %vm386, %v7611, 0
      %v7633 = vsel %vm386, %v7612, 0
      %v7636 = vsel %vm386, %v7613, 0
      %v7639 = vsel %vm386, %v7614, 0
      %v7642 = vsel %vm386, %v7615, 0
      %v7645 = vsel %vm386, %v7616, 0
      %v7648 = vsel %vm386, %v7617, 0
      %v7651 = vsel %vm386, %v7618, 0
      %v7654 = vsel %vm386, %v7619, 0
      %v7657 = vsel %vm386, %v7620, 0
      %v7660 = vsel %vm386, %v7621, 0
      %v7663 = vsel %vm386, %v7622, 0
      %v7666 = vsel %vm386, %v7623, 0
      %v7669 = vsel %vm386, %v7624, 0
      %v7672 = vsel %vm386, %v7625, 0
      %7674 = vmatpush.bf16.msra.mxu0 0
      %7675 = vmatpush.bf16.msra.mxu0 0
      %7676 = vmatpush.bf16.msra.mxu0 0
      %7677 = vmatpush.bf16.msra.mxu0 0
      %7678 = vmatpush.bf16.msra.mxu0 0
      %7679 = vmatpush.bf16.msra.mxu0 0
      %7680 = vmatpush.bf16.msra.mxu0 %v383
      %7681 = vmatpush.bf16.msra.mxu0 %v382
      %7682 = vmatmul.bf16.gmra.mxu0 %v7627
      %v7683 = vpop.f32.mrf.mxu0
      %v7684 = vadd.f32 %v292, %v7683
      %v7685 = vpop.f32.mrf.mxu0
      %v7686 = vadd.f32 %v292, %v7685
      %7687 = vmatmul.bf16.gmra.mxu0 %v7630
      %v7688 = vpop.f32.mrf.mxu0
      %v7689 = vadd.f32 %v292, %v7688
      %v7690 = vpop.f32.mrf.mxu0
      %v7691 = vadd.f32 %v292, %v7690
      %7692 = vmatmul.bf16.gmra.mxu0 %v7633
      %v7693 = vpop.f32.mrf.mxu0
      %v7694 = vadd.f32 %v292, %v7693
      %v7695 = vpop.f32.mrf.mxu0
      %v7696 = vadd.f32 %v292, %v7695
      %7697 = vmatmul.bf16.gmra.mxu0 %v7636
      %v7698 = vpop.f32.mrf.mxu0
      %v7699 = vadd.f32 %v292, %v7698
      %v7700 = vpop.f32.mrf.mxu0
      %v7701 = vadd.f32 %v292, %v7700
      %7702 = vmatmul.bf16.gmra.mxu0 %v7639
      %v7703 = vpop.f32.mrf.mxu0
      %v7704 = vadd.f32 %v292, %v7703
      %v7705 = vpop.f32.mrf.mxu0
      %v7706 = vadd.f32 %v292, %v7705
      %7707 = vmatmul.bf16.gmra.mxu0 %v7642
      %v7708 = vpop.f32.mrf.mxu0
      %v7709 = vadd.f32 %v292, %v7708
      %v7710 = vpop.f32.mrf.mxu0
      %v7711 = vadd.f32 %v292, %v7710
      %7712 = vmatmul.bf16.gmra.mxu0 %v7645
      %v7713 = vpop.f32.mrf.mxu0
      %v7714 = vadd.f32 %v292, %v7713
      %v7715 = vpop.f32.mrf.mxu0
      %v7716 = vadd.f32 %v292, %v7715
      %7717 = vmatmul.bf16.gmra.mxu0 %v7648
      %v7718 = vpop.f32.mrf.mxu0
      %v7719 = vadd.f32 %v292, %v7718
      %v7720 = vpop.f32.mrf.mxu0
      %v7721 = vadd.f32 %v292, %v7720
      %7722 = vmatmul.bf16.gmra.mxu0 %v7651
      %v7723 = vpop.f32.mrf.mxu0
      %v7724 = vadd.f32 %v292, %v7723
      %v7725 = vpop.f32.mrf.mxu0
      %v7726 = vadd.f32 %v292, %v7725
      %7727 = vmatmul.bf16.gmra.mxu0 %v7654
      %v7728 = vpop.f32.mrf.mxu0
      %v7729 = vadd.f32 %v292, %v7728
      %v7730 = vpop.f32.mrf.mxu0
      %v7731 = vadd.f32 %v292, %v7730
      %7732 = vmatmul.bf16.gmra.mxu0 %v7657
      %v7733 = vpop.f32.mrf.mxu0
      %v7734 = vadd.f32 %v292, %v7733
      %v7735 = vpop.f32.mrf.mxu0
      %v7736 = vadd.f32 %v292, %v7735
      %7737 = vmatmul.bf16.gmra.mxu0 %v7660
      %v7738 = vpop.f32.mrf.mxu0
      %v7739 = vadd.f32 %v292, %v7738
      %v7740 = vpop.f32.mrf.mxu0
      %v7741 = vadd.f32 %v292, %v7740
      %7742 = vmatmul.bf16.gmra.mxu0 %v7663
      %v7743 = vpop.f32.mrf.mxu0
      %v7744 = vadd.f32 %v292, %v7743
      %v7745 = vpop.f32.mrf.mxu0
      %v7746 = vadd.f32 %v292, %v7745
      %7747 = vmatmul.bf16.gmra.mxu0 %v7666
      %v7748 = vpop.f32.mrf.mxu0
      %v7749 = vadd.f32 %v292, %v7748
      %v7750 = vpop.f32.mrf.mxu0
      %v7751 = vadd.f32 %v292, %v7750
      %7752 = vmatmul.bf16.gmra.mxu0 %v7669
      %v7753 = vpop.f32.mrf.mxu0
      %v7754 = vadd.f32 %v292, %v7753
      %v7755 = vpop.f32.mrf.mxu0
      %v7756 = vadd.f32 %v292, %v7755
      %7757 = vmatmul.bf16.gmra.mxu0 %v7672
      %v7758 = vpop.f32.mrf.mxu0
      %v7759 = vadd.f32 %v292, %v7758
      %v7760 = vpop.f32.mrf.mxu0
      %v7761 = vadd.f32 %v292, %v7760
      %7762 = vdwg.mxu0
      %v7763 = vmax.f32 %v7684, 0.0
      %v7764 = vmax.f32 %v7686, 0.0
      %v7765 = vmax.f32 %v7689, 0.0
      %v7766 = vmax.f32 %v7691, 0.0
      %v7767 = vmax.f32 %v7694, 0.0
      %v7768 = vmax.f32 %v7696, 0.0
      %v7769 = vmax.f32 %v7699, 0.0
      %v7770 = vmax.f32 %v7701, 0.0
      %v7771 = vmax.f32 %v7704, 0.0
      %v7772 = vmax.f32 %v7706, 0.0
      %v7773 = vmax.f32 %v7709, 0.0
      %v7774 = vmax.f32 %v7711, 0.0
      %v7775 = vmax.f32 %v7714, 0.0
      %v7776 = vmax.f32 %v7716, 0.0
      %v7777 = vmax.f32 %v7719, 0.0
      %v7778 = vmax.f32 %v7721, 0.0
      %v7779 = vmax.f32 %v7724, 0.0
      %v7780 = vmax.f32 %v7726, 0.0
      %v7781 = vmax.f32 %v7729, 0.0
      %v7782 = vmax.f32 %v7731, 0.0
      %v7783 = vmax.f32 %v7734, 0.0
      %v7784 = vmax.f32 %v7736, 0.0
      %v7785 = vmax.f32 %v7739, 0.0
      %v7786 = vmax.f32 %v7741, 0.0
      %v7787 = vmax.f32 %v7744, 0.0
      %v7788 = vmax.f32 %v7746, 0.0
      %v7789 = vmax.f32 %v7749, 0.0
      %v7790 = vmax.f32 %v7751, 0.0
      %v7791 = vmax.f32 %v7754, 0.0
      %v7792 = vmax.f32 %v7756, 0.0
      %v7793 = vmax.f32 %v7759, 0.0
      %v7794 = vmax.f32 %v7761, 0.0
      %v7795 = vpack.c.bf16 %v7764, %v7763
      %v7796 = vpack.c.bf16 %v7766, %v7765
      %v7797 = vpack.c.bf16 %v7768, %v7767
      %v7798 = vpack.c.bf16 %v7770, %v7769
      %v7799 = vpack.c.bf16 %v7772, %v7771
      %v7800 = vpack.c.bf16 %v7774, %v7773
      %v7801 = vpack.c.bf16 %v7776, %v7775
      %v7802 = vpack.c.bf16 %v7778, %v7777
      %v7803 = vpack.c.bf16 %v7780, %v7779
      %v7804 = vpack.c.bf16 %v7782, %v7781
      %v7805 = vpack.c.bf16 %v7784, %v7783
      %v7806 = vpack.c.bf16 %v7786, %v7785
      %v7807 = vpack.c.bf16 %v7788, %v7787
      %v7808 = vpack.c.bf16 %v7790, %v7789
      %v7809 = vpack.c.bf16 %v7792, %v7791
      %v7810 = vpack.c.bf16 %v7794, %v7793
      %7811 = vst [vmem:[#allocation1] ss:$9 sm:$0xff] %v258
      %v7812 = vld [vmem:[#allocation1] sm:$0xff]
      %v7813 = vld [vmem:[#allocation1 + $0x9] sm:$0xff]
      %7816 = vmatpush.bf16.msra.mxu0 %v7802
      %7817 = vmatpush.bf16.msra.mxu0 %v7801
      %7818 = vmatpush.bf16.msra.mxu0 %v7800
      %7819 = vmatpush.bf16.msra.mxu0 %v7799
      %7820 = vmatpush.bf16.msra.mxu0 %v7798
      %7821 = vmatpush.bf16.msra.mxu0 %v7797
      %7822 = vmatpush.bf16.msra.mxu0 %v7796
      %7823 = vmatpush.bf16.msra.mxu0 %v7795
      %7824 = vmatmul.bf16.gmra.mxu0 %v7812
      %v7825 = vpop.f32.mrf.mxu0
      %v7826 = vadd.f32 0.0, %v7825
      %v7827 = vpop.f32.mrf.mxu0
      %7828 = vdwg.mxu0
      %7829 = vmatpush.bf16.msra.mxu0 %v7810
      %7830 = vmatpush.bf16.msra.mxu0 %v7809
      %7831 = vmatpush.bf16.msra.mxu0 %v7808
      %7832 = vmatpush.bf16.msra.mxu0 %v7807
      %7833 = vmatpush.bf16.msra.mxu0 %v7806
      %7834 = vmatpush.bf16.msra.mxu0 %v7805
      %7835 = vmatpush.bf16.msra.mxu0 %v7804
      %7836 = vmatpush.bf16.msra.mxu0 %v7803
      %7837 = vmatmul.bf16.gmra.mxu0 %v7813
      %v7838 = vpop.f32.mrf.mxu0
      %v7839 = vadd.f32 %v7826, %v7838
      %v7840 = vpop.f32.mrf.mxu0
      %7841 = vdwg.mxu0
      %s7842 = scalar_lea.vmem %s246, 2944
      %v7843 = vld [vmem:[%s7842] sm:$0xf]
      %v7844 = vld [vmem:[%s7842 + $0x4] sm:$0xf]
      %v7845 = vld [vmem:[%s7842 + $0x8] sm:$0xf]
      %v7846 = vld [vmem:[%s7842 + $0xc] sm:$0xf]
      %v7847 = vld [vmem:[%s7842 + $0x10] sm:$0xf]
      %v7848 = vld [vmem:[%s7842 + $0x14] sm:$0xf]
      %v7849 = vld [vmem:[%s7842 + $0x18] sm:$0xf]
      %v7850 = vld [vmem:[%s7842 + $0x1c] sm:$0xf]
      %v7851 = vld [vmem:[%s7842 + $0x20] sm:$0xf]
      %v7852 = vld [vmem:[%s7842 + $0x24] sm:$0xf]
      %v7853 = vld [vmem:[%s7842 + $0x28] sm:$0xf]
      %v7854 = vld [vmem:[%s7842 + $0x2c] sm:$0xf]
      %v7855 = vld [vmem:[%s7842 + $0x30] sm:$0xf]
      %v7856 = vld [vmem:[%s7842 + $0x34] sm:$0xf]
      %v7857 = vld [vmem:[%s7842 + $0x38] sm:$0xf]
      %v7858 = vld [vmem:[%s7842 + $0x3c] sm:$0xf]
      %v7859 = vld [vmem:[%s7842 + $0x40] sm:$0xf]
      %v7860 = vld [vmem:[%s7842 + $0x44] sm:$0xf]
      %v7861 = vld [vmem:[%s7842 + $0x48] sm:$0xf]
      %v7862 = vld [vmem:[%s7842 + $0x4c] sm:$0xf]
      %v7863 = vld [vmem:[%s7842 + $0x50] sm:$0xf]
      %v7864 = vld [vmem:[%s7842 + $0x54] sm:$0xf]
      %v7865 = vld [vmem:[%s7842 + $0x58] sm:$0xf]
      %v7866 = vld [vmem:[%s7842 + $0x5c] sm:$0xf]
      %v7867 = vld [vmem:[%s7842 + $0x60] sm:$0xf]
      %v7868 = vld [vmem:[%s7842 + $0x64] sm:$0xf]
      %v7869 = vld [vmem:[%s7842 + $0x68] sm:$0xf]
      %v7870 = vld [vmem:[%s7842 + $0x6c] sm:$0xf]
      %v7871 = vld [vmem:[%s7842 + $0x70] sm:$0xf]
      %v7872 = vld [vmem:[%s7842 + $0x74] sm:$0xf]
      %v7873 = vld [vmem:[%s7842 + $0x78] sm:$0xf]
      %v7874 = vld [vmem:[%s7842 + $0x7c] sm:$0xf]
      %v7907 = vunpack.c.l.b16 %v7843
      %v7908 = vunpack.c.l.b16 %v7844
      %v7909 = vunpack.c.l.b16 %v7845
      %v7910 = vunpack.c.l.b16 %v7846
      %v7911 = vunpack.c.l.b16 %v7847
      %v7912 = vunpack.c.l.b16 %v7848
      %v7913 = vunpack.c.l.b16 %v7849
      %v7914 = vunpack.c.l.b16 %v7850
      %v7915 = vunpack.c.l.b16 %v7851
      %v7916 = vunpack.c.l.b16 %v7852
      %v7917 = vunpack.c.l.b16 %v7853
      %v7918 = vunpack.c.l.b16 %v7854
      %v7919 = vunpack.c.l.b16 %v7855
      %v7920 = vunpack.c.l.b16 %v7856
      %v7921 = vunpack.c.l.b16 %v7857
      %v7922 = vunpack.c.l.b16 %v7858
      %v7923 = vunpack.c.l.b16 %v7859
      %v7924 = vunpack.c.l.b16 %v7860
      %v7925 = vunpack.c.l.b16 %v7861
      %v7926 = vunpack.c.l.b16 %v7862
      %v7927 = vunpack.c.l.b16 %v7863
      %v7928 = vunpack.c.l.b16 %v7864
      %v7929 = vunpack.c.l.b16 %v7865
      %v7930 = vunpack.c.l.b16 %v7866
      %v7931 = vunpack.c.l.b16 %v7867
      %v7932 = vunpack.c.l.b16 %v7868
      %v7933 = vunpack.c.l.b16 %v7869
      %v7934 = vunpack.c.l.b16 %v7870
      %v7935 = vunpack.c.l.b16 %v7871
      %v7936 = vunpack.c.l.b16 %v7872
      %v7937 = vunpack.c.l.b16 %v7873
      %v7938 = vunpack.c.l.b16 %v7874
      %v7939 = vpack.c.b16 %v7908, %v7907
      %v7940 = vpack.c.b16 %v7910, %v7909
      %v7941 = vpack.c.b16 %v7912, %v7911
      %v7942 = vpack.c.b16 %v7914, %v7913
      %v7943 = vpack.c.b16 %v7916, %v7915
      %v7944 = vpack.c.b16 %v7918, %v7917
      %v7945 = vpack.c.b16 %v7920, %v7919
      %v7946 = vpack.c.b16 %v7922, %v7921
      %v7947 = vpack.c.b16 %v7924, %v7923
      %v7948 = vpack.c.b16 %v7926, %v7925
      %v7949 = vpack.c.b16 %v7928, %v7927
      %v7950 = vpack.c.b16 %v7930, %v7929
      %v7951 = vpack.c.b16 %v7932, %v7931
      %v7952 = vpack.c.b16 %v7934, %v7933
      %v7953 = vpack.c.b16 %v7936, %v7935
      %v7954 = vpack.c.b16 %v7938, %v7937
      %v7956 = vsel %vm386, %v7939, 0
      %v7959 = vsel %vm386, %v7940, 0
      %v7962 = vsel %vm386, %v7941, 0
      %v7965 = vsel %vm386, %v7942, 0
      %v7968 = vsel %vm386, %v7943, 0
      %v7971 = vsel %vm386, %v7944, 0
      %v7974 = vsel %vm386, %v7945, 0
      %v7977 = vsel %vm386, %v7946, 0
      %v7980 = vsel %vm386, %v7947, 0
      %v7983 = vsel %vm386, %v7948, 0
      %v7986 = vsel %vm386, %v7949, 0
      %v7989 = vsel %vm386, %v7950, 0
      %v7992 = vsel %vm386, %v7951, 0
      %v7995 = vsel %vm386, %v7952, 0
      %v7998 = vsel %vm386, %v7953, 0
      %v8001 = vsel %vm386, %v7954, 0
      %8003 = vmatpush.bf16.msra.mxu0 0
      %8004 = vmatpush.bf16.msra.mxu0 0
      %8005 = vmatpush.bf16.msra.mxu0 0
      %8006 = vmatpush.bf16.msra.mxu0 0
      %8007 = vmatpush.bf16.msra.mxu0 0
      %8008 = vmatpush.bf16.msra.mxu0 0
      %8009 = vmatpush.bf16.msra.mxu0 %v383
      %8010 = vmatpush.bf16.msra.mxu0 %v382
      %8011 = vmatmul.bf16.gmra.mxu0 %v7956
      %v8012 = vpop.f32.mrf.mxu0
      %v8013 = vadd.f32 %v292, %v8012
      %v8014 = vpop.f32.mrf.mxu0
      %v8015 = vadd.f32 %v292, %v8014
      %8016 = vmatmul.bf16.gmra.mxu0 %v7959
      %v8017 = vpop.f32.mrf.mxu0
      %v8018 = vadd.f32 %v292, %v8017
      %v8019 = vpop.f32.mrf.mxu0
      %v8020 = vadd.f32 %v292, %v8019
      %8021 = vmatmul.bf16.gmra.mxu0 %v7962
      %v8022 = vpop.f32.mrf.mxu0
      %v8023 = vadd.f32 %v292, %v8022
      %v8024 = vpop.f32.mrf.mxu0
      %v8025 = vadd.f32 %v292, %v8024
      %8026 = vmatmul.bf16.gmra.mxu0 %v7965
      %v8027 = vpop.f32.mrf.mxu0
      %v8028 = vadd.f32 %v292, %v8027
      %v8029 = vpop.f32.mrf.mxu0
      %v8030 = vadd.f32 %v292, %v8029
      %8031 = vmatmul.bf16.gmra.mxu0 %v7968
      %v8032 = vpop.f32.mrf.mxu0
      %v8033 = vadd.f32 %v292, %v8032
      %v8034 = vpop.f32.mrf.mxu0
      %v8035 = vadd.f32 %v292, %v8034
      %8036 = vmatmul.bf16.gmra.mxu0 %v7971
      %v8037 = vpop.f32.mrf.mxu0
      %v8038 = vadd.f32 %v292, %v8037
      %v8039 = vpop.f32.mrf.mxu0
      %v8040 = vadd.f32 %v292, %v8039
      %8041 = vmatmul.bf16.gmra.mxu0 %v7974
      %v8042 = vpop.f32.mrf.mxu0
      %v8043 = vadd.f32 %v292, %v8042
      %v8044 = vpop.f32.mrf.mxu0
      %v8045 = vadd.f32 %v292, %v8044
      %8046 = vmatmul.bf16.gmra.mxu0 %v7977
      %v8047 = vpop.f32.mrf.mxu0
      %v8048 = vadd.f32 %v292, %v8047
      %v8049 = vpop.f32.mrf.mxu0
      %v8050 = vadd.f32 %v292, %v8049
      %8051 = vmatmul.bf16.gmra.mxu0 %v7980
      %v8052 = vpop.f32.mrf.mxu0
      %v8053 = vadd.f32 %v292, %v8052
      %v8054 = vpop.f32.mrf.mxu0
      %v8055 = vadd.f32 %v292, %v8054
      %8056 = vmatmul.bf16.gmra.mxu0 %v7983
      %v8057 = vpop.f32.mrf.mxu0
      %v8058 = vadd.f32 %v292, %v8057
      %v8059 = vpop.f32.mrf.mxu0
      %v8060 = vadd.f32 %v292, %v8059
      %8061 = vmatmul.bf16.gmra.mxu0 %v7986
      %v8062 = vpop.f32.mrf.mxu0
      %v8063 = vadd.f32 %v292, %v8062
      %v8064 = vpop.f32.mrf.mxu0
      %v8065 = vadd.f32 %v292, %v8064
      %8066 = vmatmul.bf16.gmra.mxu0 %v7989
      %v8067 = vpop.f32.mrf.mxu0
      %v8068 = vadd.f32 %v292, %v8067
      %v8069 = vpop.f32.mrf.mxu0
      %v8070 = vadd.f32 %v292, %v8069
      %8071 = vmatmul.bf16.gmra.mxu0 %v7992
      %v8072 = vpop.f32.mrf.mxu0
      %v8073 = vadd.f32 %v292, %v8072
      %v8074 = vpop.f32.mrf.mxu0
      %v8075 = vadd.f32 %v292, %v8074
      %8076 = vmatmul.bf16.gmra.mxu0 %v7995
      %v8077 = vpop.f32.mrf.mxu0
      %v8078 = vadd.f32 %v292, %v8077
      %v8079 = vpop.f32.mrf.mxu0
      %v8080 = vadd.f32 %v292, %v8079
      %8081 = vmatmul.bf16.gmra.mxu0 %v7998
      %v8082 = vpop.f32.mrf.mxu0
      %v8083 = vadd.f32 %v292, %v8082
      %v8084 = vpop.f32.mrf.mxu0
      %v8085 = vadd.f32 %v292, %v8084
      %8086 = vmatmul.bf16.gmra.mxu0 %v8001
      %v8087 = vpop.f32.mrf.mxu0
      %v8088 = vadd.f32 %v292, %v8087
      %v8089 = vpop.f32.mrf.mxu0
      %v8090 = vadd.f32 %v292, %v8089
      %8091 = vdwg.mxu0
      %v8092 = vmax.f32 %v8013, 0.0
      %v8093 = vmax.f32 %v8015, 0.0
      %v8094 = vmax.f32 %v8018, 0.0
      %v8095 = vmax.f32 %v8020, 0.0
      %v8096 = vmax.f32 %v8023, 0.0
      %v8097 = vmax.f32 %v8025, 0.0
      %v8098 = vmax.f32 %v8028, 0.0
      %v8099 = vmax.f32 %v8030, 0.0
      %v8100 = vmax.f32 %v8033, 0.0
      %v8101 = vmax.f32 %v8035, 0.0
      %v8102 = vmax.f32 %v8038, 0.0
      %v8103 = vmax.f32 %v8040, 0.0
      %v8104 = vmax.f32 %v8043, 0.0
      %v8105 = vmax.f32 %v8045, 0.0
      %v8106 = vmax.f32 %v8048, 0.0
      %v8107 = vmax.f32 %v8050, 0.0
      %v8108 = vmax.f32 %v8053, 0.0
      %v8109 = vmax.f32 %v8055, 0.0
      %v8110 = vmax.f32 %v8058, 0.0
      %v8111 = vmax.f32 %v8060, 0.0
      %v8112 = vmax.f32 %v8063, 0.0
      %v8113 = vmax.f32 %v8065, 0.0
      %v8114 = vmax.f32 %v8068, 0.0
      %v8115 = vmax.f32 %v8070, 0.0
      %v8116 = vmax.f32 %v8073, 0.0
      %v8117 = vmax.f32 %v8075, 0.0
      %v8118 = vmax.f32 %v8078, 0.0
      %v8119 = vmax.f32 %v8080, 0.0
      %v8120 = vmax.f32 %v8083, 0.0
      %v8121 = vmax.f32 %v8085, 0.0
      %v8122 = vmax.f32 %v8088, 0.0
      %v8123 = vmax.f32 %v8090, 0.0
      %v8124 = vpack.c.bf16 %v8093, %v8092
      %v8125 = vpack.c.bf16 %v8095, %v8094
      %v8126 = vpack.c.bf16 %v8097, %v8096
      %v8127 = vpack.c.bf16 %v8099, %v8098
      %v8128 = vpack.c.bf16 %v8101, %v8100
      %v8129 = vpack.c.bf16 %v8103, %v8102
      %v8130 = vpack.c.bf16 %v8105, %v8104
      %v8131 = vpack.c.bf16 %v8107, %v8106
      %v8132 = vpack.c.bf16 %v8109, %v8108
      %v8133 = vpack.c.bf16 %v8111, %v8110
      %v8134 = vpack.c.bf16 %v8113, %v8112
      %v8135 = vpack.c.bf16 %v8115, %v8114
      %v8136 = vpack.c.bf16 %v8117, %v8116
      %v8137 = vpack.c.bf16 %v8119, %v8118
      %v8138 = vpack.c.bf16 %v8121, %v8120
      %v8139 = vpack.c.bf16 %v8123, %v8122
      %8140 = vst [vmem:[#allocation1] ss:$9 sm:$0xff] %v258
      %v8141 = vld [vmem:[#allocation1] sm:$0xff]
      %v8142 = vld [vmem:[#allocation1 + $0x9] sm:$0xff]
      %8145 = vmatpush.bf16.msra.mxu0 %v8131
      %8146 = vmatpush.bf16.msra.mxu0 %v8130
      %8147 = vmatpush.bf16.msra.mxu0 %v8129
      %8148 = vmatpush.bf16.msra.mxu0 %v8128
      %8149 = vmatpush.bf16.msra.mxu0 %v8127
      %8150 = vmatpush.bf16.msra.mxu0 %v8126
      %8151 = vmatpush.bf16.msra.mxu0 %v8125
      %8152 = vmatpush.bf16.msra.mxu0 %v8124
      %8153 = vmatmul.bf16.gmra.mxu0 %v8141
      %v8154 = vpop.f32.mrf.mxu0
      %v8155 = vadd.f32 0.0, %v8154
      %v8156 = vpop.f32.mrf.mxu0
      %8157 = vdwg.mxu0
      %8158 = vmatpush.bf16.msra.mxu0 %v8139
      %8159 = vmatpush.bf16.msra.mxu0 %v8138
      %8160 = vmatpush.bf16.msra.mxu0 %v8137
      %8161 = vmatpush.bf16.msra.mxu0 %v8136
      %8162 = vmatpush.bf16.msra.mxu0 %v8135
      %8163 = vmatpush.bf16.msra.mxu0 %v8134
      %8164 = vmatpush.bf16.msra.mxu0 %v8133
      %8165 = vmatpush.bf16.msra.mxu0 %v8132
      %8166 = vmatmul.bf16.gmra.mxu0 %v8142
      %v8167 = vpop.f32.mrf.mxu0
      %v8168 = vadd.f32 %v8155, %v8167
      %v8169 = vpop.f32.mrf.mxu0
      %8170 = vdwg.mxu0
      %s8171 = scalar_lea.vmem %s246, 3072
      %v8172 = vld [vmem:[%s8171] sm:$0xf]
      %v8173 = vld [vmem:[%s8171 + $0x4] sm:$0xf]
      %v8174 = vld [vmem:[%s8171 + $0x8] sm:$0xf]
      %v8175 = vld [vmem:[%s8171 + $0xc] sm:$0xf]
      %v8176 = vld [vmem:[%s8171 + $0x10] sm:$0xf]
      %v8177 = vld [vmem:[%s8171 + $0x14] sm:$0xf]
      %v8178 = vld [vmem:[%s8171 + $0x18] sm:$0xf]
      %v8179 = vld [vmem:[%s8171 + $0x1c] sm:$0xf]
      %v8180 = vld [vmem:[%s8171 + $0x20] sm:$0xf]
      %v8181 = vld [vmem:[%s8171 + $0x24] sm:$0xf]
      %v8182 = vld [vmem:[%s8171 + $0x28] sm:$0xf]
      %v8183 = vld [vmem:[%s8171 + $0x2c] sm:$0xf]
      %v8184 = vld [vmem:[%s8171 + $0x30] sm:$0xf]
      %v8185 = vld [vmem:[%s8171 + $0x34] sm:$0xf]
      %v8186 = vld [vmem:[%s8171 + $0x38] sm:$0xf]
      %v8187 = vld [vmem:[%s8171 + $0x3c] sm:$0xf]
      %v8188 = vld [vmem:[%s8171 + $0x40] sm:$0xf]
      %v8189 = vld [vmem:[%s8171 + $0x44] sm:$0xf]
      %v8190 = vld [vmem:[%s8171 + $0x48] sm:$0xf]
      %v8191 = vld [vmem:[%s8171 + $0x4c] sm:$0xf]
      %v8192 = vld [vmem:[%s8171 + $0x50] sm:$0xf]
      %v8193 = vld [vmem:[%s8171 + $0x54] sm:$0xf]
      %v8194 = vld [vmem:[%s8171 + $0x58] sm:$0xf]
      %v8195 = vld [vmem:[%s8171 + $0x5c] sm:$0xf]
      %v8196 = vld [vmem:[%s8171 + $0x60] sm:$0xf]
      %v8197 = vld [vmem:[%s8171 + $0x64] sm:$0xf]
      %v8198 = vld [vmem:[%s8171 + $0x68] sm:$0xf]
      %v8199 = vld [vmem:[%s8171 + $0x6c] sm:$0xf]
      %v8200 = vld [vmem:[%s8171 + $0x70] sm:$0xf]
      %v8201 = vld [vmem:[%s8171 + $0x74] sm:$0xf]
      %v8202 = vld [vmem:[%s8171 + $0x78] sm:$0xf]
      %v8203 = vld [vmem:[%s8171 + $0x7c] sm:$0xf]
      %v8236 = vunpack.c.l.b16 %v8172
      %v8237 = vunpack.c.l.b16 %v8173
      %v8238 = vunpack.c.l.b16 %v8174
      %v8239 = vunpack.c.l.b16 %v8175
      %v8240 = vunpack.c.l.b16 %v8176
      %v8241 = vunpack.c.l.b16 %v8177
      %v8242 = vunpack.c.l.b16 %v8178
      %v8243 = vunpack.c.l.b16 %v8179
      %v8244 = vunpack.c.l.b16 %v8180
      %v8245 = vunpack.c.l.b16 %v8181
      %v8246 = vunpack.c.l.b16 %v8182
      %v8247 = vunpack.c.l.b16 %v8183
      %v8248 = vunpack.c.l.b16 %v8184
      %v8249 = vunpack.c.l.b16 %v8185
      %v8250 = vunpack.c.l.b16 %v8186
      %v8251 = vunpack.c.l.b16 %v8187
      %v8252 = vunpack.c.l.b16 %v8188
      %v8253 = vunpack.c.l.b16 %v8189
      %v8254 = vunpack.c.l.b16 %v8190
      %v8255 = vunpack.c.l.b16 %v8191
      %v8256 = vunpack.c.l.b16 %v8192
      %v8257 = vunpack.c.l.b16 %v8193
      %v8258 = vunpack.c.l.b16 %v8194
      %v8259 = vunpack.c.l.b16 %v8195
      %v8260 = vunpack.c.l.b16 %v8196
      %v8261 = vunpack.c.l.b16 %v8197
      %v8262 = vunpack.c.l.b16 %v8198
      %v8263 = vunpack.c.l.b16 %v8199
      %v8264 = vunpack.c.l.b16 %v8200
      %v8265 = vunpack.c.l.b16 %v8201
      %v8266 = vunpack.c.l.b16 %v8202
      %v8267 = vunpack.c.l.b16 %v8203
      %v8268 = vpack.c.b16 %v8237, %v8236
      %v8269 = vpack.c.b16 %v8239, %v8238
      %v8270 = vpack.c.b16 %v8241, %v8240
      %v8271 = vpack.c.b16 %v8243, %v8242
      %v8272 = vpack.c.b16 %v8245, %v8244
      %v8273 = vpack.c.b16 %v8247, %v8246
      %v8274 = vpack.c.b16 %v8249, %v8248
      %v8275 = vpack.c.b16 %v8251, %v8250
      %v8276 = vpack.c.b16 %v8253, %v8252
      %v8277 = vpack.c.b16 %v8255, %v8254
      %v8278 = vpack.c.b16 %v8257, %v8256
      %v8279 = vpack.c.b16 %v8259, %v8258
      %v8280 = vpack.c.b16 %v8261, %v8260
      %v8281 = vpack.c.b16 %v8263, %v8262
      %v8282 = vpack.c.b16 %v8265, %v8264
      %v8283 = vpack.c.b16 %v8267, %v8266
      %v8285 = vsel %vm386, %v8268, 0
      %v8288 = vsel %vm386, %v8269, 0
      %v8291 = vsel %vm386, %v8270, 0
      %v8294 = vsel %vm386, %v8271, 0
      %v8297 = vsel %vm386, %v8272, 0
      %v8300 = vsel %vm386, %v8273, 0
      %v8303 = vsel %vm386, %v8274, 0
      %v8306 = vsel %vm386, %v8275, 0
      %v8309 = vsel %vm386, %v8276, 0
      %v8312 = vsel %vm386, %v8277, 0
      %v8315 = vsel %vm386, %v8278, 0
      %v8318 = vsel %vm386, %v8279, 0
      %v8321 = vsel %vm386, %v8280, 0
      %v8324 = vsel %vm386, %v8281, 0
      %v8327 = vsel %vm386, %v8282, 0
      %v8330 = vsel %vm386, %v8283, 0
      %8332 = vmatpush.bf16.msra.mxu0 0
      %8333 = vmatpush.bf16.msra.mxu0 0
      %8334 = vmatpush.bf16.msra.mxu0 0
      %8335 = vmatpush.bf16.msra.mxu0 0
      %8336 = vmatpush.bf16.msra.mxu0 0
      %8337 = vmatpush.bf16.msra.mxu0 0
      %8338 = vmatpush.bf16.msra.mxu0 %v383
      %8339 = vmatpush.bf16.msra.mxu0 %v382
      %8340 = vmatmul.bf16.gmra.mxu0 %v8285
      %v8341 = vpop.f32.mrf.mxu0
      %v8342 = vadd.f32 %v292, %v8341
      %v8343 = vpop.f32.mrf.mxu0
      %v8344 = vadd.f32 %v292, %v8343
      %8345 = vmatmul.bf16.gmra.mxu0 %v8288
      %v8346 = vpop.f32.mrf.mxu0
      %v8347 = vadd.f32 %v292, %v8346
      %v8348 = vpop.f32.mrf.mxu0
      %v8349 = vadd.f32 %v292, %v8348
      %8350 = vmatmul.bf16.gmra.mxu0 %v8291
      %v8351 = vpop.f32.mrf.mxu0
      %v8352 = vadd.f32 %v292, %v8351
      %v8353 = vpop.f32.mrf.mxu0
      %v8354 = vadd.f32 %v292, %v8353
      %8355 = vmatmul.bf16.gmra.mxu0 %v8294
      %v8356 = vpop.f32.mrf.mxu0
      %v8357 = vadd.f32 %v292, %v8356
      %v8358 = vpop.f32.mrf.mxu0
      %v8359 = vadd.f32 %v292, %v8358
      %8360 = vmatmul.bf16.gmra.mxu0 %v8297
      %v8361 = vpop.f32.mrf.mxu0
      %v8362 = vadd.f32 %v292, %v8361
      %v8363 = vpop.f32.mrf.mxu0
      %v8364 = vadd.f32 %v292, %v8363
      %8365 = vmatmul.bf16.gmra.mxu0 %v8300
      %v8366 = vpop.f32.mrf.mxu0
      %v8367 = vadd.f32 %v292, %v8366
      %v8368 = vpop.f32.mrf.mxu0
      %v8369 = vadd.f32 %v292, %v8368
      %8370 = vmatmul.bf16.gmra.mxu0 %v8303
      %v8371 = vpop.f32.mrf.mxu0
      %v8372 = vadd.f32 %v292, %v8371
      %v8373 = vpop.f32.mrf.mxu0
      %v8374 = vadd.f32 %v292, %v8373
      %8375 = vmatmul.bf16.gmra.mxu0 %v8306
      %v8376 = vpop.f32.mrf.mxu0
      %v8377 = vadd.f32 %v292, %v8376
      %v8378 = vpop.f32.mrf.mxu0
      %v8379 = vadd.f32 %v292, %v8378
      %8380 = vmatmul.bf16.gmra.mxu0 %v8309
      %v8381 = vpop.f32.mrf.mxu0
      %v8382 = vadd.f32 %v292, %v8381
      %v8383 = vpop.f32.mrf.mxu0
      %v8384 = vadd.f32 %v292, %v8383
      %8385 = vmatmul.bf16.gmra.mxu0 %v8312
      %v8386 = vpop.f32.mrf.mxu0
      %v8387 = vadd.f32 %v292, %v8386
      %v8388 = vpop.f32.mrf.mxu0
      %v8389 = vadd.f32 %v292, %v8388
      %8390 = vmatmul.bf16.gmra.mxu0 %v8315
      %v8391 = vpop.f32.mrf.mxu0
      %v8392 = vadd.f32 %v292, %v8391
      %v8393 = vpop.f32.mrf.mxu0
      %v8394 = vadd.f32 %v292, %v8393
      %8395 = vmatmul.bf16.gmra.mxu0 %v8318
      %v8396 = vpop.f32.mrf.mxu0
      %v8397 = vadd.f32 %v292, %v8396
      %v8398 = vpop.f32.mrf.mxu0
      %v8399 = vadd.f32 %v292, %v8398
      %8400 = vmatmul.bf16.gmra.mxu0 %v8321
      %v8401 = vpop.f32.mrf.mxu0
      %v8402 = vadd.f32 %v292, %v8401
      %v8403 = vpop.f32.mrf.mxu0
      %v8404 = vadd.f32 %v292, %v8403
      %8405 = vmatmul.bf16.gmra.mxu0 %v8324
      %v8406 = vpop.f32.mrf.mxu0
      %v8407 = vadd.f32 %v292, %v8406
      %v8408 = vpop.f32.mrf.mxu0
      %v8409 = vadd.f32 %v292, %v8408
      %8410 = vmatmul.bf16.gmra.mxu0 %v8327
      %v8411 = vpop.f32.mrf.mxu0
      %v8412 = vadd.f32 %v292, %v8411
      %v8413 = vpop.f32.mrf.mxu0
      %v8414 = vadd.f32 %v292, %v8413
      %8415 = vmatmul.bf16.gmra.mxu0 %v8330
      %v8416 = vpop.f32.mrf.mxu0
      %v8417 = vadd.f32 %v292, %v8416
      %v8418 = vpop.f32.mrf.mxu0
      %v8419 = vadd.f32 %v292, %v8418
      %8420 = vdwg.mxu0
      %v8421 = vmax.f32 %v8342, 0.0
      %v8422 = vmax.f32 %v8344, 0.0
      %v8423 = vmax.f32 %v8347, 0.0
      %v8424 = vmax.f32 %v8349, 0.0
      %v8425 = vmax.f32 %v8352, 0.0
      %v8426 = vmax.f32 %v8354, 0.0
      %v8427 = vmax.f32 %v8357, 0.0
      %v8428 = vmax.f32 %v8359, 0.0
      %v8429 = vmax.f32 %v8362, 0.0
      %v8430 = vmax.f32 %v8364, 0.0
      %v8431 = vmax.f32 %v8367, 0.0
      %v8432 = vmax.f32 %v8369, 0.0
      %v8433 = vmax.f32 %v8372, 0.0
      %v8434 = vmax.f32 %v8374, 0.0
      %v8435 = vmax.f32 %v8377, 0.0
      %v8436 = vmax.f32 %v8379, 0.0
      %v8437 = vmax.f32 %v8382, 0.0
      %v8438 = vmax.f32 %v8384, 0.0
      %v8439 = vmax.f32 %v8387, 0.0
      %v8440 = vmax.f32 %v8389, 0.0
      %v8441 = vmax.f32 %v8392, 0.0
      %v8442 = vmax.f32 %v8394, 0.0
      %v8443 = vmax.f32 %v8397, 0.0
      %v8444 = vmax.f32 %v8399, 0.0
      %v8445 = vmax.f32 %v8402, 0.0
      %v8446 = vmax.f32 %v8404, 0.0
      %v8447 = vmax.f32 %v8407, 0.0
      %v8448 = vmax.f32 %v8409, 0.0
      %v8449 = vmax.f32 %v8412, 0.0
      %v8450 = vmax.f32 %v8414, 0.0
      %v8451 = vmax.f32 %v8417, 0.0
      %v8452 = vmax.f32 %v8419, 0.0
      %v8453 = vpack.c.bf16 %v8422, %v8421
      %v8454 = vpack.c.bf16 %v8424, %v8423
      %v8455 = vpack.c.bf16 %v8426, %v8425
      %v8456 = vpack.c.bf16 %v8428, %v8427
      %v8457 = vpack.c.bf16 %v8430, %v8429
      %v8458 = vpack.c.bf16 %v8432, %v8431
      %v8459 = vpack.c.bf16 %v8434, %v8433
      %v8460 = vpack.c.bf16 %v8436, %v8435
      %v8461 = vpack.c.bf16 %v8438, %v8437
      %v8462 = vpack.c.bf16 %v8440, %v8439
      %v8463 = vpack.c.bf16 %v8442, %v8441
      %v8464 = vpack.c.bf16 %v8444, %v8443
      %v8465 = vpack.c.bf16 %v8446, %v8445
      %v8466 = vpack.c.bf16 %v8448, %v8447
      %v8467 = vpack.c.bf16 %v8450, %v8449
      %v8468 = vpack.c.bf16 %v8452, %v8451
      %8469 = vst [vmem:[#allocation1] ss:$9 sm:$0xff] %v258
      %v8470 = vld [vmem:[#allocation1] sm:$0xff]
      %v8471 = vld [vmem:[#allocation1 + $0x9] sm:$0xff]
      %8474 = vmatpush.bf16.msra.mxu0 %v8460
      %8475 = vmatpush.bf16.msra.mxu0 %v8459
      %8476 = vmatpush.bf16.msra.mxu0 %v8458
      %8477 = vmatpush.bf16.msra.mxu0 %v8457
      %8478 = vmatpush.bf16.msra.mxu0 %v8456
      %8479 = vmatpush.bf16.msra.mxu0 %v8455
      %8480 = vmatpush.bf16.msra.mxu0 %v8454
      %8481 = vmatpush.bf16.msra.mxu0 %v8453
      %8482 = vmatmul.bf16.gmra.mxu0 %v8470
      %v8483 = vpop.f32.mrf.mxu0
      %v8484 = vadd.f32 0.0, %v8483
      %v8485 = vpop.f32.mrf.mxu0
      %8486 = vdwg.mxu0
      %8487 = vmatpush.bf16.msra.mxu0 %v8468
      %8488 = vmatpush.bf16.msra.mxu0 %v8467
      %8489 = vmatpush.bf16.msra.mxu0 %v8466
      %8490 = vmatpush.bf16.msra.mxu0 %v8465
      %8491 = vmatpush.bf16.msra.mxu0 %v8464
      %8492 = vmatpush.bf16.msra.mxu0 %v8463
      %8493 = vmatpush.bf16.msra.mxu0 %v8462
      %8494 = vmatpush.bf16.msra.mxu0 %v8461
      %8495 = vmatmul.bf16.gmra.mxu0 %v8471
      %v8496 = vpop.f32.mrf.mxu0
      %v8497 = vadd.f32 %v8484, %v8496
      %v8498 = vpop.f32.mrf.mxu0
      %8499 = vdwg.mxu0
      %s8500 = scalar_lea.vmem %s246, 3200
      %v8501 = vld [vmem:[%s8500] sm:$0xf]
      %v8502 = vld [vmem:[%s8500 + $0x4] sm:$0xf]
      %v8503 = vld [vmem:[%s8500 + $0x8] sm:$0xf]
      %v8504 = vld [vmem:[%s8500 + $0xc] sm:$0xf]
      %v8505 = vld [vmem:[%s8500 + $0x10] sm:$0xf]
      %v8506 = vld [vmem:[%s8500 + $0x14] sm:$0xf]
      %v8507 = vld [vmem:[%s8500 + $0x18] sm:$0xf]
      %v8508 = vld [vmem:[%s8500 + $0x1c] sm:$0xf]
      %v8509 = vld [vmem:[%s8500 + $0x20] sm:$0xf]
      %v8510 = vld [vmem:[%s8500 + $0x24] sm:$0xf]
      %v8511 = vld [vmem:[%s8500 + $0x28] sm:$0xf]
      %v8512 = vld [vmem:[%s8500 + $0x2c] sm:$0xf]
      %v8513 = vld [vmem:[%s8500 + $0x30] sm:$0xf]
      %v8514 = vld [vmem:[%s8500 + $0x34] sm:$0xf]
      %v8515 = vld [vmem:[%s8500 + $0x38] sm:$0xf]
      %v8516 = vld [vmem:[%s8500 + $0x3c] sm:$0xf]
      %v8517 = vld [vmem:[%s8500 + $0x40] sm:$0xf]
      %v8518 = vld [vmem:[%s8500 + $0x44] sm:$0xf]
      %v8519 = vld [vmem:[%s8500 + $0x48] sm:$0xf]
      %v8520 = vld [vmem:[%s8500 + $0x4c] sm:$0xf]
      %v8521 = vld [vmem:[%s8500 + $0x50] sm:$0xf]
      %v8522 = vld [vmem:[%s8500 + $0x54] sm:$0xf]
      %v8523 = vld [vmem:[%s8500 + $0x58] sm:$0xf]
      %v8524 = vld [vmem:[%s8500 + $0x5c] sm:$0xf]
      %v8525 = vld [vmem:[%s8500 + $0x60] sm:$0xf]
      %v8526 = vld [vmem:[%s8500 + $0x64] sm:$0xf]
      %v8527 = vld [vmem:[%s8500 + $0x68] sm:$0xf]
      %v8528 = vld [vmem:[%s8500 + $0x6c] sm:$0xf]
      %v8529 = vld [vmem:[%s8500 + $0x70] sm:$0xf]
      %v8530 = vld [vmem:[%s8500 + $0x74] sm:$0xf]
      %v8531 = vld [vmem:[%s8500 + $0x78] sm:$0xf]
      %v8532 = vld [vmem:[%s8500 + $0x7c] sm:$0xf]
      %v8565 = vunpack.c.l.b16 %v8501
      %v8566 = vunpack.c.l.b16 %v8502
      %v8567 = vunpack.c.l.b16 %v8503
      %v8568 = vunpack.c.l.b16 %v8504
      %v8569 = vunpack.c.l.b16 %v8505
      %v8570 = vunpack.c.l.b16 %v8506
      %v8571 = vunpack.c.l.b16 %v8507
      %v8572 = vunpack.c.l.b16 %v8508
      %v8573 = vunpack.c.l.b16 %v8509
      %v8574 = vunpack.c.l.b16 %v8510
      %v8575 = vunpack.c.l.b16 %v8511
      %v8576 = vunpack.c.l.b16 %v8512
      %v8577 = vunpack.c.l.b16 %v8513
      %v8578 = vunpack.c.l.b16 %v8514
      %v8579 = vunpack.c.l.b16 %v8515
      %v8580 = vunpack.c.l.b16 %v8516
      %v8581 = vunpack.c.l.b16 %v8517
      %v8582 = vunpack.c.l.b16 %v8518
      %v8583 = vunpack.c.l.b16 %v8519
      %v8584 = vunpack.c.l.b16 %v8520
      %v8585 = vunpack.c.l.b16 %v8521
      %v8586 = vunpack.c.l.b16 %v8522
      %v8587 = vunpack.c.l.b16 %v8523
      %v8588 = vunpack.c.l.b16 %v8524
      %v8589 = vunpack.c.l.b16 %v8525
      %v8590 = vunpack.c.l.b16 %v8526
      %v8591 = vunpack.c.l.b16 %v8527
      %v8592 = vunpack.c.l.b16 %v8528
      %v8593 = vunpack.c.l.b16 %v8529
      %v8594 = vunpack.c.l.b16 %v8530
      %v8595 = vunpack.c.l.b16 %v8531
      %v8596 = vunpack.c.l.b16 %v8532
      %v8597 = vpack.c.b16 %v8566, %v8565
      %v8598 = vpack.c.b16 %v8568, %v8567
      %v8599 = vpack.c.b16 %v8570, %v8569
      %v8600 = vpack.c.b16 %v8572, %v8571
      %v8601 = vpack.c.b16 %v8574, %v8573
      %v8602 = vpack.c.b16 %v8576, %v8575
      %v8603 = vpack.c.b16 %v8578, %v8577
      %v8604 = vpack.c.b16 %v8580, %v8579
      %v8605 = vpack.c.b16 %v8582, %v8581
      %v8606 = vpack.c.b16 %v8584, %v8583
      %v8607 = vpack.c.b16 %v8586, %v8585
      %v8608 = vpack.c.b16 %v8588, %v8587
      %v8609 = vpack.c.b16 %v8590, %v8589
      %v8610 = vpack.c.b16 %v8592, %v8591
      %v8611 = vpack.c.b16 %v8594, %v8593
      %v8612 = vpack.c.b16 %v8596, %v8595
      %v8614 = vsel %vm386, %v8597, 0
      %v8617 = vsel %vm386, %v8598, 0
      %v8620 = vsel %vm386, %v8599, 0
      %v8623 = vsel %vm386, %v8600, 0
      %v8626 = vsel %vm386, %v8601, 0
      %v8629 = vsel %vm386, %v8602, 0
      %v8632 = vsel %vm386, %v8603, 0
      %v8635 = vsel %vm386, %v8604, 0
      %v8638 = vsel %vm386, %v8605, 0
      %v8641 = vsel %vm386, %v8606, 0
      %v8644 = vsel %vm386, %v8607, 0
      %v8647 = vsel %vm386, %v8608, 0
      %v8650 = vsel %vm386, %v8609, 0
      %v8653 = vsel %vm386, %v8610, 0
      %v8656 = vsel %vm386, %v8611, 0
      %v8659 = vsel %vm386, %v8612, 0
      %8661 = vmatpush.bf16.msra.mxu0 0
      %8662 = vmatpush.bf16.msra.mxu0 0
      %8663 = vmatpush.bf16.msra.mxu0 0
      %8664 = vmatpush.bf16.msra.mxu0 0
      %8665 = vmatpush.bf16.msra.mxu0 0
      %8666 = vmatpush.bf16.msra.mxu0 0
      %8667 = vmatpush.bf16.msra.mxu0 %v383
      %8668 = vmatpush.bf16.msra.mxu0 %v382
      %8669 = vmatmul.bf16.gmra.mxu0 %v8614
      %v8670 = vpop.f32.mrf.mxu0
      %v8671 = vadd.f32 %v292, %v8670
      %v8672 = vpop.f32.mrf.mxu0
      %v8673 = vadd.f32 %v292, %v8672
      %8674 = vmatmul.bf16.gmra.mxu0 %v8617
      %v8675 = vpop.f32.mrf.mxu0
      %v8676 = vadd.f32 %v292, %v8675
      %v8677 = vpop.f32.mrf.mxu0
      %v8678 = vadd.f32 %v292, %v8677
      %8679 = vmatmul.bf16.gmra.mxu0 %v8620
      %v8680 = vpop.f32.mrf.mxu0
      %v8681 = vadd.f32 %v292, %v8680
      %v8682 = vpop.f32.mrf.mxu0
      %v8683 = vadd.f32 %v292, %v8682
      %8684 = vmatmul.bf16.gmra.mxu0 %v8623
      %v8685 = vpop.f32.mrf.mxu0
      %v8686 = vadd.f32 %v292, %v8685
      %v8687 = vpop.f32.mrf.mxu0
      %v8688 = vadd.f32 %v292, %v8687
      %8689 = vmatmul.bf16.gmra.mxu0 %v8626
      %v8690 = vpop.f32.mrf.mxu0
      %v8691 = vadd.f32 %v292, %v8690
      %v8692 = vpop.f32.mrf.mxu0
      %v8693 = vadd.f32 %v292, %v8692
      %8694 = vmatmul.bf16.gmra.mxu0 %v8629
      %v8695 = vpop.f32.mrf.mxu0
      %v8696 = vadd.f32 %v292, %v8695
      %v8697 = vpop.f32.mrf.mxu0
      %v8698 = vadd.f32 %v292, %v8697
      %8699 = vmatmul.bf16.gmra.mxu0 %v8632
      %v8700 = vpop.f32.mrf.mxu0
      %v8701 = vadd.f32 %v292, %v8700
      %v8702 = vpop.f32.mrf.mxu0
      %v8703 = vadd.f32 %v292, %v8702
      %8704 = vmatmul.bf16.gmra.mxu0 %v8635
      %v8705 = vpop.f32.mrf.mxu0
      %v8706 = vadd.f32 %v292, %v8705
      %v8707 = vpop.f32.mrf.mxu0
      %v8708 = vadd.f32 %v292, %v8707
      %8709 = vmatmul.bf16.gmra.mxu0 %v8638
      %v8710 = vpop.f32.mrf.mxu0
      %v8711 = vadd.f32 %v292, %v8710
      %v8712 = vpop.f32.mrf.mxu0
      %v8713 = vadd.f32 %v292, %v8712
      %8714 = vmatmul.bf16.gmra.mxu0 %v8641
      %v8715 = vpop.f32.mrf.mxu0
      %v8716 = vadd.f32 %v292, %v8715
      %v8717 = vpop.f32.mrf.mxu0
      %v8718 = vadd.f32 %v292, %v8717
      %8719 = vmatmul.bf16.gmra.mxu0 %v8644
      %v8720 = vpop.f32.mrf.mxu0
      %v8721 = vadd.f32 %v292, %v8720
      %v8722 = vpop.f32.mrf.mxu0
      %v8723 = vadd.f32 %v292, %v8722
      %8724 = vmatmul.bf16.gmra.mxu0 %v8647
      %v8725 = vpop.f32.mrf.mxu0
      %v8726 = vadd.f32 %v292, %v8725
      %v8727 = vpop.f32.mrf.mxu0
      %v8728 = vadd.f32 %v292, %v8727
      %8729 = vmatmul.bf16.gmra.mxu0 %v8650
      %v8730 = vpop.f32.mrf.mxu0
      %v8731 = vadd.f32 %v292, %v8730
      %v8732 = vpop.f32.mrf.mxu0
      %v8733 = vadd.f32 %v292, %v8732
      %8734 = vmatmul.bf16.gmra.mxu0 %v8653
      %v8735 = vpop.f32.mrf.mxu0
      %v8736 = vadd.f32 %v292, %v8735
      %v8737 = vpop.f32.mrf.mxu0
      %v8738 = vadd.f32 %v292, %v8737
      %8739 = vmatmul.bf16.gmra.mxu0 %v8656
      %v8740 = vpop.f32.mrf.mxu0
      %v8741 = vadd.f32 %v292, %v8740
      %v8742 = vpop.f32.mrf.mxu0
      %v8743 = vadd.f32 %v292, %v8742
      %8744 = vmatmul.bf16.gmra.mxu0 %v8659
      %v8745 = vpop.f32.mrf.mxu0
      %v8746 = vadd.f32 %v292, %v8745
      %v8747 = vpop.f32.mrf.mxu0
      %v8748 = vadd.f32 %v292, %v8747
      %8749 = vdwg.mxu0
      %v8750 = vmax.f32 %v8671, 0.0
      %v8751 = vmax.f32 %v8673, 0.0
      %v8752 = vmax.f32 %v8676, 0.0
      %v8753 = vmax.f32 %v8678, 0.0
      %v8754 = vmax.f32 %v8681, 0.0
      %v8755 = vmax.f32 %v8683, 0.0
      %v8756 = vmax.f32 %v8686, 0.0
      %v8757 = vmax.f32 %v8688, 0.0
      %v8758 = vmax.f32 %v8691, 0.0
      %v8759 = vmax.f32 %v8693, 0.0
      %v8760 = vmax.f32 %v8696, 0.0
      %v8761 = vmax.f32 %v8698, 0.0
      %v8762 = vmax.f32 %v8701, 0.0
      %v8763 = vmax.f32 %v8703, 0.0
      %v8764 = vmax.f32 %v8706, 0.0
      %v8765 = vmax.f32 %v8708, 0.0
      %v8766 = vmax.f32 %v8711, 0.0
      %v8767 = vmax.f32 %v8713, 0.0
      %v8768 = vmax.f32 %v8716, 0.0
      %v8769 = vmax.f32 %v8718, 0.0
      %v8770 = vmax.f32 %v8721, 0.0
      %v8771 = vmax.f32 %v8723, 0.0
      %v8772 = vmax.f32 %v8726, 0.0
      %v8773 = vmax.f32 %v8728, 0.0
      %v8774 = vmax.f32 %v8731, 0.0
      %v8775 = vmax.f32 %v8733, 0.0
      %v8776 = vmax.f32 %v8736, 0.0
      %v8777 = vmax.f32 %v8738, 0.0
      %v8778 = vmax.f32 %v8741, 0.0
      %v8779 = vmax.f32 %v8743, 0.0
      %v8780 = vmax.f32 %v8746, 0.0
      %v8781 = vmax.f32 %v8748, 0.0
      %v8782 = vpack.c.bf16 %v8751, %v8750
      %v8783 = vpack.c.bf16 %v8753, %v8752
      %v8784 = vpack.c.bf16 %v8755, %v8754
      %v8785 = vpack.c.bf16 %v8757, %v8756
      %v8786 = vpack.c.bf16 %v8759, %v8758
      %v8787 = vpack.c.bf16 %v8761, %v8760
      %v8788 = vpack.c.bf16 %v8763, %v8762
      %v8789 = vpack.c.bf16 %v8765, %v8764
      %v8790 = vpack.c.bf16 %v8767, %v8766
      %v8791 = vpack.c.bf16 %v8769, %v8768
      %v8792 = vpack.c.bf16 %v8771, %v8770
      %v8793 = vpack.c.bf16 %v8773, %v8772
      %v8794 = vpack.c.bf16 %v8775, %v8774
      %v8795 = vpack.c.bf16 %v8777, %v8776
      %v8796 = vpack.c.bf16 %v8779, %v8778
      %v8797 = vpack.c.bf16 %v8781, %v8780
      %8798 = vst [vmem:[#allocation1] ss:$9 sm:$0xff] %v258
      %v8799 = vld [vmem:[#allocation1] sm:$0xff]
      %v8800 = vld [vmem:[#allocation1 + $0x9] sm:$0xff]
      %8803 = vmatpush.bf16.msra.mxu0 %v8789
      %8804 = vmatpush.bf16.msra.mxu0 %v8788
      %8805 = vmatpush.bf16.msra.mxu0 %v8787
      %8806 = vmatpush.bf16.msra.mxu0 %v8786
      %8807 = vmatpush.bf16.msra.mxu0 %v8785
      %8808 = vmatpush.bf16.msra.mxu0 %v8784
      %8809 = vmatpush.bf16.msra.mxu0 %v8783
      %8810 = vmatpush.bf16.msra.mxu0 %v8782
      %8811 = vmatmul.bf16.gmra.mxu0 %v8799
      %v8812 = vpop.f32.mrf.mxu0
      %v8813 = vadd.f32 0.0, %v8812
      %v8814 = vpop.f32.mrf.mxu0
      %8815 = vdwg.mxu0
      %8816 = vmatpush.bf16.msra.mxu0 %v8797
      %8817 = vmatpush.bf16.msra.mxu0 %v8796
      %8818 = vmatpush.bf16.msra.mxu0 %v8795
      %8819 = vmatpush.bf16.msra.mxu0 %v8794
      %8820 = vmatpush.bf16.msra.mxu0 %v8793
      %8821 = vmatpush.bf16.msra.mxu0 %v8792
      %8822 = vmatpush.bf16.msra.mxu0 %v8791
      %8823 = vmatpush.bf16.msra.mxu0 %v8790
      %8824 = vmatmul.bf16.gmra.mxu0 %v8800
      %v8825 = vpop.f32.mrf.mxu0
      %v8826 = vadd.f32 %v8813, %v8825
      %v8827 = vpop.f32.mrf.mxu0
      %8828 = vdwg.mxu0
      %s8829 = scalar_lea.vmem %s246, 3328
      %v8830 = vld [vmem:[%s8829] sm:$0xf]
      %v8831 = vld [vmem:[%s8829 + $0x4] sm:$0xf]
      %v8832 = vld [vmem:[%s8829 + $0x8] sm:$0xf]
      %v8833 = vld [vmem:[%s8829 + $0xc] sm:$0xf]
      %v8834 = vld [vmem:[%s8829 + $0x10] sm:$0xf]
      %v8835 = vld [vmem:[%s8829 + $0x14] sm:$0xf]
      %v8836 = vld [vmem:[%s8829 + $0x18] sm:$0xf]
      %v8837 = vld [vmem:[%s8829 + $0x1c] sm:$0xf]
      %v8838 = vld [vmem:[%s8829 + $0x20] sm:$0xf]
      %v8839 = vld [vmem:[%s8829 + $0x24] sm:$0xf]
      %v8840 = vld [vmem:[%s8829 + $0x28] sm:$0xf]
      %v8841 = vld [vmem:[%s8829 + $0x2c] sm:$0xf]
      %v8842 = vld [vmem:[%s8829 + $0x30] sm:$0xf]
      %v8843 = vld [vmem:[%s8829 + $0x34] sm:$0xf]
      %v8844 = vld [vmem:[%s8829 + $0x38] sm:$0xf]
      %v8845 = vld [vmem:[%s8829 + $0x3c] sm:$0xf]
      %v8846 = vld [vmem:[%s8829 + $0x40] sm:$0xf]
      %v8847 = vld [vmem:[%s8829 + $0x44] sm:$0xf]
      %v8848 = vld [vmem:[%s8829 + $0x48] sm:$0xf]
      %v8849 = vld [vmem:[%s8829 + $0x4c] sm:$0xf]
      %v8850 = vld [vmem:[%s8829 + $0x50] sm:$0xf]
      %v8851 = vld [vmem:[%s8829 + $0x54] sm:$0xf]
      %v8852 = vld [vmem:[%s8829 + $0x58] sm:$0xf]
      %v8853 = vld [vmem:[%s8829 + $0x5c] sm:$0xf]
      %v8854 = vld [vmem:[%s8829 + $0x60] sm:$0xf]
      %v8855 = vld [vmem:[%s8829 + $0x64] sm:$0xf]
      %v8856 = vld [vmem:[%s8829 + $0x68] sm:$0xf]
      %v8857 = vld [vmem:[%s8829 + $0x6c] sm:$0xf]
      %v8858 = vld [vmem:[%s8829 + $0x70] sm:$0xf]
      %v8859 = vld [vmem:[%s8829 + $0x74] sm:$0xf]
      %v8860 = vld [vmem:[%s8829 + $0x78] sm:$0xf]
      %v8861 = vld [vmem:[%s8829 + $0x7c] sm:$0xf]
      %v8894 = vunpack.c.l.b16 %v8830
      %v8895 = vunpack.c.l.b16 %v8831
      %v8896 = vunpack.c.l.b16 %v8832
      %v8897 = vunpack.c.l.b16 %v8833
      %v8898 = vunpack.c.l.b16 %v8834
      %v8899 = vunpack.c.l.b16 %v8835
      %v8900 = vunpack.c.l.b16 %v8836
      %v8901 = vunpack.c.l.b16 %v8837
      %v8902 = vunpack.c.l.b16 %v8838
      %v8903 = vunpack.c.l.b16 %v8839
      %v8904 = vunpack.c.l.b16 %v8840
      %v8905 = vunpack.c.l.b16 %v8841
      %v8906 = vunpack.c.l.b16 %v8842
      %v8907 = vunpack.c.l.b16 %v8843
      %v8908 = vunpack.c.l.b16 %v8844
      %v8909 = vunpack.c.l.b16 %v8845
      %v8910 = vunpack.c.l.b16 %v8846
      %v8911 = vunpack.c.l.b16 %v8847
      %v8912 = vunpack.c.l.b16 %v8848
      %v8913 = vunpack.c.l.b16 %v8849
      %v8914 = vunpack.c.l.b16 %v8850
      %v8915 = vunpack.c.l.b16 %v8851
      %v8916 = vunpack.c.l.b16 %v8852
      %v8917 = vunpack.c.l.b16 %v8853
      %v8918 = vunpack.c.l.b16 %v8854
      %v8919 = vunpack.c.l.b16 %v8855
      %v8920 = vunpack.c.l.b16 %v8856
      %v8921 = vunpack.c.l.b16 %v8857
      %v8922 = vunpack.c.l.b16 %v8858
      %v8923 = vunpack.c.l.b16 %v8859
      %v8924 = vunpack.c.l.b16 %v8860
      %v8925 = vunpack.c.l.b16 %v8861
      %v8926 = vpack.c.b16 %v8895, %v8894
      %v8927 = vpack.c.b16 %v8897, %v8896
      %v8928 = vpack.c.b16 %v8899, %v8898
      %v8929 = vpack.c.b16 %v8901, %v8900
      %v8930 = vpack.c.b16 %v8903, %v8902
      %v8931 = vpack.c.b16 %v8905, %v8904
      %v8932 = vpack.c.b16 %v8907, %v8906
      %v8933 = vpack.c.b16 %v8909, %v8908
      %v8934 = vpack.c.b16 %v8911, %v8910
      %v8935 = vpack.c.b16 %v8913, %v8912
      %v8936 = vpack.c.b16 %v8915, %v8914
      %v8937 = vpack.c.b16 %v8917, %v8916
      %v8938 = vpack.c.b16 %v8919, %v8918
      %v8939 = vpack.c.b16 %v8921, %v8920
      %v8940 = vpack.c.b16 %v8923, %v8922
      %v8941 = vpack.c.b16 %v8925, %v8924
      %v8943 = vsel %vm386, %v8926, 0
      %v8946 = vsel %vm386, %v8927, 0
      %v8949 = vsel %vm386, %v8928, 0
      %v8952 = vsel %vm386, %v8929, 0
      %v8955 = vsel %vm386, %v8930, 0
      %v8958 = vsel %vm386, %v8931, 0
      %v8961 = vsel %vm386, %v8932, 0
      %v8964 = vsel %vm386, %v8933, 0
      %v8967 = vsel %vm386, %v8934, 0
      %v8970 = vsel %vm386, %v8935, 0
      %v8973 = vsel %vm386, %v8936, 0
      %v8976 = vsel %vm386, %v8937, 0
      %v8979 = vsel %vm386, %v8938, 0
      %v8982 = vsel %vm386, %v8939, 0
      %v8985 = vsel %vm386, %v8940, 0
      %v8988 = vsel %vm386, %v8941, 0
      %8990 = vmatpush.bf16.msra.mxu0 0
      %8991 = vmatpush.bf16.msra.mxu0 0
      %8992 = vmatpush.bf16.msra.mxu0 0
      %8993 = vmatpush.bf16.msra.mxu0 0
      %8994 = vmatpush.bf16.msra.mxu0 0
      %8995 = vmatpush.bf16.msra.mxu0 0
      %8996 = vmatpush.bf16.msra.mxu0 %v383
      %8997 = vmatpush.bf16.msra.mxu0 %v382
      %8998 = vmatmul.bf16.gmra.mxu0 %v8943
      %v8999 = vpop.f32.mrf.mxu0
      %v9000 = vadd.f32 %v292, %v8999
      %v9001 = vpop.f32.mrf.mxu0
      %v9002 = vadd.f32 %v292, %v9001
      %9003 = vmatmul.bf16.gmra.mxu0 %v8946
      %v9004 = vpop.f32.mrf.mxu0
      %v9005 = vadd.f32 %v292, %v9004
      %v9006 = vpop.f32.mrf.mxu0
      %v9007 = vadd.f32 %v292, %v9006
      %9008 = vmatmul.bf16.gmra.mxu0 %v8949
      %v9009 = vpop.f32.mrf.mxu0
      %v9010 = vadd.f32 %v292, %v9009
      %v9011 = vpop.f32.mrf.mxu0
      %v9012 = vadd.f32 %v292, %v9011
      %9013 = vmatmul.bf16.gmra.mxu0 %v8952
      %v9014 = vpop.f32.mrf.mxu0
      %v9015 = vadd.f32 %v292, %v9014
      %v9016 = vpop.f32.mrf.mxu0
      %v9017 = vadd.f32 %v292, %v9016
      %9018 = vmatmul.bf16.gmra.mxu0 %v8955
      %v9019 = vpop.f32.mrf.mxu0
      %v9020 = vadd.f32 %v292, %v9019
      %v9021 = vpop.f32.mrf.mxu0
      %v9022 = vadd.f32 %v292, %v9021
      %9023 = vmatmul.bf16.gmra.mxu0 %v8958
      %v9024 = vpop.f32.mrf.mxu0
      %v9025 = vadd.f32 %v292, %v9024
      %v9026 = vpop.f32.mrf.mxu0
      %v9027 = vadd.f32 %v292, %v9026
      %9028 = vmatmul.bf16.gmra.mxu0 %v8961
      %v9029 = vpop.f32.mrf.mxu0
      %v9030 = vadd.f32 %v292, %v9029
      %v9031 = vpop.f32.mrf.mxu0
      %v9032 = vadd.f32 %v292, %v9031
      %9033 = vmatmul.bf16.gmra.mxu0 %v8964
      %v9034 = vpop.f32.mrf.mxu0
      %v9035 = vadd.f32 %v292, %v9034
      %v9036 = vpop.f32.mrf.mxu0
      %v9037 = vadd.f32 %v292, %v9036
      %9038 = vmatmul.bf16.gmra.mxu0 %v8967
      %v9039 = vpop.f32.mrf.mxu0
      %v9040 = vadd.f32 %v292, %v9039
      %v9041 = vpop.f32.mrf.mxu0
      %v9042 = vadd.f32 %v292, %v9041
      %9043 = vmatmul.bf16.gmra.mxu0 %v8970
      %v9044 = vpop.f32.mrf.mxu0
      %v9045 = vadd.f32 %v292, %v9044
      %v9046 = vpop.f32.mrf.mxu0
      %v9047 = vadd.f32 %v292, %v9046
      %9048 = vmatmul.bf16.gmra.mxu0 %v8973
      %v9049 = vpop.f32.mrf.mxu0
      %v9050 = vadd.f32 %v292, %v9049
      %v9051 = vpop.f32.mrf.mxu0
      %v9052 = vadd.f32 %v292, %v9051
      %9053 = vmatmul.bf16.gmra.mxu0 %v8976
      %v9054 = vpop.f32.mrf.mxu0
      %v9055 = vadd.f32 %v292, %v9054
      %v9056 = vpop.f32.mrf.mxu0
      %v9057 = vadd.f32 %v292, %v9056
      %9058 = vmatmul.bf16.gmra.mxu0 %v8979
      %v9059 = vpop.f32.mrf.mxu0
      %v9060 = vadd.f32 %v292, %v9059
      %v9061 = vpop.f32.mrf.mxu0
      %v9062 = vadd.f32 %v292, %v9061
      %9063 = vmatmul.bf16.gmra.mxu0 %v8982
      %v9064 = vpop.f32.mrf.mxu0
      %v9065 = vadd.f32 %v292, %v9064
      %v9066 = vpop.f32.mrf.mxu0
      %v9067 = vadd.f32 %v292, %v9066
      %9068 = vmatmul.bf16.gmra.mxu0 %v8985
      %v9069 = vpop.f32.mrf.mxu0
      %v9070 = vadd.f32 %v292, %v9069
      %v9071 = vpop.f32.mrf.mxu0
      %v9072 = vadd.f32 %v292, %v9071
      %9073 = vmatmul.bf16.gmra.mxu0 %v8988
      %v9074 = vpop.f32.mrf.mxu0
      %v9075 = vadd.f32 %v292, %v9074
      %v9076 = vpop.f32.mrf.mxu0
      %v9077 = vadd.f32 %v292, %v9076
      %9078 = vdwg.mxu0
      %v9079 = vmax.f32 %v9000, 0.0
      %v9080 = vmax.f32 %v9002, 0.0
      %v9081 = vmax.f32 %v9005, 0.0
      %v9082 = vmax.f32 %v9007, 0.0
      %v9083 = vmax.f32 %v9010, 0.0
      %v9084 = vmax.f32 %v9012, 0.0
      %v9085 = vmax.f32 %v9015, 0.0
      %v9086 = vmax.f32 %v9017, 0.0
      %v9087 = vmax.f32 %v9020, 0.0
      %v9088 = vmax.f32 %v9022, 0.0
      %v9089 = vmax.f32 %v9025, 0.0
      %v9090 = vmax.f32 %v9027, 0.0
      %v9091 = vmax.f32 %v9030, 0.0
      %v9092 = vmax.f32 %v9032, 0.0
      %v9093 = vmax.f32 %v9035, 0.0
      %v9094 = vmax.f32 %v9037, 0.0
      %v9095 = vmax.f32 %v9040, 0.0
      %v9096 = vmax.f32 %v9042, 0.0
      %v9097 = vmax.f32 %v9045, 0.0
      %v9098 = vmax.f32 %v9047, 0.0
      %v9099 = vmax.f32 %v9050, 0.0
      %v9100 = vmax.f32 %v9052, 0.0
      %v9101 = vmax.f32 %v9055, 0.0
      %v9102 = vmax.f32 %v9057, 0.0
      %v9103 = vmax.f32 %v9060, 0.0
      %v9104 = vmax.f32 %v9062, 0.0
      %v9105 = vmax.f32 %v9065, 0.0
      %v9106 = vmax.f32 %v9067, 0.0
      %v9107 = vmax.f32 %v9070, 0.0
      %v9108 = vmax.f32 %v9072, 0.0
      %v9109 = vmax.f32 %v9075, 0.0
      %v9110 = vmax.f32 %v9077, 0.0
      %v9111 = vpack.c.bf16 %v9080, %v9079
      %v9112 = vpack.c.bf16 %v9082, %v9081
      %v9113 = vpack.c.bf16 %v9084, %v9083
      %v9114 = vpack.c.bf16 %v9086, %v9085
      %v9115 = vpack.c.bf16 %v9088, %v9087
      %v9116 = vpack.c.bf16 %v9090, %v9089
      %v9117 = vpack.c.bf16 %v9092, %v9091
      %v9118 = vpack.c.bf16 %v9094, %v9093
      %v9119 = vpack.c.bf16 %v9096, %v9095
      %v9120 = vpack.c.bf16 %v9098, %v9097
      %v9121 = vpack.c.bf16 %v9100, %v9099
      %v9122 = vpack.c.bf16 %v9102, %v9101
      %v9123 = vpack.c.bf16 %v9104, %v9103
      %v9124 = vpack.c.bf16 %v9106, %v9105
      %v9125 = vpack.c.bf16 %v9108, %v9107
      %v9126 = vpack.c.bf16 %v9110, %v9109
      %9127 = vst [vmem:[#allocation1] ss:$9 sm:$0xff] %v258
      %v9128 = vld [vmem:[#allocation1] sm:$0xff]
      %v9129 = vld [vmem:[#allocation1 + $0x9] sm:$0xff]
      %9132 = vmatpush.bf16.msra.mxu0 %v9118
      %9133 = vmatpush.bf16.msra.mxu0 %v9117
      %9134 = vmatpush.bf16.msra.mxu0 %v9116
      %9135 = vmatpush.bf16.msra.mxu0 %v9115
      %9136 = vmatpush.bf16.msra.mxu0 %v9114
      %9137 = vmatpush.bf16.msra.mxu0 %v9113
      %9138 = vmatpush.bf16.msra.mxu0 %v9112
      %9139 = vmatpush.bf16.msra.mxu0 %v9111
      %9140 = vmatmul.bf16.gmra.mxu0 %v9128
      %v9141 = vpop.f32.mrf.mxu0
      %v9142 = vadd.f32 0.0, %v9141
      %v9143 = vpop.f32.mrf.mxu0
      %9144 = vdwg.mxu0
      %9145 = vmatpush.bf16.msra.mxu0 %v9126
      %9146 = vmatpush.bf16.msra.mxu0 %v9125
      %9147 = vmatpush.bf16.msra.mxu0 %v9124
      %9148 = vmatpush.bf16.msra.mxu0 %v9123
      %9149 = vmatpush.bf16.msra.mxu0 %v9122
      %9150 = vmatpush.bf16.msra.mxu0 %v9121
      %9151 = vmatpush.bf16.msra.mxu0 %v9120
      %9152 = vmatpush.bf16.msra.mxu0 %v9119
      %9153 = vmatmul.bf16.gmra.mxu0 %v9129
      %v9154 = vpop.f32.mrf.mxu0
      %v9155 = vadd.f32 %v9142, %v9154
      %v9156 = vpop.f32.mrf.mxu0
      %9157 = vdwg.mxu0
      %v9159 = vrot.slane %v930, 7
      %v9162 = vrot.slane %v1259, 6
      %v9165 = vrot.slane %v1588, 5
      %v9168 = vrot.slane %v1917, 4
      %v9171 = vrot.slane %v2246, 3
      %v9174 = vrot.slane %v2575, 2
      %v9177 = vrot.slane %v2904, 1
      %v9180 = vrot.slane %v3562, 7
      %v9183 = vrot.slane %v3891, 6
      %v9186 = vrot.slane %v4220, 5
      %v9189 = vrot.slane %v4549, 4
      %v9192 = vrot.slane %v4878, 3
      %v9195 = vrot.slane %v5207, 2
      %v9198 = vrot.slane %v5536, 1
      %vm9200 = vcmask 1040384
      %v9201 = vsel %vm9200, %v601, %v9159
      %vm9202 = vcmask 1041408
      %v9203 = vsel %vm9202, %v9201, %v9162
      %vm9204 = vcmask 1042432
      %v9205 = vsel %vm9204, %v9203, %v9165
      %vm9206 = vcmask 1043456
      %v9207 = vsel %vm9206, %v9205, %v9168
      %vm9208 = vcmask 1044480
      %v9209 = vsel %vm9208, %v9207, %v9171
      %vm9210 = vcmask 1045504
      %v9211 = vsel %vm9210, %v9209, %v9174
      %vm9212 = vcmask 1046528
      %v9213 = vsel %vm9212, %v9211, %v9177
      %v9214 = vsel %vm9200, %v3233, %v9180
      %v9215 = vsel %vm9202, %v9214, %v9183
      %v9216 = vsel %vm9204, %v9215, %v9186
      %v9217 = vsel %vm9206, %v9216, %v9189
      %v9218 = vsel %vm9208, %v9217, %v9192
      %v9219 = vsel %vm9210, %v9218, %v9195
      %v9220 = vsel %vm9212, %v9219, %v9198
      %v9222 = vrot.slane %v6194, 7
      %v9225 = vrot.slane %v6523, 6
      %v9228 = vrot.slane %v6852, 5
      %v9231 = vrot.slane %v7181, 4
      %v9234 = vrot.slane %v7510, 3
      %v9237 = vrot.slane %v7839, 2
      %v9240 = vrot.slane %v8168, 1
      %v9243 = vrot.slane %v8826, 7
      %v9246 = vrot.slane %v9155, 6
      %v9248 = vsel %vm9200, %v5865, %v9222
      %v9249 = vsel %vm9202, %v9248, %v9225
      %v9250 = vsel %vm9204, %v9249, %v9228
      %v9251 = vsel %vm9206, %v9250, %v9231
      %v9252 = vsel %vm9208, %v9251, %v9234
      %v9253 = vsel %vm9210, %v9252, %v9237
      %v9254 = vsel %vm9212, %v9253, %v9240
      %v9255 = vsel %vm9200, %v8497, %v9243
      %v9256 = vsel %vm9202, %v9255, %v9246
      %v9257 = vpack.c.bf16 %v9220, %v9213
      %v9258 = vpack.c.bf16 %v9256, %v9254
      %v9259 = vld [vmem:[%s4] sm:$0xf]
      %v9260 = vld [vmem:[%s4 + $0x4] sm:$0xf]
      %v9261 = vld [vmem:[%s4 + $0x8] sm:$0xf]
      %v9262 = vld [vmem:[%s4 + $0xc] sm:$0xf]
      %v9263 = vld [vmem:[%s4 + $0x10] sm:$0xf]
      %v9264 = vld [vmem:[%s4 + $0x14] sm:$0xf]
      %v9265 = vld [vmem:[%s4 + $0x18] sm:$0xf]
      %v9266 = vld [vmem:[%s4 + $0x1c] sm:$0xf]
      %v9267 = vld [vmem:[%s4 + $0x20] sm:$0xf]
      %v9268 = vld [vmem:[%s4 + $0x24] sm:$0xf]
      %v9269 = vld [vmem:[%s4 + $0x28] sm:$0xf]
      %v9270 = vld [vmem:[%s4 + $0x2c] sm:$0xf]
      %v9271 = vld [vmem:[%s4 + $0x30] sm:$0xf]
      %v9272 = vld [vmem:[%s4 + $0x34] sm:$0xf]
      %v9273 = vld [vmem:[%s4 + $0x38] sm:$0xf]
      %v9274 = vld [vmem:[%s4 + $0x3c] sm:$0xf]
      %v9275 = vld [vmem:[%s5] sm:$0x1]
      %v9277 = vperm.slane %v9275, 0
      %v9295 = vunpack.c.l.b16 %v9259
      %v9296 = vunpack.c.l.b16 %v9260
      %v9297 = vunpack.c.l.b16 %v9261
      %v9298 = vunpack.c.l.b16 %v9262
      %v9299 = vunpack.c.l.b16 %v9263
      %v9300 = vunpack.c.l.b16 %v9264
      %v9301 = vunpack.c.l.b16 %v9265
      %v9302 = vunpack.c.l.b16 %v9266
      %v9303 = vunpack.c.l.b16 %v9267
      %v9304 = vunpack.c.l.b16 %v9268
      %v9305 = vunpack.c.l.b16 %v9269
      %v9306 = vunpack.c.l.b16 %v9270
      %v9307 = vunpack.c.l.b16 %v9271
      %v9308 = vunpack.c.l.b16 %v9272
      %v9309 = vunpack.c.l.b16 %v9273
      %v9310 = vunpack.c.l.b16 %v9274
      %v9311 = vpack.c.b16 %v9296, %v9295
      %v9312 = vpack.c.b16 %v9298, %v9297
      %v9313 = vpack.c.b16 %v9300, %v9299
      %v9314 = vpack.c.b16 %v9302, %v9301
      %v9315 = vpack.c.b16 %v9304, %v9303
      %v9316 = vpack.c.b16 %v9306, %v9305
      %v9317 = vpack.c.b16 %v9308, %v9307
      %v9318 = vpack.c.b16 %v9310, %v9309
      %9327 = vmatpush.bf16.msra.mxu0 %v9318
      %9328 = vmatpush.bf16.msra.mxu0 %v9317
      %9329 = vmatpush.bf16.msra.mxu0 %v9316
      %9330 = vmatpush.bf16.msra.mxu0 %v9315
      %9331 = vmatpush.bf16.msra.mxu0 %v9314
      %9332 = vmatpush.bf16.msra.mxu0 %v9313
      %9333 = vmatpush.bf16.msra.mxu0 %v9312
      %9334 = vmatpush.bf16.msra.mxu0 %v9311
      %9335 = vmatmul.bf16.gmra.mxu0 %v9257
      %v9336 = vpop.f32.mrf.mxu0
      %v9337 = vadd.f32 %v9277, %v9336
      %v9338 = vpop.f32.mrf.mxu0
      %v9339 = vadd.f32 %v9277, %v9338
      %9340 = vmatmul.bf16.gmra.mxu0 %v9258
      %v9341 = vpop.f32.mrf.mxu0
      %v9342 = vadd.f32 %v9277, %v9341
      %v9343 = vpop.f32.mrf.mxu0
      %v9344 = vadd.f32 %v9277, %v9343
      %9345 = vdwg.mxu0
      %9346 = vst [vmem:[%s251] sm:$0xff] %v9337
      %9347 = vst [vmem:[%s251 + $0x8] sm:$0xff] %v9339
      %9348 = vst [vmem:[%s251 + $0x10] sm:$0xff] %v9342
      %9349 = vst [vmem:[%s251 + $0x18] sm:$0x7] %v9344
      %p9350 = scmp.lt.s32.totalorder %s17, 1
      %s9351 = scalar_select %p9350, %s17, 1
      %s9352 = smul.addr %s9351, 4
      %s9353 = smul.addr %s9352, 8
      %s9354 = scalar_lea.vmem %s6, %s9353
      // Predicated region
      $region45: #{_lambda_.2} parent=43 // pred_check
        %p9355 = pneg %p166
      $region46: #{_lambda_.2} parent=43 // pred_check_branch
        %9357 = sbr.rel (%p9355) target = $region48
      $region47: #{_lambda_.2} parent=43 // pred_region
        _
      $region48: #{_lambda_.2} parent=43 // pred_fallthru
        _
    $region44: #{_lambda_.2} parent=5 // pred_fallthru
      _
    %p9358 = scmp.le.s32.totalorder 2, %s12
    // Predicated region
    $region49: #{_lambda_.2} parent=5 // pred_check
      %p9359 = pneg %p9358
    $region50: #{_lambda_.2} parent=5 // pred_check_branch
      %9361 = sbr.rel (%p9359) target = $region52
    $region51: #{_lambda_.2} parent=5 // pred_region
      %s9362 = ssub.s32 %s12, 2
      // Predicated region
      $region53: #{_lambda_.2} parent=51 // pred_check
        %p9363 = pneg %p172
      $region54: #{_lambda_.2} parent=51 // pred_check_branch
        %9365 = sbr.rel (%p9363) target = $region56
      $region55: #{_lambda_.2} parent=51 // pred_region
        %p9366 = scmp.lt.s32.totalorder %s18, 1
        %s9367 = scalar_select %p9366, %s18, 1
        %s9368 = smul.addr %s9367, 4
        %s9369 = smul.addr %s9368, 8
        %s9370 = scalar_lea.vmem %s6, %s9369
      $region56: #{_lambda_.2} parent=51 // pred_fallthru
        _
    $region52: #{_lambda_.2} parent=5 // pred_fallthru
      _
  $region6: #{_lambda_.2} parent=0 // loop_footer
    %s16 = sadd.s32 1, %s12
  $region7: #{_lambda_.2} parent=0 // loop_footer_branch
    %11 = sbr.rel target = $region3
  $region8: #{_lambda_.2} parent=0 // loop_exit
    _

</llo_original>
